<compile_context>
chip_gen: v7x
topology: tpu7x:2x2x1
jax: 0.10.0
libtpu: 0.0.40
codegen_flags: <defaults>
</compile_context>

<pallas_src>
import functools
import math

import jax
import jax.numpy as jnp
from jax.experimental import pallas as pl
from jax.experimental.pallas import tpu as pltpu

EPS = 1e-5            # nn.LayerNorm default eps
LEAKY_SLOPE = 0.2     # nn.LeakyReLU(0.2)

# Matmul operand dtype.  jnp.bfloat16 halves weight DMA/VMEM residency and
# doubles MXU throughput (accumulation stays f32 via preferred_element_type);
# float32 is kept here so numerics match the f32 PyTorch module.
MATMUL_DTYPE = jnp.float32


# ----------------------------------------------------------------------------
# capability probe: single-buffered constant blocks (pipeline_mode=Buffered(1))
# ----------------------------------------------------------------------------
def _probe_single_buffered_constants():
    """Constant-index weight blocks never need a second pipeline buffer;
    pl.Buffered(1) halves their VMEM footprint (decisive on v7x's 64 MiB VMEM
    and v5e's small scoped default).  Probe once so we fall back cleanly on
    runtimes whose Pallas does not support pipeline_mode."""
    if not hasattr(pl, "Buffered"):
        return False
    try:
        def _k(x_ref, o_ref):
            o_ref[...] = x_ref[...] + 1.0

        f = pl.pallas_call(
            _k,
            grid=(2,),
            in_specs=[pl.BlockSpec((8, 128), lambda i: (0, 0),
                                   pipeline_mode=pl.Buffered(1))],
            out_specs=pl.BlockSpec((8, 128), lambda i: (0, 0)),
            out_shape=jax.ShapeDtypeStruct((8, 128), jnp.float32),
        )
        jax.block_until_ready(f(jnp.zeros((8, 128), jnp.float32)))
        return True
    except Exception:
        return False


_SINGLE_BUFFER_CONSTS = _probe_single_buffered_constants()


# ----------------------------------------------------------------------------
# small helpers
# ----------------------------------------------------------------------------
def _wcast(w):
    return w.astype(MATMUL_DTYPE)


def _mm(a, b):
    """MXU matmul with f32 accumulation; operands cast to MATMUL_DTYPE."""
    return jnp.dot(a.astype(MATMUL_DTYPE), b.astype(MATMUL_DTYPE),
                   preferred_element_type=jnp.float32)


def _layer_norm(x, g, b):
    mu = jnp.mean(x, axis=-1, keepdims=True)
    var = jnp.mean((x - mu) ** 2, axis=-1, keepdims=True)   # biased, like PyTorch
    return (x - mu) * jax.lax.rsqrt(var + EPS) * g + b


def _gelu(x):
    # exact (erf) GELU == torch.nn.GELU default
    return 0.5 * x * (1.0 + jax.lax.erf(x * (1.0 / math.sqrt(2.0))))


def _leaky(x):
    return jnp.where(x >= 0, x, LEAKY_SLOPE * x)


def _bytes(*arrs):
    return sum(int(a.size) * a.dtype.itemsize for a in arrs)


def _mosaic_params(resident_bytes, semantics):
    """Explicit scoped-VMEM limit sized from the resident set with headroom,
    clamped so it stays legal on v7x (64 MiB physical VMEM)."""
    limit = int(min(max(int(resident_bytes) + (16 << 20), 32 << 20), 64 << 20))
    return pltpu.CompilerParams(dimension_semantics=semantics,
                                vmem_limit_bytes=limit)


def _const_spec(shape):
    """Whole-array block, constant across the grid (weights / biases).
    Single-buffered when the installed Pallas supports pipeline_mode."""
    idx = lambda *_: (0,) * len(shape)
    if _SINGLE_BUFFER_CONSTS:
        return pl.BlockSpec(shape, idx, pipeline_mode=pl.Buffered(1))
    return pl.BlockSpec(shape, idx)


def _row_tile(m):
    """Largest sublane-dense row tile that still gives >= 2 grid steps."""
    for cand in (512, 256, 128, 64, 32, 16, 8):
        if m % cand == 0 and m // cand >= 2:
            return cand
    return m


def _col_tile(n):
    """Lane-dense output-column tile (multiple of 128) or the full width."""
    for cand in (2048, 1024, 512, 256, 128):
        if n % cand == 0:
            return cand
    return n


def _samples_per_block(bs, n_tok):
    """Smallest samples-per-grid-step with sublane-dense rows (% 8 == 0) and
    >= 2 grid steps (deeper pipeline, second TensorCore on v7x).  Attention is
    per-sample batched, so small tiles cost nothing extra."""
    for cand in range(1, bs):
        if bs % cand == 0 and (cand * n_tok) % 8 == 0:
            return cand
    return bs


# ----------------------------------------------------------------------------
# in-kernel per-sample batched multi-head attention
# ----------------------------------------------------------------------------
def _mha_sample_batched(q, k, v, wp_ref, sb, n_tok, num_heads):
    """q, k, v: (R, E) with R = sb * n_tok.  Each of the sb samples attends
    only within its own n_tok tokens (batched dot_general, no cross-sample
    mask, no k transpose).  Per-head PV results are staged into one (R, E)
    slab so the output projection is a single K=E MXU matmul."""
    R, E = q.shape
    hd = E // num_heads
    scale = hd ** (-0.5)
    q3 = q.reshape(sb, n_tok, E)
    k3 = k.reshape(sb, n_tok, E)
    v3 = v.reshape(sb, n_tok, E)
    head_outs = []
    for h in range(num_heads):
        sl = slice(h * hd, (h + 1) * hd)
        qh = q3[..., sl].astype(MATMUL_DTYPE)
        kh = k3[..., sl].astype(MATMUL_DTYPE)
        vh = v3[..., sl].astype(MATMUL_DTYPE)
        # scores: contract head_dim directly (no transposed copy of k)
        s = jax.lax.dot_general(qh, kh, (((2,), (2,)), ((0,), (0,))),
                                preferred_element_type=jnp.float32) * scale
        s = s - jnp.max(s, axis=-1, keepdims=True)
        p = jnp.exp(s)
        p = p * pl.reciprocal(jnp.sum(p, axis=-1, keepdims=True), approx=True)
        o = jax.lax.dot_general(p.astype(MATMUL_DTYPE), vh,
                                (((2,), (1,)), ((0,), (0,))),
                                preferred_element_type=jnp.float32)
        head_outs.append(o)                                   # (sb, n_tok, hd)
    att = jnp.concatenate(head_outs, axis=-1).reshape(R, E)   # (R, E)
    return _mm(att, wp_ref[...])                               # K = E projection


# ----------------------------------------------------------------------------
# generic row/column-tiled linear kernel : y = x @ W + b
# ----------------------------------------------------------------------------
def _linear_kernel(x_ref, w_ref, b_ref, o_ref):
    o_ref[...] = _mm(x_ref[...], w_ref[...]) + b_ref[...]


def linear(x2d, w, b):
    M, K = x2d.shape
    N = w.shape[1]
    tm = _row_tile(M)
    tn = _col_tile(N)
    est = 2 * (tm * K + K * tn + tm * tn + tn) * 4
    return pl.pallas_call(
        _linear_kernel,
        grid=(M // tm, N // tn),
        in_specs=[
            pl.BlockSpec((tm, K), lambda i, j: (i, 0)),
            pl.BlockSpec((K, tn), lambda i, j: (0, j)),
            pl.BlockSpec((1, tn), lambda i, j: (0, j)),
        ],
        out_specs=pl.BlockSpec((tm, tn), lambda i, j: (i, j)),
        out_shape=jax.ShapeDtypeStruct((M, N), jnp.float32),
        compiler_params=_mosaic_params(est, ("parallel", "parallel")),
    )(x2d, _wcast(w), b.reshape(1, N))


# ----------------------------------------------------------------------------
# fused transformer Blocks: the whole depth loop in ONE pallas_call
# (norm1 -> MHSA -> +res -> norm2 -> MLP -> +res), activations VMEM-resident
# ----------------------------------------------------------------------------
def _blocks_kernel(x_ref, ln1g, ln1b, wqkv, wp, bp, ln2g, ln2b,
                   w1, b1, w2, b2, o_ref, act_ref, *, num_heads, sb, n_tok):
    d = pl.program_id(1)

    @pl.when(d == 0)
    def _():
        act_ref[...] = x_ref[...]

    x = act_ref[...]                                     # (rows, E) f32
    E = x.shape[-1]
    xn = _layer_norm(x, ln1g[...], ln1b[...])
    qkv = _mm(xn, wqkv[...])                             # (rows, 3E)
    q, k, v = qkv[:, :E], qkv[:, E:2 * E], qkv[:, 2 * E:]
    y = _mha_sample_batched(q, k, v, wp, sb, n_tok, num_heads) + bp[...]
    x = x + y
    h2 = _layer_norm(x, ln2g[...], ln2b[...])
    m = _gelu(_mm(h2, w1[...]) + b1[...])
    m = _mm(m, w2[...]) + b2[...]
    x = x + m
    act_ref[...] = x

    @pl.when(d == pl.num_programs(1) - 1)
    def _():
        o_ref[...] = x


def run_blocks(x_flat, p, num_heads, sb, n_tok):
    R, E = x_flat.shape
    depth = p["qkv_w"].shape[0]
    rows = sb * n_tok

    def _w_spec(shape):
        nd = len(shape)
        return pl.BlockSpec((None,) + tuple(shape),
                            lambda i, d, _nd=nd: (d,) + (0,) * _nd)

    w_args = (p["ln1_g"], p["ln1_b"], _wcast(p["qkv_w"]), _wcast(p["proj_w"]),
              p["proj_b"], p["ln2_g"], p["ln2_b"],
              _wcast(p["mlp_w1"]), p["mlp_b1"], _wcast(p["mlp_w2"]), p["mlp_b2"])
    in_specs = [pl.BlockSpec((rows, E), lambda i, d: (i, 0))]
    in_specs += [_w_spec(a.shape[1:]) for a in w_args]

    per_layer_w = _bytes(*w_args) // depth
    est = 2 * per_layer_w + 8 * rows * E * 4              # dbl-buf weights + acts
    return pl.pallas_call(
        functools.partial(_blocks_kernel, num_heads=num_heads, sb=sb, n_tok=n_tok),
        grid=(R // rows, depth),
        in_specs=in_specs,
        out_specs=pl.BlockSpec((rows, E), lambda i, d: (i, 0)),
        out_shape=jax.ShapeDtypeStruct((R, E), jnp.float32),
        scratch_shapes=[pltpu.VMEM((rows, E), jnp.float32)],
        compiler_params=_mosaic_params(est, ("parallel", "arbitrary")),
    )(x_flat, *w_args)


# ----------------------------------------------------------------------------
# fused Init_Block kernel (cross image/tactile attentions + final + MLP)
# ----------------------------------------------------------------------------
def _init_block_kernel(x_ref, t_ref, ln1g, ln1b, ln2g, ln2b,
                       wq_i, wkv_i, wp_i, bp_i,
                       wq_t, wkv_t, wp_t, bp_t,
                       wf_img, wf_tac, bf,
                       w1, b1, w2, b2, o_ref, *, num_heads, sb, n_tok):
    x = x_ref[...]                                       # image tokens (rows, E)
    t = t_ref[...]                                       # tactile tokens (rows, E)
    E = x.shape[-1]
    xn = _layer_norm(x, ln1g[...], ln1b[...])            # norm1(x)
    tn = _layer_norm(t, ln2g[...], ln2b[...])            # norm2(tactile)

    def cross(q_in, kv_in, wq, wkv, wp, bprj):
        q = _mm(q_in, wq[...])
        kv = _mm(kv_in, wkv[...])
        k, v = kv[:, :E], kv[:, E:]
        return _mha_sample_batched(q, k, v, wp, sb, n_tok, num_heads) + bprj[...]

    # Init_Image_Attention(norm1(x), norm2(tac)): q from image, kv from tactile
    img_att = cross(xn, tn, wq_i, wkv_i, wp_i, bp_i)
    # Init_Tactile_Attention called as tac_attn(norm1(x), norm2(tac)) =>
    # inside the module q comes from norm2(tac), kv from norm1(x)  (exact repro)
    tac_att = cross(tn, xn, wq_t, wkv_t, wp_t, bp_t)

    # final(cat(img, tac)) expressed as two (E, E) matmuls (no 2E concat)
    xnew = _mm(img_att, wf_img[...]) + _mm(tac_att, wf_tac[...]) + bf[...]
    # NOTE: the module uses the SAME norm2 params here (single nn.LayerNorm).
    h2 = _layer_norm(xnew, ln2g[...], ln2b[...])
    m = _gelu(_mm(h2, w1[...]) + b1[...])
    m = _mm(m, w2[...]) + b2[...]
    o_ref[...] = xnew + m


def run_init_block(x_flat, t_flat, p, num_heads, sb, n_tok):
    R, E = x_flat.shape
    MH = p["mlp_w1"].shape[1]
    rows = sb * n_tok
    wf_img = _wcast(p["final_w"][:E, :])
    wf_tac = _wcast(p["final_w"][E:, :])
    w_args = (
        p["ln1_g"].reshape(1, E), p["ln1_b"].reshape(1, E),
        p["ln2_g"].reshape(1, E), p["ln2_b"].reshape(1, E),
        _wcast(p["img_q_w"]), _wcast(p["img_kv_w"]),
        _wcast(p["img_proj_w"]), p["img_proj_b"].reshape(1, E),
        _wcast(p["tac_q_w"]), _wcast(p["tac_kv_w"]),
        _wcast(p["tac_proj_w"]), p["tac_proj_b"].reshape(1, E),
        wf_img, wf_tac, p["final_b"].reshape(1, E),
        _wcast(p["mlp_w1"]), p["mlp_b1"].reshape(1, MH),
        _wcast(p["mlp_w2"]), p["mlp_b2"].reshape(1, E),
    )
    buf = 1 if _SINGLE_BUFFER_CONSTS else 2
    est = buf * _bytes(*w_args) + 8 * rows * E * 4
    # TODO(synk): if Init_Block is still VMEM-tight at production E on v7x,
    # split the two cross-attentions onto a 2-step "arbitrary" grid axis.
    return pl.pallas_call(
        functools.partial(_init_block_kernel, num_heads=num_heads, sb=sb, n_tok=n_tok),
        grid=(R // rows,),
        in_specs=[pl.BlockSpec((rows, E), lambda i: (i, 0)),
                  pl.BlockSpec((rows, E), lambda i: (i, 0))]
                 + [_const_spec(tuple(a.shape)) for a in w_args],
        out_specs=pl.BlockSpec((rows, E), lambda i: (i, 0)),
        out_shape=jax.ShapeDtypeStruct((R, E), jnp.float32),
        compiler_params=_mosaic_params(est, ("parallel",)),
    )(x_flat, t_flat, *w_args)


# ----------------------------------------------------------------------------
# fused head kernels
#   head1: norm1 -> linear_img (Linear, LeakyReLU, Linear), per token,
#          lane-dense (padded) output
#   head2: final_layers (Linear, LeakyReLU, Linear) with K-tiled contraction
#          + merged align/contact heads
# ----------------------------------------------------------------------------
def _head1_kernel(x_ref, g_ref, b_ref, w1_ref, b1_ref, w2_ref, b2_ref, o_ref):
    h = _layer_norm(x_ref[...], g_ref[...], b_ref[...])
    h = _leaky(_mm(h, w1_ref[...]) + b1_ref[...])
    o_ref[...] = _mm(h, w2_ref[...]) + b2_ref[...]


def run_head_tokens(x_flat, params):
    R, E = x_flat.shape
    E4 = params["li1_w"].shape[1]
    E12 = params["li2_w"].shape[1]
    # pad output width to a lane-dense multiple of 128 (unmasked vst); slice off after
    E12p = E12 if E12 % 128 == 0 else ((E12 + 127) // 128) * 128
    w2, b2 = params["li2_w"], params["li2_b"]
    if E12p != E12:
        w2 = jnp.pad(w2, ((0, 0), (0, E12p - E12)))
        b2 = jnp.pad(b2, (0, E12p - E12))
    tm = _row_tile(R)
    w_args = (params["norm1_g"].reshape(1, E), params["norm1_b"].reshape(1, E),
              _wcast(params["li1_w"]), params["li1_b"].reshape(1, E4),
              _wcast(w2), b2.reshape(1, E12p))
    est = 2 * _bytes(*w_args) + 4 * tm * (E + E4 + E12p) * 4
    out = pl.pallas_call(
        _head1_kernel,
        grid=(R // tm,),
        in_specs=[pl.BlockSpec((tm, E), lambda i: (i, 0))]
                 + [_const_spec(tuple(a.shape)) for a in w_args],
        out_specs=pl.BlockSpec((tm, E12p), lambda i: (i, 0)),
        out_shape=jax.ShapeDtypeStruct((R, E12p), jnp.float32),
        compiler_params=_mosaic_params(est, ("parallel",)),
    )(x_flat, *w_args)
    return out[:, :E12] if E12p != E12 else out


def _head2_kernel(x_ref, w1_ref, b1_ref, w2_ref, b2_ref, wg_ref, bg_ref,
                  feat_ref, gate_ref, acc_ref):
    k = pl.program_id(0)

    @pl.when(k == 0)
    def _():
        acc_ref[...] = jnp.zeros_like(acc_ref)

    acc_ref[...] += _mm(x_ref[...], w1_ref[...])

    @pl.when(k == pl.num_programs(0) - 1)
    def _():
        h = _leaky(acc_ref[...] + b1_ref[...])
        feat = _mm(h, w2_ref[...]) + b2_ref[...]
        feat_ref[...] = feat
        gate_ref[...] = jax.nn.sigmoid(_mm(feat, wg_ref[...]) + bg_ref[...])


def run_head_final(x2d, params):
    M, FIN = x2d.shape
    FH = params["fl1_w"].shape[1]
    FO = params["fl2_w"].shape[1]
    tk = _col_tile(FIN)                                   # K-tile of the contraction
    # merge align / contact heads into a single (FO, 2) matmul
    wg = jnp.concatenate([params["align_w"], params["contact_w"]], axis=1)
    bg = jnp.concatenate([params["align_b"], params["contact_b"]]).reshape(1, 2)
    w_args = (params["fl1_b"].reshape(1, FH), _wcast(params["fl2_w"]),
              params["fl2_b"].reshape(1, FO), _wcast(wg), bg)
    est = 2 * (M * tk + tk * FH) * 4 + _bytes(*w_args) + 2 * M * (FH + FO) * 4
    return pl.pallas_call(
        _head2_kernel,
        grid=(FIN // tk,),
        in_specs=[pl.BlockSpec((M, tk), lambda k: (0, k)),
                  pl.BlockSpec((tk, FH), lambda k: (k, 0))]
                 + [_const_spec(tuple(a.shape)) for a in w_args],
        out_specs=(pl.BlockSpec((M, FO), lambda k: (0, 0)),
                   pl.BlockSpec((M, 2), lambda k: (0, 0))),
        out_shape=(jax.ShapeDtypeStruct((M, FO), jnp.float32),
                   jax.ShapeDtypeStruct((M, 2), jnp.float32)),
        scratch_shapes=[pltpu.VMEM((M, FH), jnp.float32)],
        compiler_params=_mosaic_params(est, ("arbitrary",)),
    )(x2d, _wcast(params["fl1_w"]), *w_args)


# ----------------------------------------------------------------------------
# parameter init (deterministic, synthetic).  Transformer Block weights are
# pre-stacked along a leading depth axis so the whole depth loop runs in one
# pallas_call (layer weights streamed per depth-step).
# ----------------------------------------------------------------------------
def init_params(key, cfg):
    E = cfg["embed_dim"]
    P = cfg["num_patches"]
    C = cfg["C"]
    pz = cfg["patch"]
    TD = cfg["tactile_dim"]
    D = cfg["depth"]
    MH = int(E * cfg["mlp_ratio"])
    E4, E12 = E // 4, E // 12
    FIN = P * E12
    FH, FO = cfg["final_hidden"], cfg["final_out"]

    keys = iter(jax.random.split(key, 64))

    def w(shape, std=0.02):
        return std * jax.random.normal(next(keys), shape, dtype=jnp.float32)

    def zeros(shape):
        return jnp.zeros(shape, jnp.float32)

    def ones(shape):
        return jnp.ones(shape, jnp.float32)

    params = dict(
        # PatchEmbed: Conv2d(k=stride=patch) expressed as flattened-patch matmul
        patch_w=w((C * pz * pz, E)), patch_b=zeros((E,)),
        tac_w=w((TD, P * E)), tac_b=zeros((P * E,)),
        pos_embed=w((1, P, E)),                        # trunc_normal_(std=0.02)
        tac_pos_embed=zeros((1, P, E)),                # stays zero in the module
        init_block=dict(
            ln1_g=ones((E,)), ln1_b=zeros((E,)),
            ln2_g=ones((E,)), ln2_b=zeros((E,)),
            img_q_w=w((E, E)), img_kv_w=w((E, 2 * E)),
            img_proj_w=w((E, E)), img_proj_b=zeros((E,)),
            tac_q_w=w((E, E)), tac_kv_w=w((E, 2 * E)),
            tac_proj_w=w((E, E)), tac_proj_b=zeros((E,)),
            final_w=w((2 * E, E)), final_b=zeros((E,)),
            mlp_w1=w((E, MH)), mlp_b1=zeros((MH,)),
            mlp_w2=w((MH, E)), mlp_b2=zeros((E,)),
        ),
        blocks=dict(                                    # depth-stacked Block weights
            ln1_g=ones((D, 1, E)), ln1_b=zeros((D, 1, E)),
            qkv_w=w((D, E, 3 * E)),                     # qkv_bias=False
            proj_w=w((D, E, E)), proj_b=zeros((D, 1, E)),
            ln2_g=ones((D, 1, E)), ln2_b=zeros((D, 1, E)),
            mlp_w1=w((D, E, MH)), mlp_b1=zeros((D, 1, MH)),
            mlp_w2=w((D, MH, E)), mlp_b2=zeros((D, 1, E)),
        ),
        norm1_g=ones((E,)), norm1_b=zeros((E,)),
        li1_w=w((E, E4)), li1_b=zeros((E4,)),
        li2_w=w((E4, E12)), li2_b=zeros((E12,)),
        fl1_w=w((FIN, FH)), fl1_b=zeros((FH,)),
        fl2_w=w((FH, FO)), fl2_b=zeros((FO,)),
        align_w=w((FO, 1)), align_b=zeros((1,)),
        contact_w=w((FO, 1)), contact_b=zeros((1,)),
    )
    return params


# ----------------------------------------------------------------------------
# full forward pass
# ----------------------------------------------------------------------------
def vision_transformer_forward(params, image, tactile, cfg):
    B, S, C, H, W = image.shape
    pz = cfg["patch"]
    E = cfg["embed_dim"]
    P = cfg["num_patches"]
    nH = cfg["num_heads"]
    BS = B * S
    gh, gw = H // pz, W // pz

    # --- PatchEmbed: conv(k=stride=patch) == extract patches + linear --------
    # TODO(synk): patch extraction / reshapes / pos-embed adds are layout
    # plumbing and are left to XLA.
    img = image.reshape(BS, C, gh, pz, gw, pz)
    patches = img.transpose(0, 2, 4, 1, 3, 5).reshape(BS * gh * gw, C * pz * pz)
    x = linear(patches, params["patch_w"], params["patch_b"])            # (BS*P, E)
    t = linear(tactile.reshape(BS, -1), params["tac_w"], params["tac_b"])  # (BS, P*E)

    # --- prepare_tokens (pos_drop is identity, p=0); keep a 2-D token slab ----
    x = (x.reshape(BS, P, E) + params["pos_embed"]).reshape(BS * P, E)
    t = (t.reshape(BS, P, E) + params["tac_pos_embed"]).reshape(BS * P, E)

    sb = _samples_per_block(BS, P)

    # --- Init_Block + all transformer Blocks (one fused pallas_call) ----------
    x = run_init_block(x, t, params["init_block"], nH, sb, P)
    x = run_blocks(x, params["blocks"], nH, sb, P)

    # --- head ------------------------------------------------------------------
    h = run_head_tokens(x, params)                       # (BS*P, E//12)
    E12 = params["li2_w"].shape[1]
    img_tac = h.reshape(BS, P * E12)
    feat, gates = run_head_final(img_tac, params)        # (BS, FO), (BS, 2)
    FO = feat.shape[-1]
    return (feat.reshape(B, S, FO),
            gates[:, 0:1].reshape(B, S, 1),
            gates[:, 1:2].reshape(B, S, 1))


# ----------------------------------------------------------------------------
if __name__ == "__main__":
    # small config consistent with the module: num_patches=(H/patch)^2,
    # embed_dim divisible by num_heads, 4 and 12; final_layers in-dim =
    # num_patches * embed_dim//12 (analog of the hard-coded 1152 -> 640 -> 288).
    cfg = dict(B=2, S=2, C=3, H=16, W=16, patch=8,
               embed_dim=48, num_heads=4, depth=2, mlp_ratio=4.0,
               tactile_dim=6, final_hidden=32, final_out=24)
    cfg["num_patches"] = (cfg["H"] // cfg["patch"]) ** 2

    key = jax.random.PRNGKey(0)
    kp, ki, kt = jax.random.split(key, 3)
    params = init_params(kp, cfg)
    image = jax.random.normal(ki, (cfg["B"], cfg["S"], cfg["C"], cfg["H"], cfg["W"]),
                              dtype=jnp.float32)
    tactile = jax.random.normal(kt, (cfg["B"], cfg["S"], cfg["tactile_dim"]),
                                dtype=jnp.float32)

    fwd = jax.jit(functools.partial(vision_transformer_forward, cfg=cfg))
    outs = fwd(params, image, tactile)
    jax.block_until_ready(outs)

    img_tactile, align, contact = outs
    assert img_tactile.shape == (cfg["B"], cfg["S"], cfg["final_out"])
    assert align.shape == (cfg["B"], cfg["S"], 1)
    assert contact.shape == (cfg["B"], cfg["S"], 1)
    assert bool(jnp.all(jnp.isfinite(img_tactile)))
    print("KERNEL_OK")
</pallas_src>

<mosaic_0001>
module attributes {stable_mosaic.version = 11 : i64} {
  func.func @_k(%arg0: i32, %arg1: memref<8x128xf32, #tpu.memory_space<vmem>>, %arg2: memref<8x128xf32, #tpu.memory_space<vmem>>) attributes {dimension_semantics = [#tpu.dimension_semantics<arbitrary>], iteration_bounds = array<i64: 2>, scalar_prefetch = 0 : i64, scratch_operands = 0 : i64, tpu.core_type = #tpu.core_type<tc>, window_params = [{pipeline_mode = #tpu.pipeline_mode<synchronous>, transform_indices = @transform_0, window_bounds = array<i64: 8, 128>}, {pipeline_mode = #tpu.pipeline_mode<synchronous>, transform_indices = @transform_1, window_bounds = array<i64: 8, 128>}]} {
    %c0 = arith.constant 0 : index
    %c0_0 = arith.constant 0 : index
    %0 = vector.load %arg1[%c0, %c0_0] : memref<8x128xf32, #tpu.memory_space<vmem>>, vector<8x128xf32>
    %cst = arith.constant 1.000000e+00 : f32
    %1 = vector.broadcast %cst : f32 to vector<8x128xf32>
    %2 = arith.addf %0, %1 : vector<8x128xf32>
    %c0_1 = arith.constant 0 : index
    %c0_2 = arith.constant 0 : index
    %3 = vector.load %arg2[%c0_1, %c0_2] : memref<8x128xf32, #tpu.memory_space<vmem>>, vector<8x128xf32>
    tpu.vector_store %arg2[%c0_1, %c0_2], %2 {strides = array<i32>} : memref<8x128xf32, #tpu.memory_space<vmem>>, vector<8x128xf32>,
    return
  }
  func.func @transform_0(%arg0: i32) -> (i32, i32) {
    %c0_i32 = arith.constant 0 : i32
    %c0_i32_0 = arith.constant 0 : i32
    %c0_i32_1 = arith.constant 0 : i32
    return %c0_i32, %c0_i32_0 : i32, i32
  }
  func.func @transform_1(%arg0: i32) -> (i32, i32) {
    %c0_i32 = arith.constant 0 : i32
    %c0_i32_0 = arith.constant 0 : i32
    %c0_i32_1 = arith.constant 0 : i32
    return %c0_i32, %c0_i32_0 : i32, i32
  }
}

module attributes {stable_mosaic.version = 11 : i64} {
  func.func @_linear_kernel(%arg0: i32, %arg1: i32, %arg2: memref<8x192xf32, #tpu.memory_space<vmem>>, %arg3: memref<192x48xf32, #tpu.memory_space<vmem>>, %arg4: memref<1x48xf32, #tpu.memory_space<vmem>>, %arg5: memref<8x48xf32, #tpu.memory_space<vmem>>) attributes {dimension_semantics = [#tpu.dimension_semantics<parallel>, #tpu.dimension_semantics<parallel>], iteration_bounds = array<i64: 2, 1>, scalar_prefetch = 0 : i64, scratch_operands = 0 : i64, tpu.core_type = #tpu.core_type<tc>, window_params = [{transform_indices = @transform_0, window_bounds = array<i64: 8, 192>}, {transform_indices = @transform_1, window_bounds = array<i64: 192, 48>}, {transform_indices = @transform_2, window_bounds = array<i64: 1, 48>}, {transform_indices = @transform_3, window_bounds = array<i64: 8, 48>}]} {
    %c0 = arith.constant 0 : index
    %c0_0 = arith.constant 0 : index
    %0 = vector.load %arg2[%c0, %c0_0] : memref<8x192xf32, #tpu.memory_space<vmem>>, vector<8x192xf32>
    %c0_1 = arith.constant 0 : index
    %c0_2 = arith.constant 0 : index
    %1 = vector.load %arg3[%c0_1, %c0_2] : memref<192x48xf32, #tpu.memory_space<vmem>>, vector<192x48xf32>
    %cst = arith.constant dense<0.000000e+00> : vector<8x48xf32>
    %2 = tpu.matmul %0, %1, %cst {dimension_numbers = #tpu.dot_dimension_numbers<[1], [0], [0], [1], [0, 0, 1, 1], [], []>} : vector<8x192xf32>, vector<192x48xf32>, vector<8x48xf32> -> vector<8x48xf32>
    %c0_3 = arith.constant 0 : index
    %c0_4 = arith.constant 0 : index
    %3 = vector.load %arg4[%c0_3, %c0_4] : memref<1x48xf32, #tpu.memory_space<vmem>>, vector<1x48xf32>
    %4 = vector.broadcast %3 : vector<1x48xf32> to vector<8x48xf32>
    %5 = arith.addf %2, %4 : vector<8x48xf32>
    %c0_5 = arith.constant 0 : index
    %c0_6 = arith.constant 0 : index
    %6 = vector.load %arg5[%c0_5, %c0_6] : memref<8x48xf32, #tpu.memory_space<vmem>>, vector<8x48xf32>
    tpu.vector_store %arg5[%c0_5, %c0_6], %5 {strides = array<i32>} : memref<8x48xf32, #tpu.memory_space<vmem>>, vector<8x48xf32>,
    return
  }
  func.func @transform_0(%arg0: i32, %arg1: i32) -> (i32, i32) {
    %c0_i32 = arith.constant 0 : i32
    %c0_i32_0 = arith.constant 0 : i32
    return %arg0, %c0_i32 : i32, i32
  }
  func.func @transform_1(%arg0: i32, %arg1: i32) -> (i32, i32) {
    %c0_i32 = arith.constant 0 : i32
    %c0_i32_0 = arith.constant 0 : i32
    return %c0_i32, %arg1 : i32, i32
  }
  func.func @transform_2(%arg0: i32, %arg1: i32) -> (i32, i32) {
    %c0_i32 = arith.constant 0 : i32
    %c0_i32_0 = arith.constant 0 : i32
    return %c0_i32, %arg1 : i32, i32
  }
  func.func @transform_3(%arg0: i32, %arg1: i32) -> (i32, i32) {
    %c0_i32 = arith.constant 0 : i32
    return %arg0, %arg1 : i32, i32
  }
}

module attributes {stable_mosaic.version = 11 : i64} {
  func.func @_linear_kernel(%arg0: i32, %arg1: i32, %arg2: memref<4x6xf32, #tpu.memory_space<vmem>>, %arg3: memref<6x192xf32, #tpu.memory_space<vmem>>, %arg4: memref<1x192xf32, #tpu.memory_space<vmem>>, %arg5: memref<4x192xf32, #tpu.memory_space<vmem>>) attributes {dimension_semantics = [#tpu.dimension_semantics<parallel>, #tpu.dimension_semantics<parallel>], iteration_bounds = array<i64: 1, 1>, scalar_prefetch = 0 : i64, scratch_operands = 0 : i64, tpu.core_type = #tpu.core_type<tc>, window_params = [{transform_indices = @transform_0, window_bounds = array<i64: 4, 6>}, {transform_indices = @transform_1, window_bounds = array<i64: 6, 192>}, {transform_indices = @transform_2, window_bounds = array<i64: 1, 192>}, {transform_indices = @transform_3, window_bounds = array<i64: 4, 192>}]} {
    %c0 = arith.constant 0 : index
    %c0_0 = arith.constant 0 : index
    %0 = vector.load %arg2[%c0, %c0_0] : memref<4x6xf32, #tpu.memory_space<vmem>>, vector<4x6xf32>
    %c0_1 = arith.constant 0 : index
    %c0_2 = arith.constant 0 : index
    %1 = vector.load %arg3[%c0_1, %c0_2] : memref<6x192xf32, #tpu.memory_space<vmem>>, vector<6x192xf32>
    %cst = arith.constant dense<0.000000e+00> : vector<4x192xf32>
    %2 = tpu.matmul %0, %1, %cst {dimension_numbers = #tpu.dot_dimension_numbers<[1], [0], [0], [1], [0, 0, 1, 1], [], []>} : vector<4x6xf32>, vector<6x192xf32>, vector<4x192xf32> -> vector<4x192xf32>
    %c0_3 = arith.constant 0 : index
    %c0_4 = arith.constant 0 : index
    %3 = vector.load %arg4[%c0_3, %c0_4] : memref<1x192xf32, #tpu.memory_space<vmem>>, vector<1x192xf32>
    %4 = vector.broadcast %3 : vector<1x192xf32> to vector<4x192xf32>
    %5 = arith.addf %2, %4 : vector<4x192xf32>
    %c0_5 = arith.constant 0 : index
    %c0_6 = arith.constant 0 : index
    %6 = vector.load %arg5[%c0_5, %c0_6] : memref<4x192xf32, #tpu.memory_space<vmem>>, vector<4x192xf32>
    tpu.vector_store %arg5[%c0_5, %c0_6], %5 {strides = array<i32>} : memref<4x192xf32, #tpu.memory_space<vmem>>, vector<4x192xf32>,
    return
  }
  func.func @transform_0(%arg0: i32, %arg1: i32) -> (i32, i32) {
    %c0_i32 = arith.constant 0 : i32
    %c0_i32_0 = arith.constant 0 : i32
    return %arg0, %c0_i32 : i32, i32
  }
  func.func @transform_1(%arg0: i32, %arg1: i32) -> (i32, i32) {
    %c0_i32 = arith.constant 0 : i32
    %c0_i32_0 = arith.constant 0 : i32
    return %c0_i32, %arg1 : i32, i32
  }
  func.func @transform_2(%arg0: i32, %arg1: i32) -> (i32, i32) {
    %c0_i32 = arith.constant 0 : i32
    %c0_i32_0 = arith.constant 0 : i32
    return %c0_i32, %arg1 : i32, i32
  }
  func.func @transform_3(%arg0: i32, %arg1: i32) -> (i32, i32) {
    %c0_i32 = arith.constant 0 : i32
    return %arg0, %arg1 : i32, i32
  }
}

module attributes {stable_mosaic.version = 11 : i64} {
  func.func @_init_block_kernel(%arg0: i32, %arg1: memref<8x48xf32, #tpu.memory_space<vmem>>, %arg2: memref<8x48xf32, #tpu.memory_space<vmem>>, %arg3: memref<1x48xf32, #tpu.memory_space<vmem>>, %arg4: memref<1x48xf32, #tpu.memory_space<vmem>>, %arg5: memref<1x48xf32, #tpu.memory_space<vmem>>, %arg6: memref<1x48xf32, #tpu.memory_space<vmem>>, %arg7: memref<48x48xf32, #tpu.memory_space<vmem>>, %arg8: memref<48x96xf32, #tpu.memory_space<vmem>>, %arg9: memref<48x48xf32, #tpu.memory_space<vmem>>, %arg10: memref<1x48xf32, #tpu.memory_space<vmem>>, %arg11: memref<48x48xf32, #tpu.memory_space<vmem>>, %arg12: memref<48x96xf32, #tpu.memory_space<vmem>>, %arg13: memref<48x48xf32, #tpu.memory_space<vmem>>, %arg14: memref<1x48xf32, #tpu.memory_space<vmem>>, %arg15: memref<48x48xf32, #tpu.memory_space<vmem>>, %arg16: memref<48x48xf32, #tpu.memory_space<vmem>>, %arg17: memref<1x48xf32, #tpu.memory_space<vmem>>, %arg18: memref<48x192xf32, #tpu.memory_space<vmem>>, %arg19: memref<1x192xf32, #tpu.memory_space<vmem>>, %arg20: memref<192x48xf32, #tpu.memory_space<vmem>>, %arg21: memref<1x48xf32, #tpu.memory_space<vmem>>, %arg22: memref<8x48xf32, #tpu.memory_space<vmem>>) attributes {dimension_semantics = [#tpu.dimension_semantics<parallel>], iteration_bounds = array<i64: 2>, scalar_prefetch = 0 : i64, scratch_operands = 0 : i64, tpu.core_type = #tpu.core_type<tc>, window_params = [{transform_indices = @transform_0, window_bounds = array<i64: 8, 48>}, {transform_indices = @transform_1, window_bounds = array<i64: 8, 48>}, {pipeline_mode = #tpu.pipeline_mode<synchronous>, transform_indices = @transform_2, window_bounds = array<i64: 1, 48>}, {pipeline_mode = #tpu.pipeline_mode<synchronous>, transform_indices = @transform_3, window_bounds = array<i64: 1, 48>}, {pipeline_mode = #tpu.pipeline_mode<synchronous>, transform_indices = @transform_4, window_bounds = array<i64: 1, 48>}, {pipeline_mode = #tpu.pipeline_mode<synchronous>, transform_indices = @transform_5, window_bounds = array<i64: 1, 48>}, {pipeline_mode = #tpu.pipeline_mode<synchronous>, transform_indices = @transform_6, window_bounds = array<i64: 48, 48>}, {pipeline_mode = #tpu.pipeline_mode<synchronous>, transform_indices = @transform_7, window_bounds = array<i64: 48, 96>}, {pipeline_mode = #tpu.pipeline_mode<synchronous>, transform_indices = @transform_8, window_bounds = array<i64: 48, 48>}, {pipeline_mode = #tpu.pipeline_mode<synchronous>, transform_indices = @transform_9, window_bounds = array<i64: 1, 48>}, {pipeline_mode = #tpu.pipeline_mode<synchronous>, transform_indices = @transform_10, window_bounds = array<i64: 48, 48>}, {pipeline_mode = #tpu.pipeline_mode<synchronous>, transform_indices = @transform_11, window_bounds = array<i64: 48, 96>}, {pipeline_mode = #tpu.pipeline_mode<synchronous>, transform_indices = @transform_12, window_bounds = array<i64: 48, 48>}, {pipeline_mode = #tpu.pipeline_mode<synchronous>, transform_indices = @transform_13, window_bounds = array<i64: 1, 48>}, {pipeline_mode = #tpu.pipeline_mode<synchronous>, transform_indices = @transform_14, window_bounds = array<i64: 48, 48>}, {pipeline_mode = #tpu.pipeline_mode<synchronous>, transform_indices = @transform_15, window_bounds = array<i64: 48, 48>}, {pipeline_mode = #tpu.pipeline_mode<synchronous>, transform_indices = @transform_16, window_bounds = array<i64: 1, 48>}, {pipeline_mode = #tpu.pipeline_mode<synchronous>, transform_indices = @transform_17, window_bounds = array<i64: 48, 192>}, {pipeline_mode = #tpu.pipeline_mode<synchronous>, transform_indices = @transform_18, window_bounds = array<i64: 1, 192>}, {pipeline_mode = #tpu.pipeline_mode<synchronous>, transform_indices = @transform_19, window_bounds = array<i64: 192, 48>}, {pipeline_mode = #tpu.pipeline_mode<synchronous>, transform_indices = @transform_20, window_bounds = array<i64: 1, 48>}, {transform_indices = @transform_21, window_bounds = array<i64: 8, 48>}]} {
    %c0 = arith.constant 0 : index
    %c0_0 = arith.constant 0 : index
    %0 = vector.load %arg1[%c0, %c0_0] : memref<8x48xf32, #tpu.memory_space<vmem>>, vector<8x48xf32>
    %c0_1 = arith.constant 0 : index
    %c0_2 = arith.constant 0 : index
    %1 = vector.load %arg2[%c0_1, %c0_2] : memref<8x48xf32, #tpu.memory_space<vmem>>, vector<8x48xf32>
    %c0_3 = arith.constant 0 : index
    %c0_4 = arith.constant 0 : index
    %2 = vector.load %arg3[%c0_3, %c0_4] : memref<1x48xf32, #tpu.memory_space<vmem>>, vector<1x48xf32>
    %c0_5 = arith.constant 0 : index
    %c0_6 = arith.constant 0 : index
    %3 = vector.load %arg4[%c0_5, %c0_6] : memref<1x48xf32, #tpu.memory_space<vmem>>, vector<1x48xf32>
    %cst = arith.constant dense<0.000000e+00> : vector<8xf32>
    %4 = vector.multi_reduction <add>, %0, %cst [1] : vector<8x48xf32> to vector<8xf32>
    %5 = vector.shape_cast %4 : vector<8xf32> to vector<8x1xf32>
    %cst_7 = arith.constant 4.800000e+01 : f32
    %6 = vector.broadcast %cst_7 : f32 to vector<8x1xf32>
    %7 = arith.divf %5, %6 : vector<8x1xf32>
    %8 = vector.broadcast %7 : vector<8x1xf32> to vector<8x48xf32>
    %9 = arith.subf %0, %8 : vector<8x48xf32>
    %10 = arith.mulf %9, %9 : vector<8x48xf32>
    %cst_8 = arith.constant dense<0.000000e+00> : vector<8xf32>
    %11 = vector.multi_reduction <add>, %10, %cst_8 [1] : vector<8x48xf32> to vector<8xf32>
    %12 = vector.shape_cast %11 : vector<8xf32> to vector<8x1xf32>
    %cst_9 = arith.constant 4.800000e+01 : f32
    %13 = vector.broadcast %cst_9 : f32 to vector<8x1xf32>
    %14 = arith.divf %12, %13 : vector<8x1xf32>
    %15 = vector.broadcast %7 : vector<8x1xf32> to vector<8x48xf32>
    %16 = arith.subf %0, %15 : vector<8x48xf32>
    %cst_10 = arith.constant 9.99999974E-6 : f32
    %17 = vector.broadcast %cst_10 : f32 to vector<8x1xf32>
    %18 = arith.addf %14, %17 : vector<8x1xf32>
    %19 = math.rsqrt %18 : vector<8x1xf32>
    %20 = vector.broadcast %19 : vector<8x1xf32> to vector<8x48xf32>
    %21 = arith.mulf %16, %20 : vector<8x48xf32>
    %22 = vector.broadcast %2 : vector<1x48xf32> to vector<8x48xf32>
    %23 = arith.mulf %21, %22 : vector<8x48xf32>
    %24 = vector.broadcast %3 : vector<1x48xf32> to vector<8x48xf32>
    %25 = arith.addf %23, %24 : vector<8x48xf32>
    %c0_11 = arith.constant 0 : index
    %c0_12 = arith.constant 0 : index
    %26 = vector.load %arg5[%c0_11, %c0_12] : memref<1x48xf32, #tpu.memory_space<vmem>>, vector<1x48xf32>
    %c0_13 = arith.constant 0 : index
    %c0_14 = arith.constant 0 : index
    %27 = vector.load %arg6[%c0_13, %c0_14] : memref<1x48xf32, #tpu.memory_space<vmem>>, vector<1x48xf32>
    %cst_15 = arith.constant dense<0.000000e+00> : vector<8xf32>
    %28 = vector.multi_reduction <add>, %1, %cst_15 [1] : vector<8x48xf32> to vector<8xf32>
    %29 = vector.shape_cast %28 : vector<8xf32> to vector<8x1xf32>
    %cst_16 = arith.constant 4.800000e+01 : f32
    %30 = vector.broadcast %cst_16 : f32 to vector<8x1xf32>
    %31 = arith.divf %29, %30 : vector<8x1xf32>
    %32 = vector.broadcast %31 : vector<8x1xf32> to vector<8x48xf32>
    %33 = arith.subf %1, %32 : vector<8x48xf32>
    %34 = arith.mulf %33, %33 : vector<8x48xf32>
    %cst_17 = arith.constant dense<0.000000e+00> : vector<8xf32>
    %35 = vector.multi_reduction <add>, %34, %cst_17 [1] : vector<8x48xf32> to vector<8xf32>
    %36 = vector.shape_cast %35 : vector<8xf32> to vector<8x1xf32>
    %cst_18 = arith.constant 4.800000e+01 : f32
    %37 = vector.broadcast %cst_18 : f32 to vector<8x1xf32>
    %38 = arith.divf %36, %37 : vector<8x1xf32>
    %39 = vector.broadcast %31 : vector<8x1xf32> to vector<8x48xf32>
    %40 = arith.subf %1, %39 : vector<8x48xf32>
    %cst_19 = arith.constant 9.99999974E-6 : f32
    %41 = vector.broadcast %cst_19 : f32 to vector<8x1xf32>
    %42 = arith.addf %38, %41 : vector<8x1xf32>
    %43 = math.rsqrt %42 : vector<8x1xf32>
    %44 = vector.broadcast %43 : vector<8x1xf32> to vector<8x48xf32>
    %45 = arith.mulf %40, %44 : vector<8x48xf32>
    %46 = vector.broadcast %26 : vector<1x48xf32> to vector<8x48xf32>
    %47 = arith.mulf %45, %46 : vector<8x48xf32>
    %48 = vector.broadcast %27 : vector<1x48xf32> to vector<8x48xf32>
    %49 = arith.addf %47, %48 : vector<8x48xf32>
    %c0_20 = arith.constant 0 : index
    %c0_21 = arith.constant 0 : index
    %50 = vector.load %arg7[%c0_20, %c0_21] : memref<48x48xf32, #tpu.memory_space<vmem>>, vector<48x48xf32>
    %cst_22 = arith.constant dense<0.000000e+00> : vector<8x48xf32>
    %51 = tpu.matmul %25, %50, %cst_22 {dimension_numbers = #tpu.dot_dimension_numbers<[1], [0], [0], [1], [0, 0, 1, 1], [], []>} : vector<8x48xf32>, vector<48x48xf32>, vector<8x48xf32> -> vector<8x48xf32>
    %c0_23 = arith.constant 0 : index
    %c0_24 = arith.constant 0 : index
    %52 = vector.load %arg8[%c0_23, %c0_24] : memref<48x96xf32, #tpu.memory_space<vmem>>, vector<48x96xf32>
    %cst_25 = arith.constant dense<0.000000e+00> : vector<8x96xf32>
    %53 = tpu.matmul %49, %52, %cst_25 {dimension_numbers = #tpu.dot_dimension_numbers<[1], [0], [0], [1], [0, 0, 1, 1], [], []>} : vector<8x48xf32>, vector<48x96xf32>, vector<8x96xf32> -> vector<8x96xf32>
    %54 = vector.extract_strided_slice %53 {offsets = [0, 0], sizes = [8, 48], strides = [1, 1]} : vector<8x96xf32> to vector<8x48xf32>
    %55 = vector.extract_strided_slice %53 {offsets = [0, 48], sizes = [8, 48], strides = [1, 1]} : vector<8x96xf32> to vector<8x48xf32>
    %56 = vector.shape_cast %51 : vector<8x48xf32> to vector<2x4x48xf32>
    %57 = vector.shape_cast %54 : vector<8x48xf32> to vector<2x4x48xf32>
    %58 = vector.shape_cast %55 : vector<8x48xf32> to vector<2x4x48xf32>
    %59 = vector.extract_strided_slice %56 {offsets = [0, 0, 0], sizes = [2, 4, 12], strides = [1, 1, 1]} : vector<2x4x48xf32> to vector<2x4x12xf32>
    %60 = vector.extract_strided_slice %57 {offsets = [0, 0, 0], sizes = [2, 4, 12], strides = [1, 1, 1]} : vector<2x4x48xf32> to vector<2x4x12xf32>
    %61 = vector.extract_strided_slice %58 {offsets = [0, 0, 0], sizes = [2, 4, 12], strides = [1, 1, 1]} : vector<2x4x48xf32> to vector<2x4x12xf32>
    %cst_26 = arith.constant dense<0.000000e+00> : vector<2x4x4xf32>
    %62 = tpu.matmul %59, %60, %cst_26 {dimension_numbers = #tpu.dot_dimension_numbers<[2], [2], [1], [1], [0, 0, 0, 1, 1, 1], [0], [0]>} : vector<2x4x12xf32>, vector<2x4x12xf32>, vector<2x4x4xf32> -> vector<2x4x4xf32>
    %cst_27 = arith.constant 0.288675129 : f32
    %63 = vector.broadcast %cst_27 : f32 to vector<2x4x4xf32>
    %64 = arith.mulf %62, %63 : vector<2x4x4xf32>
    %cst_28 = arith.constant dense<0xFF800000> : vector<2x4xf32>
    %65 = vector.multi_reduction <maximumf>, %64, %cst_28 [2] : vector<2x4x4xf32> to vector<2x4xf32>
    %66 = vector.shape_cast %65 : vector<2x4xf32> to vector<2x4x1xf32>
    %67 = vector.broadcast %66 : vector<2x4x1xf32> to vector<2x4x4xf32>
    %68 = arith.subf %64, %67 : vector<2x4x4xf32>
    %69 = math.exp %68 : vector<2x4x4xf32>
    %cst_29 = arith.constant dense<0.000000e+00> : vector<2x4xf32>
    %70 = vector.multi_reduction <add>, %69, %cst_29 [2] : vector<2x4x4xf32> to vector<2x4xf32>
    %71 = vector.shape_cast %70 : vector<2x4xf32> to vector<2x4x1xf32>
    %72 = tpu.reciprocal %71 {approx = true} : vector<2x4x1xf32> -> vector<2x4x1xf32>
    %73 = vector.broadcast %72 : vector<2x4x1xf32> to vector<2x4x4xf32>
    %74 = arith.mulf %69, %73 : vector<2x4x4xf32>
    %cst_30 = arith.constant dense<0.000000e+00> : vector<2x4x12xf32>
    %75 = tpu.matmul %74, %61, %cst_30 {dimension_numbers = #tpu.dot_dimension_numbers<[2], [1], [1], [2], [0, 0, 0, 1, 1, 2], [0], [0]>} : vector<2x4x4xf32>, vector<2x4x12xf32>, vector<2x4x12xf32> -> vector<2x4x12xf32>
    %76 = vector.extract_strided_slice %56 {offsets = [0, 0, 12], sizes = [2, 4, 12], strides = [1, 1, 1]} : vector<2x4x48xf32> to vector<2x4x12xf32>
    %77 = vector.extract_strided_slice %57 {offsets = [0, 0, 12], sizes = [2, 4, 12], strides = [1, 1, 1]} : vector<2x4x48xf32> to vector<2x4x12xf32>
    %78 = vector.extract_strided_slice %58 {offsets = [0, 0, 12], sizes = [2, 4, 12], strides = [1, 1, 1]} : vector<2x4x48xf32> to vector<2x4x12xf32>
    %cst_31 = arith.constant dense<0.000000e+00> : vector<2x4x4xf32>
    %79 = tpu.matmul %76, %77, %cst_31 {dimension_numbers = #tpu.dot_dimension_numbers<[2], [2], [1], [1], [0, 0, 0, 1, 1, 1], [0], [0]>} : vector<2x4x12xf32>, vector<2x4x12xf32>, vector<2x4x4xf32> -> vector<2x4x4xf32>
    %cst_32 = arith.constant 0.288675129 : f32
    %80 = vector.broadcast %cst_32 : f32 to vector<2x4x4xf32>
    %81 = arith.mulf %79, %80 : vector<2x4x4xf32>
    %cst_33 = arith.constant dense<0xFF800000> : vector<2x4xf32>
    %82 = vector.multi_reduction <maximumf>, %81, %cst_33 [2] : vector<2x4x4xf32> to vector<2x4xf32>
    %83 = vector.shape_cast %82 : vector<2x4xf32> to vector<2x4x1xf32>
    %84 = vector.broadcast %83 : vector<2x4x1xf32> to vector<2x4x4xf32>
    %85 = arith.subf %81, %84 : vector<2x4x4xf32>
    %86 = math.exp %85 : vector<2x4x4xf32>
    %cst_34 = arith.constant dense<0.000000e+00> : vector<2x4xf32>
    %87 = vector.multi_reduction <add>, %86, %cst_34 [2] : vector<2x4x4xf32> to vector<2x4xf32>
    %88 = vector.shape_cast %87 : vector<2x4xf32> to vector<2x4x1xf32>
    %89 = tpu.reciprocal %88 {approx = true} : vector<2x4x1xf32> -> vector<2x4x1xf32>
    %90 = vector.broadcast %89 : vector<2x4x1xf32> to vector<2x4x4xf32>
    %91 = arith.mulf %86, %90 : vector<2x4x4xf32>
    %cst_35 = arith.constant dense<0.000000e+00> : vector<2x4x12xf32>
    %92 = tpu.matmul %91, %78, %cst_35 {dimension_numbers = #tpu.dot_dimension_numbers<[2], [1], [1], [2], [0, 0, 0, 1, 1, 2], [0], [0]>} : vector<2x4x4xf32>, vector<2x4x12xf32>, vector<2x4x12xf32> -> vector<2x4x12xf32>
    %93 = vector.extract_strided_slice %56 {offsets = [0, 0, 24], sizes = [2, 4, 12], strides = [1, 1, 1]} : vector<2x4x48xf32> to vector<2x4x12xf32>
    %94 = vector.extract_strided_slice %57 {offsets = [0, 0, 24], sizes = [2, 4, 12], strides = [1, 1, 1]} : vector<2x4x48xf32> to vector<2x4x12xf32>
    %95 = vector.extract_strided_slice %58 {offsets = [0, 0, 24], sizes = [2, 4, 12], strides = [1, 1, 1]} : vector<2x4x48xf32> to vector<2x4x12xf32>
    %cst_36 = arith.constant dense<0.000000e+00> : vector<2x4x4xf32>
    %96 = tpu.matmul %93, %94, %cst_36 {dimension_numbers = #tpu.dot_dimension_numbers<[2], [2], [1], [1], [0, 0, 0, 1, 1, 1], [0], [0]>} : vector<2x4x12xf32>, vector<2x4x12xf32>, vector<2x4x4xf32> -> vector<2x4x4xf32>
    %cst_37 = arith.constant 0.288675129 : f32
    %97 = vector.broadcast %cst_37 : f32 to vector<2x4x4xf32>
    %98 = arith.mulf %96, %97 : vector<2x4x4xf32>
    %cst_38 = arith.constant dense<0xFF800000> : vector<2x4xf32>
    %99 = vector.multi_reduction <maximumf>, %98, %cst_38 [2] : vector<2x4x4xf32> to vector<2x4xf32>
    %100 = vector.shape_cast %99 : vector<2x4xf32> to vector<2x4x1xf32>
    %101 = vector.broadcast %100 : vector<2x4x1xf32> to vector<2x4x4xf32>
    %102 = arith.subf %98, %101 : vector<2x4x4xf32>
    %103 = math.exp %102 : vector<2x4x4xf32>
    %cst_39 = arith.constant dense<0.000000e+00> : vector<2x4xf32>
    %104 = vector.multi_reduction <add>, %103, %cst_39 [2] : vector<2x4x4xf32> to vector<2x4xf32>
    %105 = vector.shape_cast %104 : vector<2x4xf32> to vector<2x4x1xf32>
    %106 = tpu.reciprocal %105 {approx = true} : vector<2x4x1xf32> -> vector<2x4x1xf32>
    %107 = vector.broadcast %106 : vector<2x4x1xf32> to vector<2x4x4xf32>
    %108 = arith.mulf %103, %107 : vector<2x4x4xf32>
    %cst_40 = arith.constant dense<0.000000e+00> : vector<2x4x12xf32>
    %109 = tpu.matmul %108, %95, %cst_40 {dimension_numbers = #tpu.dot_dimension_numbers<[2], [1], [1], [2], [0, 0, 0, 1, 1, 2], [0], [0]>} : vector<2x4x4xf32>, vector<2x4x12xf32>, vector<2x4x12xf32> -> vector<2x4x12xf32>
    %110 = vector.extract_strided_slice %56 {offsets = [0, 0, 36], sizes = [2, 4, 12], strides = [1, 1, 1]} : vector<2x4x48xf32> to vector<2x4x12xf32>
    %111 = vector.extract_strided_slice %57 {offsets = [0, 0, 36], sizes = [2, 4, 12], strides = [1, 1, 1]} : vector<2x4x48xf32> to vector<2x4x12xf32>
    %112 = vector.extract_strided_slice %58 {offsets = [0, 0, 36], sizes = [2, 4, 12], strides = [1, 1, 1]} : vector<2x4x48xf32> to vector<2x4x12xf32>
    %cst_41 = arith.constant dense<0.000000e+00> : vector<2x4x4xf32>
    %113 = tpu.matmul %110, %111, %cst_41 {dimension_numbers = #tpu.dot_dimension_numbers<[2], [2], [1], [1], [0, 0, 0, 1, 1, 1], [0], [0]>} : vector<2x4x12xf32>, vector<2x4x12xf32>, vector<2x4x4xf32> -> vector<2x4x4xf32>
    %cst_42 = arith.constant 0.288675129 : f32
    %114 = vector.broadcast %cst_42 : f32 to vector<2x4x4xf32>
    %115 = arith.mulf %113, %114 : vector<2x4x4xf32>
    %cst_43 = arith.constant dense<0xFF800000> : vector<2x4xf32>
    %116 = vector.multi_reduction <maximumf>, %115, %cst_43 [2] : vector<2x4x4xf32> to vector<2x4xf32>
    %117 = vector.shape_cast %116 : vector<2x4xf32> to vector<2x4x1xf32>
    %118 = vector.broadcast %117 : vector<2x4x1xf32> to vector<2x4x4xf32>
    %119 = arith.subf %115, %118 : vector<2x4x4xf32>
    %120 = math.exp %119 : vector<2x4x4xf32>
    %cst_44 = arith.constant dense<0.000000e+00> : vector<2x4xf32>
    %121 = vector.multi_reduction <add>, %120, %cst_44 [2] : vector<2x4x4xf32> to vector<2x4xf32>
    %122 = vector.shape_cast %121 : vector<2x4xf32> to vector<2x4x1xf32>
    %123 = tpu.reciprocal %122 {approx = true} : vector<2x4x1xf32> -> vector<2x4x1xf32>
    %124 = vector.broadcast %123 : vector<2x4x1xf32> to vector<2x4x4xf32>
    %125 = arith.mulf %120, %124 : vector<2x4x4xf32>
    %cst_45 = arith.constant dense<0.000000e+00> : vector<2x4x12xf32>
    %126 = tpu.matmul %125, %112, %cst_45 {dimension_numbers = #tpu.dot_dimension_numbers<[2], [1], [1], [2], [0, 0, 0, 1, 1, 2], [0], [0]>} : vector<2x4x4xf32>, vector<2x4x12xf32>, vector<2x4x12xf32> -> vector<2x4x12xf32>
    %127 = tpu.concatenate %75, %92, %109, %126 in 2 : vector<2x4x12xf32>, vector<2x4x12xf32>, vector<2x4x12xf32>, vector<2x4x12xf32> -> vector<2x4x48xf32>
    %128 = vector.shape_cast %127 : vector<2x4x48xf32> to vector<8x48xf32>
    %c0_46 = arith.constant 0 : index
    %c0_47 = arith.constant 0 : index
    %129 = vector.load %arg9[%c0_46, %c0_47] : memref<48x48xf32, #tpu.memory_space<vmem>>, vector<48x48xf32>
    %cst_48 = arith.constant dense<0.000000e+00> : vector<8x48xf32>
    %130 = tpu.matmul %128, %129, %cst_48 {dimension_numbers = #tpu.dot_dimension_numbers<[1], [0], [0], [1], [0, 0, 1, 1], [], []>} : vector<8x48xf32>, vector<48x48xf32>, vector<8x48xf32> -> vector<8x48xf32>
    %c0_49 = arith.constant 0 : index
    %c0_50 = arith.constant 0 : index
    %131 = vector.load %arg10[%c0_49, %c0_50] : memref<1x48xf32, #tpu.memory_space<vmem>>, vector<1x48xf32>
    %132 = vector.broadcast %131 : vector<1x48xf32> to vector<8x48xf32>
    %133 = arith.addf %130, %132 : vector<8x48xf32>
    %c0_51 = arith.constant 0 : index
    %c0_52 = arith.constant 0 : index
    %134 = vector.load %arg11[%c0_51, %c0_52] : memref<48x48xf32, #tpu.memory_space<vmem>>, vector<48x48xf32>
    %cst_53 = arith.constant dense<0.000000e+00> : vector<8x48xf32>
    %135 = tpu.matmul %49, %134, %cst_53 {dimension_numbers = #tpu.dot_dimension_numbers<[1], [0], [0], [1], [0, 0, 1, 1], [], []>} : vector<8x48xf32>, vector<48x48xf32>, vector<8x48xf32> -> vector<8x48xf32>
    %c0_54 = arith.constant 0 : index
    %c0_55 = arith.constant 0 : index
    %136 = vector.load %arg12[%c0_54, %c0_55] : memref<48x96xf32, #tpu.memory_space<vmem>>, vector<48x96xf32>
    %cst_56 = arith.constant dense<0.000000e+00> : vector<8x96xf32>
    %137 = tpu.matmul %25, %136, %cst_56 {dimension_numbers = #tpu.dot_dimension_numbers<[1], [0], [0], [1], [0, 0, 1, 1], [], []>} : vector<8x48xf32>, vector<48x96xf32>, vector<8x96xf32> -> vector<8x96xf32>
    %138 = vector.extract_strided_slice %137 {offsets = [0, 0], sizes = [8, 48], strides = [1, 1]} : vector<8x96xf32> to vector<8x48xf32>
    %139 = vector.extract_strided_slice %137 {offsets = [0, 48], sizes = [8, 48], strides = [1, 1]} : vector<8x96xf32> to vector<8x48xf32>
    %140 = vector.shape_cast %135 : vector<8x48xf32> to vector<2x4x48xf32>
    %141 = vector.shape_cast %138 : vector<8x48xf32> to vector<2x4x48xf32>
    %142 = vector.shape_cast %139 : vector<8x48xf32> to vector<2x4x48xf32>
    %143 = vector.extract_strided_slice %140 {offsets = [0, 0, 0], sizes = [2, 4, 12], strides = [1, 1, 1]} : vector<2x4x48xf32> to vector<2x4x12xf32>
    %144 = vector.extract_strided_slice %141 {offsets = [0, 0, 0], sizes = [2, 4, 12], strides = [1, 1, 1]} : vector<2x4x48xf32> to vector<2x4x12xf32>
    %145 = vector.extract_strided_slice %142 {offsets = [0, 0, 0], sizes = [2, 4, 12], strides = [1, 1, 1]} : vector<2x4x48xf32> to vector<2x4x12xf32>
    %cst_57 = arith.constant dense<0.000000e+00> : vector<2x4x4xf32>
    %146 = tpu.matmul %143, %144, %cst_57 {dimension_numbers = #tpu.dot_dimension_numbers<[2], [2], [1], [1], [0, 0, 0, 1, 1, 1], [0], [0]>} : vector<2x4x12xf32>, vector<2x4x12xf32>, vector<2x4x4xf32> -> vector<2x4x4xf32>
    %cst_58 = arith.constant 0.288675129 : f32
    %147 = vector.broadcast %cst_58 : f32 to vector<2x4x4xf32>
    %148 = arith.mulf %146, %147 : vector<2x4x4xf32>
    %cst_59 = arith.constant dense<0xFF800000> : vector<2x4xf32>
    %149 = vector.multi_reduction <maximumf>, %148, %cst_59 [2] : vector<2x4x4xf32> to vector<2x4xf32>
    %150 = vector.shape_cast %149 : vector<2x4xf32> to vector<2x4x1xf32>
    %151 = vector.broadcast %150 : vector<2x4x1xf32> to vector<2x4x4xf32>
    %152 = arith.subf %148, %151 : vector<2x4x4xf32>
    %153 = math.exp %152 : vector<2x4x4xf32>
    %cst_60 = arith.constant dense<0.000000e+00> : vector<2x4xf32>
    %154 = vector.multi_reduction <add>, %153, %cst_60 [2] : vector<2x4x4xf32> to vector<2x4xf32>
    %155 = vector.shape_cast %154 : vector<2x4xf32> to vector<2x4x1xf32>
    %156 = tpu.reciprocal %155 {approx = true} : vector<2x4x1xf32> -> vector<2x4x1xf32>
    %157 = vector.broadcast %156 : vector<2x4x1xf32> to vector<2x4x4xf32>
    %158 = arith.mulf %153, %157 : vector<2x4x4xf32>
    %cst_61 = arith.constant dense<0.000000e+00> : vector<2x4x12xf32>
    %159 = tpu.matmul %158, %145, %cst_61 {dimension_numbers = #tpu.dot_dimension_numbers<[2], [1], [1], [2], [0, 0, 0, 1, 1, 2], [0], [0]>} : vector<2x4x4xf32>, vector<2x4x12xf32>, vector<2x4x12xf32> -> vector<2x4x12xf32>
    %160 = vector.extract_strided_slice %140 {offsets = [0, 0, 12], sizes = [2, 4, 12], strides = [1, 1, 1]} : vector<2x4x48xf32> to vector<2x4x12xf32>
    %161 = vector.extract_strided_slice %141 {offsets = [0, 0, 12], sizes = [2, 4, 12], strides = [1, 1, 1]} : vector<2x4x48xf32> to vector<2x4x12xf32>
    %162 = vector.extract_strided_slice %142 {offsets = [0, 0, 12], sizes = [2, 4, 12], strides = [1, 1, 1]} : vector<2x4x48xf32> to vector<2x4x12xf32>
    %cst_62 = arith.constant dense<0.000000e+00> : vector<2x4x4xf32>
    %163 = tpu.matmul %160, %161, %cst_62 {dimension_numbers = #tpu.dot_dimension_numbers<[2], [2], [1], [1], [0, 0, 0, 1, 1, 1], [0], [0]>} : vector<2x4x12xf32>, vector<2x4x12xf32>, vector<2x4x4xf32> -> vector<2x4x4xf32>
    %cst_63 = arith.constant 0.288675129 : f32
    %164 = vector.broadcast %cst_63 : f32 to vector<2x4x4xf32>
    %165 = arith.mulf %163, %164 : vector<2x4x4xf32>
    %cst_64 = arith.constant dense<0xFF800000> : vector<2x4xf32>
    %166 = vector.multi_reduction <maximumf>, %165, %cst_64 [2] : vector<2x4x4xf32> to vector<2x4xf32>
    %167 = vector.shape_cast %166 : vector<2x4xf32> to vector<2x4x1xf32>
    %168 = vector.broadcast %167 : vector<2x4x1xf32> to vector<2x4x4xf32>
    %169 = arith.subf %165, %168 : vector<2x4x4xf32>
    %170 = math.exp %169 : vector<2x4x4xf32>
    %cst_65 = arith.constant dense<0.000000e+00> : vector<2x4xf32>
    %171 = vector.multi_reduction <add>, %170, %cst_65 [2] : vector<2x4x4xf32> to vector<2x4xf32>
    %172 = vector.shape_cast %171 : vector<2x4xf32> to vector<2x4x1xf32>
    %173 = tpu.reciprocal %172 {approx = true} : vector<2x4x1xf32> -> vector<2x4x1xf32>
    %174 = vector.broadcast %173 : vector<2x4x1xf32> to vector<2x4x4xf32>
    %175 = arith.mulf %170, %174 : vector<2x4x4xf32>
    %cst_66 = arith.constant dense<0.000000e+00> : vector<2x4x12xf32>
    %176 = tpu.matmul %175, %162, %cst_66 {dimension_numbers = #tpu.dot_dimension_numbers<[2], [1], [1], [2], [0, 0, 0, 1, 1, 2], [0], [0]>} : vector<2x4x4xf32>, vector<2x4x12xf32>, vector<2x4x12xf32> -> vector<2x4x12xf32>
    %177 = vector.extract_strided_slice %140 {offsets = [0, 0, 24], sizes = [2, 4, 12], strides = [1, 1, 1]} : vector<2x4x48xf32> to vector<2x4x12xf32>
    %178 = vector.extract_strided_slice %141 {offsets = [0, 0, 24], sizes = [2, 4, 12], strides = [1, 1, 1]} : vector<2x4x48xf32> to vector<2x4x12xf32>
    %179 = vector.extract_strided_slice %142 {offsets = [0, 0, 24], sizes = [2, 4, 12], strides = [1, 1, 1]} : vector<2x4x48xf32> to vector<2x4x12xf32>
    %cst_67 = arith.constant dense<0.000000e+00> : vector<2x4x4xf32>
    %180 = tpu.matmul %177, %178, %cst_67 {dimension_numbers = #tpu.dot_dimension_numbers<[2], [2], [1], [1], [0, 0, 0, 1, 1, 1], [0], [0]>} : vector<2x4x12xf32>, vector<2x4x12xf32>, vector<2x4x4xf32> -> vector<2x4x4xf32>
    %cst_68 = arith.constant 0.288675129 : f32
    %181 = vector.broadcast %cst_68 : f32 to vector<2x4x4xf32>
    %182 = arith.mulf %180, %181 : vector<2x4x4xf32>
    %cst_69 = arith.constant dense<0xFF800000> : vector<2x4xf32>
    %183 = vector.multi_reduction <maximumf>, %182, %cst_69 [2] : vector<2x4x4xf32> to vector<2x4xf32>
    %184 = vector.shape_cast %183 : vector<2x4xf32> to vector<2x4x1xf32>
    %185 = vector.broadcast %184 : vector<2x4x1xf32> to vector<2x4x4xf32>
    %186 = arith.subf %182, %185 : vector<2x4x4xf32>
    %187 = math.exp %186 : vector<2x4x4xf32>
    %cst_70 = arith.constant dense<0.000000e+00> : vector<2x4xf32>
    %188 = vector.multi_reduction <add>, %187, %cst_70 [2] : vector<2x4x4xf32> to vector<2x4xf32>
    %189 = vector.shape_cast %188 : vector<2x4xf32> to vector<2x4x1xf32>
    %190 = tpu.reciprocal %189 {approx = true} : vector<2x4x1xf32> -> vector<2x4x1xf32>
    %191 = vector.broadcast %190 : vector<2x4x1xf32> to vector<2x4x4xf32>
    %192 = arith.mulf %187, %191 : vector<2x4x4xf32>
    %cst_71 = arith.constant dense<0.000000e+00> : vector<2x4x12xf32>
    %193 = tpu.matmul %192, %179, %cst_71 {dimension_numbers = #tpu.dot_dimension_numbers<[2], [1], [1], [2], [0, 0, 0, 1, 1, 2], [0], [0]>} : vector<2x4x4xf32>, vector<2x4x12xf32>, vector<2x4x12xf32> -> vector<2x4x12xf32>
    %194 = vector.extract_strided_slice %140 {offsets = [0, 0, 36], sizes = [2, 4, 12], strides = [1, 1, 1]} : vector<2x4x48xf32> to vector<2x4x12xf32>
    %195 = vector.extract_strided_slice %141 {offsets = [0, 0, 36], sizes = [2, 4, 12], strides = [1, 1, 1]} : vector<2x4x48xf32> to vector<2x4x12xf32>
    %196 = vector.extract_strided_slice %142 {offsets = [0, 0, 36], sizes = [2, 4, 12], strides = [1, 1, 1]} : vector<2x4x48xf32> to vector<2x4x12xf32>
    %cst_72 = arith.constant dense<0.000000e+00> : vector<2x4x4xf32>
    %197 = tpu.matmul %194, %195, %cst_72 {dimension_numbers = #tpu.dot_dimension_numbers<[2], [2], [1], [1], [0, 0, 0, 1, 1, 1], [0], [0]>} : vector<2x4x12xf32>, vector<2x4x12xf32>, vector<2x4x4xf32> -> vector<2x4x4xf32>
    %cst_73 = arith.constant 0.288675129 : f32
    %198 = vector.broadcast %cst_73 : f32 to vector<2x4x4xf32>
    %199 = arith.mulf %197, %198 : vector<2x4x4xf32>
    %cst_74 = arith.constant dense<0xFF800000> : vector<2x4xf32>
    %200 = vector.multi_reduction <maximumf>, %199, %cst_74 [2] : vector<2x4x4xf32> to vector<2x4xf32>
    %201 = vector.shape_cast %200 : vector<2x4xf32> to vector<2x4x1xf32>
    %202 = vector.broadcast %201 : vector<2x4x1xf32> to vector<2x4x4xf32>
    %203 = arith.subf %199, %202 : vector<2x4x4xf32>
    %204 = math.exp %203 : vector<2x4x4xf32>
    %cst_75 = arith.constant dense<0.000000e+00> : vector<2x4xf32>
    %205 = vector.multi_reduction <add>, %204, %cst_75 [2] : vector<2x4x4xf32> to vector<2x4xf32>
    %206 = vector.shape_cast %205 : vector<2x4xf32> to vector<2x4x1xf32>
    %207 = tpu.reciprocal %206 {approx = true} : vector<2x4x1xf32> -> vector<2x4x1xf32>
    %208 = vector.broadcast %207 : vector<2x4x1xf32> to vector<2x4x4xf32>
    %209 = arith.mulf %204, %208 : vector<2x4x4xf32>
    %cst_76 = arith.constant dense<0.000000e+00> : vector<2x4x12xf32>
    %210 = tpu.matmul %209, %196, %cst_76 {dimension_numbers = #tpu.dot_dimension_numbers<[2], [1], [1], [2], [0, 0, 0, 1, 1, 2], [0], [0]>} : vector<2x4x4xf32>, vector<2x4x12xf32>, vector<2x4x12xf32> -> vector<2x4x12xf32>
    %211 = tpu.concatenate %159, %176, %193, %210 in 2 : vector<2x4x12xf32>, vector<2x4x12xf32>, vector<2x4x12xf32>, vector<2x4x12xf32> -> vector<2x4x48xf32>
    %212 = vector.shape_cast %211 : vector<2x4x48xf32> to vector<8x48xf32>
    %c0_77 = arith.constant 0 : index
    %c0_78 = arith.constant 0 : index
    %213 = vector.load %arg13[%c0_77, %c0_78] : memref<48x48xf32, #tpu.memory_space<vmem>>, vector<48x48xf32>
    %cst_79 = arith.constant dense<0.000000e+00> : vector<8x48xf32>
    %214 = tpu.matmul %212, %213, %cst_79 {dimension_numbers = #tpu.dot_dimension_numbers<[1], [0], [0], [1], [0, 0, 1, 1], [], []>} : vector<8x48xf32>, vector<48x48xf32>, vector<8x48xf32> -> vector<8x48xf32>
    %c0_80 = arith.constant 0 : index
    %c0_81 = arith.constant 0 : index
    %215 = vector.load %arg14[%c0_80, %c0_81] : memref<1x48xf32, #tpu.memory_space<vmem>>, vector<1x48xf32>
    %216 = vector.broadcast %215 : vector<1x48xf32> to vector<8x48xf32>
    %217 = arith.addf %214, %216 : vector<8x48xf32>
    %c0_82 = arith.constant 0 : index
    %c0_83 = arith.constant 0 : index
    %218 = vector.load %arg15[%c0_82, %c0_83] : memref<48x48xf32, #tpu.memory_space<vmem>>, vector<48x48xf32>
    %cst_84 = arith.constant dense<0.000000e+00> : vector<8x48xf32>
    %219 = tpu.matmul %133, %218, %cst_84 {dimension_numbers = #tpu.dot_dimension_numbers<[1], [0], [0], [1], [0, 0, 1, 1], [], []>} : vector<8x48xf32>, vector<48x48xf32>, vector<8x48xf32> -> vector<8x48xf32>
    %c0_85 = arith.constant 0 : index
    %c0_86 = arith.constant 0 : index
    %220 = vector.load %arg16[%c0_85, %c0_86] : memref<48x48xf32, #tpu.memory_space<vmem>>, vector<48x48xf32>
    %cst_87 = arith.constant dense<0.000000e+00> : vector<8x48xf32>
    %221 = tpu.matmul %217, %220, %cst_87 {dimension_numbers = #tpu.dot_dimension_numbers<[1], [0], [0], [1], [0, 0, 1, 1], [], []>} : vector<8x48xf32>, vector<48x48xf32>, vector<8x48xf32> -> vector<8x48xf32>
    %222 = arith.addf %219, %221 : vector<8x48xf32>
    %c0_88 = arith.constant 0 : index
    %c0_89 = arith.constant 0 : index
    %223 = vector.load %arg17[%c0_88, %c0_89] : memref<1x48xf32, #tpu.memory_space<vmem>>, vector<1x48xf32>
    %224 = vector.broadcast %223 : vector<1x48xf32> to vector<8x48xf32>
    %225 = arith.addf %222, %224 : vector<8x48xf32>
    %c0_90 = arith.constant 0 : index
    %c0_91 = arith.constant 0 : index
    %226 = vector.load %arg5[%c0_90, %c0_91] : memref<1x48xf32, #tpu.memory_space<vmem>>, vector<1x48xf32>
    %c0_92 = arith.constant 0 : index
    %c0_93 = arith.constant 0 : index
    %227 = vector.load %arg6[%c0_92, %c0_93] : memref<1x48xf32, #tpu.memory_space<vmem>>, vector<1x48xf32>
    %cst_94 = arith.constant dense<0.000000e+00> : vector<8xf32>
    %228 = vector.multi_reduction <add>, %225, %cst_94 [1] : vector<8x48xf32> to vector<8xf32>
    %229 = vector.shape_cast %228 : vector<8xf32> to vector<8x1xf32>
    %cst_95 = arith.constant 4.800000e+01 : f32
    %230 = vector.broadcast %cst_95 : f32 to vector<8x1xf32>
    %231 = arith.divf %229, %230 : vector<8x1xf32>
    %232 = vector.broadcast %231 : vector<8x1xf32> to vector<8x48xf32>
    %233 = arith.subf %225, %232 : vector<8x48xf32>
    %234 = arith.mulf %233, %233 : vector<8x48xf32>
    %cst_96 = arith.constant dense<0.000000e+00> : vector<8xf32>
    %235 = vector.multi_reduction <add>, %234, %cst_96 [1] : vector<8x48xf32> to vector<8xf32>
    %236 = vector.shape_cast %235 : vector<8xf32> to vector<8x1xf32>
    %cst_97 = arith.constant 4.800000e+01 : f32
    %237 = vector.broadcast %cst_97 : f32 to vector<8x1xf32>
    %238 = arith.divf %236, %237 : vector<8x1xf32>
    %239 = vector.broadcast %231 : vector<8x1xf32> to vector<8x48xf32>
    %240 = arith.subf %225, %239 : vector<8x48xf32>
    %cst_98 = arith.constant 9.99999974E-6 : f32
    %241 = vector.broadcast %cst_98 : f32 to vector<8x1xf32>
    %242 = arith.addf %238, %241 : vector<8x1xf32>
    %243 = math.rsqrt %242 : vector<8x1xf32>
    %244 = vector.broadcast %243 : vector<8x1xf32> to vector<8x48xf32>
    %245 = arith.mulf %240, %244 : vector<8x48xf32>
    %246 = vector.broadcast %226 : vector<1x48xf32> to vector<8x48xf32>
    %247 = arith.mulf %245, %246 : vector<8x48xf32>
    %248 = vector.broadcast %227 : vector<1x48xf32> to vector<8x48xf32>
    %249 = arith.addf %247, %248 : vector<8x48xf32>
    %c0_99 = arith.constant 0 : index
    %c0_100 = arith.constant 0 : index
    %250 = vector.load %arg18[%c0_99, %c0_100] : memref<48x192xf32, #tpu.memory_space<vmem>>, vector<48x192xf32>
    %cst_101 = arith.constant dense<0.000000e+00> : vector<8x192xf32>
    %251 = tpu.matmul %249, %250, %cst_101 {dimension_numbers = #tpu.dot_dimension_numbers<[1], [0], [0], [1], [0, 0, 1, 1], [], []>} : vector<8x48xf32>, vector<48x192xf32>, vector<8x192xf32> -> vector<8x192xf32>
    %c0_102 = arith.constant 0 : index
    %c0_103 = arith.constant 0 : index
    %252 = vector.load %arg19[%c0_102, %c0_103] : memref<1x192xf32, #tpu.memory_space<vmem>>, vector<1x192xf32>
    %253 = vector.broadcast %252 : vector<1x192xf32> to vector<8x192xf32>
    %254 = arith.addf %251, %253 : vector<8x192xf32>
    %cst_104 = arith.constant 5.000000e-01 : f32
    %255 = vector.broadcast %cst_104 : f32 to vector<8x192xf32>
    %256 = arith.mulf %255, %254 : vector<8x192xf32>
    %cst_105 = arith.constant 0.707106769 : f32
    %257 = vector.broadcast %cst_105 : f32 to vector<8x192xf32>
    %258 = arith.mulf %254, %257 : vector<8x192xf32>
    %259 = math.erf %258 : vector<8x192xf32>
    %cst_106 = arith.constant 1.000000e+00 : f32
    %260 = vector.broadcast %cst_106 : f32 to vector<8x192xf32>
    %261 = arith.addf %260, %259 : vector<8x192xf32>
    %262 = arith.mulf %256, %261 : vector<8x192xf32>
    %c0_107 = arith.constant 0 : index
    %c0_108 = arith.constant 0 : index
    %263 = vector.load %arg20[%c0_107, %c0_108] : memref<192x48xf32, #tpu.memory_space<vmem>>, vector<192x48xf32>
    %cst_109 = arith.constant dense<0.000000e+00> : vector<8x48xf32>
    %264 = tpu.matmul %262, %263, %cst_109 {dimension_numbers = #tpu.dot_dimension_numbers<[1], [0], [0], [1], [0, 0, 1, 1], [], []>} : vector<8x192xf32>, vector<192x48xf32>, vector<8x48xf32> -> vector<8x48xf32>
    %c0_110 = arith.constant 0 : index
    %c0_111 = arith.constant 0 : index
    %265 = vector.load %arg21[%c0_110, %c0_111] : memref<1x48xf32, #tpu.memory_space<vmem>>, vector<1x48xf32>
    %266 = vector.broadcast %265 : vector<1x48xf32> to vector<8x48xf32>
    %267 = arith.addf %264, %266 : vector<8x48xf32>
    %268 = arith.addf %225, %267 : vector<8x48xf32>
    %c0_112 = arith.constant 0 : index
    %c0_113 = arith.constant 0 : index
    %269 = vector.load %arg22[%c0_112, %c0_113] : memref<8x48xf32, #tpu.memory_space<vmem>>, vector<8x48xf32>
    tpu.vector_store %arg22[%c0_112, %c0_113], %268 {strides = array<i32>} : memref<8x48xf32, #tpu.memory_space<vmem>>, vector<8x48xf32>,
    return
  }
  func.func @transform_0(%arg0: i32) -> (i32, i32) {
    %c0_i32 = arith.constant 0 : i32
    %c0_i32_0 = arith.constant 0 : i32
    return %arg0, %c0_i32 : i32, i32
  }
  func.func @transform_1(%arg0: i32) -> (i32, i32) {
    %c0_i32 = arith.constant 0 : i32
    %c0_i32_0 = arith.constant 0 : i32
    return %arg0, %c0_i32 : i32, i32
  }
  func.func @transform_2(%arg0: i32) -> (i32, i32) {
    %c0_i32 = arith.constant 0 : i32
    %c0_i32_0 = arith.constant 0 : i32
    %c0_i32_1 = arith.constant 0 : i32
    return %c0_i32, %c0_i32_0 : i32, i32
  }
  func.func @transform_3(%arg0: i32) -> (i32, i32) {
    %c0_i32 = arith.constant 0 : i32
    %c0_i32_0 = arith.constant 0 : i32
    %c0_i32_1 = arith.constant 0 : i32
    return %c0_i32, %c0_i32_0 : i32, i32
  }
  func.func @transform_4(%arg0: i32) -> (i32, i32) {
    %c0_i32 = arith.constant 0 : i32
    %c0_i32_0 = arith.constant 0 : i32
    %c0_i32_1 = arith.constant 0 : i32
    return %c0_i32, %c0_i32_0 : i32, i32
  }
  func.func @transform_5(%arg0: i32) -> (i32, i32) {
    %c0_i32 = arith.constant 0 : i32
    %c0_i32_0 = arith.constant 0 : i32
    %c0_i32_1 = arith.constant 0 : i32
    return %c0_i32, %c0_i32_0 : i32, i32
  }
  func.func @transform_6(%arg0: i32) -> (i32, i32) {
    %c0_i32 = arith.constant 0 : i32
    %c0_i32_0 = arith.constant 0 : i32
    %c0_i32_1 = arith.constant 0 : i32
    return %c0_i32, %c0_i32_0 : i32, i32
  }
  func.func @transform_7(%arg0: i32) -> (i32, i32) {
    %c0_i32 = arith.constant 0 : i32
    %c0_i32_0 = arith.constant 0 : i32
    %c0_i32_1 = arith.constant 0 : i32
    return %c0_i32, %c0_i32_0 : i32, i32
  }
  func.func @transform_8(%arg0: i32) -> (i32, i32) {
    %c0_i32 = arith.constant 0 : i32
    %c0_i32_0 = arith.constant 0 : i32
    %c0_i32_1 = arith.constant 0 : i32
    return %c0_i32, %c0_i32_0 : i32, i32
  }
  func.func @transform_9(%arg0: i32) -> (i32, i32) {
    %c0_i32 = arith.constant 0 : i32
    %c0_i32_0 = arith.constant 0 : i32
    %c0_i32_1 = arith.constant 0 : i32
    return %c0_i32, %c0_i32_0 : i32, i32
  }
  func.func @transform_10(%arg0: i32) -> (i32, i32) {
    %c0_i32 = arith.constant 0 : i32
    %c0_i32_0 = arith.constant 0 : i32
    %c0_i32_1 = arith.constant 0 : i32
    return %c0_i32, %c0_i32_0 : i32, i32
  }
  func.func @transform_11(%arg0: i32) -> (i32, i32) {
    %c0_i32 = arith.constant 0 : i32
    %c0_i32_0 = arith.constant 0 : i32
    %c0_i32_1 = arith.constant 0 : i32
    return %c0_i32, %c0_i32_0 : i32, i32
  }
  func.func @transform_12(%arg0: i32) -> (i32, i32) {
    %c0_i32 = arith.constant 0 : i32
    %c0_i32_0 = arith.constant 0 : i32
    %c0_i32_1 = arith.constant 0 : i32
    return %c0_i32, %c0_i32_0 : i32, i32
  }
  func.func @transform_13(%arg0: i32) -> (i32, i32) {
    %c0_i32 = arith.constant 0 : i32
    %c0_i32_0 = arith.constant 0 : i32
    %c0_i32_1 = arith.constant 0 : i32
    return %c0_i32, %c0_i32_0 : i32, i32
  }
  func.func @transform_14(%arg0: i32) -> (i32, i32) {
    %c0_i32 = arith.constant 0 : i32
    %c0_i32_0 = arith.constant 0 : i32
    %c0_i32_1 = arith.constant 0 : i32
    return %c0_i32, %c0_i32_0 : i32, i32
  }
  func.func @transform_15(%arg0: i32) -> (i32, i32) {
    %c0_i32 = arith.constant 0 : i32
    %c0_i32_0 = arith.constant 0 : i32
    %c0_i32_1 = arith.constant 0 : i32
    return %c0_i32, %c0_i32_0 : i32, i32
  }
  func.func @transform_16(%arg0: i32) -> (i32, i32) {
    %c0_i32 = arith.constant 0 : i32
    %c0_i32_0 = arith.constant 0 : i32
    %c0_i32_1 = arith.constant 0 : i32
    return %c0_i32, %c0_i32_0 : i32, i32
  }
  func.func @transform_17(%arg0: i32) -> (i32, i32) {
    %c0_i32 = arith.constant 0 : i32
    %c0_i32_0 = arith.constant 0 : i32
    %c0_i32_1 = arith.constant 0 : i32
    return %c0_i32, %c0_i32_0 : i32, i32
  }
  func.func @transform_18(%arg0: i32) -> (i32, i32) {
    %c0_i32 = arith.constant 0 : i32
    %c0_i32_0 = arith.constant 0 : i32
    %c0_i32_1 = arith.constant 0 : i32
    return %c0_i32, %c0_i32_0 : i32, i32
  }
  func.func @transform_19(%arg0: i32) -> (i32, i32) {
    %c0_i32 = arith.constant 0 : i32
    %c0_i32_0 = arith.constant 0 : i32
    %c0_i32_1 = arith.constant 0 : i32
    return %c0_i32, %c0_i32_0 : i32, i32
  }
  func.func @transform_20(%arg0: i32) -> (i32, i32) {
    %c0_i32 = arith.constant 0 : i32
    %c0_i32_0 = arith.constant 0 : i32
    %c0_i32_1 = arith.constant 0 : i32
    return %c0_i32, %c0_i32_0 : i32, i32
  }
  func.func @transform_21(%arg0: i32) -> (i32, i32) {
    %c0_i32 = arith.constant 0 : i32
    %c0_i32_0 = arith.constant 0 : i32
    return %arg0, %c0_i32 : i32, i32
  }
}

module attributes {stable_mosaic.version = 11 : i64} {
  func.func @_blocks_kernel(%arg0: i32, %arg1: i32, %arg2: memref<8x48xf32, #tpu.memory_space<vmem>>, %arg3: memref<1x1x48xf32, #tpu.memory_space<vmem>>, %arg4: memref<1x1x48xf32, #tpu.memory_space<vmem>>, %arg5: memref<1x48x144xf32, #tpu.memory_space<vmem>>, %arg6: memref<1x48x48xf32, #tpu.memory_space<vmem>>, %arg7: memref<1x1x48xf32, #tpu.memory_space<vmem>>, %arg8: memref<1x1x48xf32, #tpu.memory_space<vmem>>, %arg9: memref<1x1x48xf32, #tpu.memory_space<vmem>>, %arg10: memref<1x48x192xf32, #tpu.memory_space<vmem>>, %arg11: memref<1x1x192xf32, #tpu.memory_space<vmem>>, %arg12: memref<1x192x48xf32, #tpu.memory_space<vmem>>, %arg13: memref<1x1x48xf32, #tpu.memory_space<vmem>>, %arg14: memref<8x48xf32, #tpu.memory_space<vmem>>, %arg15: memref<8x48xf32, #tpu.memory_space<vmem>>) attributes {dimension_semantics = [#tpu.dimension_semantics<parallel>, #tpu.dimension_semantics<arbitrary>], iteration_bounds = array<i64: 2, 2>, scalar_prefetch = 0 : i64, scratch_operands = 1 : i64, tpu.core_type = #tpu.core_type<tc>, window_params = [{transform_indices = @transform_0, window_bounds = array<i64: 8, 48>}, {transform_indices = @transform_1, window_bounds = array<i64: 1, 1, 48>}, {transform_indices = @transform_2, window_bounds = array<i64: 1, 1, 48>}, {transform_indices = @transform_3, window_bounds = array<i64: 1, 48, 144>}, {transform_indices = @transform_4, window_bounds = array<i64: 1, 48, 48>}, {transform_indices = @transform_5, window_bounds = array<i64: 1, 1, 48>}, {transform_indices = @transform_6, window_bounds = array<i64: 1, 1, 48>}, {transform_indices = @transform_7, window_bounds = array<i64: 1, 1, 48>}, {transform_indices = @transform_8, window_bounds = array<i64: 1, 48, 192>}, {transform_indices = @transform_9, window_bounds = array<i64: 1, 1, 192>}, {transform_indices = @transform_10, window_bounds = array<i64: 1, 192, 48>}, {transform_indices = @transform_11, window_bounds = array<i64: 1, 1, 48>}, {transform_indices = @transform_12, window_bounds = array<i64: 8, 48>}]} {
    %c0_i32 = arith.constant 0 : i32
    %0 = arith.cmpi eq, %arg1, %c0_i32 : i32
    %1 = arith.extui %0 : i1 to i32
    %c0_i32_0 = arith.constant 0 : i32
    %2 = arith.cmpi ne, %1, %c0_i32_0 : i32
    scf.if %2 {
      %c0_74 = arith.constant 0 : index
      %c0_75 = arith.constant 0 : index
      %170 = vector.load %arg2[%c0_74, %c0_75] : memref<8x48xf32, #tpu.memory_space<vmem>>, vector<8x48xf32>
      %c0_76 = arith.constant 0 : index
      %c0_77 = arith.constant 0 : index
      %171 = vector.load %arg15[%c0_76, %c0_77] : memref<8x48xf32, #tpu.memory_space<vmem>>, vector<8x48xf32>
      tpu.vector_store %arg15[%c0_76, %c0_77], %170 {strides = array<i32>} : memref<8x48xf32, #tpu.memory_space<vmem>>, vector<8x48xf32>,
    } else {
    }
    %c0 = arith.constant 0 : index
    %c0_1 = arith.constant 0 : index
    %3 = vector.load %arg15[%c0, %c0_1] : memref<8x48xf32, #tpu.memory_space<vmem>>, vector<8x48xf32>
    %c0_2 = arith.constant 0 : index
    %c0_3 = arith.constant 0 : index
    %c0_4 = arith.constant 0 : index
    %4 = vector.load %arg3[%c0_2, %c0_3, %c0_4] : memref<1x1x48xf32, #tpu.memory_space<vmem>>, vector<1x1x48xf32>
    %5 = vector.shape_cast %4 : vector<1x1x48xf32> to vector<1x48xf32>
    %c0_5 = arith.constant 0 : index
    %c0_6 = arith.constant 0 : index
    %c0_7 = arith.constant 0 : index
    %6 = vector.load %arg4[%c0_5, %c0_6, %c0_7] : memref<1x1x48xf32, #tpu.memory_space<vmem>>, vector<1x1x48xf32>
    %7 = vector.shape_cast %6 : vector<1x1x48xf32> to vector<1x48xf32>
    %cst = arith.constant dense<0.000000e+00> : vector<8xf32>
    %8 = vector.multi_reduction <add>, %3, %cst [1] : vector<8x48xf32> to vector<8xf32>
    %9 = vector.shape_cast %8 : vector<8xf32> to vector<8x1xf32>
    %cst_8 = arith.constant 4.800000e+01 : f32
    %10 = vector.broadcast %cst_8 : f32 to vector<8x1xf32>
    %11 = arith.divf %9, %10 : vector<8x1xf32>
    %12 = vector.broadcast %11 : vector<8x1xf32> to vector<8x48xf32>
    %13 = arith.subf %3, %12 : vector<8x48xf32>
    %14 = arith.mulf %13, %13 : vector<8x48xf32>
    %cst_9 = arith.constant dense<0.000000e+00> : vector<8xf32>
    %15 = vector.multi_reduction <add>, %14, %cst_9 [1] : vector<8x48xf32> to vector<8xf32>
    %16 = vector.shape_cast %15 : vector<8xf32> to vector<8x1xf32>
    %cst_10 = arith.constant 4.800000e+01 : f32
    %17 = vector.broadcast %cst_10 : f32 to vector<8x1xf32>
    %18 = arith.divf %16, %17 : vector<8x1xf32>
    %19 = vector.broadcast %11 : vector<8x1xf32> to vector<8x48xf32>
    %20 = arith.subf %3, %19 : vector<8x48xf32>
    %cst_11 = arith.constant 9.99999974E-6 : f32
    %21 = vector.broadcast %cst_11 : f32 to vector<8x1xf32>
    %22 = arith.addf %18, %21 : vector<8x1xf32>
    %23 = math.rsqrt %22 : vector<8x1xf32>
    %24 = vector.broadcast %23 : vector<8x1xf32> to vector<8x48xf32>
    %25 = arith.mulf %20, %24 : vector<8x48xf32>
    %26 = vector.broadcast %5 : vector<1x48xf32> to vector<8x48xf32>
    %27 = arith.mulf %25, %26 : vector<8x48xf32>
    %28 = vector.broadcast %7 : vector<1x48xf32> to vector<8x48xf32>
    %29 = arith.addf %27, %28 : vector<8x48xf32>
    %c0_12 = arith.constant 0 : index
    %c0_13 = arith.constant 0 : index
    %c0_14 = arith.constant 0 : index
    %30 = vector.load %arg5[%c0_12, %c0_13, %c0_14] : memref<1x48x144xf32, #tpu.memory_space<vmem>>, vector<1x48x144xf32>
    %31 = vector.shape_cast %30 : vector<1x48x144xf32> to vector<48x144xf32>
    %cst_15 = arith.constant dense<0.000000e+00> : vector<8x144xf32>
    %32 = tpu.matmul %29, %31, %cst_15 {dimension_numbers = #tpu.dot_dimension_numbers<[1], [0], [0], [1], [0, 0, 1, 1], [], []>} : vector<8x48xf32>, vector<48x144xf32>, vector<8x144xf32> -> vector<8x144xf32>
    %33 = vector.extract_strided_slice %32 {offsets = [0, 0], sizes = [8, 48], strides = [1, 1]} : vector<8x144xf32> to vector<8x48xf32>
    %34 = vector.extract_strided_slice %32 {offsets = [0, 48], sizes = [8, 48], strides = [1, 1]} : vector<8x144xf32> to vector<8x48xf32>
    %35 = vector.extract_strided_slice %32 {offsets = [0, 96], sizes = [8, 48], strides = [1, 1]} : vector<8x144xf32> to vector<8x48xf32>
    %36 = vector.shape_cast %33 : vector<8x48xf32> to vector<2x4x48xf32>
    %37 = vector.shape_cast %34 : vector<8x48xf32> to vector<2x4x48xf32>
    %38 = vector.shape_cast %35 : vector<8x48xf32> to vector<2x4x48xf32>
    %39 = vector.extract_strided_slice %36 {offsets = [0, 0, 0], sizes = [2, 4, 12], strides = [1, 1, 1]} : vector<2x4x48xf32> to vector<2x4x12xf32>
    %40 = vector.extract_strided_slice %37 {offsets = [0, 0, 0], sizes = [2, 4, 12], strides = [1, 1, 1]} : vector<2x4x48xf32> to vector<2x4x12xf32>
    %41 = vector.extract_strided_slice %38 {offsets = [0, 0, 0], sizes = [2, 4, 12], strides = [1, 1, 1]} : vector<2x4x48xf32> to vector<2x4x12xf32>
    %cst_16 = arith.constant dense<0.000000e+00> : vector<2x4x4xf32>
    %42 = tpu.matmul %39, %40, %cst_16 {dimension_numbers = #tpu.dot_dimension_numbers<[2], [2], [1], [1], [0, 0, 0, 1, 1, 1], [0], [0]>} : vector<2x4x12xf32>, vector<2x4x12xf32>, vector<2x4x4xf32> -> vector<2x4x4xf32>
    %cst_17 = arith.constant 0.288675129 : f32
    %43 = vector.broadcast %cst_17 : f32 to vector<2x4x4xf32>
    %44 = arith.mulf %42, %43 : vector<2x4x4xf32>
    %cst_18 = arith.constant dense<0xFF800000> : vector<2x4xf32>
    %45 = vector.multi_reduction <maximumf>, %44, %cst_18 [2] : vector<2x4x4xf32> to vector<2x4xf32>
    %46 = vector.shape_cast %45 : vector<2x4xf32> to vector<2x4x1xf32>
    %47 = vector.broadcast %46 : vector<2x4x1xf32> to vector<2x4x4xf32>
    %48 = arith.subf %44, %47 : vector<2x4x4xf32>
    %49 = math.exp %48 : vector<2x4x4xf32>
    %cst_19 = arith.constant dense<0.000000e+00> : vector<2x4xf32>
    %50 = vector.multi_reduction <add>, %49, %cst_19 [2] : vector<2x4x4xf32> to vector<2x4xf32>
    %51 = vector.shape_cast %50 : vector<2x4xf32> to vector<2x4x1xf32>
    %52 = tpu.reciprocal %51 {approx = true} : vector<2x4x1xf32> -> vector<2x4x1xf32>
    %53 = vector.broadcast %52 : vector<2x4x1xf32> to vector<2x4x4xf32>
    %54 = arith.mulf %49, %53 : vector<2x4x4xf32>
    %cst_20 = arith.constant dense<0.000000e+00> : vector<2x4x12xf32>
    %55 = tpu.matmul %54, %41, %cst_20 {dimension_numbers = #tpu.dot_dimension_numbers<[2], [1], [1], [2], [0, 0, 0, 1, 1, 2], [0], [0]>} : vector<2x4x4xf32>, vector<2x4x12xf32>, vector<2x4x12xf32> -> vector<2x4x12xf32>
    %56 = vector.extract_strided_slice %36 {offsets = [0, 0, 12], sizes = [2, 4, 12], strides = [1, 1, 1]} : vector<2x4x48xf32> to vector<2x4x12xf32>
    %57 = vector.extract_strided_slice %37 {offsets = [0, 0, 12], sizes = [2, 4, 12], strides = [1, 1, 1]} : vector<2x4x48xf32> to vector<2x4x12xf32>
    %58 = vector.extract_strided_slice %38 {offsets = [0, 0, 12], sizes = [2, 4, 12], strides = [1, 1, 1]} : vector<2x4x48xf32> to vector<2x4x12xf32>
    %cst_21 = arith.constant dense<0.000000e+00> : vector<2x4x4xf32>
    %59 = tpu.matmul %56, %57, %cst_21 {dimension_numbers = #tpu.dot_dimension_numbers<[2], [2], [1], [1], [0, 0, 0, 1, 1, 1], [0], [0]>} : vector<2x4x12xf32>, vector<2x4x12xf32>, vector<2x4x4xf32> -> vector<2x4x4xf32>
    %cst_22 = arith.constant 0.288675129 : f32
    %60 = vector.broadcast %cst_22 : f32 to vector<2x4x4xf32>
    %61 = arith.mulf %59, %60 : vector<2x4x4xf32>
    %cst_23 = arith.constant dense<0xFF800000> : vector<2x4xf32>
    %62 = vector.multi_reduction <maximumf>, %61, %cst_23 [2] : vector<2x4x4xf32> to vector<2x4xf32>
    %63 = vector.shape_cast %62 : vector<2x4xf32> to vector<2x4x1xf32>
    %64 = vector.broadcast %63 : vector<2x4x1xf32> to vector<2x4x4xf32>
    %65 = arith.subf %61, %64 : vector<2x4x4xf32>
    %66 = math.exp %65 : vector<2x4x4xf32>
    %cst_24 = arith.constant dense<0.000000e+00> : vector<2x4xf32>
    %67 = vector.multi_reduction <add>, %66, %cst_24 [2] : vector<2x4x4xf32> to vector<2x4xf32>
    %68 = vector.shape_cast %67 : vector<2x4xf32> to vector<2x4x1xf32>
    %69 = tpu.reciprocal %68 {approx = true} : vector<2x4x1xf32> -> vector<2x4x1xf32>
    %70 = vector.broadcast %69 : vector<2x4x1xf32> to vector<2x4x4xf32>
    %71 = arith.mulf %66, %70 : vector<2x4x4xf32>
    %cst_25 = arith.constant dense<0.000000e+00> : vector<2x4x12xf32>
    %72 = tpu.matmul %71, %58, %cst_25 {dimension_numbers = #tpu.dot_dimension_numbers<[2], [1], [1], [2], [0, 0, 0, 1, 1, 2], [0], [0]>} : vector<2x4x4xf32>, vector<2x4x12xf32>, vector<2x4x12xf32> -> vector<2x4x12xf32>
    %73 = vector.extract_strided_slice %36 {offsets = [0, 0, 24], sizes = [2, 4, 12], strides = [1, 1, 1]} : vector<2x4x48xf32> to vector<2x4x12xf32>
    %74 = vector.extract_strided_slice %37 {offsets = [0, 0, 24], sizes = [2, 4, 12], strides = [1, 1, 1]} : vector<2x4x48xf32> to vector<2x4x12xf32>
    %75 = vector.extract_strided_slice %38 {offsets = [0, 0, 24], sizes = [2, 4, 12], strides = [1, 1, 1]} : vector<2x4x48xf32> to vector<2x4x12xf32>
    %cst_26 = arith.constant dense<0.000000e+00> : vector<2x4x4xf32>
    %76 = tpu.matmul %73, %74, %cst_26 {dimension_numbers = #tpu.dot_dimension_numbers<[2], [2], [1], [1], [0, 0, 0, 1, 1, 1], [0], [0]>} : vector<2x4x12xf32>, vector<2x4x12xf32>, vector<2x4x4xf32> -> vector<2x4x4xf32>
    %cst_27 = arith.constant 0.288675129 : f32
    %77 = vector.broadcast %cst_27 : f32 to vector<2x4x4xf32>
    %78 = arith.mulf %76, %77 : vector<2x4x4xf32>
    %cst_28 = arith.constant dense<0xFF800000> : vector<2x4xf32>
    %79 = vector.multi_reduction <maximumf>, %78, %cst_28 [2] : vector<2x4x4xf32> to vector<2x4xf32>
    %80 = vector.shape_cast %79 : vector<2x4xf32> to vector<2x4x1xf32>
    %81 = vector.broadcast %80 : vector<2x4x1xf32> to vector<2x4x4xf32>
    %82 = arith.subf %78, %81 : vector<2x4x4xf32>
    %83 = math.exp %82 : vector<2x4x4xf32>
    %cst_29 = arith.constant dense<0.000000e+00> : vector<2x4xf32>
    %84 = vector.multi_reduction <add>, %83, %cst_29 [2] : vector<2x4x4xf32> to vector<2x4xf32>
    %85 = vector.shape_cast %84 : vector<2x4xf32> to vector<2x4x1xf32>
    %86 = tpu.reciprocal %85 {approx = true} : vector<2x4x1xf32> -> vector<2x4x1xf32>
    %87 = vector.broadcast %86 : vector<2x4x1xf32> to vector<2x4x4xf32>
    %88 = arith.mulf %83, %87 : vector<2x4x4xf32>
    %cst_30 = arith.constant dense<0.000000e+00> : vector<2x4x12xf32>
    %89 = tpu.matmul %88, %75, %cst_30 {dimension_numbers = #tpu.dot_dimension_numbers<[2], [1], [1], [2], [0, 0, 0, 1, 1, 2], [0], [0]>} : vector<2x4x4xf32>, vector<2x4x12xf32>, vector<2x4x12xf32> -> vector<2x4x12xf32>
    %90 = vector.extract_strided_slice %36 {offsets = [0, 0, 36], sizes = [2, 4, 12], strides = [1, 1, 1]} : vector<2x4x48xf32> to vector<2x4x12xf32>
    %91 = vector.extract_strided_slice %37 {offsets = [0, 0, 36], sizes = [2, 4, 12], strides = [1, 1, 1]} : vector<2x4x48xf32> to vector<2x4x12xf32>
    %92 = vector.extract_strided_slice %38 {offsets = [0, 0, 36], sizes = [2, 4, 12], strides = [1, 1, 1]} : vector<2x4x48xf32> to vector<2x4x12xf32>
    %cst_31 = arith.constant dense<0.000000e+00> : vector<2x4x4xf32>
    %93 = tpu.matmul %90, %91, %cst_31 {dimension_numbers = #tpu.dot_dimension_numbers<[2], [2], [1], [1], [0, 0, 0, 1, 1, 1], [0], [0]>} : vector<2x4x12xf32>, vector<2x4x12xf32>, vector<2x4x4xf32> -> vector<2x4x4xf32>
    %cst_32 = arith.constant 0.288675129 : f32
    %94 = vector.broadcast %cst_32 : f32 to vector<2x4x4xf32>
    %95 = arith.mulf %93, %94 : vector<2x4x4xf32>
    %cst_33 = arith.constant dense<0xFF800000> : vector<2x4xf32>
    %96 = vector.multi_reduction <maximumf>, %95, %cst_33 [2] : vector<2x4x4xf32> to vector<2x4xf32>
    %97 = vector.shape_cast %96 : vector<2x4xf32> to vector<2x4x1xf32>
    %98 = vector.broadcast %97 : vector<2x4x1xf32> to vector<2x4x4xf32>
    %99 = arith.subf %95, %98 : vector<2x4x4xf32>
    %100 = math.exp %99 : vector<2x4x4xf32>
    %cst_34 = arith.constant dense<0.000000e+00> : vector<2x4xf32>
    %101 = vector.multi_reduction <add>, %100, %cst_34 [2] : vector<2x4x4xf32> to vector<2x4xf32>
    %102 = vector.shape_cast %101 : vector<2x4xf32> to vector<2x4x1xf32>
    %103 = tpu.reciprocal %102 {approx = true} : vector<2x4x1xf32> -> vector<2x4x1xf32>
    %104 = vector.broadcast %103 : vector<2x4x1xf32> to vector<2x4x4xf32>
    %105 = arith.mulf %100, %104 : vector<2x4x4xf32>
    %cst_35 = arith.constant dense<0.000000e+00> : vector<2x4x12xf32>
    %106 = tpu.matmul %105, %92, %cst_35 {dimension_numbers = #tpu.dot_dimension_numbers<[2], [1], [1], [2], [0, 0, 0, 1, 1, 2], [0], [0]>} : vector<2x4x4xf32>, vector<2x4x12xf32>, vector<2x4x12xf32> -> vector<2x4x12xf32>
    %107 = tpu.concatenate %55, %72, %89, %106 in 2 : vector<2x4x12xf32>, vector<2x4x12xf32>, vector<2x4x12xf32>, vector<2x4x12xf32> -> vector<2x4x48xf32>
    %108 = vector.shape_cast %107 : vector<2x4x48xf32> to vector<8x48xf32>
    %c0_36 = arith.constant 0 : index
    %c0_37 = arith.constant 0 : index
    %c0_38 = arith.constant 0 : index
    %109 = vector.load %arg6[%c0_36, %c0_37, %c0_38] : memref<1x48x48xf32, #tpu.memory_space<vmem>>, vector<1x48x48xf32>
    %110 = vector.shape_cast %109 : vector<1x48x48xf32> to vector<48x48xf32>
    %cst_39 = arith.constant dense<0.000000e+00> : vector<8x48xf32>
    %111 = tpu.matmul %108, %110, %cst_39 {dimension_numbers = #tpu.dot_dimension_numbers<[1], [0], [0], [1], [0, 0, 1, 1], [], []>} : vector<8x48xf32>, vector<48x48xf32>, vector<8x48xf32> -> vector<8x48xf32>
    %c0_40 = arith.constant 0 : index
    %c0_41 = arith.constant 0 : index
    %c0_42 = arith.constant 0 : index
    %112 = vector.load %arg7[%c0_40, %c0_41, %c0_42] : memref<1x1x48xf32, #tpu.memory_space<vmem>>, vector<1x1x48xf32>
    %113 = vector.shape_cast %112 : vector<1x1x48xf32> to vector<1x48xf32>
    %114 = vector.broadcast %113 : vector<1x48xf32> to vector<8x48xf32>
    %115 = arith.addf %111, %114 : vector<8x48xf32>
    %116 = arith.addf %3, %115 : vector<8x48xf32>
    %c0_43 = arith.constant 0 : index
    %c0_44 = arith.constant 0 : index
    %c0_45 = arith.constant 0 : index
    %117 = vector.load %arg8[%c0_43, %c0_44, %c0_45] : memref<1x1x48xf32, #tpu.memory_space<vmem>>, vector<1x1x48xf32>
    %118 = vector.shape_cast %117 : vector<1x1x48xf32> to vector<1x48xf32>
    %c0_46 = arith.constant 0 : index
    %c0_47 = arith.constant 0 : index
    %c0_48 = arith.constant 0 : index
    %119 = vector.load %arg9[%c0_46, %c0_47, %c0_48] : memref<1x1x48xf32, #tpu.memory_space<vmem>>, vector<1x1x48xf32>
    %120 = vector.shape_cast %119 : vector<1x1x48xf32> to vector<1x48xf32>
    %cst_49 = arith.constant dense<0.000000e+00> : vector<8xf32>
    %121 = vector.multi_reduction <add>, %116, %cst_49 [1] : vector<8x48xf32> to vector<8xf32>
    %122 = vector.shape_cast %121 : vector<8xf32> to vector<8x1xf32>
    %cst_50 = arith.constant 4.800000e+01 : f32
    %123 = vector.broadcast %cst_50 : f32 to vector<8x1xf32>
    %124 = arith.divf %122, %123 : vector<8x1xf32>
    %125 = vector.broadcast %124 : vector<8x1xf32> to vector<8x48xf32>
    %126 = arith.subf %116, %125 : vector<8x48xf32>
    %127 = arith.mulf %126, %126 : vector<8x48xf32>
    %cst_51 = arith.constant dense<0.000000e+00> : vector<8xf32>
    %128 = vector.multi_reduction <add>, %127, %cst_51 [1] : vector<8x48xf32> to vector<8xf32>
    %129 = vector.shape_cast %128 : vector<8xf32> to vector<8x1xf32>
    %cst_52 = arith.constant 4.800000e+01 : f32
    %130 = vector.broadcast %cst_52 : f32 to vector<8x1xf32>
    %131 = arith.divf %129, %130 : vector<8x1xf32>
    %132 = vector.broadcast %124 : vector<8x1xf32> to vector<8x48xf32>
    %133 = arith.subf %116, %132 : vector<8x48xf32>
    %cst_53 = arith.constant 9.99999974E-6 : f32
    %134 = vector.broadcast %cst_53 : f32 to vector<8x1xf32>
    %135 = arith.addf %131, %134 : vector<8x1xf32>
    %136 = math.rsqrt %135 : vector<8x1xf32>
    %137 = vector.broadcast %136 : vector<8x1xf32> to vector<8x48xf32>
    %138 = arith.mulf %133, %137 : vector<8x48xf32>
    %139 = vector.broadcast %118 : vector<1x48xf32> to vector<8x48xf32>
    %140 = arith.mulf %138, %139 : vector<8x48xf32>
    %141 = vector.broadcast %120 : vector<1x48xf32> to vector<8x48xf32>
    %142 = arith.addf %140, %141 : vector<8x48xf32>
    %c0_54 = arith.constant 0 : index
    %c0_55 = arith.constant 0 : index
    %c0_56 = arith.constant 0 : index
    %143 = vector.load %arg10[%c0_54, %c0_55, %c0_56] : memref<1x48x192xf32, #tpu.memory_space<vmem>>, vector<1x48x192xf32>
    %144 = vector.shape_cast %143 : vector<1x48x192xf32> to vector<48x192xf32>
    %cst_57 = arith.constant dense<0.000000e+00> : vector<8x192xf32>
    %145 = tpu.matmul %142, %144, %cst_57 {dimension_numbers = #tpu.dot_dimension_numbers<[1], [0], [0], [1], [0, 0, 1, 1], [], []>} : vector<8x48xf32>, vector<48x192xf32>, vector<8x192xf32> -> vector<8x192xf32>
    %c0_58 = arith.constant 0 : index
    %c0_59 = arith.constant 0 : index
    %c0_60 = arith.constant 0 : index
    %146 = vector.load %arg11[%c0_58, %c0_59, %c0_60] : memref<1x1x192xf32, #tpu.memory_space<vmem>>, vector<1x1x192xf32>
    %147 = vector.shape_cast %146 : vector<1x1x192xf32> to vector<1x192xf32>
    %148 = vector.broadcast %147 : vector<1x192xf32> to vector<8x192xf32>
    %149 = arith.addf %145, %148 : vector<8x192xf32>
    %cst_61 = arith.constant 5.000000e-01 : f32
    %150 = vector.broadcast %cst_61 : f32 to vector<8x192xf32>
    %151 = arith.mulf %150, %149 : vector<8x192xf32>
    %cst_62 = arith.constant 0.707106769 : f32
    %152 = vector.broadcast %cst_62 : f32 to vector<8x192xf32>
    %153 = arith.mulf %149, %152 : vector<8x192xf32>
    %154 = math.erf %153 : vector<8x192xf32>
    %cst_63 = arith.constant 1.000000e+00 : f32
    %155 = vector.broadcast %cst_63 : f32 to vector<8x192xf32>
    %156 = arith.addf %155, %154 : vector<8x192xf32>
    %157 = arith.mulf %151, %156 : vector<8x192xf32>
    %c0_64 = arith.constant 0 : index
    %c0_65 = arith.constant 0 : index
    %c0_66 = arith.constant 0 : index
    %158 = vector.load %arg12[%c0_64, %c0_65, %c0_66] : memref<1x192x48xf32, #tpu.memory_space<vmem>>, vector<1x192x48xf32>
    %159 = vector.shape_cast %158 : vector<1x192x48xf32> to vector<192x48xf32>
    %cst_67 = arith.constant dense<0.000000e+00> : vector<8x48xf32>
    %160 = tpu.matmul %157, %159, %cst_67 {dimension_numbers = #tpu.dot_dimension_numbers<[1], [0], [0], [1], [0, 0, 1, 1], [], []>} : vector<8x192xf32>, vector<192x48xf32>, vector<8x48xf32> -> vector<8x48xf32>
    %c0_68 = arith.constant 0 : index
    %c0_69 = arith.constant 0 : index
    %c0_70 = arith.constant 0 : index
    %161 = vector.load %arg13[%c0_68, %c0_69, %c0_70] : memref<1x1x48xf32, #tpu.memory_space<vmem>>, vector<1x1x48xf32>
    %162 = vector.shape_cast %161 : vector<1x1x48xf32> to vector<1x48xf32>
    %163 = vector.broadcast %162 : vector<1x48xf32> to vector<8x48xf32>
    %164 = arith.addf %160, %163 : vector<8x48xf32>
    %165 = arith.addf %116, %164 : vector<8x48xf32>
    %c0_71 = arith.constant 0 : index
    %c0_72 = arith.constant 0 : index
    %166 = vector.load %arg15[%c0_71, %c0_72] : memref<8x48xf32, #tpu.memory_space<vmem>>, vector<8x48xf32>
    tpu.vector_store %arg15[%c0_71, %c0_72], %165 {strides = array<i32>} : memref<8x48xf32, #tpu.memory_space<vmem>>, vector<8x48xf32>,
    %c1_i32 = arith.constant 1 : i32
    %167 = arith.cmpi eq, %arg1, %c1_i32 : i32
    %168 = arith.extui %167 : i1 to i32
    %c0_i32_73 = arith.constant 0 : i32
    %169 = arith.cmpi ne, %168, %c0_i32_73 : i32
    scf.if %169 {
      %c0_74 = arith.constant 0 : index
      %c0_75 = arith.constant 0 : index
      %170 = vector.load %arg14[%c0_74, %c0_75] : memref<8x48xf32, #tpu.memory_space<vmem>>, vector<8x48xf32>
      tpu.vector_store %arg14[%c0_74, %c0_75], %165 {strides = array<i32>} : memref<8x48xf32, #tpu.memory_space<vmem>>, vector<8x48xf32>,
    } else {
    }
    return
  }
  func.func @transform_0(%arg0: i32, %arg1: i32) -> (i32, i32) {
    %c0_i32 = arith.constant 0 : i32
    %c0_i32_0 = arith.constant 0 : i32
    return %arg0, %c0_i32 : i32, i32
  }
  func.func @transform_1(%arg0: i32, %arg1: i32) -> (i32, i32, i32) {
    %c0_i32 = arith.constant 0 : i32
    %c0_i32_0 = arith.constant 0 : i32
    %c0_i32_1 = arith.constant 0 : i32
    return %arg1, %c0_i32, %c0_i32_0 : i32, i32, i32
  }
  func.func @transform_2(%arg0: i32, %arg1: i32) -> (i32, i32, i32) {
    %c0_i32 = arith.constant 0 : i32
    %c0_i32_0 = arith.constant 0 : i32
    %c0_i32_1 = arith.constant 0 : i32
    return %arg1, %c0_i32, %c0_i32_0 : i32, i32, i32
  }
  func.func @transform_3(%arg0: i32, %arg1: i32) -> (i32, i32, i32) {
    %c0_i32 = arith.constant 0 : i32
    %c0_i32_0 = arith.constant 0 : i32
    %c0_i32_1 = arith.constant 0 : i32
    return %arg1, %c0_i32, %c0_i32_0 : i32, i32, i32
  }
  func.func @transform_4(%arg0: i32, %arg1: i32) -> (i32, i32, i32) {
    %c0_i32 = arith.constant 0 : i32
    %c0_i32_0 = arith.constant 0 : i32
    %c0_i32_1 = arith.constant 0 : i32
    return %arg1, %c0_i32, %c0_i32_0 : i32, i32, i32
  }
  func.func @transform_5(%arg0: i32, %arg1: i32) -> (i32, i32, i32) {
    %c0_i32 = arith.constant 0 : i32
    %c0_i32_0 = arith.constant 0 : i32
    %c0_i32_1 = arith.constant 0 : i32
    return %arg1, %c0_i32, %c0_i32_0 : i32, i32, i32
  }
  func.func @transform_6(%arg0: i32, %arg1: i32) -> (i32, i32, i32) {
    %c0_i32 = arith.constant 0 : i32
    %c0_i32_0 = arith.constant 0 : i32
    %c0_i32_1 = arith.constant 0 : i32
    return %arg1, %c0_i32, %c0_i32_0 : i32, i32, i32
  }
  func.func @transform_7(%arg0: i32, %arg1: i32) -> (i32, i32, i32) {
    %c0_i32 = arith.constant 0 : i32
    %c0_i32_0 = arith.constant 0 : i32
    %c0_i32_1 = arith.constant 0 : i32
    return %arg1, %c0_i32, %c0_i32_0 : i32, i32, i32
  }
  func.func @transform_8(%arg0: i32, %arg1: i32) -> (i32, i32, i32) {
    %c0_i32 = arith.constant 0 : i32
    %c0_i32_0 = arith.constant 0 : i32
    %c0_i32_1 = arith.constant 0 : i32
    return %arg1, %c0_i32, %c0_i32_0 : i32, i32, i32
  }
  func.func @transform_9(%arg0: i32, %arg1: i32) -> (i32, i32, i32) {
    %c0_i32 = arith.constant 0 : i32
    %c0_i32_0 = arith.constant 0 : i32
    %c0_i32_1 = arith.constant 0 : i32
    return %arg1, %c0_i32, %c0_i32_0 : i32, i32, i32
  }
  func.func @transform_10(%arg0: i32, %arg1: i32) -> (i32, i32, i32) {
    %c0_i32 = arith.constant 0 : i32
    %c0_i32_0 = arith.constant 0 : i32
    %c0_i32_1 = arith.constant 0 : i32
    return %arg1, %c0_i32, %c0_i32_0 : i32, i32, i32
  }
  func.func @transform_11(%arg0: i32, %arg1: i32) -> (i32, i32, i32) {
    %c0_i32 = arith.constant 0 : i32
    %c0_i32_0 = arith.constant 0 : i32
    %c0_i32_1 = arith.constant 0 : i32
    return %arg1, %c0_i32, %c0_i32_0 : i32, i32, i32
  }
  func.func @transform_12(%arg0: i32, %arg1: i32) -> (i32, i32) {
    %c0_i32 = arith.constant 0 : i32
    %c0_i32_0 = arith.constant 0 : i32
    return %arg0, %c0_i32 : i32, i32
  }
}

module attributes {stable_mosaic.version = 11 : i64} {
  func.func @_head1_kernel(%arg0: i32, %arg1: memref<8x48xf32, #tpu.memory_space<vmem>>, %arg2: memref<1x48xf32, #tpu.memory_space<vmem>>, %arg3: memref<1x48xf32, #tpu.memory_space<vmem>>, %arg4: memref<48x12xf32, #tpu.memory_space<vmem>>, %arg5: memref<1x12xf32, #tpu.memory_space<vmem>>, %arg6: memref<12x128xf32, #tpu.memory_space<vmem>>, %arg7: memref<1x128xf32, #tpu.memory_space<vmem>>, %arg8: memref<8x128xf32, #tpu.memory_space<vmem>>) attributes {dimension_semantics = [#tpu.dimension_semantics<parallel>], iteration_bounds = array<i64: 2>, scalar_prefetch = 0 : i64, scratch_operands = 0 : i64, tpu.core_type = #tpu.core_type<tc>, window_params = [{transform_indices = @transform_0, window_bounds = array<i64: 8, 48>}, {pipeline_mode = #tpu.pipeline_mode<synchronous>, transform_indices = @transform_1, window_bounds = array<i64: 1, 48>}, {pipeline_mode = #tpu.pipeline_mode<synchronous>, transform_indices = @transform_2, window_bounds = array<i64: 1, 48>}, {pipeline_mode = #tpu.pipeline_mode<synchronous>, transform_indices = @transform_3, window_bounds = array<i64: 48, 12>}, {pipeline_mode = #tpu.pipeline_mode<synchronous>, transform_indices = @transform_4, window_bounds = array<i64: 1, 12>}, {pipeline_mode = #tpu.pipeline_mode<synchronous>, transform_indices = @transform_5, window_bounds = array<i64: 12, 128>}, {pipeline_mode = #tpu.pipeline_mode<synchronous>, transform_indices = @transform_6, window_bounds = array<i64: 1, 128>}, {transform_indices = @transform_7, window_bounds = array<i64: 8, 128>}]} {
    %c0 = arith.constant 0 : index
    %c0_0 = arith.constant 0 : index
    %0 = vector.load %arg1[%c0, %c0_0] : memref<8x48xf32, #tpu.memory_space<vmem>>, vector<8x48xf32>
    %c0_1 = arith.constant 0 : index
    %c0_2 = arith.constant 0 : index
    %1 = vector.load %arg2[%c0_1, %c0_2] : memref<1x48xf32, #tpu.memory_space<vmem>>, vector<1x48xf32>
    %c0_3 = arith.constant 0 : index
    %c0_4 = arith.constant 0 : index
    %2 = vector.load %arg3[%c0_3, %c0_4] : memref<1x48xf32, #tpu.memory_space<vmem>>, vector<1x48xf32>
    %cst = arith.constant dense<0.000000e+00> : vector<8xf32>
    %3 = vector.multi_reduction <add>, %0, %cst [1] : vector<8x48xf32> to vector<8xf32>
    %4 = vector.shape_cast %3 : vector<8xf32> to vector<8x1xf32>
    %cst_5 = arith.constant 4.800000e+01 : f32
    %5 = vector.broadcast %cst_5 : f32 to vector<8x1xf32>
    %6 = arith.divf %4, %5 : vector<8x1xf32>
    %7 = vector.broadcast %6 : vector<8x1xf32> to vector<8x48xf32>
    %8 = arith.subf %0, %7 : vector<8x48xf32>
    %9 = arith.mulf %8, %8 : vector<8x48xf32>
    %cst_6 = arith.constant dense<0.000000e+00> : vector<8xf32>
    %10 = vector.multi_reduction <add>, %9, %cst_6 [1] : vector<8x48xf32> to vector<8xf32>
    %11 = vector.shape_cast %10 : vector<8xf32> to vector<8x1xf32>
    %cst_7 = arith.constant 4.800000e+01 : f32
    %12 = vector.broadcast %cst_7 : f32 to vector<8x1xf32>
    %13 = arith.divf %11, %12 : vector<8x1xf32>
    %14 = vector.broadcast %6 : vector<8x1xf32> to vector<8x48xf32>
    %15 = arith.subf %0, %14 : vector<8x48xf32>
    %cst_8 = arith.constant 9.99999974E-6 : f32
    %16 = vector.broadcast %cst_8 : f32 to vector<8x1xf32>
    %17 = arith.addf %13, %16 : vector<8x1xf32>
    %18 = math.rsqrt %17 : vector<8x1xf32>
    %19 = vector.broadcast %18 : vector<8x1xf32> to vector<8x48xf32>
    %20 = arith.mulf %15, %19 : vector<8x48xf32>
    %21 = vector.broadcast %1 : vector<1x48xf32> to vector<8x48xf32>
    %22 = arith.mulf %20, %21 : vector<8x48xf32>
    %23 = vector.broadcast %2 : vector<1x48xf32> to vector<8x48xf32>
    %24 = arith.addf %22, %23 : vector<8x48xf32>
    %c0_9 = arith.constant 0 : index
    %c0_10 = arith.constant 0 : index
    %25 = vector.load %arg4[%c0_9, %c0_10] : memref<48x12xf32, #tpu.memory_space<vmem>>, vector<48x12xf32>
    %cst_11 = arith.constant dense<0.000000e+00> : vector<8x12xf32>
    %26 = tpu.matmul %24, %25, %cst_11 {dimension_numbers = #tpu.dot_dimension_numbers<[1], [0], [0], [1], [0, 0, 1, 1], [], []>} : vector<8x48xf32>, vector<48x12xf32>, vector<8x12xf32> -> vector<8x12xf32>
    %c0_12 = arith.constant 0 : index
    %c0_13 = arith.constant 0 : index
    %27 = vector.load %arg5[%c0_12, %c0_13] : memref<1x12xf32, #tpu.memory_space<vmem>>, vector<1x12xf32>
    %28 = vector.broadcast %27 : vector<1x12xf32> to vector<8x12xf32>
    %29 = arith.addf %26, %28 : vector<8x12xf32>
    %cst_14 = arith.constant 0.000000e+00 : f32
    %30 = vector.broadcast %cst_14 : f32 to vector<8x12xf32>
    %31 = arith.cmpf oge, %29, %30 : vector<8x12xf32>
    %cst_15 = arith.constant 2.000000e-01 : f32
    %32 = vector.broadcast %cst_15 : f32 to vector<8x12xf32>
    %33 = arith.mulf %32, %29 : vector<8x12xf32>
    %34 = arith.select %31, %29, %33 : vector<8x12xi1>, vector<8x12xf32>
    %c0_16 = arith.constant 0 : index
    %c0_17 = arith.constant 0 : index
    %35 = vector.load %arg6[%c0_16, %c0_17] : memref<12x128xf32, #tpu.memory_space<vmem>>, vector<12x128xf32>
    %cst_18 = arith.constant dense<0.000000e+00> : vector<8x128xf32>
    %36 = tpu.matmul %34, %35, %cst_18 {dimension_numbers = #tpu.dot_dimension_numbers<[1], [0], [0], [1], [0, 0, 1, 1], [], []>} : vector<8x12xf32>, vector<12x128xf32>, vector<8x128xf32> -> vector<8x128xf32>
    %c0_19 = arith.constant 0 : index
    %c0_20 = arith.constant 0 : index
    %37 = vector.load %arg7[%c0_19, %c0_20] : memref<1x128xf32, #tpu.memory_space<vmem>>, vector<1x128xf32>
    %38 = vector.broadcast %37 : vector<1x128xf32> to vector<8x128xf32>
    %39 = arith.addf %36, %38 : vector<8x128xf32>
    %c0_21 = arith.constant 0 : index
    %c0_22 = arith.constant 0 : index
    %40 = vector.load %arg8[%c0_21, %c0_22] : memref<8x128xf32, #tpu.memory_space<vmem>>, vector<8x128xf32>
    tpu.vector_store %arg8[%c0_21, %c0_22], %39 {strides = array<i32>} : memref<8x128xf32, #tpu.memory_space<vmem>>, vector<8x128xf32>,
    return
  }
  func.func @transform_0(%arg0: i32) -> (i32, i32) {
    %c0_i32 = arith.constant 0 : i32
    %c0_i32_0 = arith.constant 0 : i32
    return %arg0, %c0_i32 : i32, i32
  }
  func.func @transform_1(%arg0: i32) -> (i32, i32) {
    %c0_i32 = arith.constant 0 : i32
    %c0_i32_0 = arith.constant 0 : i32
    %c0_i32_1 = arith.constant 0 : i32
    return %c0_i32, %c0_i32_0 : i32, i32
  }
  func.func @transform_2(%arg0: i32) -> (i32, i32) {
    %c0_i32 = arith.constant 0 : i32
    %c0_i32_0 = arith.constant 0 : i32
    %c0_i32_1 = arith.constant 0 : i32
    return %c0_i32, %c0_i32_0 : i32, i32
  }
  func.func @transform_3(%arg0: i32) -> (i32, i32) {
    %c0_i32 = arith.constant 0 : i32
    %c0_i32_0 = arith.constant 0 : i32
    %c0_i32_1 = arith.constant 0 : i32
    return %c0_i32, %c0_i32_0 : i32, i32
  }
  func.func @transform_4(%arg0: i32) -> (i32, i32) {
    %c0_i32 = arith.constant 0 : i32
    %c0_i32_0 = arith.constant 0 : i32
    %c0_i32_1 = arith.constant 0 : i32
    return %c0_i32, %c0_i32_0 : i32, i32
  }
  func.func @transform_5(%arg0: i32) -> (i32, i32) {
    %c0_i32 = arith.constant 0 : i32
    %c0_i32_0 = arith.constant 0 : i32
    %c0_i32_1 = arith.constant 0 : i32
    return %c0_i32, %c0_i32_0 : i32, i32
  }
  func.func @transform_6(%arg0: i32) -> (i32, i32) {
    %c0_i32 = arith.constant 0 : i32
    %c0_i32_0 = arith.constant 0 : i32
    %c0_i32_1 = arith.constant 0 : i32
    return %c0_i32, %c0_i32_0 : i32, i32
  }
  func.func @transform_7(%arg0: i32) -> (i32, i32) {
    %c0_i32 = arith.constant 0 : i32
    %c0_i32_0 = arith.constant 0 : i32
    return %arg0, %c0_i32 : i32, i32
  }
}

module attributes {stable_mosaic.version = 11 : i64} {
  func.func @_head2_kernel(%arg0: i32, %arg1: memref<4x16xf32, #tpu.memory_space<vmem>>, %arg2: memref<16x32xf32, #tpu.memory_space<vmem>>, %arg3: memref<1x32xf32, #tpu.memory_space<vmem>>, %arg4: memref<32x24xf32, #tpu.memory_space<vmem>>, %arg5: memref<1x24xf32, #tpu.memory_space<vmem>>, %arg6: memref<24x2xf32, #tpu.memory_space<vmem>>, %arg7: memref<1x2xf32, #tpu.memory_space<vmem>>, %arg8: memref<4x24xf32, #tpu.memory_space<vmem>>, %arg9: memref<4x2xf32, #tpu.memory_space<vmem>>, %arg10: memref<4x32xf32, #tpu.memory_space<vmem>>) attributes {dimension_semantics = [#tpu.dimension_semantics<arbitrary>], iteration_bounds = array<i64: 1>, scalar_prefetch = 0 : i64, scratch_operands = 1 : i64, tpu.core_type = #tpu.core_type<tc>, window_params = [{transform_indices = @transform_0, window_bounds = array<i64: 4, 16>}, {transform_indices = @transform_1, window_bounds = array<i64: 16, 32>}, {pipeline_mode = #tpu.pipeline_mode<synchronous>, transform_indices = @transform_2, window_bounds = array<i64: 1, 32>}, {pipeline_mode = #tpu.pipeline_mode<synchronous>, transform_indices = @transform_3, window_bounds = array<i64: 32, 24>}, {pipeline_mode = #tpu.pipeline_mode<synchronous>, transform_indices = @transform_4, window_bounds = array<i64: 1, 24>}, {pipeline_mode = #tpu.pipeline_mode<synchronous>, transform_indices = @transform_5, window_bounds = array<i64: 24, 2>}, {pipeline_mode = #tpu.pipeline_mode<synchronous>, transform_indices = @transform_6, window_bounds = array<i64: 1, 2>}, {pipeline_mode = #tpu.pipeline_mode<synchronous>, transform_indices = @transform_7, window_bounds = array<i64: 4, 24>}, {pipeline_mode = #tpu.pipeline_mode<synchronous>, transform_indices = @transform_8, window_bounds = array<i64: 4, 2>}]} {
    %c0_i32 = arith.constant 0 : i32
    %0 = arith.cmpi eq, %arg0, %c0_i32 : i32
    %1 = arith.extui %0 : i1 to i32
    %c0_i32_0 = arith.constant 0 : i32
    %2 = arith.cmpi ne, %1, %c0_i32_0 : i32
    scf.if %2 {
      %cst_10 = arith.constant 0.000000e+00 : f32
      %12 = vector.broadcast %cst_10 : f32 to vector<4x32xf32>
      %c0_11 = arith.constant 0 : index
      %c0_12 = arith.constant 0 : index
      %13 = vector.load %arg10[%c0_11, %c0_12] : memref<4x32xf32, #tpu.memory_space<vmem>>, vector<4x32xf32>
      tpu.vector_store %arg10[%c0_11, %c0_12], %12 {strides = array<i32>} : memref<4x32xf32, #tpu.memory_space<vmem>>, vector<4x32xf32>,
    } else {
    }
    %c0 = arith.constant 0 : index
    %c0_1 = arith.constant 0 : index
    %3 = vector.load %arg10[%c0, %c0_1] : memref<4x32xf32, #tpu.memory_space<vmem>>, vector<4x32xf32>
    %c0_2 = arith.constant 0 : index
    %c0_3 = arith.constant 0 : index
    %4 = vector.load %arg1[%c0_2, %c0_3] : memref<4x16xf32, #tpu.memory_space<vmem>>, vector<4x16xf32>
    %c0_4 = arith.constant 0 : index
    %c0_5 = arith.constant 0 : index
    %5 = vector.load %arg2[%c0_4, %c0_5] : memref<16x32xf32, #tpu.memory_space<vmem>>, vector<16x32xf32>
    %cst = arith.constant dense<0.000000e+00> : vector<4x32xf32>
    %6 = tpu.matmul %4, %5, %cst {dimension_numbers = #tpu.dot_dimension_numbers<[1], [0], [0], [1], [0, 0, 1, 1], [], []>} : vector<4x16xf32>, vector<16x32xf32>, vector<4x32xf32> -> vector<4x32xf32>
    %7 = arith.addf %3, %6 : vector<4x32xf32>
    %c0_6 = arith.constant 0 : index
    %c0_7 = arith.constant 0 : index
    %8 = vector.load %arg10[%c0_6, %c0_7] : memref<4x32xf32, #tpu.memory_space<vmem>>, vector<4x32xf32>
    tpu.vector_store %arg10[%c0_6, %c0_7], %7 {strides = array<i32>} : memref<4x32xf32, #tpu.memory_space<vmem>>, vector<4x32xf32>,
    %c0_i32_8 = arith.constant 0 : i32
    %9 = arith.cmpi eq, %arg0, %c0_i32_8 : i32
    %10 = arith.extui %9 : i1 to i32
    %c0_i32_9 = arith.constant 0 : i32
    %11 = arith.cmpi ne, %10, %c0_i32_9 : i32
    scf.if %11 {
      %c0_10 = arith.constant 0 : index
      %c0_11 = arith.constant 0 : index
      %12 = vector.load %arg10[%c0_10, %c0_11] : memref<4x32xf32, #tpu.memory_space<vmem>>, vector<4x32xf32>
      %c0_12 = arith.constant 0 : index
      %c0_13 = arith.constant 0 : index
      %13 = vector.load %arg3[%c0_12, %c0_13] : memref<1x32xf32, #tpu.memory_space<vmem>>, vector<1x32xf32>
      %14 = vector.broadcast %13 : vector<1x32xf32> to vector<4x32xf32>
      %15 = arith.addf %12, %14 : vector<4x32xf32>
      %cst_14 = arith.constant 0.000000e+00 : f32
      %16 = vector.broadcast %cst_14 : f32 to vector<4x32xf32>
      %17 = arith.cmpf oge, %15, %16 : vector<4x32xf32>
      %cst_15 = arith.constant 2.000000e-01 : f32
      %18 = vector.broadcast %cst_15 : f32 to vector<4x32xf32>
      %19 = arith.mulf %18, %15 : vector<4x32xf32>
      %20 = arith.select %17, %15, %19 : vector<4x32xi1>, vector<4x32xf32>
      %c0_16 = arith.constant 0 : index
      %c0_17 = arith.constant 0 : index
      %21 = vector.load %arg4[%c0_16, %c0_17] : memref<32x24xf32, #tpu.memory_space<vmem>>, vector<32x24xf32>
      %cst_18 = arith.constant dense<0.000000e+00> : vector<4x24xf32>
      %22 = tpu.matmul %20, %21, %cst_18 {dimension_numbers = #tpu.dot_dimension_numbers<[1], [0], [0], [1], [0, 0, 1, 1], [], []>} : vector<4x32xf32>, vector<32x24xf32>, vector<4x24xf32> -> vector<4x24xf32>
      %c0_19 = arith.constant 0 : index
      %c0_20 = arith.constant 0 : index
      %23 = vector.load %arg5[%c0_19, %c0_20] : memref<1x24xf32, #tpu.memory_space<vmem>>, vector<1x24xf32>
      %24 = vector.broadcast %23 : vector<1x24xf32> to vector<4x24xf32>
      %25 = arith.addf %22, %24 : vector<4x24xf32>
      %c0_21 = arith.constant 0 : index
      %c0_22 = arith.constant 0 : index
      %26 = vector.load %arg8[%c0_21, %c0_22] : memref<4x24xf32, #tpu.memory_space<vmem>>, vector<4x24xf32>
      tpu.vector_store %arg8[%c0_21, %c0_22], %25 {strides = array<i32>} : memref<4x24xf32, #tpu.memory_space<vmem>>, vector<4x24xf32>,
      %c0_23 = arith.constant 0 : index
      %c0_24 = arith.constant 0 : index
      %27 = vector.load %arg6[%c0_23, %c0_24] : memref<24x2xf32, #tpu.memory_space<vmem>>, vector<24x2xf32>
      %cst_25 = arith.constant dense<0.000000e+00> : vector<4x2xf32>
      %28 = tpu.matmul %25, %27, %cst_25 {dimension_numbers = #tpu.dot_dimension_numbers<[1], [0], [0], [1], [0, 0, 1, 1], [], []>} : vector<4x24xf32>, vector<24x2xf32>, vector<4x2xf32> -> vector<4x2xf32>
      %c0_26 = arith.constant 0 : index
      %c0_27 = arith.constant 0 : index
      %29 = vector.load %arg7[%c0_26, %c0_27] : memref<1x2xf32, #tpu.memory_space<vmem>>, vector<1x2xf32>
      %30 = vector.broadcast %29 : vector<1x2xf32> to vector<4x2xf32>
      %31 = arith.addf %28, %30 : vector<4x2xf32>
      %32 = arith.negf %31 : vector<4x2xf32>
      %33 = math.exp %32 : vector<4x2xf32>
      %cst_28 = arith.constant 1.000000e+00 : f32
      %34 = vector.broadcast %cst_28 : f32 to vector<4x2xf32>
      %35 = arith.addf %34, %33 : vector<4x2xf32>
      %36 = arith.divf %34, %35 : vector<4x2xf32>
      %c0_29 = arith.constant 0 : index
      %c0_30 = arith.constant 0 : index
      %37 = vector.load %arg9[%c0_29, %c0_30] : memref<4x2xf32, #tpu.memory_space<vmem>>, vector<4x2xf32>
      tpu.vector_store %arg9[%c0_29, %c0_30], %36 {strides = array<i32>} : memref<4x2xf32, #tpu.memory_space<vmem>>, vector<4x2xf32>,
    } else {
    }
    return
  }
  func.func @transform_0(%arg0: i32) -> (i32, i32) {
    %c0_i32 = arith.constant 0 : i32
    %c0_i32_0 = arith.constant 0 : i32
    return %c0_i32, %arg0 : i32, i32
  }
  func.func @transform_1(%arg0: i32) -> (i32, i32) {
    %c0_i32 = arith.constant 0 : i32
    %c0_i32_0 = arith.constant 0 : i32
    return %arg0, %c0_i32 : i32, i32
  }
  func.func @transform_2(%arg0: i32) -> (i32, i32) {
    %c0_i32 = arith.constant 0 : i32
    %c0_i32_0 = arith.constant 0 : i32
    %c0_i32_1 = arith.constant 0 : i32
    return %c0_i32, %c0_i32_0 : i32, i32
  }
  func.func @transform_3(%arg0: i32) -> (i32, i32) {
    %c0_i32 = arith.constant 0 : i32
    %c0_i32_0 = arith.constant 0 : i32
    %c0_i32_1 = arith.constant 0 : i32
    return %c0_i32, %c0_i32_0 : i32, i32
  }
  func.func @transform_4(%arg0: i32) -> (i32, i32) {
    %c0_i32 = arith.constant 0 : i32
    %c0_i32_0 = arith.constant 0 : i32
    %c0_i32_1 = arith.constant 0 : i32
    return %c0_i32, %c0_i32_0 : i32, i32
  }
  func.func @transform_5(%arg0: i32) -> (i32, i32) {
    %c0_i32 = arith.constant 0 : i32
    %c0_i32_0 = arith.constant 0 : i32
    %c0_i32_1 = arith.constant 0 : i32
    return %c0_i32, %c0_i32_0 : i32, i32
  }
  func.func @transform_6(%arg0: i32) -> (i32, i32) {
    %c0_i32 = arith.constant 0 : i32
    %c0_i32_0 = arith.constant 0 : i32
    %c0_i32_1 = arith.constant 0 : i32
    return %c0_i32, %c0_i32_0 : i32, i32
  }
  func.func @transform_7(%arg0: i32) -> (i32, i32) {
    %c0_i32 = arith.constant 0 : i32
    %c0_i32_0 = arith.constant 0 : i32
    %c0_i32_1 = arith.constant 0 : i32
    return %c0_i32, %c0_i32_0 : i32, i32
  }
  func.func @transform_8(%arg0: i32) -> (i32, i32) {
    %c0_i32 = arith.constant 0 : i32
    %c0_i32_0 = arith.constant 0 : i32
    %c0_i32_1 = arith.constant 0 : i32
    return %c0_i32, %c0_i32_0 : i32, i32
  }
}

</mosaic_0001>

<llo_original>
// kernel: tpu_custom_call.1
$region0: #{tpu_custom_call.1}
  #allocation0 [shape = 'u32[]', space=smem, size = 0x4, offset = 0x4, fixed_abs, tag = 'smem constant byte address 0x4 - core index']
  #allocation1 [shape = 'u32[144,128]{1,0:T(1,128)}', space=vmem, size = 0x12000, scoped, tag = 'internal scratch']
  %s0 = inlined_call_operand.hbm [shape: f32[8,128], index: 0, kind: input, shape index: {}]
  %s1 = inlined_call_operand.hbm [shape: f32[8,128], index: 1, kind: output, shape index: {}]
  %s2 = sld [smem:[#allocation0]]
  $region41: #{tpu_custom_call.1} parent=0
    _
  %s4 = ssub.s32 1, %s2
  %s5 = scalar_select 0, %s4, %s2
  $region1: #{tpu_custom_call.1} parent=0
    #allocation2 [shape = 'u8[4096]{0}', space=vmem, size = 0x1000, scoped, tag = 'input window, operand 0, single buffered']
    #allocation3 [shape = 's32[2]{0}', space=sflag, size = 0x8, scoped, tag = 'scoped memory for tpu_custom_call.1']
    #allocation4 [shape = 's32[2]{0}', space=sflag, size = 0x8, scoped, tag = 'scoped memory for tpu_custom_call.1']
    #allocation5 [shape = 'u8[4096]{0}', space=vmem, size = 0x1000, scoped, tag = 'output window, operand 0, single buffered']
    %6 = vsyncpa [#allocation3], 0
    %7 = vsyncpa [#allocation4], 0
    loop: start=0, step=1, limit=4
    $region2: #{tpu_custom_call.1} parent=1 // loop_pre_header
      _
    $region3: #{tpu_custom_call.1} parent=1 // loop_header
      %s9 = sphi 0, %s13
      %p10 = scmp.ge.s32.totalorder %s9, 4
      %s17 = sphi 0, %s17
      %s19 = sphi 0, %s17
      %s20 = sphi 0, %s19
      %s34 = sphi 0, %s20
      %s38 = sphi 0, %s38
      %s40 = sphi 0, %s38
      %s41 = sphi 0, %s40
      %s55 = sphi 0, %s41
    $region4: #{tpu_custom_call.1} parent=1 // loop_header_branch
      %12 = sbr.rel (%p10) target = $region8
    $region5: #{tpu_custom_call.1} parent=1 // loop_body
      %s14 = ssub.s32 %s9, 1
      %s15 = ssub.s32 %s9, 2
      %s16 = sadd.s32 %s9, 1
      %s18 = sadd.s32 %s17, 1
      %p21 = scmp.eq.s32.totalorder %s9, 1
      %p22 = scmp.ne.s32.totalorder %s17, %s19
      %p23 = scmp.eq.s32.totalorder %s9, 0
      %p24 = por %p22, %p23
      %p25 = scmp.ne.s32.totalorder %s17, %s19
      %p26 = scmp.eq.s32.totalorder %s14, 1
      %p27 = por %p25, %p26
      %p28 = scmp.ne.s32.totalorder %s19, %s20
      %p29 = scmp.eq.s32.totalorder %s14, 0
      %p30 = por %p28, %p29
      %p31 = scmp.ne.s32.totalorder %s19, %s20
      %p32 = scmp.eq.s32.totalorder %s15, 1
      %p33 = por %p31, %p32
      %p35 = scmp.ne.s32.totalorder %s20, %s34
      %p36 = scmp.eq.s32.totalorder %s15, 0
      %p37 = por %p35, %p36
      %s39 = sadd.s32 %s38, 1
      %p42 = scmp.eq.s32.totalorder %s9, 1
      %p43 = scmp.ne.s32.totalorder %s38, %s40
      %p44 = scmp.eq.s32.totalorder %s9, 0
      %p45 = por %p43, %p44
      %p46 = scmp.ne.s32.totalorder %s38, %s40
      %p47 = scmp.eq.s32.totalorder %s14, 1
      %p48 = por %p46, %p47
      %p49 = scmp.ne.s32.totalorder %s40, %s41
      %p50 = scmp.eq.s32.totalorder %s14, 0
      %p51 = por %p49, %p50
      %p52 = scmp.ne.s32.totalorder %s40, %s41
      %p53 = scmp.eq.s32.totalorder %s15, 1
      %p54 = por %p52, %p53
      %p56 = scmp.ne.s32.totalorder %s41, %s55
      %p57 = scmp.eq.s32.totalorder %s15, 0
      %p58 = por %p56, %p57
      %p59 = scmp.le.s32.totalorder 1, %s9
      %p60 = scmp.lt.s32.totalorder %s9, 3
      %p61 = pnand %p59, %p60
      %p62 = pneg %p61
      // Predicated region
      $region9: #{tpu_custom_call.1} parent=5 // pred_check
        _
      $region10: #{tpu_custom_call.1} parent=5 // pred_check_branch
        %64 = sbr.rel (%p61) target = $region12
      $region11: #{tpu_custom_call.1} parent=5 // pred_region
        %s65 = ssub.s32 %s9, 1
        // Predicated region
        $region13: #{tpu_custom_call.1} parent=11 // pred_check
          %p66 = pneg %p30
        $region14: #{tpu_custom_call.1} parent=11 // pred_check_branch
          %68 = sbr.rel (%p66) target = $region16
        $region15: #{tpu_custom_call.1} parent=11 // pred_region
          %s70 = ssub.s32 128, 128
          %71 = vsyncadd [#allocation3], %s70
          %s73 = sshll.u32 [#allocation2], 4
          %s74 = int_to_ptr.vmem [resolvable:$true] %s73
          %76 = dma.hbm_to_vmem [thread:$0]  %s0, 128, %s74, [#allocation3]
        $region16: #{tpu_custom_call.1} parent=11 // pred_fallthru
          _
      $region12: #{tpu_custom_call.1} parent=5 // pred_fallthru
        _
      %p77 = scmp.lt.s32.totalorder %s9, 2
      // Predicated region
      $region17: #{tpu_custom_call.1} parent=5 // pred_check
        %p78 = pneg %p77
      $region18: #{tpu_custom_call.1} parent=5 // pred_check_branch
        %80 = sbr.rel (%p78) target = $region20
      $region19: #{tpu_custom_call.1} parent=5 // pred_region
        _
      $region20: #{tpu_custom_call.1} parent=5 // pred_fallthru
        _
      %p81 = scmp.le.s32.totalorder 1, %s9
      %p82 = scmp.lt.s32.totalorder %s9, 3
      %p83 = pnand %p81, %p82
      %p84 = pneg %p83
      // Predicated region
      $region21: #{tpu_custom_call.1} parent=5 // pred_check
        _
      $region22: #{tpu_custom_call.1} parent=5 // pred_check_branch
        %86 = sbr.rel (%p83) target = $region24
      $region23: #{tpu_custom_call.1} parent=5 // pred_region
        %s87 = ssub.s32 %s9, 1
        // Predicated region
        $region25: #{tpu_custom_call.1} parent=23 // pred_check
          %p88 = pneg %p30
        $region26: #{tpu_custom_call.1} parent=23 // pred_check_branch
          %90 = sbr.rel (%p88) target = $region28
        $region27: #{tpu_custom_call.1} parent=23 // pred_region
          %91 = dma.done [#allocation3], 128
        $region28: #{tpu_custom_call.1} parent=23 // pred_fallthru
          _
        %p92 = pneg %p30
        %p93 = pneg %p27
        %p94 = pneg %p51
        %p95 = pneg %p48
        %v96 = vld [vmem:[#allocation2] sm:$0xff]
        %v97 = vadd.f32 %v96, 1.0
        %98 = vst [vmem:[#allocation5] sm:$0xff] %v97
        // Predicated region
        $region29: #{tpu_custom_call.1} parent=23 // pred_check
          %p99 = pneg %p48
        $region30: #{tpu_custom_call.1} parent=23 // pred_check_branch
          %101 = sbr.rel (%p99) target = $region32
        $region31: #{tpu_custom_call.1} parent=23 // pred_region
          %s103 = ssub.s32 128, 128
          %104 = vsyncadd [#allocation4], %s103
          %s106 = sshll.u32 [#allocation5], 4
          %s107 = int_to_ptr.vmem [resolvable:$true] %s106
          %109 = dma.vmem_to_hbm [thread:$0]  %s107, 128, %s1, [#allocation4]
        $region32: #{tpu_custom_call.1} parent=23 // pred_fallthru
          _
        // Predicated region
        $region33: #{tpu_custom_call.1} parent=23 // pred_check
          %p110 = pneg %p48
        $region34: #{tpu_custom_call.1} parent=23 // pred_check_branch
          %112 = sbr.rel (%p110) target = $region36
        $region35: #{tpu_custom_call.1} parent=23 // pred_region
          %113 = dma.done [#allocation4], 128
        $region36: #{tpu_custom_call.1} parent=23 // pred_fallthru
          _
      $region24: #{tpu_custom_call.1} parent=5 // pred_fallthru
        _
      %p114 = scmp.le.s32.totalorder 2, %s9
      // Predicated region
      $region37: #{tpu_custom_call.1} parent=5 // pred_check
        %p115 = pneg %p114
      $region38: #{tpu_custom_call.1} parent=5 // pred_check_branch
        %117 = sbr.rel (%p115) target = $region40
      $region39: #{tpu_custom_call.1} parent=5 // pred_region
        %s118 = ssub.s32 %s9, 2
      $region40: #{tpu_custom_call.1} parent=5 // pred_fallthru
        _
    $region6: #{tpu_custom_call.1} parent=1 // loop_footer
      %s13 = sadd.s32 1, %s9
    $region7: #{tpu_custom_call.1} parent=1 // loop_footer_branch
      %8 = sbr.rel target = $region3
    $region8: #{tpu_custom_call.1} parent=1 // loop_exit
      _
    %119 = vsyncpa [#allocation3], 1
    %s120 = scalar_lea.sflag [#allocation3], 1
    %121 = vsyncpa %s120, 1
    %122 = vsyncpa [#allocation4], 1
    %s123 = scalar_lea.sflag [#allocation4], 1
    %124 = vsyncpa %s123, 1

// kernel: vision_transformer_forward.6
$region0: #{vision_transformer_forward.6}
  #allocation0 [shape = 'u32[]', space=smem, size = 0x4, offset = 0x4, fixed_abs, tag = 'smem constant byte address 0x4 - core index']
  #allocation1 [shape = 'u32[144,128]{1,0:T(1,128)}', space=vmem, size = 0x12000, scoped, tag = 'internal scratch']
  %s0 = inlined_call_operand.vmem [shape: f32[16,192], index: 0, kind: input, shape index: {}]
  %s1 = inlined_call_operand.vmem [shape: f32[192,48], index: 1, kind: input, shape index: {}]
  %s2 = inlined_call_operand.vmem [shape: f32[1,48], index: 2, kind: input, shape index: {}]
  %s3 = inlined_call_operand.vmem [shape: f32[16,48], index: 3, kind: output, shape index: {}]
  %s4 = sld [smem:[#allocation0]]
  $region45: #{vision_transformer_forward.6} parent=0
    _
  %s6 = ssub.s32 1, %s4
  %s7 = scalar_select 0, %s6, %s4
  loop: start=0, step=1, limit=4
  $region2: #{vision_transformer_forward.6} parent=0 // loop_pre_header
    _
  $region3: #{vision_transformer_forward.6} parent=0 // loop_header
    %s9 = sphi 0, %s13
    %p10 = scmp.ge.s32.totalorder %s9, 4
    %s16 = sphi 0, %s28
    %s17 = sphi 0, %s24
    %s18 = sphi 0, %s16
    %s19 = sphi 0, %s17
    %s20 = sphi 0, %s18
    %s21 = sphi 0, %s19
    %s31 = sphi 0, %s33
    %s34 = sphi 0, %s31
    %s35 = sphi 0, %s34
    %s51 = sphi 0, %s35
    %s57 = sphi 0, %s59
    %s60 = sphi 0, %s57
    %s61 = sphi 0, %s60
    %s77 = sphi 0, %s61
    %s83 = sphi 0, %s85
    %s86 = sphi 0, %s83
    %s87 = sphi 0, %s86
    %s103 = sphi 0, %s87
    %s111 = sphi 0, %s113
    %s114 = sphi 0, %s111
    %s115 = sphi 0, %s114
    %s131 = sphi 0, %s115
  $region4: #{vision_transformer_forward.6} parent=0 // loop_header_branch
    %12 = sbr.rel (%p10) target = $region8
  $region5: #{vision_transformer_forward.6} parent=0 // loop_body
    %s14 = ssub.s32 %s9, 1
    %s15 = ssub.s32 %s9, 2
    %s22 = sadd.s32 1, %s17
    %p23 = scmp.ge.s32.totalorder %s22, 1
    %s24 = scalar_select %p23, 0, %s22
    %s25 = sadd.s32 1, %s16
    %s26 = scalar_select %p23, %s25, %s16
    %p27 = scmp.ge.s32.totalorder %s26, 2
    %s28 = scalar_select %p27, 0, %s26
    %s29 = ssub.s32 %s16, %s28
    %p30 = scmp.eq.s32.totalorder %s29, 0
    %s32 = sadd.s32 %s31, 1
    %s33 = scalar_select %p30, %s31, %s32
    %p36 = pneg %p30
    %p37 = scmp.eq.s32.totalorder %s9, 1
    %p38 = por %p36, %p37
    %p39 = scmp.ne.s32.totalorder %s31, %s34
    %p40 = scmp.eq.s32.totalorder %s9, 0
    %p41 = por %p39, %p40
    %p42 = scmp.ne.s32.totalorder %s31, %s34
    %p43 = scmp.eq.s32.totalorder %s14, 1
    %p44 = por %p42, %p43
    %p45 = scmp.ne.s32.totalorder %s34, %s35
    %p46 = scmp.eq.s32.totalorder %s14, 0
    %p47 = por %p45, %p46
    %p48 = scmp.ne.s32.totalorder %s34, %s35
    %p49 = scmp.eq.s32.totalorder %s15, 1
    %p50 = por %p48, %p49
    %p52 = scmp.ne.s32.totalorder %s35, %s51
    %p53 = scmp.eq.s32.totalorder %s15, 0
    %p54 = por %p52, %p53
    %s55 = ssub.s32 %s17, %s24
    %p56 = scmp.eq.s32.totalorder %s55, 0
    %s58 = sadd.s32 %s57, 1
    %s59 = scalar_select %p56, %s57, %s58
    %p62 = pneg %p56
    %p63 = scmp.eq.s32.totalorder %s9, 1
    %p64 = por %p62, %p63
    %p65 = scmp.ne.s32.totalorder %s57, %s60
    %p66 = scmp.eq.s32.totalorder %s9, 0
    %p67 = por %p65, %p66
    %p68 = scmp.ne.s32.totalorder %s57, %s60
    %p69 = scmp.eq.s32.totalorder %s14, 1
    %p70 = por %p68, %p69
    %p71 = scmp.ne.s32.totalorder %s60, %s61
    %p72 = scmp.eq.s32.totalorder %s14, 0
    %p73 = por %p71, %p72
    %p74 = scmp.ne.s32.totalorder %s60, %s61
    %p75 = scmp.eq.s32.totalorder %s15, 1
    %p76 = por %p74, %p75
    %p78 = scmp.ne.s32.totalorder %s61, %s77
    %p79 = scmp.eq.s32.totalorder %s15, 0
    %p80 = por %p78, %p79
    %s81 = ssub.s32 %s17, %s24
    %p82 = scmp.eq.s32.totalorder %s81, 0
    %s84 = sadd.s32 %s83, 1
    %s85 = scalar_select %p82, %s83, %s84
    %p88 = pneg %p82
    %p89 = scmp.eq.s32.totalorder %s9, 1
    %p90 = por %p88, %p89
    %p91 = scmp.ne.s32.totalorder %s83, %s86
    %p92 = scmp.eq.s32.totalorder %s9, 0
    %p93 = por %p91, %p92
    %p94 = scmp.ne.s32.totalorder %s83, %s86
    %p95 = scmp.eq.s32.totalorder %s14, 1
    %p96 = por %p94, %p95
    %p97 = scmp.ne.s32.totalorder %s86, %s87
    %p98 = scmp.eq.s32.totalorder %s14, 0
    %p99 = por %p97, %p98
    %p100 = scmp.ne.s32.totalorder %s86, %s87
    %p101 = scmp.eq.s32.totalorder %s15, 1
    %p102 = por %p100, %p101
    %p104 = scmp.ne.s32.totalorder %s87, %s103
    %p105 = scmp.eq.s32.totalorder %s15, 0
    %p106 = por %p104, %p105
    %s107 = ssub.s32 %s16, %s28
    %s108 = ssub.s32 %s17, %s24
    %s109 = sor.u32 %s107, %s108
    %p110 = scmp.eq.s32.totalorder %s109, 0
    %s112 = sadd.s32 %s111, 1
    %s113 = scalar_select %p110, %s111, %s112
    %p116 = pneg %p110
    %p117 = scmp.eq.s32.totalorder %s9, 1
    %p118 = por %p116, %p117
    %p119 = scmp.ne.s32.totalorder %s111, %s114
    %p120 = scmp.eq.s32.totalorder %s9, 0
    %p121 = por %p119, %p120
    %p122 = scmp.ne.s32.totalorder %s111, %s114
    %p123 = scmp.eq.s32.totalorder %s14, 1
    %p124 = por %p122, %p123
    %p125 = scmp.ne.s32.totalorder %s114, %s115
    %p126 = scmp.eq.s32.totalorder %s14, 0
    %p127 = por %p125, %p126
    %p128 = scmp.ne.s32.totalorder %s114, %s115
    %p129 = scmp.eq.s32.totalorder %s15, 1
    %p130 = por %p128, %p129
    %p132 = scmp.ne.s32.totalorder %s115, %s131
    %p133 = scmp.eq.s32.totalorder %s15, 0
    %p134 = por %p132, %p133
    %p135 = scmp.le.s32.totalorder 1, %s9
    %p136 = scmp.lt.s32.totalorder %s9, 3
    %p137 = pnand %p135, %p136
    %p138 = pneg %p137
    // Predicated region
    $region9: #{vision_transformer_forward.6} parent=5 // pred_check
      _
    $region10: #{vision_transformer_forward.6} parent=5 // pred_check_branch
      %140 = sbr.rel (%p137) target = $region12
    $region11: #{vision_transformer_forward.6} parent=5 // pred_region
      %s141 = ssub.s32 %s9, 1
      // Predicated region
      $region13: #{vision_transformer_forward.6} parent=11 // pred_check
        %p142 = pneg %p73
      $region14: #{vision_transformer_forward.6} parent=11 // pred_check_branch
        %144 = sbr.rel (%p142) target = $region16
      $region15: #{vision_transformer_forward.6} parent=11 // pred_region
        %p145 = scmp.lt.s32.totalorder %s19, 0
        %s146 = scalar_select %p145, %s19, 0
        %s147 = smul.addr %s146, 8
        %s148 = scalar_lea.vmem %s1, %s147
      $region16: #{vision_transformer_forward.6} parent=11 // pred_fallthru
        _
      // Predicated region
      $region17: #{vision_transformer_forward.6} parent=11 // pred_check
        %p149 = pneg %p99
      $region18: #{vision_transformer_forward.6} parent=11 // pred_check_branch
        %151 = sbr.rel (%p149) target = $region20
      $region19: #{vision_transformer_forward.6} parent=11 // pred_region
        %p152 = scmp.lt.s32.totalorder %s19, 0
        %s153 = scalar_select %p152, %s19, 0
        %s154 = scalar_lea.vmem %s2, %s153
      $region20: #{vision_transformer_forward.6} parent=11 // pred_fallthru
        _
    $region12: #{vision_transformer_forward.6} parent=5 // pred_fallthru
      _
    %p155 = scmp.lt.s32.totalorder %s9, 2
    // Predicated region
    $region21: #{vision_transformer_forward.6} parent=5 // pred_check
      %p156 = pneg %p155
    $region22: #{vision_transformer_forward.6} parent=5 // pred_check_branch
      %158 = sbr.rel (%p156) target = $region24
    $region23: #{vision_transformer_forward.6} parent=5 // pred_region
      // Predicated region
      $region25: #{vision_transformer_forward.6} parent=23 // pred_check
        %p159 = pneg %p41
      $region26: #{vision_transformer_forward.6} parent=23 // pred_check_branch
        %161 = sbr.rel (%p159) target = $region28
      $region27: #{vision_transformer_forward.6} parent=23 // pred_region
        %p162 = scmp.lt.s32.totalorder %s16, 1
        %s163 = scalar_select %p162, %s16, 1
        %s164 = smul.addr %s163, 2
        %s165 = smul.addr %s164, 8
        %s166 = scalar_lea.vmem %s0, %s165
      $region28: #{vision_transformer_forward.6} parent=23 // pred_fallthru
        _
    $region24: #{vision_transformer_forward.6} parent=5 // pred_fallthru
      _
    %p167 = scmp.le.s32.totalorder 1, %s9
    %p168 = scmp.lt.s32.totalorder %s9, 3
    %p169 = pnand %p167, %p168
    %p170 = pneg %p169
    // Predicated region
    $region29: #{vision_transformer_forward.6} parent=5 // pred_check
      _
    $region30: #{vision_transformer_forward.6} parent=5 // pred_check_branch
      %172 = sbr.rel (%p169) target = $region32
    $region31: #{vision_transformer_forward.6} parent=5 // pred_region
      %s173 = ssub.s32 %s9, 1
      %p174 = scmp.lt.s32.totalorder %s18, 1
      %s175 = scalar_select %p174, %s18, 1
      %s176 = smul.addr %s175, 2
      %s177 = smul.addr %s176, 8
      %s178 = scalar_lea.vmem %s0, %s177
      %p179 = pneg %p47
      %p180 = pneg %p44
      %p181 = scmp.lt.s32.totalorder %s19, 0
      %s182 = scalar_select %p181, %s19, 0
      %s183 = smul.addr %s182, 8
      %s184 = scalar_lea.vmem %s1, %s183
      %p185 = pneg %p73
      %p186 = pneg %p70
      %p187 = scmp.lt.s32.totalorder %s19, 0
      %s188 = scalar_select %p187, %s19, 0
      %s189 = scalar_lea.vmem %s2, %s188
      %p190 = pneg %p99
      %p191 = pneg %p96
      %p192 = pneg %p127
      %p193 = pneg %p124
      %p194 = scmp.lt.s32.totalorder %s18, 1
      %s195 = scalar_select %p194, %s18, 1
      %p196 = scmp.lt.s32.totalorder %s19, 0
      %s197 = scalar_select %p196, %s19, 0
      %s198 = sadd.s32 %s197, %s195
      %s199 = smul.addr %s198, 8
      %s200 = scalar_lea.vmem %s3, %s199
      %p201 = scmp.lt.s32.totalorder %s18, 1
      %s202 = scalar_select %p201, %s18, 1
      %s203 = smul.addr %s202, 2
      %s204 = smul.addr %s203, 8
      %s205 = scalar_lea.vmem %s0, %s204
      %p206 = scmp.lt.s32.totalorder %s19, 0
      %s207 = scalar_select %p206, %s19, 0
      %s208 = smul.addr %s207, 8
      %s209 = scalar_lea.vmem %s1, %s208
      %p210 = scmp.lt.s32.totalorder %s19, 0
      %s211 = scalar_select %p210, %s19, 0
      %s212 = scalar_lea.vmem %s2, %s211
      %p213 = scmp.lt.s32.totalorder %s18, 1
      %s214 = scalar_select %p213, %s18, 1
      %p215 = scmp.lt.s32.totalorder %s19, 0
      %s216 = scalar_select %p215, %s19, 0
      %s217 = sadd.s32 %s216, %s214
      %s218 = smul.addr %s217, 8
      %s219 = scalar_lea.vmem %s3, %s218
      %v220 = vld [vmem:[%s205] sm:$0xff]
      %v221 = vld [vmem:[%s205 + $0x8] sm:$0xff]
      %v222 = vld [vmem:[%s209] sm:$0xff]
      %v223 = vld [vmem:[%s209 + $0x8] sm:$0xff]
      %v224 = vld [vmem:[%s209 + $0x10] sm:$0xff]
      %v225 = vld [vmem:[%s209 + $0x18] sm:$0xff]
      %v226 = vld [vmem:[%s209 + $0x20] sm:$0xff]
      %v227 = vld [vmem:[%s209 + $0x28] sm:$0xff]
      %v228 = vld [vmem:[%s209 + $0x30] sm:$0xff]
      %v229 = vld [vmem:[%s209 + $0x38] sm:$0xff]
      %v230 = vld [vmem:[%s209 + $0x40] sm:$0xff]
      %v231 = vld [vmem:[%s209 + $0x48] sm:$0xff]
      %v232 = vld [vmem:[%s209 + $0x50] sm:$0xff]
      %v233 = vld [vmem:[%s209 + $0x58] sm:$0xff]
      %v234 = vld [vmem:[%s209 + $0x60] sm:$0xff]
      %v235 = vld [vmem:[%s209 + $0x68] sm:$0xff]
      %v236 = vld [vmem:[%s209 + $0x70] sm:$0xff]
      %v237 = vld [vmem:[%s209 + $0x78] sm:$0xff]
      %v238 = vld [vmem:[%s209 + $0x80] sm:$0xff]
      %v239 = vld [vmem:[%s209 + $0x88] sm:$0xff]
      %v240 = vld [vmem:[%s209 + $0x90] sm:$0xff]
      %v241 = vld [vmem:[%s209 + $0x98] sm:$0xff]
      %v242 = vld [vmem:[%s209 + $0xa0] sm:$0xff]
      %v243 = vld [vmem:[%s209 + $0xa8] sm:$0xff]
      %v244 = vld [vmem:[%s209 + $0xb0] sm:$0xff]
      %v245 = vld [vmem:[%s209 + $0xb8] sm:$0xff]
      %v246 = vld [vmem:[%s212] sm:$0x1]
      %v248 = vlaneseq
      %v249 = vshrl.u32 %v248, 7
      %v250 = vsub.s32 0, %v249
      %v251 = vrot.slane %v246, %v250
      %vm253 = vcmask 523264
      %v255 = vsel %vm253, %v221, 0
      %257 = vmatprep.subr.mxu0 0.0
      %258 = vmatpush1.msra.mxu0 %v222
      %259 = vmatprep.subr.mxu0 0.0
      %260 = vmatpush1.msra.mxu0 %v223
      %261 = vmatprep.subr.mxu0 0.0
      %262 = vmatpush1.msra.mxu0 %v224
      %263 = vmatprep.subr.mxu0 0.0
      %264 = vmatpush1.msra.mxu0 %v225
      %265 = vmatprep.subr.mxu0 0.0
      %266 = vmatpush1.msra.mxu0 %v226
      %267 = vmatprep.subr.mxu0 0.0
      %268 = vmatpush1.msra.mxu0 %v227
      %269 = vmatprep.subr.mxu0 0.0
      %270 = vmatpush1.msra.mxu0 %v228
      %271 = vmatprep.subr.mxu0 0.0
      %272 = vmatpush1.msra.mxu0 %v229
      %273 = vmatprep.subr.mxu0 0.0
      %274 = vmatpush1.msra.mxu0 %v230
      %275 = vmatprep.subr.mxu0 0.0
      %276 = vmatpush1.msra.mxu0 %v231
      %277 = vmatprep.subr.mxu0 0.0
      %278 = vmatpush1.msra.mxu0 %v232
      %279 = vmatprep.subr.mxu0 0.0
      %280 = vmatpush1.msra.mxu0 %v233
      %281 = vmatprep.subr.mxu0 0.0
      %282 = vmatpush1.msra.mxu0 %v234
      %283 = vmatprep.subr.mxu0 0.0
      %284 = vmatpush1.msra.mxu0 %v235
      %285 = vmatprep.subr.mxu0 0.0
      %286 = vmatpush1.msra.mxu0 %v236
      %287 = vmatprep.subr.mxu0 0.0
      %288 = vmatpush1.msra.mxu0 %v237
      %289 = vmatprep.subr.mxu0 0.0
      %290 = vmatpush1.msra.mxu0 %v238
      %291 = vmatprep.subr.mxu0 0.0
      %292 = vmatpush1.msra.mxu0 %v239
      %293 = vmatprep.subr.mxu0 0.0
      %294 = vmatpush1.msra.mxu0 %v240
      %295 = vmatprep.subr.mxu0 0.0
      %296 = vmatpush1.msra.mxu0 %v241
      %297 = vmatprep.subr.mxu0 0.0
      %298 = vmatpush1.msra.mxu0 %v242
      %299 = vmatprep.subr.mxu0 0.0
      %300 = vmatpush1.msra.mxu0 %v243
      %301 = vmatprep.subr.mxu0 0.0
      %302 = vmatpush1.msra.mxu0 %v244
      %303 = vmatprep.subr.mxu0 0.0
      %304 = vmatpush1.msra.mxu0 %v245
      %305 = vmatprep.subr.mxu0 0.0
      %306 = vmatpush1.msra.mxu0 0.0
      %307 = vmatprep.subr.mxu0 0.0
      %308 = vmatpush1.msra.mxu0 0.0
      %309 = vmatprep.subr.mxu0 0.0
      %310 = vmatpush1.msra.mxu0 0.0
      %311 = vmatprep.subr.mxu0 0.0
      %312 = vmatpush1.msra.mxu0 0.0
      %313 = vmatprep.subr.mxu0 0.0
      %314 = vmatpush1.msra.mxu0 0.0
      %315 = vmatprep.subr.mxu0 0.0
      %316 = vmatpush1.msra.mxu0 0.0
      %317 = vmatprep.subr.mxu0 0.0
      %318 = vmatpush1.msra.mxu0 0.0
      %319 = vmatprep.subr.mxu0 0.0
      %320 = vmatpush1.msra.mxu0 0.0
      %321 = vmatprep.mubr.f32.mxu0 %v255
      %322 = vmatmul.mubr.f32.gmra.mrb[0].mxu0 %v220
      %v323 = vpop.f32.mrb[0].mxu0
      %v324 = vadd.f32 %v251, %v323
      %v325 = vpop.f32.mrb[0].mxu0
      %326 = vdwg.mxu0
      %vm327 = vcmask 392192
      %328 = vst.msk [vmem:[%s219] sm:$0xff] %vm327, %v324
      %p329 = scmp.lt.s32.totalorder %s18, 1
      %s330 = scalar_select %p329, %s18, 1
      %p331 = scmp.lt.s32.totalorder %s19, 0
      %s332 = scalar_select %p331, %s19, 0
      %s333 = sadd.s32 %s332, %s330
      %s334 = smul.addr %s333, 8
      %s335 = scalar_lea.vmem %s3, %s334
      // Predicated region
      $region33: #{vision_transformer_forward.6} parent=31 // pred_check
        %p336 = pneg %p124
      $region34: #{vision_transformer_forward.6} parent=31 // pred_check_branch
        %338 = sbr.rel (%p336) target = $region36
      $region35: #{vision_transformer_forward.6} parent=31 // pred_region
        _
      $region36: #{vision_transformer_forward.6} parent=31 // pred_fallthru
        _
    $region32: #{vision_transformer_forward.6} parent=5 // pred_fallthru
      _
    %p339 = scmp.le.s32.totalorder 2, %s9
    // Predicated region
    $region37: #{vision_transformer_forward.6} parent=5 // pred_check
      %p340 = pneg %p339
    $region38: #{vision_transformer_forward.6} parent=5 // pred_check_branch
      %342 = sbr.rel (%p340) target = $region40
    $region39: #{vision_transformer_forward.6} parent=5 // pred_region
      %s343 = ssub.s32 %s9, 2
      // Predicated region
      $region41: #{vision_transformer_forward.6} parent=39 // pred_check
        %p344 = pneg %p130
      $region42: #{vision_transformer_forward.6} parent=39 // pred_check_branch
        %346 = sbr.rel (%p344) target = $region44
      $region43: #{vision_transformer_forward.6} parent=39 // pred_region
        %p347 = scmp.lt.s32.totalorder %s20, 1
        %s348 = scalar_select %p347, %s20, 1
        %p349 = scmp.lt.s32.totalorder %s21, 0
        %s350 = scalar_select %p349, %s21, 0
        %s351 = sadd.s32 %s350, %s348
        %s352 = smul.addr %s351, 8
        %s353 = scalar_lea.vmem %s3, %s352
      $region44: #{vision_transformer_forward.6} parent=39 // pred_fallthru
        _
    $region40: #{vision_transformer_forward.6} parent=5 // pred_fallthru
      _
  $region6: #{vision_transformer_forward.6} parent=0 // loop_footer
    %s13 = sadd.s32 1, %s9
  $region7: #{vision_transformer_forward.6} parent=0 // loop_footer_branch
    %8 = sbr.rel target = $region3
  $region8: #{vision_transformer_forward.6} parent=0 // loop_exit
    _

// kernel: vision_transformer_forward.7
$region0: #{vision_transformer_forward.7}
  #allocation0 [shape = 'u32[]', space=smem, size = 0x4, offset = 0x4, fixed_abs, tag = 'smem constant byte address 0x4 - core index']
  #allocation1 [shape = 'u32[144,128]{1,0:T(1,128)}', space=vmem, size = 0x12000, scoped, tag = 'internal scratch']
  %s0 = inlined_call_operand.vmem [shape: f32[4,6], index: 0, kind: input, shape index: {}]
  %s1 = inlined_call_operand.vmem [shape: f32[6,192], index: 1, kind: input, shape index: {}]
  %s2 = inlined_call_operand.vmem [shape: f32[1,192], index: 2, kind: input, shape index: {}]
  %s3 = inlined_call_operand.vmem [shape: f32[4,192], index: 3, kind: output, shape index: {}]
  %s4 = sld [smem:[#allocation0]]
  $region22: #{vision_transformer_forward.7} parent=0
    _
  %s6 = ssub.s32 1, %s4
  %s7 = scalar_select 0, %s6, %s4
  // Predicated region
  $region2: #{vision_transformer_forward.7} parent=0 // pred_check
    _
  $region3: #{vision_transformer_forward.7} parent=0 // pred_check_branch
    %9 = sbr.rel (0) target = $region5
  $region4: #{vision_transformer_forward.7} parent=0 // pred_region
    _
  $region5: #{vision_transformer_forward.7} parent=0 // pred_fallthru
    _
  // Predicated region
  $region6: #{vision_transformer_forward.7} parent=0 // pred_check
    _
  $region7: #{vision_transformer_forward.7} parent=0 // pred_check_branch
    %11 = sbr.rel (0) target = $region9
  $region8: #{vision_transformer_forward.7} parent=0 // pred_region
    _
  $region9: #{vision_transformer_forward.7} parent=0 // pred_fallthru
    _
  // Predicated region
  $region10: #{vision_transformer_forward.7} parent=0 // pred_check
    _
  $region11: #{vision_transformer_forward.7} parent=0 // pred_check_branch
    %13 = sbr.rel (0) target = $region13
  $region12: #{vision_transformer_forward.7} parent=0 // pred_region
    _
  $region13: #{vision_transformer_forward.7} parent=0 // pred_fallthru
    _
  %v14 = vld [vmem:[%s0] sm:$0xf]
  %v15 = vld [vmem:[%s1] sm:$0x3f]
  %v16 = vld [vmem:[%s1 + $0x8] sm:$0x3f]
  %v17 = vld [vmem:[%s2] sm:$0x3]
  %v19 = vlaneseq
  %v20 = vshrl.u32 %v19, 7
  %v21 = vsub.s32 0, %v20
  %v22 = vrot.slane %v17, %v21
  %v23 = vlaneseq
  %v24 = vshrl.u32 %v23, 7
  %v25 = vsub.s32 1, %v24
  %v26 = vrot.slane %v17, %v25
  %vm29 = vcmask 48128
  %v31 = vsel %vm29, %v14, 0
  %vm33 = vcmask 1045504
  %v35 = vsel %vm33, %v15, 0
  %v38 = vsel %vm33, %v16, 0
  %40 = vmatprep.subr.mxu0 %v38
  %41 = vmatpush1.msra.mxu0 %v35
  %42 = vmatprep.subr.mxu0 0.0
  %43 = vmatpush1.msra.mxu0 0.0
  %44 = vmatprep.subr.mxu0 0.0
  %45 = vmatpush1.msra.mxu0 0.0
  %46 = vmatprep.subr.mxu0 0.0
  %47 = vmatpush1.msra.mxu0 0.0
  %48 = vmatprep.subr.mxu0 0.0
  %49 = vmatpush1.msra.mxu0 0.0
  %50 = vmatprep.subr.mxu0 0.0
  %51 = vmatpush1.msra.mxu0 0.0
  %52 = vmatprep.subr.mxu0 0.0
  %53 = vmatpush1.msra.mxu0 0.0
  %54 = vmatprep.subr.mxu0 0.0
  %55 = vmatpush1.msra.mxu0 0.0
  %56 = vmatprep.subr.mxu0 0.0
  %57 = vmatpush1.msra.mxu0 0.0
  %58 = vmatprep.subr.mxu0 0.0
  %59 = vmatpush1.msra.mxu0 0.0
  %60 = vmatprep.subr.mxu0 0.0
  %61 = vmatpush1.msra.mxu0 0.0
  %62 = vmatprep.subr.mxu0 0.0
  %63 = vmatpush1.msra.mxu0 0.0
  %64 = vmatprep.subr.mxu0 0.0
  %65 = vmatpush1.msra.mxu0 0.0
  %66 = vmatprep.subr.mxu0 0.0
  %67 = vmatpush1.msra.mxu0 0.0
  %68 = vmatprep.subr.mxu0 0.0
  %69 = vmatpush1.msra.mxu0 0.0
  %70 = vmatprep.subr.mxu0 0.0
  %71 = vmatpush1.msra.mxu0 0.0
  %72 = vmatprep.subr.mxu0 0.0
  %73 = vmatpush1.msra.mxu0 0.0
  %74 = vmatprep.subr.mxu0 0.0
  %75 = vmatpush1.msra.mxu0 0.0
  %76 = vmatprep.subr.mxu0 0.0
  %77 = vmatpush1.msra.mxu0 0.0
  %78 = vmatprep.subr.mxu0 0.0
  %79 = vmatpush1.msra.mxu0 0.0
  %80 = vmatprep.subr.mxu0 0.0
  %81 = vmatpush1.msra.mxu0 0.0
  %82 = vmatprep.subr.mxu0 0.0
  %83 = vmatpush1.msra.mxu0 0.0
  %84 = vmatprep.subr.mxu0 0.0
  %85 = vmatpush1.msra.mxu0 0.0
  %86 = vmatprep.subr.mxu0 0.0
  %87 = vmatpush1.msra.mxu0 0.0
  %88 = vmatprep.subr.mxu0 0.0
  %89 = vmatpush1.msra.mxu0 0.0
  %90 = vmatprep.subr.mxu0 0.0
  %91 = vmatpush1.msra.mxu0 0.0
  %92 = vmatprep.subr.mxu0 0.0
  %93 = vmatpush1.msra.mxu0 0.0
  %94 = vmatprep.subr.mxu0 0.0
  %95 = vmatpush1.msra.mxu0 0.0
  %96 = vmatprep.subr.mxu0 0.0
  %97 = vmatpush1.msra.mxu0 0.0
  %98 = vmatprep.subr.mxu0 0.0
  %99 = vmatpush1.msra.mxu0 0.0
  %100 = vmatprep.subr.mxu0 0.0
  %101 = vmatpush1.msra.mxu0 0.0
  %102 = vmatprep.subr.mxu0 0.0
  %103 = vmatpush1.msra.mxu0 0.0
  %104 = vmatprep.mubr.f32.mxu0 0.0
  %105 = vmatmul.mubr.f32.gmra.mrb[0].mxu0 %v31
  %v106 = vpop.f32.mrb[0].mxu0
  %v107 = vadd.f32 %v22, %v106
  %v108 = vpop.f32.mrb[0].mxu0
  %v109 = vadd.f32 %v26, %v108
  %110 = vdwg.mxu0
  %v113 = vcombine.low %v107, %v109
  %vm115 = vcmask 1043456
  %vm116 = vcmask 523268
  %vm117 = vmor %vm116, %vm115
  %118 = vst.msk [vmem:[%s3] sm:$0xff] %vm117, %v113
  // Predicated region
  $region14: #{vision_transformer_forward.7} parent=0 // pred_check
    _
  $region15: #{vision_transformer_forward.7} parent=0 // pred_check_branch
    %120 = sbr.rel (0) target = $region17
  $region16: #{vision_transformer_forward.7} parent=0 // pred_region
    _
  $region17: #{vision_transformer_forward.7} parent=0 // pred_fallthru
    _
  // Predicated region
  $region18: #{vision_transformer_forward.7} parent=0 // pred_check
    _
  $region19: #{vision_transformer_forward.7} parent=0 // pred_check_branch
    %122 = sbr.rel (0) target = $region21
  $region20: #{vision_transformer_forward.7} parent=0 // pred_region
    _
  $region21: #{vision_transformer_forward.7} parent=0 // pred_fallthru
    _

// kernel: vision_transformer_forward.11
$region0: #{vision_transformer_forward.11}
  #allocation0 [shape = 'u32[]', space=smem, size = 0x4, offset = 0x4, fixed_abs, tag = 'smem constant byte address 0x4 - core index']
  #allocation1 [shape = 'u32[144,128]{1,0:T(1,128)}', space=vmem, size = 0x12000, scoped, tag = 'internal scratch']
  #allocation2 [shape = 'f32[4,32]{1,0:T(4,128)}', space=vmem, size = 0x800, scoped, tag = 'scratch operand']
  %s0 = inlined_call_operand.vmem [shape: f32[4,16], index: 0, kind: input, shape index: {}]
  %s1 = inlined_call_operand.vmem [shape: f32[16,32], index: 1, kind: input, shape index: {}]
  %s2 = inlined_call_operand.vmem [shape: f32[1,32], index: 2, kind: input, shape index: {}]
  %s3 = inlined_call_operand.vmem [shape: f32[32,24], index: 3, kind: input, shape index: {}]
  %s4 = inlined_call_operand.vmem [shape: f32[1,24], index: 4, kind: input, shape index: {}]
  %s5 = inlined_call_operand.vmem [shape: f32[24,2], index: 5, kind: input, shape index: {}]
  %s6 = inlined_call_operand.vmem [shape: f32[1,2], index: 6, kind: input, shape index: {}]
  %s7 = inlined_call_operand.hbm [shape: f32[4,24], index: 7, kind: output, shape index: {0}]
  %s8 = inlined_call_operand.vmem [shape: f32[4,2], index: 8, kind: output, shape index: {1}]
  %9 = xla_tuple %s7, %s8
  %s10 = sld [smem:[#allocation0]]
  $region54: #{vision_transformer_forward.11} parent=0
    _
  %s12 = ssub.s32 1, %s10
  %s13 = scalar_select 0, %s12, %s10
  $region1: #{vision_transformer_forward.11} parent=0
    #allocation3 [shape = 'u8[2048]{0}', space=vmem, size = 0x800, scoped, tag = 'output window, operand 0, single buffered']
    #allocation4 [shape = 's32[1]{0}', space=sflag, size = 0x4, scoped, tag = 'scoped memory for vision_transformer_forward.11']
    %14 = vsyncpa [#allocation4], 0
    // Predicated region
    $region2: #{vision_transformer_forward.11} parent=1 // pred_check
      _
    $region3: #{vision_transformer_forward.11} parent=1 // pred_check_branch
      %16 = sbr.rel (0) target = $region5
    $region4: #{vision_transformer_forward.11} parent=1 // pred_region
      _
    $region5: #{vision_transformer_forward.11} parent=1 // pred_fallthru
      _
    // Predicated region
    $region6: #{vision_transformer_forward.11} parent=1 // pred_check
      _
    $region7: #{vision_transformer_forward.11} parent=1 // pred_check_branch
      %18 = sbr.rel (0) target = $region9
    $region8: #{vision_transformer_forward.11} parent=1 // pred_region
      _
    $region9: #{vision_transformer_forward.11} parent=1 // pred_fallthru
      _
    // Predicated region
    $region10: #{vision_transformer_forward.11} parent=1 // pred_check
      _
    $region11: #{vision_transformer_forward.11} parent=1 // pred_check_branch
      %20 = sbr.rel (0) target = $region13
    $region12: #{vision_transformer_forward.11} parent=1 // pred_region
      _
    $region13: #{vision_transformer_forward.11} parent=1 // pred_fallthru
      _
    // Predicated region
    $region14: #{vision_transformer_forward.11} parent=1 // pred_check
      _
    $region15: #{vision_transformer_forward.11} parent=1 // pred_check_branch
      %22 = sbr.rel (0) target = $region17
    $region16: #{vision_transformer_forward.11} parent=1 // pred_region
      _
    $region17: #{vision_transformer_forward.11} parent=1 // pred_fallthru
      _
    // Predicated region
    $region18: #{vision_transformer_forward.11} parent=1 // pred_check
      _
    $region19: #{vision_transformer_forward.11} parent=1 // pred_check_branch
      %24 = sbr.rel (0) target = $region21
    $region20: #{vision_transformer_forward.11} parent=1 // pred_region
      _
    $region21: #{vision_transformer_forward.11} parent=1 // pred_fallthru
      _
    // Predicated region
    $region22: #{vision_transformer_forward.11} parent=1 // pred_check
      _
    $region23: #{vision_transformer_forward.11} parent=1 // pred_check_branch
      %26 = sbr.rel (0) target = $region25
    $region24: #{vision_transformer_forward.11} parent=1 // pred_region
      _
    $region25: #{vision_transformer_forward.11} parent=1 // pred_fallthru
      _
    // Predicated region
    $region26: #{vision_transformer_forward.11} parent=1 // pred_check
      _
    $region27: #{vision_transformer_forward.11} parent=1 // pred_check_branch
      %28 = sbr.rel (0) target = $region29
    $region28: #{vision_transformer_forward.11} parent=1 // pred_region
      _
    $region29: #{vision_transformer_forward.11} parent=1 // pred_fallthru
      _
    %p29 = scmp.eq.s32.totalorder 0, 0
    // Predicated region
    $region30: #{vision_transformer_forward.11} parent=1 // pred_check
      %p30 = pneg %p29
    $region31: #{vision_transformer_forward.11} parent=1 // pred_check_branch
      %32 = sbr.rel (%p30) target = $region33
    $region32: #{vision_transformer_forward.11} parent=1 // pred_region
      %vm33 = vcmask 257024
      %34 = vst.msk [vmem:[#allocation2] sm:$0xf] %vm33, 0.0
    $region33: #{vision_transformer_forward.11} parent=1 // pred_fallthru
      _
    %v35 = vld [vmem:[#allocation2] sm:$0xf]
    %v36 = vld [vmem:[%s0] sm:$0xf]
    %v37 = vld [vmem:[%s1] sm:$0xff]
    %v38 = vld [vmem:[%s1 + $0x8] sm:$0xff]
    %vm39 = vcmask 130048
    %v41 = vsel %vm39, %v36, 0
    %43 = vmatprep.subr.mxu0 0.0
    %44 = vmatpush1.msra.mxu0 %v37
    %45 = vmatprep.subr.mxu0 0.0
    %46 = vmatpush1.msra.mxu0 %v38
    %47 = vmatprep.subr.mxu0 0.0
    %48 = vmatpush1.msra.mxu0 0.0
    %49 = vmatprep.subr.mxu0 0.0
    %50 = vmatpush1.msra.mxu0 0.0
    %51 = vmatprep.subr.mxu0 0.0
    %52 = vmatpush1.msra.mxu0 0.0
    %53 = vmatprep.subr.mxu0 0.0
    %54 = vmatpush1.msra.mxu0 0.0
    %55 = vmatprep.subr.mxu0 0.0
    %56 = vmatpush1.msra.mxu0 0.0
    %57 = vmatprep.subr.mxu0 0.0
    %58 = vmatpush1.msra.mxu0 0.0
    %59 = vmatprep.subr.mxu0 0.0
    %60 = vmatpush1.msra.mxu0 0.0
    %61 = vmatprep.subr.mxu0 0.0
    %62 = vmatpush1.msra.mxu0 0.0
    %63 = vmatprep.subr.mxu0 0.0
    %64 = vmatpush1.msra.mxu0 0.0
    %65 = vmatprep.subr.mxu0 0.0
    %66 = vmatpush1.msra.mxu0 0.0
    %67 = vmatprep.subr.mxu0 0.0
    %68 = vmatpush1.msra.mxu0 0.0
    %69 = vmatprep.subr.mxu0 0.0
    %70 = vmatpush1.msra.mxu0 0.0
    %71 = vmatprep.subr.mxu0 0.0
    %72 = vmatpush1.msra.mxu0 0.0
    %73 = vmatprep.subr.mxu0 0.0
    %74 = vmatpush1.msra.mxu0 0.0
    %75 = vmatprep.subr.mxu0 0.0
    %76 = vmatpush1.msra.mxu0 0.0
    %77 = vmatprep.subr.mxu0 0.0
    %78 = vmatpush1.msra.mxu0 0.0
    %79 = vmatprep.subr.mxu0 0.0
    %80 = vmatpush1.msra.mxu0 0.0
    %81 = vmatprep.subr.mxu0 0.0
    %82 = vmatpush1.msra.mxu0 0.0
    %83 = vmatprep.subr.mxu0 0.0
    %84 = vmatpush1.msra.mxu0 0.0
    %85 = vmatprep.subr.mxu0 0.0
    %86 = vmatpush1.msra.mxu0 0.0
    %87 = vmatprep.subr.mxu0 0.0
    %88 = vmatpush1.msra.mxu0 0.0
    %89 = vmatprep.subr.mxu0 0.0
    %90 = vmatpush1.msra.mxu0 0.0
    %91 = vmatprep.subr.mxu0 0.0
    %92 = vmatpush1.msra.mxu0 0.0
    %93 = vmatprep.subr.mxu0 0.0
    %94 = vmatpush1.msra.mxu0 0.0
    %95 = vmatprep.subr.mxu0 0.0
    %96 = vmatpush1.msra.mxu0 0.0
    %97 = vmatprep.subr.mxu0 0.0
    %98 = vmatpush1.msra.mxu0 0.0
    %99 = vmatprep.subr.mxu0 0.0
    %100 = vmatpush1.msra.mxu0 0.0
    %101 = vmatprep.subr.mxu0 0.0
    %102 = vmatpush1.msra.mxu0 0.0
    %103 = vmatprep.subr.mxu0 0.0
    %104 = vmatpush1.msra.mxu0 0.0
    %105 = vmatprep.subr.mxu0 0.0
    %106 = vmatpush1.msra.mxu0 0.0
    %107 = vmatprep.mubr.f32.mxu0 0.0
    %108 = vmatmul.mubr.f32.gmra.mrb[0].mxu0 %v41
    %v109 = vpop.f32.mrb[0].mxu0
    %v110 = vadd.f32 0.0, %v109
    %v111 = vpop.f32.mrb[0].mxu0
    %112 = vdwg.mxu0
    %v113 = vadd.f32 %v35, %v110
    %vm114 = vcmask 257024
    %115 = vst.msk [vmem:[#allocation2] sm:$0xf] %vm114, %v113
    // Predicated region
    $region34: #{vision_transformer_forward.11} parent=1 // pred_check
      %p116 = pneg %p29
    $region35: #{vision_transformer_forward.11} parent=1 // pred_check_branch
      %118 = sbr.rel (%p116) target = $region37
    $region36: #{vision_transformer_forward.11} parent=1 // pred_region
      %v119 = vld [vmem:[#allocation2] sm:$0xf]
      %v120 = vld [vmem:[%s2] sm:$0x1]
      %v122 = vlaneseq
      %v123 = vshrl.u32 %v122, 7
      %v124 = vsub.s32 0, %v123
      %v125 = vrot.slane %v120, %v124
      %v127 = vadd.f32 %v119, %v125
      %vm128 = vcmp.ge.f32.partialorder %v127, 0.0
      %v129 = vmul.f32 %v127, 0.2
      %v130 = vsel %vm128, %v127, %v129
      %v131 = vld [vmem:[%s3] sm:$0xff]
      %v132 = vld [vmem:[%s3 + $0x8] sm:$0xff]
      %v133 = vld [vmem:[%s3 + $0x10] sm:$0xff]
      %v134 = vld [vmem:[%s3 + $0x18] sm:$0xff]
      %v135 = vld [vmem:[%s4] sm:$0x1]
      %v137 = vlaneseq
      %v138 = vshrl.u32 %v137, 7
      %v139 = vsub.s32 0, %v138
      %v140 = vrot.slane %v135, %v139
      %vm142 = vcmask 261120
      %v144 = vsel %vm142, %v130, 0
      %146 = vmatprep.subr.mxu0 0.0
      %147 = vmatpush1.msra.mxu0 %v131
      %148 = vmatprep.subr.mxu0 0.0
      %149 = vmatpush1.msra.mxu0 %v132
      %150 = vmatprep.subr.mxu0 0.0
      %151 = vmatpush1.msra.mxu0 %v133
      %152 = vmatprep.subr.mxu0 0.0
      %153 = vmatpush1.msra.mxu0 %v134
      %154 = vmatprep.subr.mxu0 0.0
      %155 = vmatpush1.msra.mxu0 0.0
      %156 = vmatprep.subr.mxu0 0.0
      %157 = vmatpush1.msra.mxu0 0.0
      %158 = vmatprep.subr.mxu0 0.0
      %159 = vmatpush1.msra.mxu0 0.0
      %160 = vmatprep.subr.mxu0 0.0
      %161 = vmatpush1.msra.mxu0 0.0
      %162 = vmatprep.subr.mxu0 0.0
      %163 = vmatpush1.msra.mxu0 0.0
      %164 = vmatprep.subr.mxu0 0.0
      %165 = vmatpush1.msra.mxu0 0.0
      %166 = vmatprep.subr.mxu0 0.0
      %167 = vmatpush1.msra.mxu0 0.0
      %168 = vmatprep.subr.mxu0 0.0
      %169 = vmatpush1.msra.mxu0 0.0
      %170 = vmatprep.subr.mxu0 0.0
      %171 = vmatpush1.msra.mxu0 0.0
      %172 = vmatprep.subr.mxu0 0.0
      %173 = vmatpush1.msra.mxu0 0.0
      %174 = vmatprep.subr.mxu0 0.0
      %175 = vmatpush1.msra.mxu0 0.0
      %176 = vmatprep.subr.mxu0 0.0
      %177 = vmatpush1.msra.mxu0 0.0
      %178 = vmatprep.subr.mxu0 0.0
      %179 = vmatpush1.msra.mxu0 0.0
      %180 = vmatprep.subr.mxu0 0.0
      %181 = vmatpush1.msra.mxu0 0.0
      %182 = vmatprep.subr.mxu0 0.0
      %183 = vmatpush1.msra.mxu0 0.0
      %184 = vmatprep.subr.mxu0 0.0
      %185 = vmatpush1.msra.mxu0 0.0
      %186 = vmatprep.subr.mxu0 0.0
      %187 = vmatpush1.msra.mxu0 0.0
      %188 = vmatprep.subr.mxu0 0.0
      %189 = vmatpush1.msra.mxu0 0.0
      %190 = vmatprep.subr.mxu0 0.0
      %191 = vmatpush1.msra.mxu0 0.0
      %192 = vmatprep.subr.mxu0 0.0
      %193 = vmatpush1.msra.mxu0 0.0
      %194 = vmatprep.subr.mxu0 0.0
      %195 = vmatpush1.msra.mxu0 0.0
      %196 = vmatprep.subr.mxu0 0.0
      %197 = vmatpush1.msra.mxu0 0.0
      %198 = vmatprep.subr.mxu0 0.0
      %199 = vmatpush1.msra.mxu0 0.0
      %200 = vmatprep.subr.mxu0 0.0
      %201 = vmatpush1.msra.mxu0 0.0
      %202 = vmatprep.subr.mxu0 0.0
      %203 = vmatpush1.msra.mxu0 0.0
      %204 = vmatprep.subr.mxu0 0.0
      %205 = vmatpush1.msra.mxu0 0.0
      %206 = vmatprep.subr.mxu0 0.0
      %207 = vmatpush1.msra.mxu0 0.0
      %208 = vmatprep.subr.mxu0 0.0
      %209 = vmatpush1.msra.mxu0 0.0
      %210 = vmatprep.mubr.f32.mxu0 0.0
      %211 = vmatmul.mubr.f32.gmra.mrb[0].mxu0 %v144
      %v212 = vpop.f32.mrb[0].mxu0
      %v213 = vadd.f32 %v140, %v212
      %v214 = vpop.f32.mrb[0].mxu0
      %215 = vdwg.mxu0
      %vm216 = vcmask 191488
      %217 = vst.msk [vmem:[#allocation3] sm:$0xf] %vm216, %v213
      %v218 = vld [vmem:[%s5] sm:$0xff]
      %v219 = vld [vmem:[%s5 + $0x8] sm:$0xff]
      %v220 = vld [vmem:[%s5 + $0x10] sm:$0xff]
      %v221 = vld [vmem:[%s6] sm:$0x1]
      %v223 = vlaneseq
      %v224 = vshrl.u32 %v223, 7
      %v225 = vsub.s32 0, %v224
      %v226 = vrot.slane %v221, %v225
      %vm228 = vcmask 195584
      %v230 = vsel %vm228, %v213, 0
      %232 = vmatprep.subr.mxu0 0.0
      %233 = vmatpush1.msra.mxu0 %v218
      %234 = vmatprep.subr.mxu0 0.0
      %235 = vmatpush1.msra.mxu0 %v219
      %236 = vmatprep.subr.mxu0 0.0
      %237 = vmatpush1.msra.mxu0 %v220
      %238 = vmatprep.subr.mxu0 0.0
      %239 = vmatpush1.msra.mxu0 0.0
      %240 = vmatprep.subr.mxu0 0.0
      %241 = vmatpush1.msra.mxu0 0.0
      %242 = vmatprep.subr.mxu0 0.0
      %243 = vmatpush1.msra.mxu0 0.0
      %244 = vmatprep.subr.mxu0 0.0
      %245 = vmatpush1.msra.mxu0 0.0
      %246 = vmatprep.subr.mxu0 0.0
      %247 = vmatpush1.msra.mxu0 0.0
      %248 = vmatprep.subr.mxu0 0.0
      %249 = vmatpush1.msra.mxu0 0.0
      %250 = vmatprep.subr.mxu0 0.0
      %251 = vmatpush1.msra.mxu0 0.0
      %252 = vmatprep.subr.mxu0 0.0
      %253 = vmatpush1.msra.mxu0 0.0
      %254 = vmatprep.subr.mxu0 0.0
      %255 = vmatpush1.msra.mxu0 0.0
      %256 = vmatprep.subr.mxu0 0.0
      %257 = vmatpush1.msra.mxu0 0.0
      %258 = vmatprep.subr.mxu0 0.0
      %259 = vmatpush1.msra.mxu0 0.0
      %260 = vmatprep.subr.mxu0 0.0
      %261 = vmatpush1.msra.mxu0 0.0
      %262 = vmatprep.subr.mxu0 0.0
      %263 = vmatpush1.msra.mxu0 0.0
      %264 = vmatprep.subr.mxu0 0.0
      %265 = vmatpush1.msra.mxu0 0.0
      %266 = vmatprep.subr.mxu0 0.0
      %267 = vmatpush1.msra.mxu0 0.0
      %268 = vmatprep.subr.mxu0 0.0
      %269 = vmatpush1.msra.mxu0 0.0
      %270 = vmatprep.subr.mxu0 0.0
      %271 = vmatpush1.msra.mxu0 0.0
      %272 = vmatprep.subr.mxu0 0.0
      %273 = vmatpush1.msra.mxu0 0.0
      %274 = vmatprep.subr.mxu0 0.0
      %275 = vmatpush1.msra.mxu0 0.0
      %276 = vmatprep.subr.mxu0 0.0
      %277 = vmatpush1.msra.mxu0 0.0
      %278 = vmatprep.subr.mxu0 0.0
      %279 = vmatpush1.msra.mxu0 0.0
      %280 = vmatprep.subr.mxu0 0.0
      %281 = vmatpush1.msra.mxu0 0.0
      %282 = vmatprep.subr.mxu0 0.0
      %283 = vmatpush1.msra.mxu0 0.0
      %284 = vmatprep.subr.mxu0 0.0
      %285 = vmatpush1.msra.mxu0 0.0
      %286 = vmatprep.subr.mxu0 0.0
      %287 = vmatpush1.msra.mxu0 0.0
      %288 = vmatprep.subr.mxu0 0.0
      %289 = vmatpush1.msra.mxu0 0.0
      %290 = vmatprep.subr.mxu0 0.0
      %291 = vmatpush1.msra.mxu0 0.0
      %292 = vmatprep.subr.mxu0 0.0
      %293 = vmatpush1.msra.mxu0 0.0
      %294 = vmatprep.subr.mxu0 0.0
      %295 = vmatpush1.msra.mxu0 0.0
      %296 = vmatprep.mubr.f32.mxu0 0.0
      %297 = vmatmul.mubr.f32.gmra.mrb[0].mxu0 %v230
      %v298 = vpop.f32.mrb[0].mxu0
      %v299 = vadd.f32 %v226, %v298
      %v300 = vpop.f32.mrb[0].mxu0
      %301 = vdwg.mxu0
      %v302 = vxor.u32 %v299, 2147483648
      %v303 = vmul.f32 %v302, 1.442695
      %v304 = vpow.pop %v303
      %v305 = vadd.f32 %v304, 1.0
      %v306 = vrcp.pop %v305
      %v307 = vmul.f32 1.0, %v306
      %vm308 = vcmask 11264
      %309 = vst.msk [vmem:[%s8] sm:$0xf] %vm308, %v307
    $region37: #{vision_transformer_forward.11} parent=1 // pred_fallthru
      _
    // Predicated region
    $region38: #{vision_transformer_forward.11} parent=1 // pred_check
      _
    $region39: #{vision_transformer_forward.11} parent=1 // pred_check_branch
      %311 = sbr.rel (0) target = $region41
    $region40: #{vision_transformer_forward.11} parent=1 // pred_region
      %s313 = ssub.s32 64, 64
      %314 = vsyncadd [#allocation4], %s313
      %s316 = sshll.u32 [#allocation3], 4
      %s317 = int_to_ptr.vmem [resolvable:$true] %s316
      %319 = dma.vmem_to_hbm [thread:$0]  %s317, 64, %s7, [#allocation4]
    $region41: #{vision_transformer_forward.11} parent=1 // pred_fallthru
      _
    // Predicated region
    $region42: #{vision_transformer_forward.11} parent=1 // pred_check
      _
    $region43: #{vision_transformer_forward.11} parent=1 // pred_check_branch
      %321 = sbr.rel (0) target = $region45
    $region44: #{vision_transformer_forward.11} parent=1 // pred_region
      _
    $region45: #{vision_transformer_forward.11} parent=1 // pred_fallthru
      _
    // Predicated region
    $region46: #{vision_transformer_forward.11} parent=1 // pred_check
      _
    $region47: #{vision_transformer_forward.11} parent=1 // pred_check_branch
      %323 = sbr.rel (0) target = $region49
    $region48: #{vision_transformer_forward.11} parent=1 // pred_region
      %324 = dma.done [#allocation4], 64
    $region49: #{vision_transformer_forward.11} parent=1 // pred_fallthru
      _
    // Predicated region
    $region50: #{vision_transformer_forward.11} parent=1 // pred_check
      _
    $region51: #{vision_transformer_forward.11} parent=1 // pred_check_branch
      %326 = sbr.rel (0) target = $region53
    $region52: #{vision_transformer_forward.11} parent=1 // pred_region
      _
    $region53: #{vision_transformer_forward.11} parent=1 // pred_fallthru
      _
    %327 = vsyncpa [#allocation4], 1

// kernel: vision_transformer_forward.10
$region0: #{vision_transformer_forward.10}
  #allocation0 [shape = 'u32[]', space=smem, size = 0x4, offset = 0x4, fixed_abs, tag = 'smem constant byte address 0x4 - core index']
  #allocation1 [shape = 'u32[144,128]{1,0:T(1,128)}', space=vmem, size = 0x12000, scoped, tag = 'internal scratch']
  %s0 = inlined_call_operand.vmem [shape: f32[16,48], index: 0, kind: input, shape index: {}]
  %s1 = inlined_call_operand.vmem [shape: f32[1,48], index: 1, kind: input, shape index: {}]
  %s2 = inlined_call_operand.vmem [shape: f32[1,48], index: 2, kind: input, shape index: {}]
  %s3 = inlined_call_operand.vmem [shape: f32[48,12], index: 3, kind: input, shape index: {}]
  %s4 = inlined_call_operand.vmem [shape: f32[1,12], index: 4, kind: input, shape index: {}]
  %s5 = inlined_call_operand.vmem [shape: f32[12,128], index: 5, kind: input, shape index: {}]
  %s6 = inlined_call_operand.vmem [shape: f32[1,128], index: 6, kind: input, shape index: {}]
  %s7 = inlined_call_operand.vmem [shape: f32[16,128], index: 7, kind: output, shape index: {}]
  %s8 = sld [smem:[#allocation0]]
  $region61: #{vision_transformer_forward.10} parent=0
    _
  %s10 = ssub.s32 1, %s8
  %s11 = scalar_select 0, %s10, %s8
  loop: start=0, step=1, limit=4
  $region2: #{vision_transformer_forward.10} parent=0 // loop_pre_header
    _
  $region3: #{vision_transformer_forward.10} parent=0 // loop_header
    %s13 = sphi 0, %s17
    %p14 = scmp.ge.s32.totalorder %s13, 4
    %s23 = sphi 0, %s25
    %s26 = sphi 0, %s23
    %s27 = sphi 0, %s26
    %s43 = sphi 0, %s27
    %s47 = sphi 0, %s47
    %s49 = sphi 0, %s47
    %s50 = sphi 0, %s49
    %s64 = sphi 0, %s50
    %s68 = sphi 0, %s68
    %s70 = sphi 0, %s68
    %s71 = sphi 0, %s70
    %s85 = sphi 0, %s71
    %s89 = sphi 0, %s89
    %s91 = sphi 0, %s89
    %s92 = sphi 0, %s91
    %s106 = sphi 0, %s92
    %s110 = sphi 0, %s110
    %s112 = sphi 0, %s110
    %s113 = sphi 0, %s112
    %s127 = sphi 0, %s113
    %s131 = sphi 0, %s131
    %s133 = sphi 0, %s131
    %s134 = sphi 0, %s133
    %s148 = sphi 0, %s134
    %s152 = sphi 0, %s152
    %s154 = sphi 0, %s152
    %s155 = sphi 0, %s154
    %s169 = sphi 0, %s155
    %s175 = sphi 0, %s177
    %s178 = sphi 0, %s175
    %s179 = sphi 0, %s178
    %s195 = sphi 0, %s179
  $region4: #{vision_transformer_forward.10} parent=0 // loop_header_branch
    %16 = sbr.rel (%p14) target = $region8
  $region5: #{vision_transformer_forward.10} parent=0 // loop_body
    %s18 = ssub.s32 %s13, 1
    %s19 = ssub.s32 %s13, 2
    %s20 = sadd.s32 %s13, 1
    %s21 = ssub.s32 %s13, %s20
    %p22 = scmp.eq.s32.totalorder %s21, 0
    %s24 = sadd.s32 %s23, 1
    %s25 = scalar_select %p22, %s23, %s24
    %p28 = pneg %p22
    %p29 = scmp.eq.s32.totalorder %s13, 1
    %p30 = por %p28, %p29
    %p31 = scmp.ne.s32.totalorder %s23, %s26
    %p32 = scmp.eq.s32.totalorder %s13, 0
    %p33 = por %p31, %p32
    %p34 = scmp.ne.s32.totalorder %s23, %s26
    %p35 = scmp.eq.s32.totalorder %s18, 1
    %p36 = por %p34, %p35
    %p37 = scmp.ne.s32.totalorder %s26, %s27
    %p38 = scmp.eq.s32.totalorder %s18, 0
    %p39 = por %p37, %p38
    %p40 = scmp.ne.s32.totalorder %s26, %s27
    %p41 = scmp.eq.s32.totalorder %s19, 1
    %p42 = por %p40, %p41
    %p44 = scmp.ne.s32.totalorder %s27, %s43
    %p45 = scmp.eq.s32.totalorder %s19, 0
    %p46 = por %p44, %p45
    %s48 = sadd.s32 %s47, 1
    %p51 = scmp.eq.s32.totalorder %s13, 1
    %p52 = scmp.ne.s32.totalorder %s47, %s49
    %p53 = scmp.eq.s32.totalorder %s13, 0
    %p54 = por %p52, %p53
    %p55 = scmp.ne.s32.totalorder %s47, %s49
    %p56 = scmp.eq.s32.totalorder %s18, 1
    %p57 = por %p55, %p56
    %p58 = scmp.ne.s32.totalorder %s49, %s50
    %p59 = scmp.eq.s32.totalorder %s18, 0
    %p60 = por %p58, %p59
    %p61 = scmp.ne.s32.totalorder %s49, %s50
    %p62 = scmp.eq.s32.totalorder %s19, 1
    %p63 = por %p61, %p62
    %p65 = scmp.ne.s32.totalorder %s50, %s64
    %p66 = scmp.eq.s32.totalorder %s19, 0
    %p67 = por %p65, %p66
    %s69 = sadd.s32 %s68, 1
    %p72 = scmp.eq.s32.totalorder %s13, 1
    %p73 = scmp.ne.s32.totalorder %s68, %s70
    %p74 = scmp.eq.s32.totalorder %s13, 0
    %p75 = por %p73, %p74
    %p76 = scmp.ne.s32.totalorder %s68, %s70
    %p77 = scmp.eq.s32.totalorder %s18, 1
    %p78 = por %p76, %p77
    %p79 = scmp.ne.s32.totalorder %s70, %s71
    %p80 = scmp.eq.s32.totalorder %s18, 0
    %p81 = por %p79, %p80
    %p82 = scmp.ne.s32.totalorder %s70, %s71
    %p83 = scmp.eq.s32.totalorder %s19, 1
    %p84 = por %p82, %p83
    %p86 = scmp.ne.s32.totalorder %s71, %s85
    %p87 = scmp.eq.s32.totalorder %s19, 0
    %p88 = por %p86, %p87
    %s90 = sadd.s32 %s89, 1
    %p93 = scmp.eq.s32.totalorder %s13, 1
    %p94 = scmp.ne.s32.totalorder %s89, %s91
    %p95 = scmp.eq.s32.totalorder %s13, 0
    %p96 = por %p94, %p95
    %p97 = scmp.ne.s32.totalorder %s89, %s91
    %p98 = scmp.eq.s32.totalorder %s18, 1
    %p99 = por %p97, %p98
    %p100 = scmp.ne.s32.totalorder %s91, %s92
    %p101 = scmp.eq.s32.totalorder %s18, 0
    %p102 = por %p100, %p101
    %p103 = scmp.ne.s32.totalorder %s91, %s92
    %p104 = scmp.eq.s32.totalorder %s19, 1
    %p105 = por %p103, %p104
    %p107 = scmp.ne.s32.totalorder %s92, %s106
    %p108 = scmp.eq.s32.totalorder %s19, 0
    %p109 = por %p107, %p108
    %s111 = sadd.s32 %s110, 1
    %p114 = scmp.eq.s32.totalorder %s13, 1
    %p115 = scmp.ne.s32.totalorder %s110, %s112
    %p116 = scmp.eq.s32.totalorder %s13, 0
    %p117 = por %p115, %p116
    %p118 = scmp.ne.s32.totalorder %s110, %s112
    %p119 = scmp.eq.s32.totalorder %s18, 1
    %p120 = por %p118, %p119
    %p121 = scmp.ne.s32.totalorder %s112, %s113
    %p122 = scmp.eq.s32.totalorder %s18, 0
    %p123 = por %p121, %p122
    %p124 = scmp.ne.s32.totalorder %s112, %s113
    %p125 = scmp.eq.s32.totalorder %s19, 1
    %p126 = por %p124, %p125
    %p128 = scmp.ne.s32.totalorder %s113, %s127
    %p129 = scmp.eq.s32.totalorder %s19, 0
    %p130 = por %p128, %p129
    %s132 = sadd.s32 %s131, 1
    %p135 = scmp.eq.s32.totalorder %s13, 1
    %p136 = scmp.ne.s32.totalorder %s131, %s133
    %p137 = scmp.eq.s32.totalorder %s13, 0
    %p138 = por %p136, %p137
    %p139 = scmp.ne.s32.totalorder %s131, %s133
    %p140 = scmp.eq.s32.totalorder %s18, 1
    %p141 = por %p139, %p140
    %p142 = scmp.ne.s32.totalorder %s133, %s134
    %p143 = scmp.eq.s32.totalorder %s18, 0
    %p144 = por %p142, %p143
    %p145 = scmp.ne.s32.totalorder %s133, %s134
    %p146 = scmp.eq.s32.totalorder %s19, 1
    %p147 = por %p145, %p146
    %p149 = scmp.ne.s32.totalorder %s134, %s148
    %p150 = scmp.eq.s32.totalorder %s19, 0
    %p151 = por %p149, %p150
    %s153 = sadd.s32 %s152, 1
    %p156 = scmp.eq.s32.totalorder %s13, 1
    %p157 = scmp.ne.s32.totalorder %s152, %s154
    %p158 = scmp.eq.s32.totalorder %s13, 0
    %p159 = por %p157, %p158
    %p160 = scmp.ne.s32.totalorder %s152, %s154
    %p161 = scmp.eq.s32.totalorder %s18, 1
    %p162 = por %p160, %p161
    %p163 = scmp.ne.s32.totalorder %s154, %s155
    %p164 = scmp.eq.s32.totalorder %s18, 0
    %p165 = por %p163, %p164
    %p166 = scmp.ne.s32.totalorder %s154, %s155
    %p167 = scmp.eq.s32.totalorder %s19, 1
    %p168 = por %p166, %p167
    %p170 = scmp.ne.s32.totalorder %s155, %s169
    %p171 = scmp.eq.s32.totalorder %s19, 0
    %p172 = por %p170, %p171
    %s173 = ssub.s32 %s13, %s20
    %p174 = scmp.eq.s32.totalorder %s173, 0
    %s176 = sadd.s32 %s175, 1
    %s177 = scalar_select %p174, %s175, %s176
    %p180 = pneg %p174
    %p181 = scmp.eq.s32.totalorder %s13, 1
    %p182 = por %p180, %p181
    %p183 = scmp.ne.s32.totalorder %s175, %s178
    %p184 = scmp.eq.s32.totalorder %s13, 0
    %p185 = por %p183, %p184
    %p186 = scmp.ne.s32.totalorder %s175, %s178
    %p187 = scmp.eq.s32.totalorder %s18, 1
    %p188 = por %p186, %p187
    %p189 = scmp.ne.s32.totalorder %s178, %s179
    %p190 = scmp.eq.s32.totalorder %s18, 0
    %p191 = por %p189, %p190
    %p192 = scmp.ne.s32.totalorder %s178, %s179
    %p193 = scmp.eq.s32.totalorder %s19, 1
    %p194 = por %p192, %p193
    %p196 = scmp.ne.s32.totalorder %s179, %s195
    %p197 = scmp.eq.s32.totalorder %s19, 0
    %p198 = por %p196, %p197
    %p199 = scmp.le.s32.totalorder 1, %s13
    %p200 = scmp.lt.s32.totalorder %s13, 3
    %p201 = pnand %p199, %p200
    %p202 = pneg %p201
    // Predicated region
    $region9: #{vision_transformer_forward.10} parent=5 // pred_check
      _
    $region10: #{vision_transformer_forward.10} parent=5 // pred_check_branch
      %204 = sbr.rel (%p201) target = $region12
    $region11: #{vision_transformer_forward.10} parent=5 // pred_region
      %s205 = ssub.s32 %s13, 1
      // Predicated region
      $region13: #{vision_transformer_forward.10} parent=11 // pred_check
        %p206 = pneg %p60
      $region14: #{vision_transformer_forward.10} parent=11 // pred_check_branch
        %208 = sbr.rel (%p206) target = $region16
      $region15: #{vision_transformer_forward.10} parent=11 // pred_region
        _
      $region16: #{vision_transformer_forward.10} parent=11 // pred_fallthru
        _
      // Predicated region
      $region17: #{vision_transformer_forward.10} parent=11 // pred_check
        %p209 = pneg %p81
      $region18: #{vision_transformer_forward.10} parent=11 // pred_check_branch
        %211 = sbr.rel (%p209) target = $region20
      $region19: #{vision_transformer_forward.10} parent=11 // pred_region
        _
      $region20: #{vision_transformer_forward.10} parent=11 // pred_fallthru
        _
      // Predicated region
      $region21: #{vision_transformer_forward.10} parent=11 // pred_check
        %p212 = pneg %p102
      $region22: #{vision_transformer_forward.10} parent=11 // pred_check_branch
        %214 = sbr.rel (%p212) target = $region24
      $region23: #{vision_transformer_forward.10} parent=11 // pred_region
        _
      $region24: #{vision_transformer_forward.10} parent=11 // pred_fallthru
        _
      // Predicated region
      $region25: #{vision_transformer_forward.10} parent=11 // pred_check
        %p215 = pneg %p123
      $region26: #{vision_transformer_forward.10} parent=11 // pred_check_branch
        %217 = sbr.rel (%p215) target = $region28
      $region27: #{vision_transformer_forward.10} parent=11 // pred_region
        _
      $region28: #{vision_transformer_forward.10} parent=11 // pred_fallthru
        _
      // Predicated region
      $region29: #{vision_transformer_forward.10} parent=11 // pred_check
        %p218 = pneg %p144
      $region30: #{vision_transformer_forward.10} parent=11 // pred_check_branch
        %220 = sbr.rel (%p218) target = $region32
      $region31: #{vision_transformer_forward.10} parent=11 // pred_region
        _
      $region32: #{vision_transformer_forward.10} parent=11 // pred_fallthru
        _
      // Predicated region
      $region33: #{vision_transformer_forward.10} parent=11 // pred_check
        %p221 = pneg %p165
      $region34: #{vision_transformer_forward.10} parent=11 // pred_check_branch
        %223 = sbr.rel (%p221) target = $region36
      $region35: #{vision_transformer_forward.10} parent=11 // pred_region
        _
      $region36: #{vision_transformer_forward.10} parent=11 // pred_fallthru
        _
    $region12: #{vision_transformer_forward.10} parent=5 // pred_fallthru
      _
    %p224 = scmp.lt.s32.totalorder %s13, 2
    // Predicated region
    $region37: #{vision_transformer_forward.10} parent=5 // pred_check
      %p225 = pneg %p224
    $region38: #{vision_transformer_forward.10} parent=5 // pred_check_branch
      %227 = sbr.rel (%p225) target = $region40
    $region39: #{vision_transformer_forward.10} parent=5 // pred_region
      // Predicated region
      $region41: #{vision_transformer_forward.10} parent=39 // pred_check
        %p228 = pneg %p33
      $region42: #{vision_transformer_forward.10} parent=39 // pred_check_branch
        %230 = sbr.rel (%p228) target = $region44
      $region43: #{vision_transformer_forward.10} parent=39 // pred_region
        %p231 = scmp.lt.s32.totalorder %s13, 1
        %s232 = scalar_select %p231, %s13, 1
        %s233 = smul.addr %s232, 8
        %s234 = scalar_lea.vmem %s0, %s233
      $region44: #{vision_transformer_forward.10} parent=39 // pred_fallthru
        _
    $region40: #{vision_transformer_forward.10} parent=5 // pred_fallthru
      _
    %p235 = scmp.le.s32.totalorder 1, %s13
    %p236 = scmp.lt.s32.totalorder %s13, 3
    %p237 = pnand %p235, %p236
    %p238 = pneg %p237
    // Predicated region
    $region45: #{vision_transformer_forward.10} parent=5 // pred_check
      _
    $region46: #{vision_transformer_forward.10} parent=5 // pred_check_branch
      %240 = sbr.rel (%p237) target = $region48
    $region47: #{vision_transformer_forward.10} parent=5 // pred_region
      %s241 = ssub.s32 %s13, 1
      %p242 = scmp.lt.s32.totalorder %s18, 1
      %s243 = scalar_select %p242, %s18, 1
      %s244 = smul.addr %s243, 8
      %s245 = scalar_lea.vmem %s0, %s244
      %p246 = pneg %p39
      %p247 = pneg %p36
      %p248 = pneg %p60
      %p249 = pneg %p57
      %p250 = pneg %p81
      %p251 = pneg %p78
      %p252 = pneg %p102
      %p253 = pneg %p99
      %p254 = pneg %p123
      %p255 = pneg %p120
      %p256 = pneg %p144
      %p257 = pneg %p141
      %p258 = pneg %p165
      %p259 = pneg %p162
      %p260 = pneg %p191
      %p261 = pneg %p188
      %p262 = scmp.lt.s32.totalorder %s18, 1
      %s263 = scalar_select %p262, %s18, 1
      %s264 = smul.addr %s263, 8
      %s265 = scalar_lea.vmem %s7, %s264
      %p266 = scmp.lt.s32.totalorder %s18, 1
      %s267 = scalar_select %p266, %s18, 1
      %s268 = smul.addr %s267, 8
      %s269 = scalar_lea.vmem %s0, %s268
      %p270 = scmp.lt.s32.totalorder %s18, 1
      %s271 = scalar_select %p270, %s18, 1
      %s272 = smul.addr %s271, 8
      %s273 = scalar_lea.vmem %s7, %s272
      %v274 = vld [vmem:[%s269] sm:$0xff]
      %v275 = vld [vmem:[%s1] sm:$0x1]
      %v276 = vld [vmem:[%s2] sm:$0x1]
      %vm277 = vcmask 392192
      %v278 = vsel %vm277, %v274, 0.0
      %279 = vadd.xlane.f32.xlu0 %v278
      %v280 = vpop.xlane.xlu0 %279
      %v281 = vrcp.pop 48.0
      %v282 = vmul.f32 %v280, %v281
      %v283 = vsub.f32 %v274, %v282
      %v284 = vmul.f32 %v283, %v283
      %v285 = vsel %vm277, %v284, 0.0
      %286 = vadd.xlane.f32.xlu0 %v285
      %v287 = vpop.xlane.xlu0 %286
      %v288 = vmul.f32 %v287, %v281
      %v289 = vadd.f32 %v288, 1e-05
      %v290 = vrsqrt.pop %v289
      %v291 = vmul.f32 %v283, %v290
      %v293 = vlaneseq
      %v294 = vshrl.u32 %v293, 7
      %v295 = vsub.s32 0, %v294
      %v296 = vrot.slane %v275, %v295
      %v298 = vmul.f32 %v291, %v296
      %v300 = vlaneseq
      %v301 = vshrl.u32 %v300, 7
      %v302 = vsub.s32 0, %v301
      %v303 = vrot.slane %v276, %v302
      %v305 = vadd.f32 %v298, %v303
      %v306 = vld [vmem:[%s3] sm:$0xff]
      %v307 = vld [vmem:[%s3 + $0x8] sm:$0xff]
      %v308 = vld [vmem:[%s3 + $0x10] sm:$0xff]
      %v309 = vld [vmem:[%s3 + $0x18] sm:$0xff]
      %v310 = vld [vmem:[%s3 + $0x20] sm:$0xff]
      %v311 = vld [vmem:[%s3 + $0x28] sm:$0xff]
      %v312 = vld [vmem:[%s4] sm:$0x1]
      %v314 = vlaneseq
      %v315 = vshrl.u32 %v314, 7
      %v316 = vsub.s32 0, %v315
      %v317 = vrot.slane %v312, %v316
      %v320 = vsel %vm277, %v305, 0
      %322 = vmatprep.subr.mxu0 0.0
      %323 = vmatpush1.msra.mxu0 %v306
      %324 = vmatprep.subr.mxu0 0.0
      %325 = vmatpush1.msra.mxu0 %v307
      %326 = vmatprep.subr.mxu0 0.0
      %327 = vmatpush1.msra.mxu0 %v308
      %328 = vmatprep.subr.mxu0 0.0
      %329 = vmatpush1.msra.mxu0 %v309
      %330 = vmatprep.subr.mxu0 0.0
      %331 = vmatpush1.msra.mxu0 %v310
      %332 = vmatprep.subr.mxu0 0.0
      %333 = vmatpush1.msra.mxu0 %v311
      %334 = vmatprep.subr.mxu0 0.0
      %335 = vmatpush1.msra.mxu0 0.0
      %336 = vmatprep.subr.mxu0 0.0
      %337 = vmatpush1.msra.mxu0 0.0
      %338 = vmatprep.subr.mxu0 0.0
      %339 = vmatpush1.msra.mxu0 0.0
      %340 = vmatprep.subr.mxu0 0.0
      %341 = vmatpush1.msra.mxu0 0.0
      %342 = vmatprep.subr.mxu0 0.0
      %343 = vmatpush1.msra.mxu0 0.0
      %344 = vmatprep.subr.mxu0 0.0
      %345 = vmatpush1.msra.mxu0 0.0
      %346 = vmatprep.subr.mxu0 0.0
      %347 = vmatpush1.msra.mxu0 0.0
      %348 = vmatprep.subr.mxu0 0.0
      %349 = vmatpush1.msra.mxu0 0.0
      %350 = vmatprep.subr.mxu0 0.0
      %351 = vmatpush1.msra.mxu0 0.0
      %352 = vmatprep.subr.mxu0 0.0
      %353 = vmatpush1.msra.mxu0 0.0
      %354 = vmatprep.subr.mxu0 0.0
      %355 = vmatpush1.msra.mxu0 0.0
      %356 = vmatprep.subr.mxu0 0.0
      %357 = vmatpush1.msra.mxu0 0.0
      %358 = vmatprep.subr.mxu0 0.0
      %359 = vmatpush1.msra.mxu0 0.0
      %360 = vmatprep.subr.mxu0 0.0
      %361 = vmatpush1.msra.mxu0 0.0
      %362 = vmatprep.subr.mxu0 0.0
      %363 = vmatpush1.msra.mxu0 0.0
      %364 = vmatprep.subr.mxu0 0.0
      %365 = vmatpush1.msra.mxu0 0.0
      %366 = vmatprep.subr.mxu0 0.0
      %367 = vmatpush1.msra.mxu0 0.0
      %368 = vmatprep.subr.mxu0 0.0
      %369 = vmatpush1.msra.mxu0 0.0
      %370 = vmatprep.subr.mxu0 0.0
      %371 = vmatpush1.msra.mxu0 0.0
      %372 = vmatprep.subr.mxu0 0.0
      %373 = vmatpush1.msra.mxu0 0.0
      %374 = vmatprep.subr.mxu0 0.0
      %375 = vmatpush1.msra.mxu0 0.0
      %376 = vmatprep.subr.mxu0 0.0
      %377 = vmatpush1.msra.mxu0 0.0
      %378 = vmatprep.subr.mxu0 0.0
      %379 = vmatpush1.msra.mxu0 0.0
      %380 = vmatprep.subr.mxu0 0.0
      %381 = vmatpush1.msra.mxu0 0.0
      %382 = vmatprep.subr.mxu0 0.0
      %383 = vmatpush1.msra.mxu0 0.0
      %384 = vmatprep.subr.mxu0 0.0
      %385 = vmatpush1.msra.mxu0 0.0
      %386 = vmatprep.mubr.f32.mxu0 0.0
      %387 = vmatmul.mubr.f32.gmra.mrb[0].mxu0 %v320
      %v388 = vpop.f32.mrb[0].mxu0
      %v389 = vadd.f32 %v317, %v388
      %v390 = vpop.f32.mrb[0].mxu0
      %391 = vdwg.mxu0
      %vm392 = vcmp.ge.f32.partialorder %v389, 0.0
      %v393 = vmul.f32 %v389, 0.2
      %v394 = vsel %vm392, %v389, %v393
      %v395 = vld [vmem:[%s5] sm:$0xff]
      %v396 = vld [vmem:[%s5 + $0x8] sm:$0xf]
      %v397 = vld [vmem:[%s6] sm:$0x1]
      %v399 = vlaneseq
      %v400 = vshrl.u32 %v399, 7
      %v401 = vsub.s32 0, %v400
      %v402 = vrot.slane %v397, %v401
      %vm404 = vcmask 97280
      %v406 = vsel %vm404, %v394, 0
      %vm408 = vcmask 1043456
      %v410 = vsel %vm408, %v396, 0
      %412 = vmatprep.subr.mxu0 0.0
      %413 = vmatpush1.msra.mxu0 %v395
      %414 = vmatprep.subr.mxu0 0.0
      %415 = vmatpush1.msra.mxu0 %v410
      %416 = vmatprep.subr.mxu0 0.0
      %417 = vmatpush1.msra.mxu0 0.0
      %418 = vmatprep.subr.mxu0 0.0
      %419 = vmatpush1.msra.mxu0 0.0
      %420 = vmatprep.subr.mxu0 0.0
      %421 = vmatpush1.msra.mxu0 0.0
      %422 = vmatprep.subr.mxu0 0.0
      %423 = vmatpush1.msra.mxu0 0.0
      %424 = vmatprep.subr.mxu0 0.0
      %425 = vmatpush1.msra.mxu0 0.0
      %426 = vmatprep.subr.mxu0 0.0
      %427 = vmatpush1.msra.mxu0 0.0
      %428 = vmatprep.subr.mxu0 0.0
      %429 = vmatpush1.msra.mxu0 0.0
      %430 = vmatprep.subr.mxu0 0.0
      %431 = vmatpush1.msra.mxu0 0.0
      %432 = vmatprep.subr.mxu0 0.0
      %433 = vmatpush1.msra.mxu0 0.0
      %434 = vmatprep.subr.mxu0 0.0
      %435 = vmatpush1.msra.mxu0 0.0
      %436 = vmatprep.subr.mxu0 0.0
      %437 = vmatpush1.msra.mxu0 0.0
      %438 = vmatprep.subr.mxu0 0.0
      %439 = vmatpush1.msra.mxu0 0.0
      %440 = vmatprep.subr.mxu0 0.0
      %441 = vmatpush1.msra.mxu0 0.0
      %442 = vmatprep.subr.mxu0 0.0
      %443 = vmatpush1.msra.mxu0 0.0
      %444 = vmatprep.subr.mxu0 0.0
      %445 = vmatpush1.msra.mxu0 0.0
      %446 = vmatprep.subr.mxu0 0.0
      %447 = vmatpush1.msra.mxu0 0.0
      %448 = vmatprep.subr.mxu0 0.0
      %449 = vmatpush1.msra.mxu0 0.0
      %450 = vmatprep.subr.mxu0 0.0
      %451 = vmatpush1.msra.mxu0 0.0
      %452 = vmatprep.subr.mxu0 0.0
      %453 = vmatpush1.msra.mxu0 0.0
      %454 = vmatprep.subr.mxu0 0.0
      %455 = vmatpush1.msra.mxu0 0.0
      %456 = vmatprep.subr.mxu0 0.0
      %457 = vmatpush1.msra.mxu0 0.0
      %458 = vmatprep.subr.mxu0 0.0
      %459 = vmatpush1.msra.mxu0 0.0
      %460 = vmatprep.subr.mxu0 0.0
      %461 = vmatpush1.msra.mxu0 0.0
      %462 = vmatprep.subr.mxu0 0.0
      %463 = vmatpush1.msra.mxu0 0.0
      %464 = vmatprep.subr.mxu0 0.0
      %465 = vmatpush1.msra.mxu0 0.0
      %466 = vmatprep.subr.mxu0 0.0
      %467 = vmatpush1.msra.mxu0 0.0
      %468 = vmatprep.subr.mxu0 0.0
      %469 = vmatpush1.msra.mxu0 0.0
      %470 = vmatprep.subr.mxu0 0.0
      %471 = vmatpush1.msra.mxu0 0.0
      %472 = vmatprep.subr.mxu0 0.0
      %473 = vmatpush1.msra.mxu0 0.0
      %474 = vmatprep.subr.mxu0 0.0
      %475 = vmatpush1.msra.mxu0 0.0
      %476 = vmatprep.mubr.f32.mxu0 0.0
      %477 = vmatmul.mubr.f32.gmra.mrb[0].mxu0 %v406
      %v478 = vpop.f32.mrb[0].mxu0
      %v479 = vadd.f32 %v402, %v478
      %v480 = vpop.f32.mrb[0].mxu0
      %481 = vdwg.mxu0
      %482 = vst [vmem:[%s273] sm:$0xff] %v479
      %p483 = scmp.lt.s32.totalorder %s18, 1
      %s484 = scalar_select %p483, %s18, 1
      %s485 = smul.addr %s484, 8
      %s486 = scalar_lea.vmem %s7, %s485
      // Predicated region
      $region49: #{vision_transformer_forward.10} parent=47 // pred_check
        %p487 = pneg %p188
      $region50: #{vision_transformer_forward.10} parent=47 // pred_check_branch
        %489 = sbr.rel (%p487) target = $region52
      $region51: #{vision_transformer_forward.10} parent=47 // pred_region
        _
      $region52: #{vision_transformer_forward.10} parent=47 // pred_fallthru
        _
    $region48: #{vision_transformer_forward.10} parent=5 // pred_fallthru
      _
    %p490 = scmp.le.s32.totalorder 2, %s13
    // Predicated region
    $region53: #{vision_transformer_forward.10} parent=5 // pred_check
      %p491 = pneg %p490
    $region54: #{vision_transformer_forward.10} parent=5 // pred_check_branch
      %493 = sbr.rel (%p491) target = $region56
    $region55: #{vision_transformer_forward.10} parent=5 // pred_region
      %s494 = ssub.s32 %s13, 2
      // Predicated region
      $region57: #{vision_transformer_forward.10} parent=55 // pred_check
        %p495 = pneg %p194
      $region58: #{vision_transformer_forward.10} parent=55 // pred_check_branch
        %497 = sbr.rel (%p495) target = $region60
      $region59: #{vision_transformer_forward.10} parent=55 // pred_region
        %p498 = scmp.lt.s32.totalorder %s19, 1
        %s499 = scalar_select %p498, %s19, 1
        %s500 = smul.addr %s499, 8
        %s501 = scalar_lea.vmem %s7, %s500
      $region60: #{vision_transformer_forward.10} parent=55 // pred_fallthru
        _
    $region56: #{vision_transformer_forward.10} parent=5 // pred_fallthru
      _
  $region6: #{vision_transformer_forward.10} parent=0 // loop_footer
    %s17 = sadd.s32 1, %s13
  $region7: #{vision_transformer_forward.10} parent=0 // loop_footer_branch
    %12 = sbr.rel target = $region3
  $region8: #{vision_transformer_forward.10} parent=0 // loop_exit
    _

// kernel: vision_transformer_forward.8
$region0: #{vision_transformer_forward.8}
  #allocation0 [shape = 'u32[]', space=smem, size = 0x4, offset = 0x4, fixed_abs, tag = 'smem constant byte address 0x4 - core index']
  #allocation1 [shape = 'u32[144,128]{1,0:T(1,128)}', space=vmem, size = 0x12000, scoped, tag = 'internal scratch']
  %s0 = inlined_call_operand.vmem [shape: f32[16,48], index: 0, kind: input, shape index: {}]
  %s1 = inlined_call_operand.vmem [shape: f32[16,48], index: 1, kind: input, shape index: {}]
  %s2 = inlined_call_operand.vmem [shape: f32[1,48], index: 2, kind: input, shape index: {}]
  %s3 = inlined_call_operand.vmem [shape: f32[1,48], index: 3, kind: input, shape index: {}]
  %s4 = inlined_call_operand.vmem [shape: f32[1,48], index: 4, kind: input, shape index: {}]
  %s5 = inlined_call_operand.vmem [shape: f32[1,48], index: 5, kind: input, shape index: {}]
  %s6 = inlined_call_operand.vmem [shape: f32[48,48], index: 6, kind: input, shape index: {}]
  %s7 = inlined_call_operand.vmem [shape: f32[48,96], index: 7, kind: input, shape index: {}]
  %s8 = inlined_call_operand.vmem [shape: f32[48,48], index: 8, kind: input, shape index: {}]
  %s9 = inlined_call_operand.vmem [shape: f32[1,48], index: 9, kind: input, shape index: {}]
  %s10 = inlined_call_operand.vmem [shape: f32[48,48], index: 10, kind: input, shape index: {}]
  %s11 = inlined_call_operand.vmem [shape: f32[48,96], index: 11, kind: input, shape index: {}]
  %s12 = inlined_call_operand.vmem [shape: f32[48,48], index: 12, kind: input, shape index: {}]
  %s13 = inlined_call_operand.vmem [shape: f32[1,48], index: 13, kind: input, shape index: {}]
  %s14 = inlined_call_operand.vmem [shape: f32[48,48], index: 14, kind: input, shape index: {}]
  %s15 = inlined_call_operand.vmem [shape: f32[48,48], index: 15, kind: input, shape index: {}]
  %s16 = inlined_call_operand.vmem [shape: f32[1,48], index: 16, kind: input, shape index: {}]
  %s17 = inlined_call_operand.vmem [shape: f32[48,192], index: 17, kind: input, shape index: {}]
  %s18 = inlined_call_operand.vmem [shape: f32[1,192], index: 18, kind: input, shape index: {}]
  %s19 = inlined_call_operand.vmem [shape: f32[192,48], index: 19, kind: input, shape index: {}]
  %s20 = inlined_call_operand.vmem [shape: f32[1,48], index: 20, kind: input, shape index: {}]
  %s21 = inlined_call_operand.vmem [shape: f32[16,48], index: 21, kind: output, shape index: {}]
  %s22 = sld [smem:[#allocation0]]
  $region117: #{vision_transformer_forward.8} parent=0
    _
  %s24 = ssub.s32 1, %s22
  %s25 = scalar_select 0, %s24, %s22
  loop: start=0, step=1, limit=4
  $region2: #{vision_transformer_forward.8} parent=0 // loop_pre_header
    _
  $region3: #{vision_transformer_forward.8} parent=0 // loop_header
    %s27 = sphi 0, %s31
    %p28 = scmp.ge.s32.totalorder %s27, 4
    %s37 = sphi 0, %s39
    %s40 = sphi 0, %s37
    %s41 = sphi 0, %s40
    %s57 = sphi 0, %s41
    %s63 = sphi 0, %s65
    %s66 = sphi 0, %s63
    %s67 = sphi 0, %s66
    %s83 = sphi 0, %s67
    %s87 = sphi 0, %s87
    %s89 = sphi 0, %s87
    %s90 = sphi 0, %s89
    %s104 = sphi 0, %s90
    %s108 = sphi 0, %s108
    %s110 = sphi 0, %s108
    %s111 = sphi 0, %s110
    %s125 = sphi 0, %s111
    %s129 = sphi 0, %s129
    %s131 = sphi 0, %s129
    %s132 = sphi 0, %s131
    %s146 = sphi 0, %s132
    %s150 = sphi 0, %s150
    %s152 = sphi 0, %s150
    %s153 = sphi 0, %s152
    %s167 = sphi 0, %s153
    %s171 = sphi 0, %s171
    %s173 = sphi 0, %s171
    %s174 = sphi 0, %s173
    %s188 = sphi 0, %s174
    %s192 = sphi 0, %s192
    %s194 = sphi 0, %s192
    %s195 = sphi 0, %s194
    %s209 = sphi 0, %s195
    %s213 = sphi 0, %s213
    %s215 = sphi 0, %s213
    %s216 = sphi 0, %s215
    %s230 = sphi 0, %s216
    %s234 = sphi 0, %s234
    %s236 = sphi 0, %s234
    %s237 = sphi 0, %s236
    %s251 = sphi 0, %s237
    %s255 = sphi 0, %s255
    %s257 = sphi 0, %s255
    %s258 = sphi 0, %s257
    %s272 = sphi 0, %s258
    %s276 = sphi 0, %s276
    %s278 = sphi 0, %s276
    %s279 = sphi 0, %s278
    %s293 = sphi 0, %s279
    %s297 = sphi 0, %s297
    %s299 = sphi 0, %s297
    %s300 = sphi 0, %s299
    %s314 = sphi 0, %s300
    %s318 = sphi 0, %s318
    %s320 = sphi 0, %s318
    %s321 = sphi 0, %s320
    %s335 = sphi 0, %s321
    %s339 = sphi 0, %s339
    %s341 = sphi 0, %s339
    %s342 = sphi 0, %s341
    %s356 = sphi 0, %s342
    %s360 = sphi 0, %s360
    %s362 = sphi 0, %s360
    %s363 = sphi 0, %s362
    %s377 = sphi 0, %s363
    %s381 = sphi 0, %s381
    %s383 = sphi 0, %s381
    %s384 = sphi 0, %s383
    %s398 = sphi 0, %s384
    %s402 = sphi 0, %s402
    %s404 = sphi 0, %s402
    %s405 = sphi 0, %s404
    %s419 = sphi 0, %s405
    %s423 = sphi 0, %s423
    %s425 = sphi 0, %s423
    %s426 = sphi 0, %s425
    %s440 = sphi 0, %s426
    %s444 = sphi 0, %s444
    %s446 = sphi 0, %s444
    %s447 = sphi 0, %s446
    %s461 = sphi 0, %s447
    %s465 = sphi 0, %s465
    %s467 = sphi 0, %s465
    %s468 = sphi 0, %s467
    %s482 = sphi 0, %s468
    %s488 = sphi 0, %s490
    %s491 = sphi 0, %s488
    %s492 = sphi 0, %s491
    %s508 = sphi 0, %s492
  $region4: #{vision_transformer_forward.8} parent=0 // loop_header_branch
    %30 = sbr.rel (%p28) target = $region8
  $region5: #{vision_transformer_forward.8} parent=0 // loop_body
    %s32 = ssub.s32 %s27, 1
    %s33 = ssub.s32 %s27, 2
    %s34 = sadd.s32 %s27, 1
    %s35 = ssub.s32 %s27, %s34
    %p36 = scmp.eq.s32.totalorder %s35, 0
    %s38 = sadd.s32 %s37, 1
    %s39 = scalar_select %p36, %s37, %s38
    %p42 = pneg %p36
    %p43 = scmp.eq.s32.totalorder %s27, 1
    %p44 = por %p42, %p43
    %p45 = scmp.ne.s32.totalorder %s37, %s40
    %p46 = scmp.eq.s32.totalorder %s27, 0
    %p47 = por %p45, %p46
    %p48 = scmp.ne.s32.totalorder %s37, %s40
    %p49 = scmp.eq.s32.totalorder %s32, 1
    %p50 = por %p48, %p49
    %p51 = scmp.ne.s32.totalorder %s40, %s41
    %p52 = scmp.eq.s32.totalorder %s32, 0
    %p53 = por %p51, %p52
    %p54 = scmp.ne.s32.totalorder %s40, %s41
    %p55 = scmp.eq.s32.totalorder %s33, 1
    %p56 = por %p54, %p55
    %p58 = scmp.ne.s32.totalorder %s41, %s57
    %p59 = scmp.eq.s32.totalorder %s33, 0
    %p60 = por %p58, %p59
    %s61 = ssub.s32 %s27, %s34
    %p62 = scmp.eq.s32.totalorder %s61, 0
    %s64 = sadd.s32 %s63, 1
    %s65 = scalar_select %p62, %s63, %s64
    %p68 = pneg %p62
    %p69 = scmp.eq.s32.totalorder %s27, 1
    %p70 = por %p68, %p69
    %p71 = scmp.ne.s32.totalorder %s63, %s66
    %p72 = scmp.eq.s32.totalorder %s27, 0
    %p73 = por %p71, %p72
    %p74 = scmp.ne.s32.totalorder %s63, %s66
    %p75 = scmp.eq.s32.totalorder %s32, 1
    %p76 = por %p74, %p75
    %p77 = scmp.ne.s32.totalorder %s66, %s67
    %p78 = scmp.eq.s32.totalorder %s32, 0
    %p79 = por %p77, %p78
    %p80 = scmp.ne.s32.totalorder %s66, %s67
    %p81 = scmp.eq.s32.totalorder %s33, 1
    %p82 = por %p80, %p81
    %p84 = scmp.ne.s32.totalorder %s67, %s83
    %p85 = scmp.eq.s32.totalorder %s33, 0
    %p86 = por %p84, %p85
    %s88 = sadd.s32 %s87, 1
    %p91 = scmp.eq.s32.totalorder %s27, 1
    %p92 = scmp.ne.s32.totalorder %s87, %s89
    %p93 = scmp.eq.s32.totalorder %s27, 0
    %p94 = por %p92, %p93
    %p95 = scmp.ne.s32.totalorder %s87, %s89
    %p96 = scmp.eq.s32.totalorder %s32, 1
    %p97 = por %p95, %p96
    %p98 = scmp.ne.s32.totalorder %s89, %s90
    %p99 = scmp.eq.s32.totalorder %s32, 0
    %p100 = por %p98, %p99
    %p101 = scmp.ne.s32.totalorder %s89, %s90
    %p102 = scmp.eq.s32.totalorder %s33, 1
    %p103 = por %p101, %p102
    %p105 = scmp.ne.s32.totalorder %s90, %s104
    %p106 = scmp.eq.s32.totalorder %s33, 0
    %p107 = por %p105, %p106
    %s109 = sadd.s32 %s108, 1
    %p112 = scmp.eq.s32.totalorder %s27, 1
    %p113 = scmp.ne.s32.totalorder %s108, %s110
    %p114 = scmp.eq.s32.totalorder %s27, 0
    %p115 = por %p113, %p114
    %p116 = scmp.ne.s32.totalorder %s108, %s110
    %p117 = scmp.eq.s32.totalorder %s32, 1
    %p118 = por %p116, %p117
    %p119 = scmp.ne.s32.totalorder %s110, %s111
    %p120 = scmp.eq.s32.totalorder %s32, 0
    %p121 = por %p119, %p120
    %p122 = scmp.ne.s32.totalorder %s110, %s111
    %p123 = scmp.eq.s32.totalorder %s33, 1
    %p124 = por %p122, %p123
    %p126 = scmp.ne.s32.totalorder %s111, %s125
    %p127 = scmp.eq.s32.totalorder %s33, 0
    %p128 = por %p126, %p127
    %s130 = sadd.s32 %s129, 1
    %p133 = scmp.eq.s32.totalorder %s27, 1
    %p134 = scmp.ne.s32.totalorder %s129, %s131
    %p135 = scmp.eq.s32.totalorder %s27, 0
    %p136 = por %p134, %p135
    %p137 = scmp.ne.s32.totalorder %s129, %s131
    %p138 = scmp.eq.s32.totalorder %s32, 1
    %p139 = por %p137, %p138
    %p140 = scmp.ne.s32.totalorder %s131, %s132
    %p141 = scmp.eq.s32.totalorder %s32, 0
    %p142 = por %p140, %p141
    %p143 = scmp.ne.s32.totalorder %s131, %s132
    %p144 = scmp.eq.s32.totalorder %s33, 1
    %p145 = por %p143, %p144
    %p147 = scmp.ne.s32.totalorder %s132, %s146
    %p148 = scmp.eq.s32.totalorder %s33, 0
    %p149 = por %p147, %p148
    %s151 = sadd.s32 %s150, 1
    %p154 = scmp.eq.s32.totalorder %s27, 1
    %p155 = scmp.ne.s32.totalorder %s150, %s152
    %p156 = scmp.eq.s32.totalorder %s27, 0
    %p157 = por %p155, %p156
    %p158 = scmp.ne.s32.totalorder %s150, %s152
    %p159 = scmp.eq.s32.totalorder %s32, 1
    %p160 = por %p158, %p159
    %p161 = scmp.ne.s32.totalorder %s152, %s153
    %p162 = scmp.eq.s32.totalorder %s32, 0
    %p163 = por %p161, %p162
    %p164 = scmp.ne.s32.totalorder %s152, %s153
    %p165 = scmp.eq.s32.totalorder %s33, 1
    %p166 = por %p164, %p165
    %p168 = scmp.ne.s32.totalorder %s153, %s167
    %p169 = scmp.eq.s32.totalorder %s33, 0
    %p170 = por %p168, %p169
    %s172 = sadd.s32 %s171, 1
    %p175 = scmp.eq.s32.totalorder %s27, 1
    %p176 = scmp.ne.s32.totalorder %s171, %s173
    %p177 = scmp.eq.s32.totalorder %s27, 0
    %p178 = por %p176, %p177
    %p179 = scmp.ne.s32.totalorder %s171, %s173
    %p180 = scmp.eq.s32.totalorder %s32, 1
    %p181 = por %p179, %p180
    %p182 = scmp.ne.s32.totalorder %s173, %s174
    %p183 = scmp.eq.s32.totalorder %s32, 0
    %p184 = por %p182, %p183
    %p185 = scmp.ne.s32.totalorder %s173, %s174
    %p186 = scmp.eq.s32.totalorder %s33, 1
    %p187 = por %p185, %p186
    %p189 = scmp.ne.s32.totalorder %s174, %s188
    %p190 = scmp.eq.s32.totalorder %s33, 0
    %p191 = por %p189, %p190
    %s193 = sadd.s32 %s192, 1
    %p196 = scmp.eq.s32.totalorder %s27, 1
    %p197 = scmp.ne.s32.totalorder %s192, %s194
    %p198 = scmp.eq.s32.totalorder %s27, 0
    %p199 = por %p197, %p198
    %p200 = scmp.ne.s32.totalorder %s192, %s194
    %p201 = scmp.eq.s32.totalorder %s32, 1
    %p202 = por %p200, %p201
    %p203 = scmp.ne.s32.totalorder %s194, %s195
    %p204 = scmp.eq.s32.totalorder %s32, 0
    %p205 = por %p203, %p204
    %p206 = scmp.ne.s32.totalorder %s194, %s195
    %p207 = scmp.eq.s32.totalorder %s33, 1
    %p208 = por %p206, %p207
    %p210 = scmp.ne.s32.totalorder %s195, %s209
    %p211 = scmp.eq.s32.totalorder %s33, 0
    %p212 = por %p210, %p211
    %s214 = sadd.s32 %s213, 1
    %p217 = scmp.eq.s32.totalorder %s27, 1
    %p218 = scmp.ne.s32.totalorder %s213, %s215
    %p219 = scmp.eq.s32.totalorder %s27, 0
    %p220 = por %p218, %p219
    %p221 = scmp.ne.s32.totalorder %s213, %s215
    %p222 = scmp.eq.s32.totalorder %s32, 1
    %p223 = por %p221, %p222
    %p224 = scmp.ne.s32.totalorder %s215, %s216
    %p225 = scmp.eq.s32.totalorder %s32, 0
    %p226 = por %p224, %p225
    %p227 = scmp.ne.s32.totalorder %s215, %s216
    %p228 = scmp.eq.s32.totalorder %s33, 1
    %p229 = por %p227, %p228
    %p231 = scmp.ne.s32.totalorder %s216, %s230
    %p232 = scmp.eq.s32.totalorder %s33, 0
    %p233 = por %p231, %p232
    %s235 = sadd.s32 %s234, 1
    %p238 = scmp.eq.s32.totalorder %s27, 1
    %p239 = scmp.ne.s32.totalorder %s234, %s236
    %p240 = scmp.eq.s32.totalorder %s27, 0
    %p241 = por %p239, %p240
    %p242 = scmp.ne.s32.totalorder %s234, %s236
    %p243 = scmp.eq.s32.totalorder %s32, 1
    %p244 = por %p242, %p243
    %p245 = scmp.ne.s32.totalorder %s236, %s237
    %p246 = scmp.eq.s32.totalorder %s32, 0
    %p247 = por %p245, %p246
    %p248 = scmp.ne.s32.totalorder %s236, %s237
    %p249 = scmp.eq.s32.totalorder %s33, 1
    %p250 = por %p248, %p249
    %p252 = scmp.ne.s32.totalorder %s237, %s251
    %p253 = scmp.eq.s32.totalorder %s33, 0
    %p254 = por %p252, %p253
    %s256 = sadd.s32 %s255, 1
    %p259 = scmp.eq.s32.totalorder %s27, 1
    %p260 = scmp.ne.s32.totalorder %s255, %s257
    %p261 = scmp.eq.s32.totalorder %s27, 0
    %p262 = por %p260, %p261
    %p263 = scmp.ne.s32.totalorder %s255, %s257
    %p264 = scmp.eq.s32.totalorder %s32, 1
    %p265 = por %p263, %p264
    %p266 = scmp.ne.s32.totalorder %s257, %s258
    %p267 = scmp.eq.s32.totalorder %s32, 0
    %p268 = por %p266, %p267
    %p269 = scmp.ne.s32.totalorder %s257, %s258
    %p270 = scmp.eq.s32.totalorder %s33, 1
    %p271 = por %p269, %p270
    %p273 = scmp.ne.s32.totalorder %s258, %s272
    %p274 = scmp.eq.s32.totalorder %s33, 0
    %p275 = por %p273, %p274
    %s277 = sadd.s32 %s276, 1
    %p280 = scmp.eq.s32.totalorder %s27, 1
    %p281 = scmp.ne.s32.totalorder %s276, %s278
    %p282 = scmp.eq.s32.totalorder %s27, 0
    %p283 = por %p281, %p282
    %p284 = scmp.ne.s32.totalorder %s276, %s278
    %p285 = scmp.eq.s32.totalorder %s32, 1
    %p286 = por %p284, %p285
    %p287 = scmp.ne.s32.totalorder %s278, %s279
    %p288 = scmp.eq.s32.totalorder %s32, 0
    %p289 = por %p287, %p288
    %p290 = scmp.ne.s32.totalorder %s278, %s279
    %p291 = scmp.eq.s32.totalorder %s33, 1
    %p292 = por %p290, %p291
    %p294 = scmp.ne.s32.totalorder %s279, %s293
    %p295 = scmp.eq.s32.totalorder %s33, 0
    %p296 = por %p294, %p295
    %s298 = sadd.s32 %s297, 1
    %p301 = scmp.eq.s32.totalorder %s27, 1
    %p302 = scmp.ne.s32.totalorder %s297, %s299
    %p303 = scmp.eq.s32.totalorder %s27, 0
    %p304 = por %p302, %p303
    %p305 = scmp.ne.s32.totalorder %s297, %s299
    %p306 = scmp.eq.s32.totalorder %s32, 1
    %p307 = por %p305, %p306
    %p308 = scmp.ne.s32.totalorder %s299, %s300
    %p309 = scmp.eq.s32.totalorder %s32, 0
    %p310 = por %p308, %p309
    %p311 = scmp.ne.s32.totalorder %s299, %s300
    %p312 = scmp.eq.s32.totalorder %s33, 1
    %p313 = por %p311, %p312
    %p315 = scmp.ne.s32.totalorder %s300, %s314
    %p316 = scmp.eq.s32.totalorder %s33, 0
    %p317 = por %p315, %p316
    %s319 = sadd.s32 %s318, 1
    %p322 = scmp.eq.s32.totalorder %s27, 1
    %p323 = scmp.ne.s32.totalorder %s318, %s320
    %p324 = scmp.eq.s32.totalorder %s27, 0
    %p325 = por %p323, %p324
    %p326 = scmp.ne.s32.totalorder %s318, %s320
    %p327 = scmp.eq.s32.totalorder %s32, 1
    %p328 = por %p326, %p327
    %p329 = scmp.ne.s32.totalorder %s320, %s321
    %p330 = scmp.eq.s32.totalorder %s32, 0
    %p331 = por %p329, %p330
    %p332 = scmp.ne.s32.totalorder %s320, %s321
    %p333 = scmp.eq.s32.totalorder %s33, 1
    %p334 = por %p332, %p333
    %p336 = scmp.ne.s32.totalorder %s321, %s335
    %p337 = scmp.eq.s32.totalorder %s33, 0
    %p338 = por %p336, %p337
    %s340 = sadd.s32 %s339, 1
    %p343 = scmp.eq.s32.totalorder %s27, 1
    %p344 = scmp.ne.s32.totalorder %s339, %s341
    %p345 = scmp.eq.s32.totalorder %s27, 0
    %p346 = por %p344, %p345
    %p347 = scmp.ne.s32.totalorder %s339, %s341
    %p348 = scmp.eq.s32.totalorder %s32, 1
    %p349 = por %p347, %p348
    %p350 = scmp.ne.s32.totalorder %s341, %s342
    %p351 = scmp.eq.s32.totalorder %s32, 0
    %p352 = por %p350, %p351
    %p353 = scmp.ne.s32.totalorder %s341, %s342
    %p354 = scmp.eq.s32.totalorder %s33, 1
    %p355 = por %p353, %p354
    %p357 = scmp.ne.s32.totalorder %s342, %s356
    %p358 = scmp.eq.s32.totalorder %s33, 0
    %p359 = por %p357, %p358
    %s361 = sadd.s32 %s360, 1
    %p364 = scmp.eq.s32.totalorder %s27, 1
    %p365 = scmp.ne.s32.totalorder %s360, %s362
    %p366 = scmp.eq.s32.totalorder %s27, 0
    %p367 = por %p365, %p366
    %p368 = scmp.ne.s32.totalorder %s360, %s362
    %p369 = scmp.eq.s32.totalorder %s32, 1
    %p370 = por %p368, %p369
    %p371 = scmp.ne.s32.totalorder %s362, %s363
    %p372 = scmp.eq.s32.totalorder %s32, 0
    %p373 = por %p371, %p372
    %p374 = scmp.ne.s32.totalorder %s362, %s363
    %p375 = scmp.eq.s32.totalorder %s33, 1
    %p376 = por %p374, %p375
    %p378 = scmp.ne.s32.totalorder %s363, %s377
    %p379 = scmp.eq.s32.totalorder %s33, 0
    %p380 = por %p378, %p379
    %s382 = sadd.s32 %s381, 1
    %p385 = scmp.eq.s32.totalorder %s27, 1
    %p386 = scmp.ne.s32.totalorder %s381, %s383
    %p387 = scmp.eq.s32.totalorder %s27, 0
    %p388 = por %p386, %p387
    %p389 = scmp.ne.s32.totalorder %s381, %s383
    %p390 = scmp.eq.s32.totalorder %s32, 1
    %p391 = por %p389, %p390
    %p392 = scmp.ne.s32.totalorder %s383, %s384
    %p393 = scmp.eq.s32.totalorder %s32, 0
    %p394 = por %p392, %p393
    %p395 = scmp.ne.s32.totalorder %s383, %s384
    %p396 = scmp.eq.s32.totalorder %s33, 1
    %p397 = por %p395, %p396
    %p399 = scmp.ne.s32.totalorder %s384, %s398
    %p400 = scmp.eq.s32.totalorder %s33, 0
    %p401 = por %p399, %p400
    %s403 = sadd.s32 %s402, 1
    %p406 = scmp.eq.s32.totalorder %s27, 1
    %p407 = scmp.ne.s32.totalorder %s402, %s404
    %p408 = scmp.eq.s32.totalorder %s27, 0
    %p409 = por %p407, %p408
    %p410 = scmp.ne.s32.totalorder %s402, %s404
    %p411 = scmp.eq.s32.totalorder %s32, 1
    %p412 = por %p410, %p411
    %p413 = scmp.ne.s32.totalorder %s404, %s405
    %p414 = scmp.eq.s32.totalorder %s32, 0
    %p415 = por %p413, %p414
    %p416 = scmp.ne.s32.totalorder %s404, %s405
    %p417 = scmp.eq.s32.totalorder %s33, 1
    %p418 = por %p416, %p417
    %p420 = scmp.ne.s32.totalorder %s405, %s419
    %p421 = scmp.eq.s32.totalorder %s33, 0
    %p422 = por %p420, %p421
    %s424 = sadd.s32 %s423, 1
    %p427 = scmp.eq.s32.totalorder %s27, 1
    %p428 = scmp.ne.s32.totalorder %s423, %s425
    %p429 = scmp.eq.s32.totalorder %s27, 0
    %p430 = por %p428, %p429
    %p431 = scmp.ne.s32.totalorder %s423, %s425
    %p432 = scmp.eq.s32.totalorder %s32, 1
    %p433 = por %p431, %p432
    %p434 = scmp.ne.s32.totalorder %s425, %s426
    %p435 = scmp.eq.s32.totalorder %s32, 0
    %p436 = por %p434, %p435
    %p437 = scmp.ne.s32.totalorder %s425, %s426
    %p438 = scmp.eq.s32.totalorder %s33, 1
    %p439 = por %p437, %p438
    %p441 = scmp.ne.s32.totalorder %s426, %s440
    %p442 = scmp.eq.s32.totalorder %s33, 0
    %p443 = por %p441, %p442
    %s445 = sadd.s32 %s444, 1
    %p448 = scmp.eq.s32.totalorder %s27, 1
    %p449 = scmp.ne.s32.totalorder %s444, %s446
    %p450 = scmp.eq.s32.totalorder %s27, 0
    %p451 = por %p449, %p450
    %p452 = scmp.ne.s32.totalorder %s444, %s446
    %p453 = scmp.eq.s32.totalorder %s32, 1
    %p454 = por %p452, %p453
    %p455 = scmp.ne.s32.totalorder %s446, %s447
    %p456 = scmp.eq.s32.totalorder %s32, 0
    %p457 = por %p455, %p456
    %p458 = scmp.ne.s32.totalorder %s446, %s447
    %p459 = scmp.eq.s32.totalorder %s33, 1
    %p460 = por %p458, %p459
    %p462 = scmp.ne.s32.totalorder %s447, %s461
    %p463 = scmp.eq.s32.totalorder %s33, 0
    %p464 = por %p462, %p463
    %s466 = sadd.s32 %s465, 1
    %p469 = scmp.eq.s32.totalorder %s27, 1
    %p470 = scmp.ne.s32.totalorder %s465, %s467
    %p471 = scmp.eq.s32.totalorder %s27, 0
    %p472 = por %p470, %p471
    %p473 = scmp.ne.s32.totalorder %s465, %s467
    %p474 = scmp.eq.s32.totalorder %s32, 1
    %p475 = por %p473, %p474
    %p476 = scmp.ne.s32.totalorder %s467, %s468
    %p477 = scmp.eq.s32.totalorder %s32, 0
    %p478 = por %p476, %p477
    %p479 = scmp.ne.s32.totalorder %s467, %s468
    %p480 = scmp.eq.s32.totalorder %s33, 1
    %p481 = por %p479, %p480
    %p483 = scmp.ne.s32.totalorder %s468, %s482
    %p484 = scmp.eq.s32.totalorder %s33, 0
    %p485 = por %p483, %p484
    %s486 = ssub.s32 %s27, %s34
    %p487 = scmp.eq.s32.totalorder %s486, 0
    %s489 = sadd.s32 %s488, 1
    %s490 = scalar_select %p487, %s488, %s489
    %p493 = pneg %p487
    %p494 = scmp.eq.s32.totalorder %s27, 1
    %p495 = por %p493, %p494
    %p496 = scmp.ne.s32.totalorder %s488, %s491
    %p497 = scmp.eq.s32.totalorder %s27, 0
    %p498 = por %p496, %p497
    %p499 = scmp.ne.s32.totalorder %s488, %s491
    %p500 = scmp.eq.s32.totalorder %s32, 1
    %p501 = por %p499, %p500
    %p502 = scmp.ne.s32.totalorder %s491, %s492
    %p503 = scmp.eq.s32.totalorder %s32, 0
    %p504 = por %p502, %p503
    %p505 = scmp.ne.s32.totalorder %s491, %s492
    %p506 = scmp.eq.s32.totalorder %s33, 1
    %p507 = por %p505, %p506
    %p509 = scmp.ne.s32.totalorder %s492, %s508
    %p510 = scmp.eq.s32.totalorder %s33, 0
    %p511 = por %p509, %p510
    %p512 = scmp.le.s32.totalorder 1, %s27
    %p513 = scmp.lt.s32.totalorder %s27, 3
    %p514 = pnand %p512, %p513
    %p515 = pneg %p514
    // Predicated region
    $region9: #{vision_transformer_forward.8} parent=5 // pred_check
      _
    $region10: #{vision_transformer_forward.8} parent=5 // pred_check_branch
      %517 = sbr.rel (%p514) target = $region12
    $region11: #{vision_transformer_forward.8} parent=5 // pred_region
      %s518 = ssub.s32 %s27, 1
      // Predicated region
      $region13: #{vision_transformer_forward.8} parent=11 // pred_check
        %p519 = pneg %p100
      $region14: #{vision_transformer_forward.8} parent=11 // pred_check_branch
        %521 = sbr.rel (%p519) target = $region16
      $region15: #{vision_transformer_forward.8} parent=11 // pred_region
        _
      $region16: #{vision_transformer_forward.8} parent=11 // pred_fallthru
        _
      // Predicated region
      $region17: #{vision_transformer_forward.8} parent=11 // pred_check
        %p522 = pneg %p121
      $region18: #{vision_transformer_forward.8} parent=11 // pred_check_branch
        %524 = sbr.rel (%p522) target = $region20
      $region19: #{vision_transformer_forward.8} parent=11 // pred_region
        _
      $region20: #{vision_transformer_forward.8} parent=11 // pred_fallthru
        _
      // Predicated region
      $region21: #{vision_transformer_forward.8} parent=11 // pred_check
        %p525 = pneg %p142
      $region22: #{vision_transformer_forward.8} parent=11 // pred_check_branch
        %527 = sbr.rel (%p525) target = $region24
      $region23: #{vision_transformer_forward.8} parent=11 // pred_region
        _
      $region24: #{vision_transformer_forward.8} parent=11 // pred_fallthru
        _
      // Predicated region
      $region25: #{vision_transformer_forward.8} parent=11 // pred_check
        %p528 = pneg %p163
      $region26: #{vision_transformer_forward.8} parent=11 // pred_check_branch
        %530 = sbr.rel (%p528) target = $region28
      $region27: #{vision_transformer_forward.8} parent=11 // pred_region
        _
      $region28: #{vision_transformer_forward.8} parent=11 // pred_fallthru
        _
      // Predicated region
      $region29: #{vision_transformer_forward.8} parent=11 // pred_check
        %p531 = pneg %p184
      $region30: #{vision_transformer_forward.8} parent=11 // pred_check_branch
        %533 = sbr.rel (%p531) target = $region32
      $region31: #{vision_transformer_forward.8} parent=11 // pred_region
        _
      $region32: #{vision_transformer_forward.8} parent=11 // pred_fallthru
        _
      // Predicated region
      $region33: #{vision_transformer_forward.8} parent=11 // pred_check
        %p534 = pneg %p205
      $region34: #{vision_transformer_forward.8} parent=11 // pred_check_branch
        %536 = sbr.rel (%p534) target = $region36
      $region35: #{vision_transformer_forward.8} parent=11 // pred_region
        _
      $region36: #{vision_transformer_forward.8} parent=11 // pred_fallthru
        _
      // Predicated region
      $region37: #{vision_transformer_forward.8} parent=11 // pred_check
        %p537 = pneg %p226
      $region38: #{vision_transformer_forward.8} parent=11 // pred_check_branch
        %539 = sbr.rel (%p537) target = $region40
      $region39: #{vision_transformer_forward.8} parent=11 // pred_region
        _
      $region40: #{vision_transformer_forward.8} parent=11 // pred_fallthru
        _
      // Predicated region
      $region41: #{vision_transformer_forward.8} parent=11 // pred_check
        %p540 = pneg %p247
      $region42: #{vision_transformer_forward.8} parent=11 // pred_check_branch
        %542 = sbr.rel (%p540) target = $region44
      $region43: #{vision_transformer_forward.8} parent=11 // pred_region
        _
      $region44: #{vision_transformer_forward.8} parent=11 // pred_fallthru
        _
      // Predicated region
      $region45: #{vision_transformer_forward.8} parent=11 // pred_check
        %p543 = pneg %p268
      $region46: #{vision_transformer_forward.8} parent=11 // pred_check_branch
        %545 = sbr.rel (%p543) target = $region48
      $region47: #{vision_transformer_forward.8} parent=11 // pred_region
        _
      $region48: #{vision_transformer_forward.8} parent=11 // pred_fallthru
        _
      // Predicated region
      $region49: #{vision_transformer_forward.8} parent=11 // pred_check
        %p546 = pneg %p289
      $region50: #{vision_transformer_forward.8} parent=11 // pred_check_branch
        %548 = sbr.rel (%p546) target = $region52
      $region51: #{vision_transformer_forward.8} parent=11 // pred_region
        _
      $region52: #{vision_transformer_forward.8} parent=11 // pred_fallthru
        _
      // Predicated region
      $region53: #{vision_transformer_forward.8} parent=11 // pred_check
        %p549 = pneg %p310
      $region54: #{vision_transformer_forward.8} parent=11 // pred_check_branch
        %551 = sbr.rel (%p549) target = $region56
      $region55: #{vision_transformer_forward.8} parent=11 // pred_region
        _
      $region56: #{vision_transformer_forward.8} parent=11 // pred_fallthru
        _
      // Predicated region
      $region57: #{vision_transformer_forward.8} parent=11 // pred_check
        %p552 = pneg %p331
      $region58: #{vision_transformer_forward.8} parent=11 // pred_check_branch
        %554 = sbr.rel (%p552) target = $region60
      $region59: #{vision_transformer_forward.8} parent=11 // pred_region
        _
      $region60: #{vision_transformer_forward.8} parent=11 // pred_fallthru
        _
      // Predicated region
      $region61: #{vision_transformer_forward.8} parent=11 // pred_check
        %p555 = pneg %p352
      $region62: #{vision_transformer_forward.8} parent=11 // pred_check_branch
        %557 = sbr.rel (%p555) target = $region64
      $region63: #{vision_transformer_forward.8} parent=11 // pred_region
        _
      $region64: #{vision_transformer_forward.8} parent=11 // pred_fallthru
        _
      // Predicated region
      $region65: #{vision_transformer_forward.8} parent=11 // pred_check
        %p558 = pneg %p373
      $region66: #{vision_transformer_forward.8} parent=11 // pred_check_branch
        %560 = sbr.rel (%p558) target = $region68
      $region67: #{vision_transformer_forward.8} parent=11 // pred_region
        _
      $region68: #{vision_transformer_forward.8} parent=11 // pred_fallthru
        _
      // Predicated region
      $region69: #{vision_transformer_forward.8} parent=11 // pred_check
        %p561 = pneg %p394
      $region70: #{vision_transformer_forward.8} parent=11 // pred_check_branch
        %563 = sbr.rel (%p561) target = $region72
      $region71: #{vision_transformer_forward.8} parent=11 // pred_region
        _
      $region72: #{vision_transformer_forward.8} parent=11 // pred_fallthru
        _
      // Predicated region
      $region73: #{vision_transformer_forward.8} parent=11 // pred_check
        %p564 = pneg %p415
      $region74: #{vision_transformer_forward.8} parent=11 // pred_check_branch
        %566 = sbr.rel (%p564) target = $region76
      $region75: #{vision_transformer_forward.8} parent=11 // pred_region
        _
      $region76: #{vision_transformer_forward.8} parent=11 // pred_fallthru
        _
      // Predicated region
      $region77: #{vision_transformer_forward.8} parent=11 // pred_check
        %p567 = pneg %p436
      $region78: #{vision_transformer_forward.8} parent=11 // pred_check_branch
        %569 = sbr.rel (%p567) target = $region80
      $region79: #{vision_transformer_forward.8} parent=11 // pred_region
        _
      $region80: #{vision_transformer_forward.8} parent=11 // pred_fallthru
        _
      // Predicated region
      $region81: #{vision_transformer_forward.8} parent=11 // pred_check
        %p570 = pneg %p457
      $region82: #{vision_transformer_forward.8} parent=11 // pred_check_branch
        %572 = sbr.rel (%p570) target = $region84
      $region83: #{vision_transformer_forward.8} parent=11 // pred_region
        _
      $region84: #{vision_transformer_forward.8} parent=11 // pred_fallthru
        _
      // Predicated region
      $region85: #{vision_transformer_forward.8} parent=11 // pred_check
        %p573 = pneg %p478
      $region86: #{vision_transformer_forward.8} parent=11 // pred_check_branch
        %575 = sbr.rel (%p573) target = $region88
      $region87: #{vision_transformer_forward.8} parent=11 // pred_region
        _
      $region88: #{vision_transformer_forward.8} parent=11 // pred_fallthru
        _
    $region12: #{vision_transformer_forward.8} parent=5 // pred_fallthru
      _
    %p576 = scmp.lt.s32.totalorder %s27, 2
    // Predicated region
    $region89: #{vision_transformer_forward.8} parent=5 // pred_check
      %p577 = pneg %p576
    $region90: #{vision_transformer_forward.8} parent=5 // pred_check_branch
      %579 = sbr.rel (%p577) target = $region92
    $region91: #{vision_transformer_forward.8} parent=5 // pred_region
      // Predicated region
      $region93: #{vision_transformer_forward.8} parent=91 // pred_check
        %p580 = pneg %p47
      $region94: #{vision_transformer_forward.8} parent=91 // pred_check_branch
        %582 = sbr.rel (%p580) target = $region96
      $region95: #{vision_transformer_forward.8} parent=91 // pred_region
        %p583 = scmp.lt.s32.totalorder %s27, 1
        %s584 = scalar_select %p583, %s27, 1
        %s585 = smul.addr %s584, 8
        %s586 = scalar_lea.vmem %s0, %s585
      $region96: #{vision_transformer_forward.8} parent=91 // pred_fallthru
        _
      // Predicated region
      $region97: #{vision_transformer_forward.8} parent=91 // pred_check
        %p587 = pneg %p73
      $region98: #{vision_transformer_forward.8} parent=91 // pred_check_branch
        %589 = sbr.rel (%p587) target = $region100
      $region99: #{vision_transformer_forward.8} parent=91 // pred_region
        %p590 = scmp.lt.s32.totalorder %s27, 1
        %s591 = scalar_select %p590, %s27, 1
        %s592 = smul.addr %s591, 8
        %s593 = scalar_lea.vmem %s1, %s592
      $region100: #{vision_transformer_forward.8} parent=91 // pred_fallthru
        _
    $region92: #{vision_transformer_forward.8} parent=5 // pred_fallthru
      _
    %p594 = scmp.le.s32.totalorder 1, %s27
    %p595 = scmp.lt.s32.totalorder %s27, 3
    %p596 = pnand %p594, %p595
    %p597 = pneg %p596
    // Predicated region
    $region101: #{vision_transformer_forward.8} parent=5 // pred_check
      _
    $region102: #{vision_transformer_forward.8} parent=5 // pred_check_branch
      %599 = sbr.rel (%p596) target = $region104
    $region103: #{vision_transformer_forward.8} parent=5 // pred_region
      %s600 = ssub.s32 %s27, 1
      %p601 = scmp.lt.s32.totalorder %s32, 1
      %s602 = scalar_select %p601, %s32, 1
      %s603 = smul.addr %s602, 8
      %s604 = scalar_lea.vmem %s0, %s603
      %p605 = pneg %p53
      %p606 = pneg %p50
      %p607 = scmp.lt.s32.totalorder %s32, 1
      %s608 = scalar_select %p607, %s32, 1
      %s609 = smul.addr %s608, 8
      %s610 = scalar_lea.vmem %s1, %s609
      %p611 = pneg %p79
      %p612 = pneg %p76
      %p613 = pneg %p100
      %p614 = pneg %p97
      %p615 = pneg %p121
      %p616 = pneg %p118
      %p617 = pneg %p142
      %p618 = pneg %p139
      %p619 = pneg %p163
      %p620 = pneg %p160
      %p621 = pneg %p184
      %p622 = pneg %p181
      %p623 = pneg %p205
      %p624 = pneg %p202
      %p625 = pneg %p226
      %p626 = pneg %p223
      %p627 = pneg %p247
      %p628 = pneg %p244
      %p629 = pneg %p268
      %p630 = pneg %p265
      %p631 = pneg %p289
      %p632 = pneg %p286
      %p633 = pneg %p310
      %p634 = pneg %p307
      %p635 = pneg %p331
      %p636 = pneg %p328
      %p637 = pneg %p352
      %p638 = pneg %p349
      %p639 = pneg %p373
      %p640 = pneg %p370
      %p641 = pneg %p394
      %p642 = pneg %p391
      %p643 = pneg %p415
      %p644 = pneg %p412
      %p645 = pneg %p436
      %p646 = pneg %p433
      %p647 = pneg %p457
      %p648 = pneg %p454
      %p649 = pneg %p478
      %p650 = pneg %p475
      %p651 = pneg %p504
      %p652 = pneg %p501
      %p653 = scmp.lt.s32.totalorder %s32, 1
      %s654 = scalar_select %p653, %s32, 1
      %s655 = smul.addr %s654, 8
      %s656 = scalar_lea.vmem %s21, %s655
      %p657 = scmp.lt.s32.totalorder %s32, 1
      %s658 = scalar_select %p657, %s32, 1
      %s659 = smul.addr %s658, 8
      %s660 = scalar_lea.vmem %s0, %s659
      %p661 = scmp.lt.s32.totalorder %s32, 1
      %s662 = scalar_select %p661, %s32, 1
      %s663 = smul.addr %s662, 8
      %s664 = scalar_lea.vmem %s1, %s663
      %p665 = scmp.lt.s32.totalorder %s32, 1
      %s666 = scalar_select %p665, %s32, 1
      %s667 = smul.addr %s666, 8
      %s668 = scalar_lea.vmem %s21, %s667
      %v669 = vld [vmem:[%s660] sm:$0xff]
      %v670 = vld [vmem:[%s664] sm:$0xff]
      %v671 = vld [vmem:[%s2] sm:$0x1]
      %v672 = vld [vmem:[%s3] sm:$0x1]
      %vm673 = vcmask 392192
      %v674 = vsel %vm673, %v669, 0.0
      %675 = vadd.xlane.f32.xlu0 %v674
      %v676 = vpop.xlane.xlu0 %675
      %v677 = vrcp.pop 48.0
      %v678 = vmul.f32 %v676, %v677
      %v679 = vsub.f32 %v669, %v678
      %v680 = vmul.f32 %v679, %v679
      %v681 = vsel %vm673, %v680, 0.0
      %682 = vadd.xlane.f32.xlu0 %v681
      %v683 = vpop.xlane.xlu0 %682
      %v684 = vmul.f32 %v683, %v677
      %v685 = vadd.f32 %v684, 1e-05
      %v686 = vrsqrt.pop %v685
      %v687 = vmul.f32 %v679, %v686
      %v689 = vlaneseq
      %v690 = vshrl.u32 %v689, 7
      %v691 = vsub.s32 0, %v690
      %v692 = vrot.slane %v671, %v691
      %v694 = vmul.f32 %v687, %v692
      %v696 = vlaneseq
      %v697 = vshrl.u32 %v696, 7
      %v698 = vsub.s32 0, %v697
      %v699 = vrot.slane %v672, %v698
      %v701 = vadd.f32 %v694, %v699
      %v702 = vld [vmem:[%s4] sm:$0x1]
      %v703 = vld [vmem:[%s5] sm:$0x1]
      %v704 = vsel %vm673, %v670, 0.0
      %705 = vadd.xlane.f32.xlu0 %v704
      %v706 = vpop.xlane.xlu0 %705
      %v707 = vmul.f32 %v706, %v677
      %v708 = vsub.f32 %v670, %v707
      %v709 = vmul.f32 %v708, %v708
      %v710 = vsel %vm673, %v709, 0.0
      %711 = vadd.xlane.f32.xlu0 %v710
      %v712 = vpop.xlane.xlu0 %711
      %v713 = vmul.f32 %v712, %v677
      %v714 = vadd.f32 %v713, 1e-05
      %v715 = vrsqrt.pop %v714
      %v716 = vmul.f32 %v708, %v715
      %v718 = vlaneseq
      %v719 = vshrl.u32 %v718, 7
      %v720 = vsub.s32 0, %v719
      %v721 = vrot.slane %v702, %v720
      %v723 = vmul.f32 %v716, %v721
      %v725 = vlaneseq
      %v726 = vshrl.u32 %v725, 7
      %v727 = vsub.s32 0, %v726
      %v728 = vrot.slane %v703, %v727
      %v730 = vadd.f32 %v723, %v728
      %v731 = vld [vmem:[%s6] sm:$0xff]
      %v732 = vld [vmem:[%s6 + $0x8] sm:$0xff]
      %v733 = vld [vmem:[%s6 + $0x10] sm:$0xff]
      %v734 = vld [vmem:[%s6 + $0x18] sm:$0xff]
      %v735 = vld [vmem:[%s6 + $0x20] sm:$0xff]
      %v736 = vld [vmem:[%s6 + $0x28] sm:$0xff]
      %v738 = vsel %vm673, %v701, 0
      %740 = vmatprep.subr.mxu0 0.0
      %741 = vmatpush1.msra.mxu0 %v731
      %742 = vmatprep.subr.mxu0 0.0
      %743 = vmatpush1.msra.mxu0 %v732
      %744 = vmatprep.subr.mxu0 0.0
      %745 = vmatpush1.msra.mxu0 %v733
      %746 = vmatprep.subr.mxu0 0.0
      %747 = vmatpush1.msra.mxu0 %v734
      %748 = vmatprep.subr.mxu0 0.0
      %749 = vmatpush1.msra.mxu0 %v735
      %750 = vmatprep.subr.mxu0 0.0
      %751 = vmatpush1.msra.mxu0 %v736
      %752 = vmatprep.subr.mxu0 0.0
      %753 = vmatpush1.msra.mxu0 0.0
      %754 = vmatprep.subr.mxu0 0.0
      %755 = vmatpush1.msra.mxu0 0.0
      %756 = vmatprep.subr.mxu0 0.0
      %757 = vmatpush1.msra.mxu0 0.0
      %758 = vmatprep.subr.mxu0 0.0
      %759 = vmatpush1.msra.mxu0 0.0
      %760 = vmatprep.subr.mxu0 0.0
      %761 = vmatpush1.msra.mxu0 0.0
      %762 = vmatprep.subr.mxu0 0.0
      %763 = vmatpush1.msra.mxu0 0.0
      %764 = vmatprep.subr.mxu0 0.0
      %765 = vmatpush1.msra.mxu0 0.0
      %766 = vmatprep.subr.mxu0 0.0
      %767 = vmatpush1.msra.mxu0 0.0
      %768 = vmatprep.subr.mxu0 0.0
      %769 = vmatpush1.msra.mxu0 0.0
      %770 = vmatprep.subr.mxu0 0.0
      %771 = vmatpush1.msra.mxu0 0.0
      %772 = vmatprep.subr.mxu0 0.0
      %773 = vmatpush1.msra.mxu0 0.0
      %774 = vmatprep.subr.mxu0 0.0
      %775 = vmatpush1.msra.mxu0 0.0
      %776 = vmatprep.subr.mxu0 0.0
      %777 = vmatpush1.msra.mxu0 0.0
      %778 = vmatprep.subr.mxu0 0.0
      %779 = vmatpush1.msra.mxu0 0.0
      %780 = vmatprep.subr.mxu0 0.0
      %781 = vmatpush1.msra.mxu0 0.0
      %782 = vmatprep.subr.mxu0 0.0
      %783 = vmatpush1.msra.mxu0 0.0
      %784 = vmatprep.subr.mxu0 0.0
      %785 = vmatpush1.msra.mxu0 0.0
      %786 = vmatprep.subr.mxu0 0.0
      %787 = vmatpush1.msra.mxu0 0.0
      %788 = vmatprep.subr.mxu0 0.0
      %789 = vmatpush1.msra.mxu0 0.0
      %790 = vmatprep.subr.mxu0 0.0
      %791 = vmatpush1.msra.mxu0 0.0
      %792 = vmatprep.subr.mxu0 0.0
      %793 = vmatpush1.msra.mxu0 0.0
      %794 = vmatprep.subr.mxu0 0.0
      %795 = vmatpush1.msra.mxu0 0.0
      %796 = vmatprep.subr.mxu0 0.0
      %797 = vmatpush1.msra.mxu0 0.0
      %798 = vmatprep.subr.mxu0 0.0
      %799 = vmatpush1.msra.mxu0 0.0
      %800 = vmatprep.subr.mxu0 0.0
      %801 = vmatpush1.msra.mxu0 0.0
      %802 = vmatprep.subr.mxu0 0.0
      %803 = vmatpush1.msra.mxu0 0.0
      %804 = vmatprep.mubr.f32.mxu0 0.0
      %805 = vmatmul.mubr.f32.gmra.mrb[0].mxu0 %v738
      %v806 = vpop.f32.mrb[0].mxu0
      %v807 = vadd.f32 0.0, %v806
      %v808 = vpop.f32.mrb[0].mxu0
      %809 = vdwg.mxu0
      %v810 = vld [vmem:[%s7] sm:$0xff]
      %v811 = vld [vmem:[%s7 + $0x8] sm:$0xff]
      %v812 = vld [vmem:[%s7 + $0x10] sm:$0xff]
      %v813 = vld [vmem:[%s7 + $0x18] sm:$0xff]
      %v814 = vld [vmem:[%s7 + $0x20] sm:$0xff]
      %v815 = vld [vmem:[%s7 + $0x28] sm:$0xff]
      %v817 = vsel %vm673, %v730, 0
      %819 = vmatprep.subr.mxu0 0.0
      %820 = vmatpush1.msra.mxu0 %v810
      %821 = vmatprep.subr.mxu0 0.0
      %822 = vmatpush1.msra.mxu0 %v811
      %823 = vmatprep.subr.mxu0 0.0
      %824 = vmatpush1.msra.mxu0 %v812
      %825 = vmatprep.subr.mxu0 0.0
      %826 = vmatpush1.msra.mxu0 %v813
      %827 = vmatprep.subr.mxu0 0.0
      %828 = vmatpush1.msra.mxu0 %v814
      %829 = vmatprep.subr.mxu0 0.0
      %830 = vmatpush1.msra.mxu0 %v815
      %831 = vmatprep.subr.mxu0 0.0
      %832 = vmatpush1.msra.mxu0 0.0
      %833 = vmatprep.subr.mxu0 0.0
      %834 = vmatpush1.msra.mxu0 0.0
      %835 = vmatprep.subr.mxu0 0.0
      %836 = vmatpush1.msra.mxu0 0.0
      %837 = vmatprep.subr.mxu0 0.0
      %838 = vmatpush1.msra.mxu0 0.0
      %839 = vmatprep.subr.mxu0 0.0
      %840 = vmatpush1.msra.mxu0 0.0
      %841 = vmatprep.subr.mxu0 0.0
      %842 = vmatpush1.msra.mxu0 0.0
      %843 = vmatprep.subr.mxu0 0.0
      %844 = vmatpush1.msra.mxu0 0.0
      %845 = vmatprep.subr.mxu0 0.0
      %846 = vmatpush1.msra.mxu0 0.0
      %847 = vmatprep.subr.mxu0 0.0
      %848 = vmatpush1.msra.mxu0 0.0
      %849 = vmatprep.subr.mxu0 0.0
      %850 = vmatpush1.msra.mxu0 0.0
      %851 = vmatprep.subr.mxu0 0.0
      %852 = vmatpush1.msra.mxu0 0.0
      %853 = vmatprep.subr.mxu0 0.0
      %854 = vmatpush1.msra.mxu0 0.0
      %855 = vmatprep.subr.mxu0 0.0
      %856 = vmatpush1.msra.mxu0 0.0
      %857 = vmatprep.subr.mxu0 0.0
      %858 = vmatpush1.msra.mxu0 0.0
      %859 = vmatprep.subr.mxu0 0.0
      %860 = vmatpush1.msra.mxu0 0.0
      %861 = vmatprep.subr.mxu0 0.0
      %862 = vmatpush1.msra.mxu0 0.0
      %863 = vmatprep.subr.mxu0 0.0
      %864 = vmatpush1.msra.mxu0 0.0
      %865 = vmatprep.subr.mxu0 0.0
      %866 = vmatpush1.msra.mxu0 0.0
      %867 = vmatprep.subr.mxu0 0.0
      %868 = vmatpush1.msra.mxu0 0.0
      %869 = vmatprep.subr.mxu0 0.0
      %870 = vmatpush1.msra.mxu0 0.0
      %871 = vmatprep.subr.mxu0 0.0
      %872 = vmatpush1.msra.mxu0 0.0
      %873 = vmatprep.subr.mxu0 0.0
      %874 = vmatpush1.msra.mxu0 0.0
      %875 = vmatprep.subr.mxu0 0.0
      %876 = vmatpush1.msra.mxu0 0.0
      %877 = vmatprep.subr.mxu0 0.0
      %878 = vmatpush1.msra.mxu0 0.0
      %879 = vmatprep.subr.mxu0 0.0
      %880 = vmatpush1.msra.mxu0 0.0
      %881 = vmatprep.subr.mxu0 0.0
      %882 = vmatpush1.msra.mxu0 0.0
      %883 = vmatprep.mubr.f32.mxu0 0.0
      %884 = vmatmul.mubr.f32.gmra.mrb[0].mxu0 %v817
      %v885 = vpop.f32.mrb[0].mxu0
      %v886 = vadd.f32 0.0, %v885
      %v887 = vpop.f32.mrb[0].mxu0
      %888 = vdwg.mxu0
      %v890 = vcombine.high %v807, %v807
      %v892 = vcombine.high %v886, %v886
      %vm893 = vcmask 97280
      %v894 = vsel %vm893, %v807, 0
      %v896 = vsel %vm893, %v886, 0
      %898 = vmatprep.subr.mxu0 0.0
      %899 = vmatpush1.xpose.msra.mxu0 %v896
      %900 = vmatprep.subr.mxu0 0.0
      %901 = vmatpush1.xpose.msra.mxu0 0.0
      %902 = vmatprep.subr.mxu0 0.0
      %903 = vmatpush1.xpose.msra.mxu0 0.0
      %904 = vmatprep.subr.mxu0 0.0
      %905 = vmatpush1.xpose.msra.mxu0 0.0
      %906 = vmatprep.subr.mxu0 0.0
      %907 = vmatpush1.xpose.msra.mxu0 0.0
      %908 = vmatprep.subr.mxu0 0.0
      %909 = vmatpush1.xpose.msra.mxu0 0.0
      %910 = vmatprep.subr.mxu0 0.0
      %911 = vmatpush1.xpose.msra.mxu0 0.0
      %912 = vmatprep.subr.mxu0 0.0
      %913 = vmatpush1.xpose.msra.mxu0 0.0
      %914 = vmatprep.subr.mxu0 0.0
      %915 = vmatpush1.xpose.msra.mxu0 0.0
      %916 = vmatprep.subr.mxu0 0.0
      %917 = vmatpush1.xpose.msra.mxu0 0.0
      %918 = vmatprep.subr.mxu0 0.0
      %919 = vmatpush1.xpose.msra.mxu0 0.0
      %920 = vmatprep.subr.mxu0 0.0
      %921 = vmatpush1.xpose.msra.mxu0 0.0
      %922 = vmatprep.subr.mxu0 0.0
      %923 = vmatpush1.xpose.msra.mxu0 0.0
      %924 = vmatprep.subr.mxu0 0.0
      %925 = vmatpush1.xpose.msra.mxu0 0.0
      %926 = vmatprep.subr.mxu0 0.0
      %927 = vmatpush1.xpose.msra.mxu0 0.0
      %928 = vmatprep.subr.mxu0 0.0
      %929 = vmatpush1.xpose.msra.mxu0 0.0
      %930 = vmatprep.subr.mxu0 0.0
      %931 = vmatpush1.xpose.msra.mxu0 0.0
      %932 = vmatprep.subr.mxu0 0.0
      %933 = vmatpush1.xpose.msra.mxu0 0.0
      %934 = vmatprep.subr.mxu0 0.0
      %935 = vmatpush1.xpose.msra.mxu0 0.0
      %936 = vmatprep.subr.mxu0 0.0
      %937 = vmatpush1.xpose.msra.mxu0 0.0
      %938 = vmatprep.subr.mxu0 0.0
      %939 = vmatpush1.xpose.msra.mxu0 0.0
      %940 = vmatprep.subr.mxu0 0.0
      %941 = vmatpush1.xpose.msra.mxu0 0.0
      %942 = vmatprep.subr.mxu0 0.0
      %943 = vmatpush1.xpose.msra.mxu0 0.0
      %944 = vmatprep.subr.mxu0 0.0
      %945 = vmatpush1.xpose.msra.mxu0 0.0
      %946 = vmatprep.subr.mxu0 0.0
      %947 = vmatpush1.xpose.msra.mxu0 0.0
      %948 = vmatprep.subr.mxu0 0.0
      %949 = vmatpush1.xpose.msra.mxu0 0.0
      %950 = vmatprep.subr.mxu0 0.0
      %951 = vmatpush1.xpose.msra.mxu0 0.0
      %952 = vmatprep.subr.mxu0 0.0
      %953 = vmatpush1.xpose.msra.mxu0 0.0
      %954 = vmatprep.subr.mxu0 0.0
      %955 = vmatpush1.xpose.msra.mxu0 0.0
      %956 = vmatprep.subr.mxu0 0.0
      %957 = vmatpush1.xpose.msra.mxu0 0.0
      %958 = vmatprep.subr.mxu0 0.0
      %959 = vmatpush1.xpose.msra.mxu0 0.0
      %960 = vmatprep.subr.mxu0 0.0
      %961 = vmatpush1.xpose.msra.mxu0 0.0
      %962 = vmatprep.mubr.f32.mxu0 0.0
      %963 = vmatmul.mubr.f32.gmra.mrb[0].mxu0 %v894
      %v964 = vpop.f32.mrb[0].mxu0
      %v965 = vadd.f32 0.0, %v964
      %v966 = vpop.f32.mrb[0].mxu0
      %967 = vdwg.mxu0
      %v968 = vsel %vm893, %v890, 0
      %v970 = vsel %vm893, %v892, 0
      %972 = vmatprep.subr.mxu0 0.0
      %973 = vmatpush1.xpose.msra.mxu0 %v970
      %974 = vmatprep.subr.mxu0 0.0
      %975 = vmatpush1.xpose.msra.mxu0 0.0
      %976 = vmatprep.subr.mxu0 0.0
      %977 = vmatpush1.xpose.msra.mxu0 0.0
      %978 = vmatprep.subr.mxu0 0.0
      %979 = vmatpush1.xpose.msra.mxu0 0.0
      %980 = vmatprep.subr.mxu0 0.0
      %981 = vmatpush1.xpose.msra.mxu0 0.0
      %982 = vmatprep.subr.mxu0 0.0
      %983 = vmatpush1.xpose.msra.mxu0 0.0
      %984 = vmatprep.subr.mxu0 0.0
      %985 = vmatpush1.xpose.msra.mxu0 0.0
      %986 = vmatprep.subr.mxu0 0.0
      %987 = vmatpush1.xpose.msra.mxu0 0.0
      %988 = vmatprep.subr.mxu0 0.0
      %989 = vmatpush1.xpose.msra.mxu0 0.0
      %990 = vmatprep.subr.mxu0 0.0
      %991 = vmatpush1.xpose.msra.mxu0 0.0
      %992 = vmatprep.subr.mxu0 0.0
      %993 = vmatpush1.xpose.msra.mxu0 0.0
      %994 = vmatprep.subr.mxu0 0.0
      %995 = vmatpush1.xpose.msra.mxu0 0.0
      %996 = vmatprep.subr.mxu0 0.0
      %997 = vmatpush1.xpose.msra.mxu0 0.0
      %998 = vmatprep.subr.mxu0 0.0
      %999 = vmatpush1.xpose.msra.mxu0 0.0
      %1000 = vmatprep.subr.mxu0 0.0
      %1001 = vmatpush1.xpose.msra.mxu0 0.0
      %1002 = vmatprep.subr.mxu0 0.0
      %1003 = vmatpush1.xpose.msra.mxu0 0.0
      %1004 = vmatprep.subr.mxu0 0.0
      %1005 = vmatpush1.xpose.msra.mxu0 0.0
      %1006 = vmatprep.subr.mxu0 0.0
      %1007 = vmatpush1.xpose.msra.mxu0 0.0
      %1008 = vmatprep.subr.mxu0 0.0
      %1009 = vmatpush1.xpose.msra.mxu0 0.0
      %1010 = vmatprep.subr.mxu0 0.0
      %1011 = vmatpush1.xpose.msra.mxu0 0.0
      %1012 = vmatprep.subr.mxu0 0.0
      %1013 = vmatpush1.xpose.msra.mxu0 0.0
      %1014 = vmatprep.subr.mxu0 0.0
      %1015 = vmatpush1.xpose.msra.mxu0 0.0
      %1016 = vmatprep.subr.mxu0 0.0
      %1017 = vmatpush1.xpose.msra.mxu0 0.0
      %1018 = vmatprep.subr.mxu0 0.0
      %1019 = vmatpush1.xpose.msra.mxu0 0.0
      %1020 = vmatprep.subr.mxu0 0.0
      %1021 = vmatpush1.xpose.msra.mxu0 0.0
      %1022 = vmatprep.subr.mxu0 0.0
      %1023 = vmatpush1.xpose.msra.mxu0 0.0
      %1024 = vmatprep.subr.mxu0 0.0
      %1025 = vmatpush1.xpose.msra.mxu0 0.0
      %1026 = vmatprep.subr.mxu0 0.0
      %1027 = vmatpush1.xpose.msra.mxu0 0.0
      %1028 = vmatprep.subr.mxu0 0.0
      %1029 = vmatpush1.xpose.msra.mxu0 0.0
      %1030 = vmatprep.subr.mxu0 0.0
      %1031 = vmatpush1.xpose.msra.mxu0 0.0
      %1032 = vmatprep.subr.mxu0 0.0
      %1033 = vmatpush1.xpose.msra.mxu0 0.0
      %1034 = vmatprep.subr.mxu0 0.0
      %1035 = vmatpush1.xpose.msra.mxu0 0.0
      %1036 = vmatprep.mubr.f32.mxu0 0.0
      %1037 = vmatmul.mubr.f32.gmra.mrb[0].mxu0 %v968
      %v1038 = vpop.f32.mrb[0].mxu0
      %v1039 = vadd.f32 0.0, %v1038
      %v1040 = vpop.f32.mrb[0].mxu0
      %1041 = vdwg.mxu0
      %v1042 = vmul.f32 %v965, 0.28867513
      %v1043 = vmul.f32 %v1039, 0.28867513
      %vm1044 = vcmask 27648
      %v1045 = vsel %vm1044, %v1042, -inf
      %1046 = vmax.xlane.f32.xlu0 %v1045
      %v1047 = vpop.xlane.xlu0 %1046
      %v1048 = vsel %vm1044, %v1043, -inf
      %1049 = vmax.xlane.f32.xlu0 %v1048
      %v1050 = vpop.xlane.xlu0 %1049
      %v1051 = vsub.f32 %v1042, %v1047
      %v1052 = vsub.f32 %v1043, %v1050
      %v1053 = vmul.f32 %v1051, 1.442695
      %v1054 = vpow.pop %v1053
      %v1055 = vmul.f32 %v1052, 1.442695
      %v1056 = vpow.pop %v1055
      %v1057 = vsel %vm1044, %v1054, 0.0
      %1058 = vadd.xlane.f32.xlu0 %v1057
      %v1059 = vpop.xlane.xlu0 %1058
      %v1060 = vsel %vm1044, %v1056, 0.0
      %1061 = vadd.xlane.f32.xlu0 %v1060
      %v1062 = vpop.xlane.xlu0 %1061
      %v1063 = vrcp.pop %v1059
      %v1064 = vrcp.pop %v1062
      %v1065 = vmul.f32 %v1054, %v1063
      %v1066 = vmul.f32 %v1056, %v1064
      %1067 = vrot.lane.b32.xlu0 %v886, 80
      %v1068 = vpop.permute.xlu0 %1067
      %vm1069 = vcmask 31744
      %v1071 = vsel %vm1069, %v1065, 0
      %vm1073 = vcmask 1043456
      %v1074 = vsel %vm1073, %v1068, 0
      %1076 = vmatprep.subr.mxu0 0.0
      %1077 = vmatpush1.msra.mxu0 %v1074
      %1078 = vmatprep.subr.mxu0 0.0
      %1079 = vmatpush1.msra.mxu0 0.0
      %1080 = vmatprep.subr.mxu0 0.0
      %1081 = vmatpush1.msra.mxu0 0.0
      %1082 = vmatprep.subr.mxu0 0.0
      %1083 = vmatpush1.msra.mxu0 0.0
      %1084 = vmatprep.subr.mxu0 0.0
      %1085 = vmatpush1.msra.mxu0 0.0
      %1086 = vmatprep.subr.mxu0 0.0
      %1087 = vmatpush1.msra.mxu0 0.0
      %1088 = vmatprep.subr.mxu0 0.0
      %1089 = vmatpush1.msra.mxu0 0.0
      %1090 = vmatprep.subr.mxu0 0.0
      %1091 = vmatpush1.msra.mxu0 0.0
      %1092 = vmatprep.subr.mxu0 0.0
      %1093 = vmatpush1.msra.mxu0 0.0
      %1094 = vmatprep.subr.mxu0 0.0
      %1095 = vmatpush1.msra.mxu0 0.0
      %1096 = vmatprep.subr.mxu0 0.0
      %1097 = vmatpush1.msra.mxu0 0.0
      %1098 = vmatprep.subr.mxu0 0.0
      %1099 = vmatpush1.msra.mxu0 0.0
      %1100 = vmatprep.subr.mxu0 0.0
      %1101 = vmatpush1.msra.mxu0 0.0
      %1102 = vmatprep.subr.mxu0 0.0
      %1103 = vmatpush1.msra.mxu0 0.0
      %1104 = vmatprep.subr.mxu0 0.0
      %1105 = vmatpush1.msra.mxu0 0.0
      %1106 = vmatprep.subr.mxu0 0.0
      %1107 = vmatpush1.msra.mxu0 0.0
      %1108 = vmatprep.subr.mxu0 0.0
      %1109 = vmatpush1.msra.mxu0 0.0
      %1110 = vmatprep.subr.mxu0 0.0
      %1111 = vmatpush1.msra.mxu0 0.0
      %1112 = vmatprep.subr.mxu0 0.0
      %1113 = vmatpush1.msra.mxu0 0.0
      %1114 = vmatprep.subr.mxu0 0.0
      %1115 = vmatpush1.msra.mxu0 0.0
      %1116 = vmatprep.subr.mxu0 0.0
      %1117 = vmatpush1.msra.mxu0 0.0
      %1118 = vmatprep.subr.mxu0 0.0
      %1119 = vmatpush1.msra.mxu0 0.0
      %1120 = vmatprep.subr.mxu0 0.0
      %1121 = vmatpush1.msra.mxu0 0.0
      %1122 = vmatprep.subr.mxu0 0.0
      %1123 = vmatpush1.msra.mxu0 0.0
      %1124 = vmatprep.subr.mxu0 0.0
      %1125 = vmatpush1.msra.mxu0 0.0
      %1126 = vmatprep.subr.mxu0 0.0
      %1127 = vmatpush1.msra.mxu0 0.0
      %1128 = vmatprep.subr.mxu0 0.0
      %1129 = vmatpush1.msra.mxu0 0.0
      %1130 = vmatprep.subr.mxu0 0.0
      %1131 = vmatpush1.msra.mxu0 0.0
      %1132 = vmatprep.subr.mxu0 0.0
      %1133 = vmatpush1.msra.mxu0 0.0
      %1134 = vmatprep.subr.mxu0 0.0
      %1135 = vmatpush1.msra.mxu0 0.0
      %1136 = vmatprep.subr.mxu0 0.0
      %1137 = vmatpush1.msra.mxu0 0.0
      %1138 = vmatprep.subr.mxu0 0.0
      %1139 = vmatpush1.msra.mxu0 0.0
      %1140 = vmatprep.mubr.f32.mxu0 0.0
      %1141 = vmatmul.mubr.f32.gmra.mrb[0].mxu0 %v1071
      %v1142 = vpop.f32.mrb[0].mxu0
      %v1143 = vadd.f32 0.0, %v1142
      %v1144 = vpop.f32.mrb[0].mxu0
      %1145 = vdwg.mxu0
      %1146 = vrot.lane.b32.xlu0 %v892, 80
      %v1147 = vpop.permute.xlu0 %1146
      %v1149 = vsel %vm1069, %v1066, 0
      %v1151 = vsel %vm1073, %v1147, 0
      %1153 = vmatprep.subr.mxu0 0.0
      %1154 = vmatpush1.msra.mxu0 %v1151
      %1155 = vmatprep.subr.mxu0 0.0
      %1156 = vmatpush1.msra.mxu0 0.0
      %1157 = vmatprep.subr.mxu0 0.0
      %1158 = vmatpush1.msra.mxu0 0.0
      %1159 = vmatprep.subr.mxu0 0.0
      %1160 = vmatpush1.msra.mxu0 0.0
      %1161 = vmatprep.subr.mxu0 0.0
      %1162 = vmatpush1.msra.mxu0 0.0
      %1163 = vmatprep.subr.mxu0 0.0
      %1164 = vmatpush1.msra.mxu0 0.0
      %1165 = vmatprep.subr.mxu0 0.0
      %1166 = vmatpush1.msra.mxu0 0.0
      %1167 = vmatprep.subr.mxu0 0.0
      %1168 = vmatpush1.msra.mxu0 0.0
      %1169 = vmatprep.subr.mxu0 0.0
      %1170 = vmatpush1.msra.mxu0 0.0
      %1171 = vmatprep.subr.mxu0 0.0
      %1172 = vmatpush1.msra.mxu0 0.0
      %1173 = vmatprep.subr.mxu0 0.0
      %1174 = vmatpush1.msra.mxu0 0.0
      %1175 = vmatprep.subr.mxu0 0.0
      %1176 = vmatpush1.msra.mxu0 0.0
      %1177 = vmatprep.subr.mxu0 0.0
      %1178 = vmatpush1.msra.mxu0 0.0
      %1179 = vmatprep.subr.mxu0 0.0
      %1180 = vmatpush1.msra.mxu0 0.0
      %1181 = vmatprep.subr.mxu0 0.0
      %1182 = vmatpush1.msra.mxu0 0.0
      %1183 = vmatprep.subr.mxu0 0.0
      %1184 = vmatpush1.msra.mxu0 0.0
      %1185 = vmatprep.subr.mxu0 0.0
      %1186 = vmatpush1.msra.mxu0 0.0
      %1187 = vmatprep.subr.mxu0 0.0
      %1188 = vmatpush1.msra.mxu0 0.0
      %1189 = vmatprep.subr.mxu0 0.0
      %1190 = vmatpush1.msra.mxu0 0.0
      %1191 = vmatprep.subr.mxu0 0.0
      %1192 = vmatpush1.msra.mxu0 0.0
      %1193 = vmatprep.subr.mxu0 0.0
      %1194 = vmatpush1.msra.mxu0 0.0
      %1195 = vmatprep.subr.mxu0 0.0
      %1196 = vmatpush1.msra.mxu0 0.0
      %1197 = vmatprep.subr.mxu0 0.0
      %1198 = vmatpush1.msra.mxu0 0.0
      %1199 = vmatprep.subr.mxu0 0.0
      %1200 = vmatpush1.msra.mxu0 0.0
      %1201 = vmatprep.subr.mxu0 0.0
      %1202 = vmatpush1.msra.mxu0 0.0
      %1203 = vmatprep.subr.mxu0 0.0
      %1204 = vmatpush1.msra.mxu0 0.0
      %1205 = vmatprep.subr.mxu0 0.0
      %1206 = vmatpush1.msra.mxu0 0.0
      %1207 = vmatprep.subr.mxu0 0.0
      %1208 = vmatpush1.msra.mxu0 0.0
      %1209 = vmatprep.subr.mxu0 0.0
      %1210 = vmatpush1.msra.mxu0 0.0
      %1211 = vmatprep.subr.mxu0 0.0
      %1212 = vmatpush1.msra.mxu0 0.0
      %1213 = vmatprep.subr.mxu0 0.0
      %1214 = vmatpush1.msra.mxu0 0.0
      %1215 = vmatprep.subr.mxu0 0.0
      %1216 = vmatpush1.msra.mxu0 0.0
      %1217 = vmatprep.mubr.f32.mxu0 0.0
      %1218 = vmatmul.mubr.f32.gmra.mrb[0].mxu0 %v1149
      %v1219 = vpop.f32.mrb[0].mxu0
      %v1220 = vadd.f32 0.0, %v1219
      %v1221 = vpop.f32.mrb[0].mxu0
      %1222 = vdwg.mxu0
      %1223 = vrot.lane.b32.xlu0 %v807, 116
      %v1224 = vpop.permute.xlu0 %1223
      %1225 = vrot.lane.b32.xlu0 %v886, 116
      %v1226 = vpop.permute.xlu0 %1225
      %v1227 = vsel %vm893, %v1224, 0
      %v1229 = vsel %vm893, %v1226, 0
      %1231 = vmatprep.subr.mxu0 0.0
      %1232 = vmatpush1.xpose.msra.mxu0 %v1229
      %1233 = vmatprep.subr.mxu0 0.0
      %1234 = vmatpush1.xpose.msra.mxu0 0.0
      %1235 = vmatprep.subr.mxu0 0.0
      %1236 = vmatpush1.xpose.msra.mxu0 0.0
      %1237 = vmatprep.subr.mxu0 0.0
      %1238 = vmatpush1.xpose.msra.mxu0 0.0
      %1239 = vmatprep.subr.mxu0 0.0
      %1240 = vmatpush1.xpose.msra.mxu0 0.0
      %1241 = vmatprep.subr.mxu0 0.0
      %1242 = vmatpush1.xpose.msra.mxu0 0.0
      %1243 = vmatprep.subr.mxu0 0.0
      %1244 = vmatpush1.xpose.msra.mxu0 0.0
      %1245 = vmatprep.subr.mxu0 0.0
      %1246 = vmatpush1.xpose.msra.mxu0 0.0
      %1247 = vmatprep.subr.mxu0 0.0
      %1248 = vmatpush1.xpose.msra.mxu0 0.0
      %1249 = vmatprep.subr.mxu0 0.0
      %1250 = vmatpush1.xpose.msra.mxu0 0.0
      %1251 = vmatprep.subr.mxu0 0.0
      %1252 = vmatpush1.xpose.msra.mxu0 0.0
      %1253 = vmatprep.subr.mxu0 0.0
      %1254 = vmatpush1.xpose.msra.mxu0 0.0
      %1255 = vmatprep.subr.mxu0 0.0
      %1256 = vmatpush1.xpose.msra.mxu0 0.0
      %1257 = vmatprep.subr.mxu0 0.0
      %1258 = vmatpush1.xpose.msra.mxu0 0.0
      %1259 = vmatprep.subr.mxu0 0.0
      %1260 = vmatpush1.xpose.msra.mxu0 0.0
      %1261 = vmatprep.subr.mxu0 0.0
      %1262 = vmatpush1.xpose.msra.mxu0 0.0
      %1263 = vmatprep.subr.mxu0 0.0
      %1264 = vmatpush1.xpose.msra.mxu0 0.0
      %1265 = vmatprep.subr.mxu0 0.0
      %1266 = vmatpush1.xpose.msra.mxu0 0.0
      %1267 = vmatprep.subr.mxu0 0.0
      %1268 = vmatpush1.xpose.msra.mxu0 0.0
      %1269 = vmatprep.subr.mxu0 0.0
      %1270 = vmatpush1.xpose.msra.mxu0 0.0
      %1271 = vmatprep.subr.mxu0 0.0
      %1272 = vmatpush1.xpose.msra.mxu0 0.0
      %1273 = vmatprep.subr.mxu0 0.0
      %1274 = vmatpush1.xpose.msra.mxu0 0.0
      %1275 = vmatprep.subr.mxu0 0.0
      %1276 = vmatpush1.xpose.msra.mxu0 0.0
      %1277 = vmatprep.subr.mxu0 0.0
      %1278 = vmatpush1.xpose.msra.mxu0 0.0
      %1279 = vmatprep.subr.mxu0 0.0
      %1280 = vmatpush1.xpose.msra.mxu0 0.0
      %1281 = vmatprep.subr.mxu0 0.0
      %1282 = vmatpush1.xpose.msra.mxu0 0.0
      %1283 = vmatprep.subr.mxu0 0.0
      %1284 = vmatpush1.xpose.msra.mxu0 0.0
      %1285 = vmatprep.subr.mxu0 0.0
      %1286 = vmatpush1.xpose.msra.mxu0 0.0
      %1287 = vmatprep.subr.mxu0 0.0
      %1288 = vmatpush1.xpose.msra.mxu0 0.0
      %1289 = vmatprep.subr.mxu0 0.0
      %1290 = vmatpush1.xpose.msra.mxu0 0.0
      %1291 = vmatprep.subr.mxu0 0.0
      %1292 = vmatpush1.xpose.msra.mxu0 0.0
      %1293 = vmatprep.subr.mxu0 0.0
      %1294 = vmatpush1.xpose.msra.mxu0 0.0
      %1295 = vmatprep.mubr.f32.mxu0 0.0
      %1296 = vmatmul.mubr.f32.gmra.mrb[0].mxu0 %v1227
      %v1297 = vpop.f32.mrb[0].mxu0
      %v1298 = vadd.f32 0.0, %v1297
      %v1299 = vpop.f32.mrb[0].mxu0
      %1300 = vdwg.mxu0
      %1301 = vrot.lane.b32.xlu0 %v890, 116
      %v1302 = vpop.permute.xlu0 %1301
      %1303 = vrot.lane.b32.xlu0 %v892, 116
      %v1304 = vpop.permute.xlu0 %1303
      %v1305 = vsel %vm893, %v1302, 0
      %v1307 = vsel %vm893, %v1304, 0
      %1309 = vmatprep.subr.mxu0 0.0
      %1310 = vmatpush1.xpose.msra.mxu0 %v1307
      %1311 = vmatprep.subr.mxu0 0.0
      %1312 = vmatpush1.xpose.msra.mxu0 0.0
      %1313 = vmatprep.subr.mxu0 0.0
      %1314 = vmatpush1.xpose.msra.mxu0 0.0
      %1315 = vmatprep.subr.mxu0 0.0
      %1316 = vmatpush1.xpose.msra.mxu0 0.0
      %1317 = vmatprep.subr.mxu0 0.0
      %1318 = vmatpush1.xpose.msra.mxu0 0.0
      %1319 = vmatprep.subr.mxu0 0.0
      %1320 = vmatpush1.xpose.msra.mxu0 0.0
      %1321 = vmatprep.subr.mxu0 0.0
      %1322 = vmatpush1.xpose.msra.mxu0 0.0
      %1323 = vmatprep.subr.mxu0 0.0
      %1324 = vmatpush1.xpose.msra.mxu0 0.0
      %1325 = vmatprep.subr.mxu0 0.0
      %1326 = vmatpush1.xpose.msra.mxu0 0.0
      %1327 = vmatprep.subr.mxu0 0.0
      %1328 = vmatpush1.xpose.msra.mxu0 0.0
      %1329 = vmatprep.subr.mxu0 0.0
      %1330 = vmatpush1.xpose.msra.mxu0 0.0
      %1331 = vmatprep.subr.mxu0 0.0
      %1332 = vmatpush1.xpose.msra.mxu0 0.0
      %1333 = vmatprep.subr.mxu0 0.0
      %1334 = vmatpush1.xpose.msra.mxu0 0.0
      %1335 = vmatprep.subr.mxu0 0.0
      %1336 = vmatpush1.xpose.msra.mxu0 0.0
      %1337 = vmatprep.subr.mxu0 0.0
      %1338 = vmatpush1.xpose.msra.mxu0 0.0
      %1339 = vmatprep.subr.mxu0 0.0
      %1340 = vmatpush1.xpose.msra.mxu0 0.0
      %1341 = vmatprep.subr.mxu0 0.0
      %1342 = vmatpush1.xpose.msra.mxu0 0.0
      %1343 = vmatprep.subr.mxu0 0.0
      %1344 = vmatpush1.xpose.msra.mxu0 0.0
      %1345 = vmatprep.subr.mxu0 0.0
      %1346 = vmatpush1.xpose.msra.mxu0 0.0
      %1347 = vmatprep.subr.mxu0 0.0
      %1348 = vmatpush1.xpose.msra.mxu0 0.0
      %1349 = vmatprep.subr.mxu0 0.0
      %1350 = vmatpush1.xpose.msra.mxu0 0.0
      %1351 = vmatprep.subr.mxu0 0.0
      %1352 = vmatpush1.xpose.msra.mxu0 0.0
      %1353 = vmatprep.subr.mxu0 0.0
      %1354 = vmatpush1.xpose.msra.mxu0 0.0
      %1355 = vmatprep.subr.mxu0 0.0
      %1356 = vmatpush1.xpose.msra.mxu0 0.0
      %1357 = vmatprep.subr.mxu0 0.0
      %1358 = vmatpush1.xpose.msra.mxu0 0.0
      %1359 = vmatprep.subr.mxu0 0.0
      %1360 = vmatpush1.xpose.msra.mxu0 0.0
      %1361 = vmatprep.subr.mxu0 0.0
      %1362 = vmatpush1.xpose.msra.mxu0 0.0
      %1363 = vmatprep.subr.mxu0 0.0
      %1364 = vmatpush1.xpose.msra.mxu0 0.0
      %1365 = vmatprep.subr.mxu0 0.0
      %1366 = vmatpush1.xpose.msra.mxu0 0.0
      %1367 = vmatprep.subr.mxu0 0.0
      %1368 = vmatpush1.xpose.msra.mxu0 0.0
      %1369 = vmatprep.subr.mxu0 0.0
      %1370 = vmatpush1.xpose.msra.mxu0 0.0
      %1371 = vmatprep.subr.mxu0 0.0
      %1372 = vmatpush1.xpose.msra.mxu0 0.0
      %1373 = vmatprep.mubr.f32.mxu0 0.0
      %1374 = vmatmul.mubr.f32.gmra.mrb[0].mxu0 %v1305
      %v1375 = vpop.f32.mrb[0].mxu0
      %v1376 = vadd.f32 0.0, %v1375
      %v1377 = vpop.f32.mrb[0].mxu0
      %1378 = vdwg.mxu0
      %v1379 = vmul.f32 %v1298, 0.28867513
      %v1380 = vmul.f32 %v1376, 0.28867513
      %v1381 = vsel %vm1044, %v1379, -inf
      %1382 = vmax.xlane.f32.xlu0 %v1381
      %v1383 = vpop.xlane.xlu0 %1382
      %v1384 = vsel %vm1044, %v1380, -inf
      %1385 = vmax.xlane.f32.xlu0 %v1384
      %v1386 = vpop.xlane.xlu0 %1385
      %v1387 = vsub.f32 %v1379, %v1383
      %v1388 = vsub.f32 %v1380, %v1386
      %v1389 = vmul.f32 %v1387, 1.442695
      %v1390 = vpow.pop %v1389
      %v1391 = vmul.f32 %v1388, 1.442695
      %v1392 = vpow.pop %v1391
      %v1393 = vsel %vm1044, %v1390, 0.0
      %1394 = vadd.xlane.f32.xlu0 %v1393
      %v1395 = vpop.xlane.xlu0 %1394
      %v1396 = vsel %vm1044, %v1392, 0.0
      %1397 = vadd.xlane.f32.xlu0 %v1396
      %v1398 = vpop.xlane.xlu0 %1397
      %v1399 = vrcp.pop %v1395
      %v1400 = vrcp.pop %v1398
      %v1401 = vmul.f32 %v1390, %v1399
      %v1402 = vmul.f32 %v1392, %v1400
      %1403 = vrot.lane.b32.xlu0 %v886, 68
      %v1404 = vpop.permute.xlu0 %1403
      %v1406 = vsel %vm1069, %v1401, 0
      %v1408 = vsel %vm1073, %v1404, 0
      %1410 = vmatprep.subr.mxu0 0.0
      %1411 = vmatpush1.msra.mxu0 %v1408
      %1412 = vmatprep.subr.mxu0 0.0
      %1413 = vmatpush1.msra.mxu0 0.0
      %1414 = vmatprep.subr.mxu0 0.0
      %1415 = vmatpush1.msra.mxu0 0.0
      %1416 = vmatprep.subr.mxu0 0.0
      %1417 = vmatpush1.msra.mxu0 0.0
      %1418 = vmatprep.subr.mxu0 0.0
      %1419 = vmatpush1.msra.mxu0 0.0
      %1420 = vmatprep.subr.mxu0 0.0
      %1421 = vmatpush1.msra.mxu0 0.0
      %1422 = vmatprep.subr.mxu0 0.0
      %1423 = vmatpush1.msra.mxu0 0.0
      %1424 = vmatprep.subr.mxu0 0.0
      %1425 = vmatpush1.msra.mxu0 0.0
      %1426 = vmatprep.subr.mxu0 0.0
      %1427 = vmatpush1.msra.mxu0 0.0
      %1428 = vmatprep.subr.mxu0 0.0
      %1429 = vmatpush1.msra.mxu0 0.0
      %1430 = vmatprep.subr.mxu0 0.0
      %1431 = vmatpush1.msra.mxu0 0.0
      %1432 = vmatprep.subr.mxu0 0.0
      %1433 = vmatpush1.msra.mxu0 0.0
      %1434 = vmatprep.subr.mxu0 0.0
      %1435 = vmatpush1.msra.mxu0 0.0
      %1436 = vmatprep.subr.mxu0 0.0
      %1437 = vmatpush1.msra.mxu0 0.0
      %1438 = vmatprep.subr.mxu0 0.0
      %1439 = vmatpush1.msra.mxu0 0.0
      %1440 = vmatprep.subr.mxu0 0.0
      %1441 = vmatpush1.msra.mxu0 0.0
      %1442 = vmatprep.subr.mxu0 0.0
      %1443 = vmatpush1.msra.mxu0 0.0
      %1444 = vmatprep.subr.mxu0 0.0
      %1445 = vmatpush1.msra.mxu0 0.0
      %1446 = vmatprep.subr.mxu0 0.0
      %1447 = vmatpush1.msra.mxu0 0.0
      %1448 = vmatprep.subr.mxu0 0.0
      %1449 = vmatpush1.msra.mxu0 0.0
      %1450 = vmatprep.subr.mxu0 0.0
      %1451 = vmatpush1.msra.mxu0 0.0
      %1452 = vmatprep.subr.mxu0 0.0
      %1453 = vmatpush1.msra.mxu0 0.0
      %1454 = vmatprep.subr.mxu0 0.0
      %1455 = vmatpush1.msra.mxu0 0.0
      %1456 = vmatprep.subr.mxu0 0.0
      %1457 = vmatpush1.msra.mxu0 0.0
      %1458 = vmatprep.subr.mxu0 0.0
      %1459 = vmatpush1.msra.mxu0 0.0
      %1460 = vmatprep.subr.mxu0 0.0
      %1461 = vmatpush1.msra.mxu0 0.0
      %1462 = vmatprep.subr.mxu0 0.0
      %1463 = vmatpush1.msra.mxu0 0.0
      %1464 = vmatprep.subr.mxu0 0.0
      %1465 = vmatpush1.msra.mxu0 0.0
      %1466 = vmatprep.subr.mxu0 0.0
      %1467 = vmatpush1.msra.mxu0 0.0
      %1468 = vmatprep.subr.mxu0 0.0
      %1469 = vmatpush1.msra.mxu0 0.0
      %1470 = vmatprep.subr.mxu0 0.0
      %1471 = vmatpush1.msra.mxu0 0.0
      %1472 = vmatprep.subr.mxu0 0.0
      %1473 = vmatpush1.msra.mxu0 0.0
      %1474 = vmatprep.mubr.f32.mxu0 0.0
      %1475 = vmatmul.mubr.f32.gmra.mrb[0].mxu0 %v1406
      %v1476 = vpop.f32.mrb[0].mxu0
      %v1477 = vadd.f32 0.0, %v1476
      %v1478 = vpop.f32.mrb[0].mxu0
      %1479 = vdwg.mxu0
      %1480 = vrot.lane.b32.xlu0 %v892, 68
      %v1481 = vpop.permute.xlu0 %1480
      %v1483 = vsel %vm1069, %v1402, 0
      %v1485 = vsel %vm1073, %v1481, 0
      %1487 = vmatprep.subr.mxu0 0.0
      %1488 = vmatpush1.msra.mxu0 %v1485
      %1489 = vmatprep.subr.mxu0 0.0
      %1490 = vmatpush1.msra.mxu0 0.0
      %1491 = vmatprep.subr.mxu0 0.0
      %1492 = vmatpush1.msra.mxu0 0.0
      %1493 = vmatprep.subr.mxu0 0.0
      %1494 = vmatpush1.msra.mxu0 0.0
      %1495 = vmatprep.subr.mxu0 0.0
      %1496 = vmatpush1.msra.mxu0 0.0
      %1497 = vmatprep.subr.mxu0 0.0
      %1498 = vmatpush1.msra.mxu0 0.0
      %1499 = vmatprep.subr.mxu0 0.0
      %1500 = vmatpush1.msra.mxu0 0.0
      %1501 = vmatprep.subr.mxu0 0.0
      %1502 = vmatpush1.msra.mxu0 0.0
      %1503 = vmatprep.subr.mxu0 0.0
      %1504 = vmatpush1.msra.mxu0 0.0
      %1505 = vmatprep.subr.mxu0 0.0
      %1506 = vmatpush1.msra.mxu0 0.0
      %1507 = vmatprep.subr.mxu0 0.0
      %1508 = vmatpush1.msra.mxu0 0.0
      %1509 = vmatprep.subr.mxu0 0.0
      %1510 = vmatpush1.msra.mxu0 0.0
      %1511 = vmatprep.subr.mxu0 0.0
      %1512 = vmatpush1.msra.mxu0 0.0
      %1513 = vmatprep.subr.mxu0 0.0
      %1514 = vmatpush1.msra.mxu0 0.0
      %1515 = vmatprep.subr.mxu0 0.0
      %1516 = vmatpush1.msra.mxu0 0.0
      %1517 = vmatprep.subr.mxu0 0.0
      %1518 = vmatpush1.msra.mxu0 0.0
      %1519 = vmatprep.subr.mxu0 0.0
      %1520 = vmatpush1.msra.mxu0 0.0
      %1521 = vmatprep.subr.mxu0 0.0
      %1522 = vmatpush1.msra.mxu0 0.0
      %1523 = vmatprep.subr.mxu0 0.0
      %1524 = vmatpush1.msra.mxu0 0.0
      %1525 = vmatprep.subr.mxu0 0.0
      %1526 = vmatpush1.msra.mxu0 0.0
      %1527 = vmatprep.subr.mxu0 0.0
      %1528 = vmatpush1.msra.mxu0 0.0
      %1529 = vmatprep.subr.mxu0 0.0
      %1530 = vmatpush1.msra.mxu0 0.0
      %1531 = vmatprep.subr.mxu0 0.0
      %1532 = vmatpush1.msra.mxu0 0.0
      %1533 = vmatprep.subr.mxu0 0.0
      %1534 = vmatpush1.msra.mxu0 0.0
      %1535 = vmatprep.subr.mxu0 0.0
      %1536 = vmatpush1.msra.mxu0 0.0
      %1537 = vmatprep.subr.mxu0 0.0
      %1538 = vmatpush1.msra.mxu0 0.0
      %1539 = vmatprep.subr.mxu0 0.0
      %1540 = vmatpush1.msra.mxu0 0.0
      %1541 = vmatprep.subr.mxu0 0.0
      %1542 = vmatpush1.msra.mxu0 0.0
      %1543 = vmatprep.subr.mxu0 0.0
      %1544 = vmatpush1.msra.mxu0 0.0
      %1545 = vmatprep.subr.mxu0 0.0
      %1546 = vmatpush1.msra.mxu0 0.0
      %1547 = vmatprep.subr.mxu0 0.0
      %1548 = vmatpush1.msra.mxu0 0.0
      %1549 = vmatprep.subr.mxu0 0.0
      %1550 = vmatpush1.msra.mxu0 0.0
      %1551 = vmatprep.mubr.f32.mxu0 0.0
      %1552 = vmatmul.mubr.f32.gmra.mrb[0].mxu0 %v1483
      %v1553 = vpop.f32.mrb[0].mxu0
      %v1554 = vadd.f32 0.0, %v1553
      %v1555 = vpop.f32.mrb[0].mxu0
      %1556 = vdwg.mxu0
      %1557 = vrot.lane.b32.xlu0 %v807, 104
      %v1558 = vpop.permute.xlu0 %1557
      %1559 = vrot.lane.b32.xlu0 %v886, 104
      %v1560 = vpop.permute.xlu0 %1559
      %v1561 = vsel %vm893, %v1558, 0
      %v1563 = vsel %vm893, %v1560, 0
      %1565 = vmatprep.subr.mxu0 0.0
      %1566 = vmatpush1.xpose.msra.mxu0 %v1563
      %1567 = vmatprep.subr.mxu0 0.0
      %1568 = vmatpush1.xpose.msra.mxu0 0.0
      %1569 = vmatprep.subr.mxu0 0.0
      %1570 = vmatpush1.xpose.msra.mxu0 0.0
      %1571 = vmatprep.subr.mxu0 0.0
      %1572 = vmatpush1.xpose.msra.mxu0 0.0
      %1573 = vmatprep.subr.mxu0 0.0
      %1574 = vmatpush1.xpose.msra.mxu0 0.0
      %1575 = vmatprep.subr.mxu0 0.0
      %1576 = vmatpush1.xpose.msra.mxu0 0.0
      %1577 = vmatprep.subr.mxu0 0.0
      %1578 = vmatpush1.xpose.msra.mxu0 0.0
      %1579 = vmatprep.subr.mxu0 0.0
      %1580 = vmatpush1.xpose.msra.mxu0 0.0
      %1581 = vmatprep.subr.mxu0 0.0
      %1582 = vmatpush1.xpose.msra.mxu0 0.0
      %1583 = vmatprep.subr.mxu0 0.0
      %1584 = vmatpush1.xpose.msra.mxu0 0.0
      %1585 = vmatprep.subr.mxu0 0.0
      %1586 = vmatpush1.xpose.msra.mxu0 0.0
      %1587 = vmatprep.subr.mxu0 0.0
      %1588 = vmatpush1.xpose.msra.mxu0 0.0
      %1589 = vmatprep.subr.mxu0 0.0
      %1590 = vmatpush1.xpose.msra.mxu0 0.0
      %1591 = vmatprep.subr.mxu0 0.0
      %1592 = vmatpush1.xpose.msra.mxu0 0.0
      %1593 = vmatprep.subr.mxu0 0.0
      %1594 = vmatpush1.xpose.msra.mxu0 0.0
      %1595 = vmatprep.subr.mxu0 0.0
      %1596 = vmatpush1.xpose.msra.mxu0 0.0
      %1597 = vmatprep.subr.mxu0 0.0
      %1598 = vmatpush1.xpose.msra.mxu0 0.0
      %1599 = vmatprep.subr.mxu0 0.0
      %1600 = vmatpush1.xpose.msra.mxu0 0.0
      %1601 = vmatprep.subr.mxu0 0.0
      %1602 = vmatpush1.xpose.msra.mxu0 0.0
      %1603 = vmatprep.subr.mxu0 0.0
      %1604 = vmatpush1.xpose.msra.mxu0 0.0
      %1605 = vmatprep.subr.mxu0 0.0
      %1606 = vmatpush1.xpose.msra.mxu0 0.0
      %1607 = vmatprep.subr.mxu0 0.0
      %1608 = vmatpush1.xpose.msra.mxu0 0.0
      %1609 = vmatprep.subr.mxu0 0.0
      %1610 = vmatpush1.xpose.msra.mxu0 0.0
      %1611 = vmatprep.subr.mxu0 0.0
      %1612 = vmatpush1.xpose.msra.mxu0 0.0
      %1613 = vmatprep.subr.mxu0 0.0
      %1614 = vmatpush1.xpose.msra.mxu0 0.0
      %1615 = vmatprep.subr.mxu0 0.0
      %1616 = vmatpush1.xpose.msra.mxu0 0.0
      %1617 = vmatprep.subr.mxu0 0.0
      %1618 = vmatpush1.xpose.msra.mxu0 0.0
      %1619 = vmatprep.subr.mxu0 0.0
      %1620 = vmatpush1.xpose.msra.mxu0 0.0
      %1621 = vmatprep.subr.mxu0 0.0
      %1622 = vmatpush1.xpose.msra.mxu0 0.0
      %1623 = vmatprep.subr.mxu0 0.0
      %1624 = vmatpush1.xpose.msra.mxu0 0.0
      %1625 = vmatprep.subr.mxu0 0.0
      %1626 = vmatpush1.xpose.msra.mxu0 0.0
      %1627 = vmatprep.subr.mxu0 0.0
      %1628 = vmatpush1.xpose.msra.mxu0 0.0
      %1629 = vmatprep.mubr.f32.mxu0 0.0
      %1630 = vmatmul.mubr.f32.gmra.mrb[0].mxu0 %v1561
      %v1631 = vpop.f32.mrb[0].mxu0
      %v1632 = vadd.f32 0.0, %v1631
      %v1633 = vpop.f32.mrb[0].mxu0
      %1634 = vdwg.mxu0
      %1635 = vrot.lane.b32.xlu0 %v890, 104
      %v1636 = vpop.permute.xlu0 %1635
      %1637 = vrot.lane.b32.xlu0 %v892, 104
      %v1638 = vpop.permute.xlu0 %1637
      %v1639 = vsel %vm893, %v1636, 0
      %v1641 = vsel %vm893, %v1638, 0
      %1643 = vmatprep.subr.mxu0 0.0
      %1644 = vmatpush1.xpose.msra.mxu0 %v1641
      %1645 = vmatprep.subr.mxu0 0.0
      %1646 = vmatpush1.xpose.msra.mxu0 0.0
      %1647 = vmatprep.subr.mxu0 0.0
      %1648 = vmatpush1.xpose.msra.mxu0 0.0
      %1649 = vmatprep.subr.mxu0 0.0
      %1650 = vmatpush1.xpose.msra.mxu0 0.0
      %1651 = vmatprep.subr.mxu0 0.0
      %1652 = vmatpush1.xpose.msra.mxu0 0.0
      %1653 = vmatprep.subr.mxu0 0.0
      %1654 = vmatpush1.xpose.msra.mxu0 0.0
      %1655 = vmatprep.subr.mxu0 0.0
      %1656 = vmatpush1.xpose.msra.mxu0 0.0
      %1657 = vmatprep.subr.mxu0 0.0
      %1658 = vmatpush1.xpose.msra.mxu0 0.0
      %1659 = vmatprep.subr.mxu0 0.0
      %1660 = vmatpush1.xpose.msra.mxu0 0.0
      %1661 = vmatprep.subr.mxu0 0.0
      %1662 = vmatpush1.xpose.msra.mxu0 0.0
      %1663 = vmatprep.subr.mxu0 0.0
      %1664 = vmatpush1.xpose.msra.mxu0 0.0
      %1665 = vmatprep.subr.mxu0 0.0
      %1666 = vmatpush1.xpose.msra.mxu0 0.0
      %1667 = vmatprep.subr.mxu0 0.0
      %1668 = vmatpush1.xpose.msra.mxu0 0.0
      %1669 = vmatprep.subr.mxu0 0.0
      %1670 = vmatpush1.xpose.msra.mxu0 0.0
      %1671 = vmatprep.subr.mxu0 0.0
      %1672 = vmatpush1.xpose.msra.mxu0 0.0
      %1673 = vmatprep.subr.mxu0 0.0
      %1674 = vmatpush1.xpose.msra.mxu0 0.0
      %1675 = vmatprep.subr.mxu0 0.0
      %1676 = vmatpush1.xpose.msra.mxu0 0.0
      %1677 = vmatprep.subr.mxu0 0.0
      %1678 = vmatpush1.xpose.msra.mxu0 0.0
      %1679 = vmatprep.subr.mxu0 0.0
      %1680 = vmatpush1.xpose.msra.mxu0 0.0
      %1681 = vmatprep.subr.mxu0 0.0
      %1682 = vmatpush1.xpose.msra.mxu0 0.0
      %1683 = vmatprep.subr.mxu0 0.0
      %1684 = vmatpush1.xpose.msra.mxu0 0.0
      %1685 = vmatprep.subr.mxu0 0.0
      %1686 = vmatpush1.xpose.msra.mxu0 0.0
      %1687 = vmatprep.subr.mxu0 0.0
      %1688 = vmatpush1.xpose.msra.mxu0 0.0
      %1689 = vmatprep.subr.mxu0 0.0
      %1690 = vmatpush1.xpose.msra.mxu0 0.0
      %1691 = vmatprep.subr.mxu0 0.0
      %1692 = vmatpush1.xpose.msra.mxu0 0.0
      %1693 = vmatprep.subr.mxu0 0.0
      %1694 = vmatpush1.xpose.msra.mxu0 0.0
      %1695 = vmatprep.subr.mxu0 0.0
      %1696 = vmatpush1.xpose.msra.mxu0 0.0
      %1697 = vmatprep.subr.mxu0 0.0
      %1698 = vmatpush1.xpose.msra.mxu0 0.0
      %1699 = vmatprep.subr.mxu0 0.0
      %1700 = vmatpush1.xpose.msra.mxu0 0.0
      %1701 = vmatprep.subr.mxu0 0.0
      %1702 = vmatpush1.xpose.msra.mxu0 0.0
      %1703 = vmatprep.subr.mxu0 0.0
      %1704 = vmatpush1.xpose.msra.mxu0 0.0
      %1705 = vmatprep.subr.mxu0 0.0
      %1706 = vmatpush1.xpose.msra.mxu0 0.0
      %1707 = vmatprep.mubr.f32.mxu0 0.0
      %1708 = vmatmul.mubr.f32.gmra.mrb[0].mxu0 %v1639
      %v1709 = vpop.f32.mrb[0].mxu0
      %v1710 = vadd.f32 0.0, %v1709
      %v1711 = vpop.f32.mrb[0].mxu0
      %1712 = vdwg.mxu0
      %v1713 = vmul.f32 %v1632, 0.28867513
      %v1714 = vmul.f32 %v1710, 0.28867513
      %v1715 = vsel %vm1044, %v1713, -inf
      %1716 = vmax.xlane.f32.xlu0 %v1715
      %v1717 = vpop.xlane.xlu0 %1716
      %v1718 = vsel %vm1044, %v1714, -inf
      %1719 = vmax.xlane.f32.xlu0 %v1718
      %v1720 = vpop.xlane.xlu0 %1719
      %v1721 = vsub.f32 %v1713, %v1717
      %v1722 = vsub.f32 %v1714, %v1720
      %v1723 = vmul.f32 %v1721, 1.442695
      %v1724 = vpow.pop %v1723
      %v1725 = vmul.f32 %v1722, 1.442695
      %v1726 = vpow.pop %v1725
      %v1727 = vsel %vm1044, %v1724, 0.0
      %1728 = vadd.xlane.f32.xlu0 %v1727
      %v1729 = vpop.xlane.xlu0 %1728
      %v1730 = vsel %vm1044, %v1726, 0.0
      %1731 = vadd.xlane.f32.xlu0 %v1730
      %v1732 = vpop.xlane.xlu0 %1731
      %v1733 = vrcp.pop %v1729
      %v1734 = vrcp.pop %v1732
      %v1735 = vmul.f32 %v1724, %v1733
      %v1736 = vmul.f32 %v1726, %v1734
      %1737 = vrot.lane.b32.xlu0 %v886, 56
      %v1738 = vpop.permute.xlu0 %1737
      %v1740 = vsel %vm1069, %v1735, 0
      %v1742 = vsel %vm1073, %v1738, 0
      %1744 = vmatprep.subr.mxu0 0.0
      %1745 = vmatpush1.msra.mxu0 %v1742
      %1746 = vmatprep.subr.mxu0 0.0
      %1747 = vmatpush1.msra.mxu0 0.0
      %1748 = vmatprep.subr.mxu0 0.0
      %1749 = vmatpush1.msra.mxu0 0.0
      %1750 = vmatprep.subr.mxu0 0.0
      %1751 = vmatpush1.msra.mxu0 0.0
      %1752 = vmatprep.subr.mxu0 0.0
      %1753 = vmatpush1.msra.mxu0 0.0
      %1754 = vmatprep.subr.mxu0 0.0
      %1755 = vmatpush1.msra.mxu0 0.0
      %1756 = vmatprep.subr.mxu0 0.0
      %1757 = vmatpush1.msra.mxu0 0.0
      %1758 = vmatprep.subr.mxu0 0.0
      %1759 = vmatpush1.msra.mxu0 0.0
      %1760 = vmatprep.subr.mxu0 0.0
      %1761 = vmatpush1.msra.mxu0 0.0
      %1762 = vmatprep.subr.mxu0 0.0
      %1763 = vmatpush1.msra.mxu0 0.0
      %1764 = vmatprep.subr.mxu0 0.0
      %1765 = vmatpush1.msra.mxu0 0.0
      %1766 = vmatprep.subr.mxu0 0.0
      %1767 = vmatpush1.msra.mxu0 0.0
      %1768 = vmatprep.subr.mxu0 0.0
      %1769 = vmatpush1.msra.mxu0 0.0
      %1770 = vmatprep.subr.mxu0 0.0
      %1771 = vmatpush1.msra.mxu0 0.0
      %1772 = vmatprep.subr.mxu0 0.0
      %1773 = vmatpush1.msra.mxu0 0.0
      %1774 = vmatprep.subr.mxu0 0.0
      %1775 = vmatpush1.msra.mxu0 0.0
      %1776 = vmatprep.subr.mxu0 0.0
      %1777 = vmatpush1.msra.mxu0 0.0
      %1778 = vmatprep.subr.mxu0 0.0
      %1779 = vmatpush1.msra.mxu0 0.0
      %1780 = vmatprep.subr.mxu0 0.0
      %1781 = vmatpush1.msra.mxu0 0.0
      %1782 = vmatprep.subr.mxu0 0.0
      %1783 = vmatpush1.msra.mxu0 0.0
      %1784 = vmatprep.subr.mxu0 0.0
      %1785 = vmatpush1.msra.mxu0 0.0
      %1786 = vmatprep.subr.mxu0 0.0
      %1787 = vmatpush1.msra.mxu0 0.0
      %1788 = vmatprep.subr.mxu0 0.0
      %1789 = vmatpush1.msra.mxu0 0.0
      %1790 = vmatprep.subr.mxu0 0.0
      %1791 = vmatpush1.msra.mxu0 0.0
      %1792 = vmatprep.subr.mxu0 0.0
      %1793 = vmatpush1.msra.mxu0 0.0
      %1794 = vmatprep.subr.mxu0 0.0
      %1795 = vmatpush1.msra.mxu0 0.0
      %1796 = vmatprep.subr.mxu0 0.0
      %1797 = vmatpush1.msra.mxu0 0.0
      %1798 = vmatprep.subr.mxu0 0.0
      %1799 = vmatpush1.msra.mxu0 0.0
      %1800 = vmatprep.subr.mxu0 0.0
      %1801 = vmatpush1.msra.mxu0 0.0
      %1802 = vmatprep.subr.mxu0 0.0
      %1803 = vmatpush1.msra.mxu0 0.0
      %1804 = vmatprep.subr.mxu0 0.0
      %1805 = vmatpush1.msra.mxu0 0.0
      %1806 = vmatprep.subr.mxu0 0.0
      %1807 = vmatpush1.msra.mxu0 0.0
      %1808 = vmatprep.mubr.f32.mxu0 0.0
      %1809 = vmatmul.mubr.f32.gmra.mrb[0].mxu0 %v1740
      %v1810 = vpop.f32.mrb[0].mxu0
      %v1811 = vadd.f32 0.0, %v1810
      %v1812 = vpop.f32.mrb[0].mxu0
      %1813 = vdwg.mxu0
      %1814 = vrot.lane.b32.xlu0 %v892, 56
      %v1815 = vpop.permute.xlu0 %1814
      %v1817 = vsel %vm1069, %v1736, 0
      %v1819 = vsel %vm1073, %v1815, 0
      %1821 = vmatprep.subr.mxu0 0.0
      %1822 = vmatpush1.msra.mxu0 %v1819
      %1823 = vmatprep.subr.mxu0 0.0
      %1824 = vmatpush1.msra.mxu0 0.0
      %1825 = vmatprep.subr.mxu0 0.0
      %1826 = vmatpush1.msra.mxu0 0.0
      %1827 = vmatprep.subr.mxu0 0.0
      %1828 = vmatpush1.msra.mxu0 0.0
      %1829 = vmatprep.subr.mxu0 0.0
      %1830 = vmatpush1.msra.mxu0 0.0
      %1831 = vmatprep.subr.mxu0 0.0
      %1832 = vmatpush1.msra.mxu0 0.0
      %1833 = vmatprep.subr.mxu0 0.0
      %1834 = vmatpush1.msra.mxu0 0.0
      %1835 = vmatprep.subr.mxu0 0.0
      %1836 = vmatpush1.msra.mxu0 0.0
      %1837 = vmatprep.subr.mxu0 0.0
      %1838 = vmatpush1.msra.mxu0 0.0
      %1839 = vmatprep.subr.mxu0 0.0
      %1840 = vmatpush1.msra.mxu0 0.0
      %1841 = vmatprep.subr.mxu0 0.0
      %1842 = vmatpush1.msra.mxu0 0.0
      %1843 = vmatprep.subr.mxu0 0.0
      %1844 = vmatpush1.msra.mxu0 0.0
      %1845 = vmatprep.subr.mxu0 0.0
      %1846 = vmatpush1.msra.mxu0 0.0
      %1847 = vmatprep.subr.mxu0 0.0
      %1848 = vmatpush1.msra.mxu0 0.0
      %1849 = vmatprep.subr.mxu0 0.0
      %1850 = vmatpush1.msra.mxu0 0.0
      %1851 = vmatprep.subr.mxu0 0.0
      %1852 = vmatpush1.msra.mxu0 0.0
      %1853 = vmatprep.subr.mxu0 0.0
      %1854 = vmatpush1.msra.mxu0 0.0
      %1855 = vmatprep.subr.mxu0 0.0
      %1856 = vmatpush1.msra.mxu0 0.0
      %1857 = vmatprep.subr.mxu0 0.0
      %1858 = vmatpush1.msra.mxu0 0.0
      %1859 = vmatprep.subr.mxu0 0.0
      %1860 = vmatpush1.msra.mxu0 0.0
      %1861 = vmatprep.subr.mxu0 0.0
      %1862 = vmatpush1.msra.mxu0 0.0
      %1863 = vmatprep.subr.mxu0 0.0
      %1864 = vmatpush1.msra.mxu0 0.0
      %1865 = vmatprep.subr.mxu0 0.0
      %1866 = vmatpush1.msra.mxu0 0.0
      %1867 = vmatprep.subr.mxu0 0.0
      %1868 = vmatpush1.msra.mxu0 0.0
      %1869 = vmatprep.subr.mxu0 0.0
      %1870 = vmatpush1.msra.mxu0 0.0
      %1871 = vmatprep.subr.mxu0 0.0
      %1872 = vmatpush1.msra.mxu0 0.0
      %1873 = vmatprep.subr.mxu0 0.0
      %1874 = vmatpush1.msra.mxu0 0.0
      %1875 = vmatprep.subr.mxu0 0.0
      %1876 = vmatpush1.msra.mxu0 0.0
      %1877 = vmatprep.subr.mxu0 0.0
      %1878 = vmatpush1.msra.mxu0 0.0
      %1879 = vmatprep.subr.mxu0 0.0
      %1880 = vmatpush1.msra.mxu0 0.0
      %1881 = vmatprep.subr.mxu0 0.0
      %1882 = vmatpush1.msra.mxu0 0.0
      %1883 = vmatprep.subr.mxu0 0.0
      %1884 = vmatpush1.msra.mxu0 0.0
      %1885 = vmatprep.mubr.f32.mxu0 0.0
      %1886 = vmatmul.mubr.f32.gmra.mrb[0].mxu0 %v1817
      %v1887 = vpop.f32.mrb[0].mxu0
      %v1888 = vadd.f32 0.0, %v1887
      %v1889 = vpop.f32.mrb[0].mxu0
      %1890 = vdwg.mxu0
      %1891 = vrot.lane.b32.xlu0 %v807, 92
      %v1892 = vpop.permute.xlu0 %1891
      %1893 = vrot.lane.b32.xlu0 %v886, 92
      %v1894 = vpop.permute.xlu0 %1893
      %v1895 = vsel %vm893, %v1892, 0
      %v1897 = vsel %vm893, %v1894, 0
      %1899 = vmatprep.subr.mxu0 0.0
      %1900 = vmatpush1.xpose.msra.mxu0 %v1897
      %1901 = vmatprep.subr.mxu0 0.0
      %1902 = vmatpush1.xpose.msra.mxu0 0.0
      %1903 = vmatprep.subr.mxu0 0.0
      %1904 = vmatpush1.xpose.msra.mxu0 0.0
      %1905 = vmatprep.subr.mxu0 0.0
      %1906 = vmatpush1.xpose.msra.mxu0 0.0
      %1907 = vmatprep.subr.mxu0 0.0
      %1908 = vmatpush1.xpose.msra.mxu0 0.0
      %1909 = vmatprep.subr.mxu0 0.0
      %1910 = vmatpush1.xpose.msra.mxu0 0.0
      %1911 = vmatprep.subr.mxu0 0.0
      %1912 = vmatpush1.xpose.msra.mxu0 0.0
      %1913 = vmatprep.subr.mxu0 0.0
      %1914 = vmatpush1.xpose.msra.mxu0 0.0
      %1915 = vmatprep.subr.mxu0 0.0
      %1916 = vmatpush1.xpose.msra.mxu0 0.0
      %1917 = vmatprep.subr.mxu0 0.0
      %1918 = vmatpush1.xpose.msra.mxu0 0.0
      %1919 = vmatprep.subr.mxu0 0.0
      %1920 = vmatpush1.xpose.msra.mxu0 0.0
      %1921 = vmatprep.subr.mxu0 0.0
      %1922 = vmatpush1.xpose.msra.mxu0 0.0
      %1923 = vmatprep.subr.mxu0 0.0
      %1924 = vmatpush1.xpose.msra.mxu0 0.0
      %1925 = vmatprep.subr.mxu0 0.0
      %1926 = vmatpush1.xpose.msra.mxu0 0.0
      %1927 = vmatprep.subr.mxu0 0.0
      %1928 = vmatpush1.xpose.msra.mxu0 0.0
      %1929 = vmatprep.subr.mxu0 0.0
      %1930 = vmatpush1.xpose.msra.mxu0 0.0
      %1931 = vmatprep.subr.mxu0 0.0
      %1932 = vmatpush1.xpose.msra.mxu0 0.0
      %1933 = vmatprep.subr.mxu0 0.0
      %1934 = vmatpush1.xpose.msra.mxu0 0.0
      %1935 = vmatprep.subr.mxu0 0.0
      %1936 = vmatpush1.xpose.msra.mxu0 0.0
      %1937 = vmatprep.subr.mxu0 0.0
      %1938 = vmatpush1.xpose.msra.mxu0 0.0
      %1939 = vmatprep.subr.mxu0 0.0
      %1940 = vmatpush1.xpose.msra.mxu0 0.0
      %1941 = vmatprep.subr.mxu0 0.0
      %1942 = vmatpush1.xpose.msra.mxu0 0.0
      %1943 = vmatprep.subr.mxu0 0.0
      %1944 = vmatpush1.xpose.msra.mxu0 0.0
      %1945 = vmatprep.subr.mxu0 0.0
      %1946 = vmatpush1.xpose.msra.mxu0 0.0
      %1947 = vmatprep.subr.mxu0 0.0
      %1948 = vmatpush1.xpose.msra.mxu0 0.0
      %1949 = vmatprep.subr.mxu0 0.0
      %1950 = vmatpush1.xpose.msra.mxu0 0.0
      %1951 = vmatprep.subr.mxu0 0.0
      %1952 = vmatpush1.xpose.msra.mxu0 0.0
      %1953 = vmatprep.subr.mxu0 0.0
      %1954 = vmatpush1.xpose.msra.mxu0 0.0
      %1955 = vmatprep.subr.mxu0 0.0
      %1956 = vmatpush1.xpose.msra.mxu0 0.0
      %1957 = vmatprep.subr.mxu0 0.0
      %1958 = vmatpush1.xpose.msra.mxu0 0.0
      %1959 = vmatprep.subr.mxu0 0.0
      %1960 = vmatpush1.xpose.msra.mxu0 0.0
      %1961 = vmatprep.subr.mxu0 0.0
      %1962 = vmatpush1.xpose.msra.mxu0 0.0
      %1963 = vmatprep.mubr.f32.mxu0 0.0
      %1964 = vmatmul.mubr.f32.gmra.mrb[0].mxu0 %v1895
      %v1965 = vpop.f32.mrb[0].mxu0
      %v1966 = vadd.f32 0.0, %v1965
      %v1967 = vpop.f32.mrb[0].mxu0
      %1968 = vdwg.mxu0
      %1969 = vrot.lane.b32.xlu0 %v890, 92
      %v1970 = vpop.permute.xlu0 %1969
      %1971 = vrot.lane.b32.xlu0 %v892, 92
      %v1972 = vpop.permute.xlu0 %1971
      %v1973 = vsel %vm893, %v1970, 0
      %v1975 = vsel %vm893, %v1972, 0
      %1977 = vmatprep.subr.mxu0 0.0
      %1978 = vmatpush1.xpose.msra.mxu0 %v1975
      %1979 = vmatprep.subr.mxu0 0.0
      %1980 = vmatpush1.xpose.msra.mxu0 0.0
      %1981 = vmatprep.subr.mxu0 0.0
      %1982 = vmatpush1.xpose.msra.mxu0 0.0
      %1983 = vmatprep.subr.mxu0 0.0
      %1984 = vmatpush1.xpose.msra.mxu0 0.0
      %1985 = vmatprep.subr.mxu0 0.0
      %1986 = vmatpush1.xpose.msra.mxu0 0.0
      %1987 = vmatprep.subr.mxu0 0.0
      %1988 = vmatpush1.xpose.msra.mxu0 0.0
      %1989 = vmatprep.subr.mxu0 0.0
      %1990 = vmatpush1.xpose.msra.mxu0 0.0
      %1991 = vmatprep.subr.mxu0 0.0
      %1992 = vmatpush1.xpose.msra.mxu0 0.0
      %1993 = vmatprep.subr.mxu0 0.0
      %1994 = vmatpush1.xpose.msra.mxu0 0.0
      %1995 = vmatprep.subr.mxu0 0.0
      %1996 = vmatpush1.xpose.msra.mxu0 0.0
      %1997 = vmatprep.subr.mxu0 0.0
      %1998 = vmatpush1.xpose.msra.mxu0 0.0
      %1999 = vmatprep.subr.mxu0 0.0
      %2000 = vmatpush1.xpose.msra.mxu0 0.0
      %2001 = vmatprep.subr.mxu0 0.0
      %2002 = vmatpush1.xpose.msra.mxu0 0.0
      %2003 = vmatprep.subr.mxu0 0.0
      %2004 = vmatpush1.xpose.msra.mxu0 0.0
      %2005 = vmatprep.subr.mxu0 0.0
      %2006 = vmatpush1.xpose.msra.mxu0 0.0
      %2007 = vmatprep.subr.mxu0 0.0
      %2008 = vmatpush1.xpose.msra.mxu0 0.0
      %2009 = vmatprep.subr.mxu0 0.0
      %2010 = vmatpush1.xpose.msra.mxu0 0.0
      %2011 = vmatprep.subr.mxu0 0.0
      %2012 = vmatpush1.xpose.msra.mxu0 0.0
      %2013 = vmatprep.subr.mxu0 0.0
      %2014 = vmatpush1.xpose.msra.mxu0 0.0
      %2015 = vmatprep.subr.mxu0 0.0
      %2016 = vmatpush1.xpose.msra.mxu0 0.0
      %2017 = vmatprep.subr.mxu0 0.0
      %2018 = vmatpush1.xpose.msra.mxu0 0.0
      %2019 = vmatprep.subr.mxu0 0.0
      %2020 = vmatpush1.xpose.msra.mxu0 0.0
      %2021 = vmatprep.subr.mxu0 0.0
      %2022 = vmatpush1.xpose.msra.mxu0 0.0
      %2023 = vmatprep.subr.mxu0 0.0
      %2024 = vmatpush1.xpose.msra.mxu0 0.0
      %2025 = vmatprep.subr.mxu0 0.0
      %2026 = vmatpush1.xpose.msra.mxu0 0.0
      %2027 = vmatprep.subr.mxu0 0.0
      %2028 = vmatpush1.xpose.msra.mxu0 0.0
      %2029 = vmatprep.subr.mxu0 0.0
      %2030 = vmatpush1.xpose.msra.mxu0 0.0
      %2031 = vmatprep.subr.mxu0 0.0
      %2032 = vmatpush1.xpose.msra.mxu0 0.0
      %2033 = vmatprep.subr.mxu0 0.0
      %2034 = vmatpush1.xpose.msra.mxu0 0.0
      %2035 = vmatprep.subr.mxu0 0.0
      %2036 = vmatpush1.xpose.msra.mxu0 0.0
      %2037 = vmatprep.subr.mxu0 0.0
      %2038 = vmatpush1.xpose.msra.mxu0 0.0
      %2039 = vmatprep.subr.mxu0 0.0
      %2040 = vmatpush1.xpose.msra.mxu0 0.0
      %2041 = vmatprep.mubr.f32.mxu0 0.0
      %2042 = vmatmul.mubr.f32.gmra.mrb[0].mxu0 %v1973
      %v2043 = vpop.f32.mrb[0].mxu0
      %v2044 = vadd.f32 0.0, %v2043
      %v2045 = vpop.f32.mrb[0].mxu0
      %2046 = vdwg.mxu0
      %v2047 = vmul.f32 %v1966, 0.28867513
      %v2048 = vmul.f32 %v2044, 0.28867513
      %v2049 = vsel %vm1044, %v2047, -inf
      %2050 = vmax.xlane.f32.xlu0 %v2049
      %v2051 = vpop.xlane.xlu0 %2050
      %v2052 = vsel %vm1044, %v2048, -inf
      %2053 = vmax.xlane.f32.xlu0 %v2052
      %v2054 = vpop.xlane.xlu0 %2053
      %v2055 = vsub.f32 %v2047, %v2051
      %v2056 = vsub.f32 %v2048, %v2054
      %v2057 = vmul.f32 %v2055, 1.442695
      %v2058 = vpow.pop %v2057
      %v2059 = vmul.f32 %v2056, 1.442695
      %v2060 = vpow.pop %v2059
      %v2061 = vsel %vm1044, %v2058, 0.0
      %2062 = vadd.xlane.f32.xlu0 %v2061
      %v2063 = vpop.xlane.xlu0 %2062
      %v2064 = vsel %vm1044, %v2060, 0.0
      %2065 = vadd.xlane.f32.xlu0 %v2064
      %v2066 = vpop.xlane.xlu0 %2065
      %v2067 = vrcp.pop %v2063
      %v2068 = vrcp.pop %v2066
      %v2069 = vmul.f32 %v2058, %v2067
      %v2070 = vmul.f32 %v2060, %v2068
      %2071 = vrot.lane.b32.xlu0 %v886, 44
      %v2072 = vpop.permute.xlu0 %2071
      %v2074 = vsel %vm1069, %v2069, 0
      %v2076 = vsel %vm1073, %v2072, 0
      %2078 = vmatprep.subr.mxu0 0.0
      %2079 = vmatpush1.msra.mxu0 %v2076
      %2080 = vmatprep.subr.mxu0 0.0
      %2081 = vmatpush1.msra.mxu0 0.0
      %2082 = vmatprep.subr.mxu0 0.0
      %2083 = vmatpush1.msra.mxu0 0.0
      %2084 = vmatprep.subr.mxu0 0.0
      %2085 = vmatpush1.msra.mxu0 0.0
      %2086 = vmatprep.subr.mxu0 0.0
      %2087 = vmatpush1.msra.mxu0 0.0
      %2088 = vmatprep.subr.mxu0 0.0
      %2089 = vmatpush1.msra.mxu0 0.0
      %2090 = vmatprep.subr.mxu0 0.0
      %2091 = vmatpush1.msra.mxu0 0.0
      %2092 = vmatprep.subr.mxu0 0.0
      %2093 = vmatpush1.msra.mxu0 0.0
      %2094 = vmatprep.subr.mxu0 0.0
      %2095 = vmatpush1.msra.mxu0 0.0
      %2096 = vmatprep.subr.mxu0 0.0
      %2097 = vmatpush1.msra.mxu0 0.0
      %2098 = vmatprep.subr.mxu0 0.0
      %2099 = vmatpush1.msra.mxu0 0.0
      %2100 = vmatprep.subr.mxu0 0.0
      %2101 = vmatpush1.msra.mxu0 0.0
      %2102 = vmatprep.subr.mxu0 0.0
      %2103 = vmatpush1.msra.mxu0 0.0
      %2104 = vmatprep.subr.mxu0 0.0
      %2105 = vmatpush1.msra.mxu0 0.0
      %2106 = vmatprep.subr.mxu0 0.0
      %2107 = vmatpush1.msra.mxu0 0.0
      %2108 = vmatprep.subr.mxu0 0.0
      %2109 = vmatpush1.msra.mxu0 0.0
      %2110 = vmatprep.subr.mxu0 0.0
      %2111 = vmatpush1.msra.mxu0 0.0
      %2112 = vmatprep.subr.mxu0 0.0
      %2113 = vmatpush1.msra.mxu0 0.0
      %2114 = vmatprep.subr.mxu0 0.0
      %2115 = vmatpush1.msra.mxu0 0.0
      %2116 = vmatprep.subr.mxu0 0.0
      %2117 = vmatpush1.msra.mxu0 0.0
      %2118 = vmatprep.subr.mxu0 0.0
      %2119 = vmatpush1.msra.mxu0 0.0
      %2120 = vmatprep.subr.mxu0 0.0
      %2121 = vmatpush1.msra.mxu0 0.0
      %2122 = vmatprep.subr.mxu0 0.0
      %2123 = vmatpush1.msra.mxu0 0.0
      %2124 = vmatprep.subr.mxu0 0.0
      %2125 = vmatpush1.msra.mxu0 0.0
      %2126 = vmatprep.subr.mxu0 0.0
      %2127 = vmatpush1.msra.mxu0 0.0
      %2128 = vmatprep.subr.mxu0 0.0
      %2129 = vmatpush1.msra.mxu0 0.0
      %2130 = vmatprep.subr.mxu0 0.0
      %2131 = vmatpush1.msra.mxu0 0.0
      %2132 = vmatprep.subr.mxu0 0.0
      %2133 = vmatpush1.msra.mxu0 0.0
      %2134 = vmatprep.subr.mxu0 0.0
      %2135 = vmatpush1.msra.mxu0 0.0
      %2136 = vmatprep.subr.mxu0 0.0
      %2137 = vmatpush1.msra.mxu0 0.0
      %2138 = vmatprep.subr.mxu0 0.0
      %2139 = vmatpush1.msra.mxu0 0.0
      %2140 = vmatprep.subr.mxu0 0.0
      %2141 = vmatpush1.msra.mxu0 0.0
      %2142 = vmatprep.mubr.f32.mxu0 0.0
      %2143 = vmatmul.mubr.f32.gmra.mrb[0].mxu0 %v2074
      %v2144 = vpop.f32.mrb[0].mxu0
      %v2145 = vadd.f32 0.0, %v2144
      %v2146 = vpop.f32.mrb[0].mxu0
      %2147 = vdwg.mxu0
      %2148 = vrot.lane.b32.xlu0 %v892, 44
      %v2149 = vpop.permute.xlu0 %2148
      %v2151 = vsel %vm1069, %v2070, 0
      %v2153 = vsel %vm1073, %v2149, 0
      %2155 = vmatprep.subr.mxu0 0.0
      %2156 = vmatpush1.msra.mxu0 %v2153
      %2157 = vmatprep.subr.mxu0 0.0
      %2158 = vmatpush1.msra.mxu0 0.0
      %2159 = vmatprep.subr.mxu0 0.0
      %2160 = vmatpush1.msra.mxu0 0.0
      %2161 = vmatprep.subr.mxu0 0.0
      %2162 = vmatpush1.msra.mxu0 0.0
      %2163 = vmatprep.subr.mxu0 0.0
      %2164 = vmatpush1.msra.mxu0 0.0
      %2165 = vmatprep.subr.mxu0 0.0
      %2166 = vmatpush1.msra.mxu0 0.0
      %2167 = vmatprep.subr.mxu0 0.0
      %2168 = vmatpush1.msra.mxu0 0.0
      %2169 = vmatprep.subr.mxu0 0.0
      %2170 = vmatpush1.msra.mxu0 0.0
      %2171 = vmatprep.subr.mxu0 0.0
      %2172 = vmatpush1.msra.mxu0 0.0
      %2173 = vmatprep.subr.mxu0 0.0
      %2174 = vmatpush1.msra.mxu0 0.0
      %2175 = vmatprep.subr.mxu0 0.0
      %2176 = vmatpush1.msra.mxu0 0.0
      %2177 = vmatprep.subr.mxu0 0.0
      %2178 = vmatpush1.msra.mxu0 0.0
      %2179 = vmatprep.subr.mxu0 0.0
      %2180 = vmatpush1.msra.mxu0 0.0
      %2181 = vmatprep.subr.mxu0 0.0
      %2182 = vmatpush1.msra.mxu0 0.0
      %2183 = vmatprep.subr.mxu0 0.0
      %2184 = vmatpush1.msra.mxu0 0.0
      %2185 = vmatprep.subr.mxu0 0.0
      %2186 = vmatpush1.msra.mxu0 0.0
      %2187 = vmatprep.subr.mxu0 0.0
      %2188 = vmatpush1.msra.mxu0 0.0
      %2189 = vmatprep.subr.mxu0 0.0
      %2190 = vmatpush1.msra.mxu0 0.0
      %2191 = vmatprep.subr.mxu0 0.0
      %2192 = vmatpush1.msra.mxu0 0.0
      %2193 = vmatprep.subr.mxu0 0.0
      %2194 = vmatpush1.msra.mxu0 0.0
      %2195 = vmatprep.subr.mxu0 0.0
      %2196 = vmatpush1.msra.mxu0 0.0
      %2197 = vmatprep.subr.mxu0 0.0
      %2198 = vmatpush1.msra.mxu0 0.0
      %2199 = vmatprep.subr.mxu0 0.0
      %2200 = vmatpush1.msra.mxu0 0.0
      %2201 = vmatprep.subr.mxu0 0.0
      %2202 = vmatpush1.msra.mxu0 0.0
      %2203 = vmatprep.subr.mxu0 0.0
      %2204 = vmatpush1.msra.mxu0 0.0
      %2205 = vmatprep.subr.mxu0 0.0
      %2206 = vmatpush1.msra.mxu0 0.0
      %2207 = vmatprep.subr.mxu0 0.0
      %2208 = vmatpush1.msra.mxu0 0.0
      %2209 = vmatprep.subr.mxu0 0.0
      %2210 = vmatpush1.msra.mxu0 0.0
      %2211 = vmatprep.subr.mxu0 0.0
      %2212 = vmatpush1.msra.mxu0 0.0
      %2213 = vmatprep.subr.mxu0 0.0
      %2214 = vmatpush1.msra.mxu0 0.0
      %2215 = vmatprep.subr.mxu0 0.0
      %2216 = vmatpush1.msra.mxu0 0.0
      %2217 = vmatprep.subr.mxu0 0.0
      %2218 = vmatpush1.msra.mxu0 0.0
      %2219 = vmatprep.mubr.f32.mxu0 0.0
      %2220 = vmatmul.mubr.f32.gmra.mrb[0].mxu0 %v2151
      %v2221 = vpop.f32.mrb[0].mxu0
      %v2222 = vadd.f32 0.0, %v2221
      %v2223 = vpop.f32.mrb[0].mxu0
      %2224 = vdwg.mxu0
      %2227 = vrot.lane.b32.xlu0 %v1477, 12
      %v2228 = vpop.permute.xlu0 %2227
      %2229 = vrot.lane.b32.xlu0 %v1554, 12
      %v2230 = vpop.permute.xlu0 %2229
      %2235 = vrot.lane.b32.xlu0 %v1811, 24
      %v2236 = vpop.permute.xlu0 %2235
      %2237 = vrot.lane.b32.xlu0 %v1888, 24
      %v2238 = vpop.permute.xlu0 %2237
      %2243 = vrot.lane.b32.xlu0 %v2145, 36
      %v2244 = vpop.permute.xlu0 %2243
      %2245 = vrot.lane.b32.xlu0 %v2222, 36
      %v2246 = vpop.permute.xlu0 %2245
      %v2249 = vsel %vm893, %v1143, %v2228
      %v2250 = vsel %vm893, %v1220, %v2230
      %vm2251 = vcmask 195584
      %v2252 = vsel %vm2251, %v2249, %v2236
      %v2253 = vsel %vm2251, %v2250, %v2238
      %vm2254 = vcmask 293888
      %v2255 = vsel %vm2254, %v2252, %v2244
      %v2256 = vsel %vm2254, %v2253, %v2246
      %v2257 = vld [vmem:[%s8] sm:$0xff]
      %v2258 = vld [vmem:[%s8 + $0x8] sm:$0xff]
      %v2259 = vld [vmem:[%s8 + $0x10] sm:$0xff]
      %v2260 = vld [vmem:[%s8 + $0x18] sm:$0xff]
      %v2261 = vld [vmem:[%s8 + $0x20] sm:$0xff]
      %v2262 = vld [vmem:[%s8 + $0x28] sm:$0xff]
      %v2263 = vld [vmem:[%s9] sm:$0x1]
      %v2265 = vlaneseq
      %v2266 = vshrl.u32 %v2265, 7
      %v2267 = vsub.s32 0, %v2266
      %v2268 = vrot.slane %v2263, %v2267
      %v2272 = vcombine.low %v2255, %v2256
      %v2273 = vsel %vm673, %v2272, 0
      %2275 = vmatprep.subr.mxu0 0.0
      %2276 = vmatpush1.msra.mxu0 %v2257
      %2277 = vmatprep.subr.mxu0 0.0
      %2278 = vmatpush1.msra.mxu0 %v2258
      %2279 = vmatprep.subr.mxu0 0.0
      %2280 = vmatpush1.msra.mxu0 %v2259
      %2281 = vmatprep.subr.mxu0 0.0
      %2282 = vmatpush1.msra.mxu0 %v2260
      %2283 = vmatprep.subr.mxu0 0.0
      %2284 = vmatpush1.msra.mxu0 %v2261
      %2285 = vmatprep.subr.mxu0 0.0
      %2286 = vmatpush1.msra.mxu0 %v2262
      %2287 = vmatprep.subr.mxu0 0.0
      %2288 = vmatpush1.msra.mxu0 0.0
      %2289 = vmatprep.subr.mxu0 0.0
      %2290 = vmatpush1.msra.mxu0 0.0
      %2291 = vmatprep.subr.mxu0 0.0
      %2292 = vmatpush1.msra.mxu0 0.0
      %2293 = vmatprep.subr.mxu0 0.0
      %2294 = vmatpush1.msra.mxu0 0.0
      %2295 = vmatprep.subr.mxu0 0.0
      %2296 = vmatpush1.msra.mxu0 0.0
      %2297 = vmatprep.subr.mxu0 0.0
      %2298 = vmatpush1.msra.mxu0 0.0
      %2299 = vmatprep.subr.mxu0 0.0
      %2300 = vmatpush1.msra.mxu0 0.0
      %2301 = vmatprep.subr.mxu0 0.0
      %2302 = vmatpush1.msra.mxu0 0.0
      %2303 = vmatprep.subr.mxu0 0.0
      %2304 = vmatpush1.msra.mxu0 0.0
      %2305 = vmatprep.subr.mxu0 0.0
      %2306 = vmatpush1.msra.mxu0 0.0
      %2307 = vmatprep.subr.mxu0 0.0
      %2308 = vmatpush1.msra.mxu0 0.0
      %2309 = vmatprep.subr.mxu0 0.0
      %2310 = vmatpush1.msra.mxu0 0.0
      %2311 = vmatprep.subr.mxu0 0.0
      %2312 = vmatpush1.msra.mxu0 0.0
      %2313 = vmatprep.subr.mxu0 0.0
      %2314 = vmatpush1.msra.mxu0 0.0
      %2315 = vmatprep.subr.mxu0 0.0
      %2316 = vmatpush1.msra.mxu0 0.0
      %2317 = vmatprep.subr.mxu0 0.0
      %2318 = vmatpush1.msra.mxu0 0.0
      %2319 = vmatprep.subr.mxu0 0.0
      %2320 = vmatpush1.msra.mxu0 0.0
      %2321 = vmatprep.subr.mxu0 0.0
      %2322 = vmatpush1.msra.mxu0 0.0
      %2323 = vmatprep.subr.mxu0 0.0
      %2324 = vmatpush1.msra.mxu0 0.0
      %2325 = vmatprep.subr.mxu0 0.0
      %2326 = vmatpush1.msra.mxu0 0.0
      %2327 = vmatprep.subr.mxu0 0.0
      %2328 = vmatpush1.msra.mxu0 0.0
      %2329 = vmatprep.subr.mxu0 0.0
      %2330 = vmatpush1.msra.mxu0 0.0
      %2331 = vmatprep.subr.mxu0 0.0
      %2332 = vmatpush1.msra.mxu0 0.0
      %2333 = vmatprep.subr.mxu0 0.0
      %2334 = vmatpush1.msra.mxu0 0.0
      %2335 = vmatprep.subr.mxu0 0.0
      %2336 = vmatpush1.msra.mxu0 0.0
      %2337 = vmatprep.subr.mxu0 0.0
      %2338 = vmatpush1.msra.mxu0 0.0
      %2339 = vmatprep.mubr.f32.mxu0 0.0
      %2340 = vmatmul.mubr.f32.gmra.mrb[0].mxu0 %v2273
      %v2341 = vpop.f32.mrb[0].mxu0
      %v2342 = vadd.f32 %v2268, %v2341
      %v2343 = vpop.f32.mrb[0].mxu0
      %2344 = vdwg.mxu0
      %v2345 = vld [vmem:[%s10] sm:$0xff]
      %v2346 = vld [vmem:[%s10 + $0x8] sm:$0xff]
      %v2347 = vld [vmem:[%s10 + $0x10] sm:$0xff]
      %v2348 = vld [vmem:[%s10 + $0x18] sm:$0xff]
      %v2349 = vld [vmem:[%s10 + $0x20] sm:$0xff]
      %v2350 = vld [vmem:[%s10 + $0x28] sm:$0xff]
      %2351 = vmatprep.subr.mxu0 0.0
      %2352 = vmatpush1.msra.mxu0 %v2345
      %2353 = vmatprep.subr.mxu0 0.0
      %2354 = vmatpush1.msra.mxu0 %v2346
      %2355 = vmatprep.subr.mxu0 0.0
      %2356 = vmatpush1.msra.mxu0 %v2347
      %2357 = vmatprep.subr.mxu0 0.0
      %2358 = vmatpush1.msra.mxu0 %v2348
      %2359 = vmatprep.subr.mxu0 0.0
      %2360 = vmatpush1.msra.mxu0 %v2349
      %2361 = vmatprep.subr.mxu0 0.0
      %2362 = vmatpush1.msra.mxu0 %v2350
      %2363 = vmatprep.subr.mxu0 0.0
      %2364 = vmatpush1.msra.mxu0 0.0
      %2365 = vmatprep.subr.mxu0 0.0
      %2366 = vmatpush1.msra.mxu0 0.0
      %2367 = vmatprep.subr.mxu0 0.0
      %2368 = vmatpush1.msra.mxu0 0.0
      %2369 = vmatprep.subr.mxu0 0.0
      %2370 = vmatpush1.msra.mxu0 0.0
      %2371 = vmatprep.subr.mxu0 0.0
      %2372 = vmatpush1.msra.mxu0 0.0
      %2373 = vmatprep.subr.mxu0 0.0
      %2374 = vmatpush1.msra.mxu0 0.0
      %2375 = vmatprep.subr.mxu0 0.0
      %2376 = vmatpush1.msra.mxu0 0.0
      %2377 = vmatprep.subr.mxu0 0.0
      %2378 = vmatpush1.msra.mxu0 0.0
      %2379 = vmatprep.subr.mxu0 0.0
      %2380 = vmatpush1.msra.mxu0 0.0
      %2381 = vmatprep.subr.mxu0 0.0
      %2382 = vmatpush1.msra.mxu0 0.0
      %2383 = vmatprep.subr.mxu0 0.0
      %2384 = vmatpush1.msra.mxu0 0.0
      %2385 = vmatprep.subr.mxu0 0.0
      %2386 = vmatpush1.msra.mxu0 0.0
      %2387 = vmatprep.subr.mxu0 0.0
      %2388 = vmatpush1.msra.mxu0 0.0
      %2389 = vmatprep.subr.mxu0 0.0
      %2390 = vmatpush1.msra.mxu0 0.0
      %2391 = vmatprep.subr.mxu0 0.0
      %2392 = vmatpush1.msra.mxu0 0.0
      %2393 = vmatprep.subr.mxu0 0.0
      %2394 = vmatpush1.msra.mxu0 0.0
      %2395 = vmatprep.subr.mxu0 0.0
      %2396 = vmatpush1.msra.mxu0 0.0
      %2397 = vmatprep.subr.mxu0 0.0
      %2398 = vmatpush1.msra.mxu0 0.0
      %2399 = vmatprep.subr.mxu0 0.0
      %2400 = vmatpush1.msra.mxu0 0.0
      %2401 = vmatprep.subr.mxu0 0.0
      %2402 = vmatpush1.msra.mxu0 0.0
      %2403 = vmatprep.subr.mxu0 0.0
      %2404 = vmatpush1.msra.mxu0 0.0
      %2405 = vmatprep.subr.mxu0 0.0
      %2406 = vmatpush1.msra.mxu0 0.0
      %2407 = vmatprep.subr.mxu0 0.0
      %2408 = vmatpush1.msra.mxu0 0.0
      %2409 = vmatprep.subr.mxu0 0.0
      %2410 = vmatpush1.msra.mxu0 0.0
      %2411 = vmatprep.subr.mxu0 0.0
      %2412 = vmatpush1.msra.mxu0 0.0
      %2413 = vmatprep.subr.mxu0 0.0
      %2414 = vmatpush1.msra.mxu0 0.0
      %2415 = vmatprep.mubr.f32.mxu0 0.0
      %2416 = vmatmul.mubr.f32.gmra.mrb[0].mxu0 %v817
      %v2417 = vpop.f32.mrb[0].mxu0
      %v2418 = vadd.f32 0.0, %v2417
      %v2419 = vpop.f32.mrb[0].mxu0
      %2420 = vdwg.mxu0
      %v2421 = vld [vmem:[%s11] sm:$0xff]
      %v2422 = vld [vmem:[%s11 + $0x8] sm:$0xff]
      %v2423 = vld [vmem:[%s11 + $0x10] sm:$0xff]
      %v2424 = vld [vmem:[%s11 + $0x18] sm:$0xff]
      %v2425 = vld [vmem:[%s11 + $0x20] sm:$0xff]
      %v2426 = vld [vmem:[%s11 + $0x28] sm:$0xff]
      %2427 = vmatprep.subr.mxu0 0.0
      %2428 = vmatpush1.msra.mxu0 %v2421
      %2429 = vmatprep.subr.mxu0 0.0
      %2430 = vmatpush1.msra.mxu0 %v2422
      %2431 = vmatprep.subr.mxu0 0.0
      %2432 = vmatpush1.msra.mxu0 %v2423
      %2433 = vmatprep.subr.mxu0 0.0
      %2434 = vmatpush1.msra.mxu0 %v2424
      %2435 = vmatprep.subr.mxu0 0.0
      %2436 = vmatpush1.msra.mxu0 %v2425
      %2437 = vmatprep.subr.mxu0 0.0
      %2438 = vmatpush1.msra.mxu0 %v2426
      %2439 = vmatprep.subr.mxu0 0.0
      %2440 = vmatpush1.msra.mxu0 0.0
      %2441 = vmatprep.subr.mxu0 0.0
      %2442 = vmatpush1.msra.mxu0 0.0
      %2443 = vmatprep.subr.mxu0 0.0
      %2444 = vmatpush1.msra.mxu0 0.0
      %2445 = vmatprep.subr.mxu0 0.0
      %2446 = vmatpush1.msra.mxu0 0.0
      %2447 = vmatprep.subr.mxu0 0.0
      %2448 = vmatpush1.msra.mxu0 0.0
      %2449 = vmatprep.subr.mxu0 0.0
      %2450 = vmatpush1.msra.mxu0 0.0
      %2451 = vmatprep.subr.mxu0 0.0
      %2452 = vmatpush1.msra.mxu0 0.0
      %2453 = vmatprep.subr.mxu0 0.0
      %2454 = vmatpush1.msra.mxu0 0.0
      %2455 = vmatprep.subr.mxu0 0.0
      %2456 = vmatpush1.msra.mxu0 0.0
      %2457 = vmatprep.subr.mxu0 0.0
      %2458 = vmatpush1.msra.mxu0 0.0
      %2459 = vmatprep.subr.mxu0 0.0
      %2460 = vmatpush1.msra.mxu0 0.0
      %2461 = vmatprep.subr.mxu0 0.0
      %2462 = vmatpush1.msra.mxu0 0.0
      %2463 = vmatprep.subr.mxu0 0.0
      %2464 = vmatpush1.msra.mxu0 0.0
      %2465 = vmatprep.subr.mxu0 0.0
      %2466 = vmatpush1.msra.mxu0 0.0
      %2467 = vmatprep.subr.mxu0 0.0
      %2468 = vmatpush1.msra.mxu0 0.0
      %2469 = vmatprep.subr.mxu0 0.0
      %2470 = vmatpush1.msra.mxu0 0.0
      %2471 = vmatprep.subr.mxu0 0.0
      %2472 = vmatpush1.msra.mxu0 0.0
      %2473 = vmatprep.subr.mxu0 0.0
      %2474 = vmatpush1.msra.mxu0 0.0
      %2475 = vmatprep.subr.mxu0 0.0
      %2476 = vmatpush1.msra.mxu0 0.0
      %2477 = vmatprep.subr.mxu0 0.0
      %2478 = vmatpush1.msra.mxu0 0.0
      %2479 = vmatprep.subr.mxu0 0.0
      %2480 = vmatpush1.msra.mxu0 0.0
      %2481 = vmatprep.subr.mxu0 0.0
      %2482 = vmatpush1.msra.mxu0 0.0
      %2483 = vmatprep.subr.mxu0 0.0
      %2484 = vmatpush1.msra.mxu0 0.0
      %2485 = vmatprep.subr.mxu0 0.0
      %2486 = vmatpush1.msra.mxu0 0.0
      %2487 = vmatprep.subr.mxu0 0.0
      %2488 = vmatpush1.msra.mxu0 0.0
      %2489 = vmatprep.subr.mxu0 0.0
      %2490 = vmatpush1.msra.mxu0 0.0
      %2491 = vmatprep.mubr.f32.mxu0 0.0
      %2492 = vmatmul.mubr.f32.gmra.mrb[0].mxu0 %v738
      %v2493 = vpop.f32.mrb[0].mxu0
      %v2494 = vadd.f32 0.0, %v2493
      %v2495 = vpop.f32.mrb[0].mxu0
      %2496 = vdwg.mxu0
      %v2498 = vcombine.high %v2418, %v2418
      %v2500 = vcombine.high %v2494, %v2494
      %v2501 = vsel %vm893, %v2418, 0
      %v2503 = vsel %vm893, %v2494, 0
      %2505 = vmatprep.subr.mxu0 0.0
      %2506 = vmatpush1.xpose.msra.mxu0 %v2503
      %2507 = vmatprep.subr.mxu0 0.0
      %2508 = vmatpush1.xpose.msra.mxu0 0.0
      %2509 = vmatprep.subr.mxu0 0.0
      %2510 = vmatpush1.xpose.msra.mxu0 0.0
      %2511 = vmatprep.subr.mxu0 0.0
      %2512 = vmatpush1.xpose.msra.mxu0 0.0
      %2513 = vmatprep.subr.mxu0 0.0
      %2514 = vmatpush1.xpose.msra.mxu0 0.0
      %2515 = vmatprep.subr.mxu0 0.0
      %2516 = vmatpush1.xpose.msra.mxu0 0.0
      %2517 = vmatprep.subr.mxu0 0.0
      %2518 = vmatpush1.xpose.msra.mxu0 0.0
      %2519 = vmatprep.subr.mxu0 0.0
      %2520 = vmatpush1.xpose.msra.mxu0 0.0
      %2521 = vmatprep.subr.mxu0 0.0
      %2522 = vmatpush1.xpose.msra.mxu0 0.0
      %2523 = vmatprep.subr.mxu0 0.0
      %2524 = vmatpush1.xpose.msra.mxu0 0.0
      %2525 = vmatprep.subr.mxu0 0.0
      %2526 = vmatpush1.xpose.msra.mxu0 0.0
      %2527 = vmatprep.subr.mxu0 0.0
      %2528 = vmatpush1.xpose.msra.mxu0 0.0
      %2529 = vmatprep.subr.mxu0 0.0
      %2530 = vmatpush1.xpose.msra.mxu0 0.0
      %2531 = vmatprep.subr.mxu0 0.0
      %2532 = vmatpush1.xpose.msra.mxu0 0.0
      %2533 = vmatprep.subr.mxu0 0.0
      %2534 = vmatpush1.xpose.msra.mxu0 0.0
      %2535 = vmatprep.subr.mxu0 0.0
      %2536 = vmatpush1.xpose.msra.mxu0 0.0
      %2537 = vmatprep.subr.mxu0 0.0
      %2538 = vmatpush1.xpose.msra.mxu0 0.0
      %2539 = vmatprep.subr.mxu0 0.0
      %2540 = vmatpush1.xpose.msra.mxu0 0.0
      %2541 = vmatprep.subr.mxu0 0.0
      %2542 = vmatpush1.xpose.msra.mxu0 0.0
      %2543 = vmatprep.subr.mxu0 0.0
      %2544 = vmatpush1.xpose.msra.mxu0 0.0
      %2545 = vmatprep.subr.mxu0 0.0
      %2546 = vmatpush1.xpose.msra.mxu0 0.0
      %2547 = vmatprep.subr.mxu0 0.0
      %2548 = vmatpush1.xpose.msra.mxu0 0.0
      %2549 = vmatprep.subr.mxu0 0.0
      %2550 = vmatpush1.xpose.msra.mxu0 0.0
      %2551 = vmatprep.subr.mxu0 0.0
      %2552 = vmatpush1.xpose.msra.mxu0 0.0
      %2553 = vmatprep.subr.mxu0 0.0
      %2554 = vmatpush1.xpose.msra.mxu0 0.0
      %2555 = vmatprep.subr.mxu0 0.0
      %2556 = vmatpush1.xpose.msra.mxu0 0.0
      %2557 = vmatprep.subr.mxu0 0.0
      %2558 = vmatpush1.xpose.msra.mxu0 0.0
      %2559 = vmatprep.subr.mxu0 0.0
      %2560 = vmatpush1.xpose.msra.mxu0 0.0
      %2561 = vmatprep.subr.mxu0 0.0
      %2562 = vmatpush1.xpose.msra.mxu0 0.0
      %2563 = vmatprep.subr.mxu0 0.0
      %2564 = vmatpush1.xpose.msra.mxu0 0.0
      %2565 = vmatprep.subr.mxu0 0.0
      %2566 = vmatpush1.xpose.msra.mxu0 0.0
      %2567 = vmatprep.subr.mxu0 0.0
      %2568 = vmatpush1.xpose.msra.mxu0 0.0
      %2569 = vmatprep.mubr.f32.mxu0 0.0
      %2570 = vmatmul.mubr.f32.gmra.mrb[0].mxu0 %v2501
      %v2571 = vpop.f32.mrb[0].mxu0
      %v2572 = vadd.f32 0.0, %v2571
      %v2573 = vpop.f32.mrb[0].mxu0
      %2574 = vdwg.mxu0
      %v2575 = vsel %vm893, %v2498, 0
      %v2577 = vsel %vm893, %v2500, 0
      %2579 = vmatprep.subr.mxu0 0.0
      %2580 = vmatpush1.xpose.msra.mxu0 %v2577
      %2581 = vmatprep.subr.mxu0 0.0
      %2582 = vmatpush1.xpose.msra.mxu0 0.0
      %2583 = vmatprep.subr.mxu0 0.0
      %2584 = vmatpush1.xpose.msra.mxu0 0.0
      %2585 = vmatprep.subr.mxu0 0.0
      %2586 = vmatpush1.xpose.msra.mxu0 0.0
      %2587 = vmatprep.subr.mxu0 0.0
      %2588 = vmatpush1.xpose.msra.mxu0 0.0
      %2589 = vmatprep.subr.mxu0 0.0
      %2590 = vmatpush1.xpose.msra.mxu0 0.0
      %2591 = vmatprep.subr.mxu0 0.0
      %2592 = vmatpush1.xpose.msra.mxu0 0.0
      %2593 = vmatprep.subr.mxu0 0.0
      %2594 = vmatpush1.xpose.msra.mxu0 0.0
      %2595 = vmatprep.subr.mxu0 0.0
      %2596 = vmatpush1.xpose.msra.mxu0 0.0
      %2597 = vmatprep.subr.mxu0 0.0
      %2598 = vmatpush1.xpose.msra.mxu0 0.0
      %2599 = vmatprep.subr.mxu0 0.0
      %2600 = vmatpush1.xpose.msra.mxu0 0.0
      %2601 = vmatprep.subr.mxu0 0.0
      %2602 = vmatpush1.xpose.msra.mxu0 0.0
      %2603 = vmatprep.subr.mxu0 0.0
      %2604 = vmatpush1.xpose.msra.mxu0 0.0
      %2605 = vmatprep.subr.mxu0 0.0
      %2606 = vmatpush1.xpose.msra.mxu0 0.0
      %2607 = vmatprep.subr.mxu0 0.0
      %2608 = vmatpush1.xpose.msra.mxu0 0.0
      %2609 = vmatprep.subr.mxu0 0.0
      %2610 = vmatpush1.xpose.msra.mxu0 0.0
      %2611 = vmatprep.subr.mxu0 0.0
      %2612 = vmatpush1.xpose.msra.mxu0 0.0
      %2613 = vmatprep.subr.mxu0 0.0
      %2614 = vmatpush1.xpose.msra.mxu0 0.0
      %2615 = vmatprep.subr.mxu0 0.0
      %2616 = vmatpush1.xpose.msra.mxu0 0.0
      %2617 = vmatprep.subr.mxu0 0.0
      %2618 = vmatpush1.xpose.msra.mxu0 0.0
      %2619 = vmatprep.subr.mxu0 0.0
      %2620 = vmatpush1.xpose.msra.mxu0 0.0
      %2621 = vmatprep.subr.mxu0 0.0
      %2622 = vmatpush1.xpose.msra.mxu0 0.0
      %2623 = vmatprep.subr.mxu0 0.0
      %2624 = vmatpush1.xpose.msra.mxu0 0.0
      %2625 = vmatprep.subr.mxu0 0.0
      %2626 = vmatpush1.xpose.msra.mxu0 0.0
      %2627 = vmatprep.subr.mxu0 0.0
      %2628 = vmatpush1.xpose.msra.mxu0 0.0
      %2629 = vmatprep.subr.mxu0 0.0
      %2630 = vmatpush1.xpose.msra.mxu0 0.0
      %2631 = vmatprep.subr.mxu0 0.0
      %2632 = vmatpush1.xpose.msra.mxu0 0.0
      %2633 = vmatprep.subr.mxu0 0.0
      %2634 = vmatpush1.xpose.msra.mxu0 0.0
      %2635 = vmatprep.subr.mxu0 0.0
      %2636 = vmatpush1.xpose.msra.mxu0 0.0
      %2637 = vmatprep.subr.mxu0 0.0
      %2638 = vmatpush1.xpose.msra.mxu0 0.0
      %2639 = vmatprep.subr.mxu0 0.0
      %2640 = vmatpush1.xpose.msra.mxu0 0.0
      %2641 = vmatprep.subr.mxu0 0.0
      %2642 = vmatpush1.xpose.msra.mxu0 0.0
      %2643 = vmatprep.mubr.f32.mxu0 0.0
      %2644 = vmatmul.mubr.f32.gmra.mrb[0].mxu0 %v2575
      %v2645 = vpop.f32.mrb[0].mxu0
      %v2646 = vadd.f32 0.0, %v2645
      %v2647 = vpop.f32.mrb[0].mxu0
      %2648 = vdwg.mxu0
      %v2649 = vmul.f32 %v2572, 0.28867513
      %v2650 = vmul.f32 %v2646, 0.28867513
      %v2651 = vsel %vm1044, %v2649, -inf
      %2652 = vmax.xlane.f32.xlu0 %v2651
      %v2653 = vpop.xlane.xlu0 %2652
      %v2654 = vsel %vm1044, %v2650, -inf
      %2655 = vmax.xlane.f32.xlu0 %v2654
      %v2656 = vpop.xlane.xlu0 %2655
      %v2657 = vsub.f32 %v2649, %v2653
      %v2658 = vsub.f32 %v2650, %v2656
      %v2659 = vmul.f32 %v2657, 1.442695
      %v2660 = vpow.pop %v2659
      %v2661 = vmul.f32 %v2658, 1.442695
      %v2662 = vpow.pop %v2661
      %v2663 = vsel %vm1044, %v2660, 0.0
      %2664 = vadd.xlane.f32.xlu0 %v2663
      %v2665 = vpop.xlane.xlu0 %2664
      %v2666 = vsel %vm1044, %v2662, 0.0
      %2667 = vadd.xlane.f32.xlu0 %v2666
      %v2668 = vpop.xlane.xlu0 %2667
      %v2669 = vrcp.pop %v2665
      %v2670 = vrcp.pop %v2668
      %v2671 = vmul.f32 %v2660, %v2669
      %v2672 = vmul.f32 %v2662, %v2670
      %2673 = vrot.lane.b32.xlu0 %v2494, 80
      %v2674 = vpop.permute.xlu0 %2673
      %v2676 = vsel %vm1069, %v2671, 0
      %v2678 = vsel %vm1073, %v2674, 0
      %2680 = vmatprep.subr.mxu0 0.0
      %2681 = vmatpush1.msra.mxu0 %v2678
      %2682 = vmatprep.subr.mxu0 0.0
      %2683 = vmatpush1.msra.mxu0 0.0
      %2684 = vmatprep.subr.mxu0 0.0
      %2685 = vmatpush1.msra.mxu0 0.0
      %2686 = vmatprep.subr.mxu0 0.0
      %2687 = vmatpush1.msra.mxu0 0.0
      %2688 = vmatprep.subr.mxu0 0.0
      %2689 = vmatpush1.msra.mxu0 0.0
      %2690 = vmatprep.subr.mxu0 0.0
      %2691 = vmatpush1.msra.mxu0 0.0
      %2692 = vmatprep.subr.mxu0 0.0
      %2693 = vmatpush1.msra.mxu0 0.0
      %2694 = vmatprep.subr.mxu0 0.0
      %2695 = vmatpush1.msra.mxu0 0.0
      %2696 = vmatprep.subr.mxu0 0.0
      %2697 = vmatpush1.msra.mxu0 0.0
      %2698 = vmatprep.subr.mxu0 0.0
      %2699 = vmatpush1.msra.mxu0 0.0
      %2700 = vmatprep.subr.mxu0 0.0
      %2701 = vmatpush1.msra.mxu0 0.0
      %2702 = vmatprep.subr.mxu0 0.0
      %2703 = vmatpush1.msra.mxu0 0.0
      %2704 = vmatprep.subr.mxu0 0.0
      %2705 = vmatpush1.msra.mxu0 0.0
      %2706 = vmatprep.subr.mxu0 0.0
      %2707 = vmatpush1.msra.mxu0 0.0
      %2708 = vmatprep.subr.mxu0 0.0
      %2709 = vmatpush1.msra.mxu0 0.0
      %2710 = vmatprep.subr.mxu0 0.0
      %2711 = vmatpush1.msra.mxu0 0.0
      %2712 = vmatprep.subr.mxu0 0.0
      %2713 = vmatpush1.msra.mxu0 0.0
      %2714 = vmatprep.subr.mxu0 0.0
      %2715 = vmatpush1.msra.mxu0 0.0
      %2716 = vmatprep.subr.mxu0 0.0
      %2717 = vmatpush1.msra.mxu0 0.0
      %2718 = vmatprep.subr.mxu0 0.0
      %2719 = vmatpush1.msra.mxu0 0.0
      %2720 = vmatprep.subr.mxu0 0.0
      %2721 = vmatpush1.msra.mxu0 0.0
      %2722 = vmatprep.subr.mxu0 0.0
      %2723 = vmatpush1.msra.mxu0 0.0
      %2724 = vmatprep.subr.mxu0 0.0
      %2725 = vmatpush1.msra.mxu0 0.0
      %2726 = vmatprep.subr.mxu0 0.0
      %2727 = vmatpush1.msra.mxu0 0.0
      %2728 = vmatprep.subr.mxu0 0.0
      %2729 = vmatpush1.msra.mxu0 0.0
      %2730 = vmatprep.subr.mxu0 0.0
      %2731 = vmatpush1.msra.mxu0 0.0
      %2732 = vmatprep.subr.mxu0 0.0
      %2733 = vmatpush1.msra.mxu0 0.0
      %2734 = vmatprep.subr.mxu0 0.0
      %2735 = vmatpush1.msra.mxu0 0.0
      %2736 = vmatprep.subr.mxu0 0.0
      %2737 = vmatpush1.msra.mxu0 0.0
      %2738 = vmatprep.subr.mxu0 0.0
      %2739 = vmatpush1.msra.mxu0 0.0
      %2740 = vmatprep.subr.mxu0 0.0
      %2741 = vmatpush1.msra.mxu0 0.0
      %2742 = vmatprep.subr.mxu0 0.0
      %2743 = vmatpush1.msra.mxu0 0.0
      %2744 = vmatprep.mubr.f32.mxu0 0.0
      %2745 = vmatmul.mubr.f32.gmra.mrb[0].mxu0 %v2676
      %v2746 = vpop.f32.mrb[0].mxu0
      %v2747 = vadd.f32 0.0, %v2746
      %v2748 = vpop.f32.mrb[0].mxu0
      %2749 = vdwg.mxu0
      %2750 = vrot.lane.b32.xlu0 %v2500, 80
      %v2751 = vpop.permute.xlu0 %2750
      %v2753 = vsel %vm1069, %v2672, 0
      %v2755 = vsel %vm1073, %v2751, 0
      %2757 = vmatprep.subr.mxu0 0.0
      %2758 = vmatpush1.msra.mxu0 %v2755
      %2759 = vmatprep.subr.mxu0 0.0
      %2760 = vmatpush1.msra.mxu0 0.0
      %2761 = vmatprep.subr.mxu0 0.0
      %2762 = vmatpush1.msra.mxu0 0.0
      %2763 = vmatprep.subr.mxu0 0.0
      %2764 = vmatpush1.msra.mxu0 0.0
      %2765 = vmatprep.subr.mxu0 0.0
      %2766 = vmatpush1.msra.mxu0 0.0
      %2767 = vmatprep.subr.mxu0 0.0
      %2768 = vmatpush1.msra.mxu0 0.0
      %2769 = vmatprep.subr.mxu0 0.0
      %2770 = vmatpush1.msra.mxu0 0.0
      %2771 = vmatprep.subr.mxu0 0.0
      %2772 = vmatpush1.msra.mxu0 0.0
      %2773 = vmatprep.subr.mxu0 0.0
      %2774 = vmatpush1.msra.mxu0 0.0
      %2775 = vmatprep.subr.mxu0 0.0
      %2776 = vmatpush1.msra.mxu0 0.0
      %2777 = vmatprep.subr.mxu0 0.0
      %2778 = vmatpush1.msra.mxu0 0.0
      %2779 = vmatprep.subr.mxu0 0.0
      %2780 = vmatpush1.msra.mxu0 0.0
      %2781 = vmatprep.subr.mxu0 0.0
      %2782 = vmatpush1.msra.mxu0 0.0
      %2783 = vmatprep.subr.mxu0 0.0
      %2784 = vmatpush1.msra.mxu0 0.0
      %2785 = vmatprep.subr.mxu0 0.0
      %2786 = vmatpush1.msra.mxu0 0.0
      %2787 = vmatprep.subr.mxu0 0.0
      %2788 = vmatpush1.msra.mxu0 0.0
      %2789 = vmatprep.subr.mxu0 0.0
      %2790 = vmatpush1.msra.mxu0 0.0
      %2791 = vmatprep.subr.mxu0 0.0
      %2792 = vmatpush1.msra.mxu0 0.0
      %2793 = vmatprep.subr.mxu0 0.0
      %2794 = vmatpush1.msra.mxu0 0.0
      %2795 = vmatprep.subr.mxu0 0.0
      %2796 = vmatpush1.msra.mxu0 0.0
      %2797 = vmatprep.subr.mxu0 0.0
      %2798 = vmatpush1.msra.mxu0 0.0
      %2799 = vmatprep.subr.mxu0 0.0
      %2800 = vmatpush1.msra.mxu0 0.0
      %2801 = vmatprep.subr.mxu0 0.0
      %2802 = vmatpush1.msra.mxu0 0.0
      %2803 = vmatprep.subr.mxu0 0.0
      %2804 = vmatpush1.msra.mxu0 0.0
      %2805 = vmatprep.subr.mxu0 0.0
      %2806 = vmatpush1.msra.mxu0 0.0
      %2807 = vmatprep.subr.mxu0 0.0
      %2808 = vmatpush1.msra.mxu0 0.0
      %2809 = vmatprep.subr.mxu0 0.0
      %2810 = vmatpush1.msra.mxu0 0.0
      %2811 = vmatprep.subr.mxu0 0.0
      %2812 = vmatpush1.msra.mxu0 0.0
      %2813 = vmatprep.subr.mxu0 0.0
      %2814 = vmatpush1.msra.mxu0 0.0
      %2815 = vmatprep.subr.mxu0 0.0
      %2816 = vmatpush1.msra.mxu0 0.0
      %2817 = vmatprep.subr.mxu0 0.0
      %2818 = vmatpush1.msra.mxu0 0.0
      %2819 = vmatprep.subr.mxu0 0.0
      %2820 = vmatpush1.msra.mxu0 0.0
      %2821 = vmatprep.mubr.f32.mxu0 0.0
      %2822 = vmatmul.mubr.f32.gmra.mrb[0].mxu0 %v2753
      %v2823 = vpop.f32.mrb[0].mxu0
      %v2824 = vadd.f32 0.0, %v2823
      %v2825 = vpop.f32.mrb[0].mxu0
      %2826 = vdwg.mxu0
      %2827 = vrot.lane.b32.xlu0 %v2418, 116
      %v2828 = vpop.permute.xlu0 %2827
      %2829 = vrot.lane.b32.xlu0 %v2494, 116
      %v2830 = vpop.permute.xlu0 %2829
      %v2831 = vsel %vm893, %v2828, 0
      %v2833 = vsel %vm893, %v2830, 0
      %2835 = vmatprep.subr.mxu0 0.0
      %2836 = vmatpush1.xpose.msra.mxu0 %v2833
      %2837 = vmatprep.subr.mxu0 0.0
      %2838 = vmatpush1.xpose.msra.mxu0 0.0
      %2839 = vmatprep.subr.mxu0 0.0
      %2840 = vmatpush1.xpose.msra.mxu0 0.0
      %2841 = vmatprep.subr.mxu0 0.0
      %2842 = vmatpush1.xpose.msra.mxu0 0.0
      %2843 = vmatprep.subr.mxu0 0.0
      %2844 = vmatpush1.xpose.msra.mxu0 0.0
      %2845 = vmatprep.subr.mxu0 0.0
      %2846 = vmatpush1.xpose.msra.mxu0 0.0
      %2847 = vmatprep.subr.mxu0 0.0
      %2848 = vmatpush1.xpose.msra.mxu0 0.0
      %2849 = vmatprep.subr.mxu0 0.0
      %2850 = vmatpush1.xpose.msra.mxu0 0.0
      %2851 = vmatprep.subr.mxu0 0.0
      %2852 = vmatpush1.xpose.msra.mxu0 0.0
      %2853 = vmatprep.subr.mxu0 0.0
      %2854 = vmatpush1.xpose.msra.mxu0 0.0
      %2855 = vmatprep.subr.mxu0 0.0
      %2856 = vmatpush1.xpose.msra.mxu0 0.0
      %2857 = vmatprep.subr.mxu0 0.0
      %2858 = vmatpush1.xpose.msra.mxu0 0.0
      %2859 = vmatprep.subr.mxu0 0.0
      %2860 = vmatpush1.xpose.msra.mxu0 0.0
      %2861 = vmatprep.subr.mxu0 0.0
      %2862 = vmatpush1.xpose.msra.mxu0 0.0
      %2863 = vmatprep.subr.mxu0 0.0
      %2864 = vmatpush1.xpose.msra.mxu0 0.0
      %2865 = vmatprep.subr.mxu0 0.0
      %2866 = vmatpush1.xpose.msra.mxu0 0.0
      %2867 = vmatprep.subr.mxu0 0.0
      %2868 = vmatpush1.xpose.msra.mxu0 0.0
      %2869 = vmatprep.subr.mxu0 0.0
      %2870 = vmatpush1.xpose.msra.mxu0 0.0
      %2871 = vmatprep.subr.mxu0 0.0
      %2872 = vmatpush1.xpose.msra.mxu0 0.0
      %2873 = vmatprep.subr.mxu0 0.0
      %2874 = vmatpush1.xpose.msra.mxu0 0.0
      %2875 = vmatprep.subr.mxu0 0.0
      %2876 = vmatpush1.xpose.msra.mxu0 0.0
      %2877 = vmatprep.subr.mxu0 0.0
      %2878 = vmatpush1.xpose.msra.mxu0 0.0
      %2879 = vmatprep.subr.mxu0 0.0
      %2880 = vmatpush1.xpose.msra.mxu0 0.0
      %2881 = vmatprep.subr.mxu0 0.0
      %2882 = vmatpush1.xpose.msra.mxu0 0.0
      %2883 = vmatprep.subr.mxu0 0.0
      %2884 = vmatpush1.xpose.msra.mxu0 0.0
      %2885 = vmatprep.subr.mxu0 0.0
      %2886 = vmatpush1.xpose.msra.mxu0 0.0
      %2887 = vmatprep.subr.mxu0 0.0
      %2888 = vmatpush1.xpose.msra.mxu0 0.0
      %2889 = vmatprep.subr.mxu0 0.0
      %2890 = vmatpush1.xpose.msra.mxu0 0.0
      %2891 = vmatprep.subr.mxu0 0.0
      %2892 = vmatpush1.xpose.msra.mxu0 0.0
      %2893 = vmatprep.subr.mxu0 0.0
      %2894 = vmatpush1.xpose.msra.mxu0 0.0
      %2895 = vmatprep.subr.mxu0 0.0
      %2896 = vmatpush1.xpose.msra.mxu0 0.0
      %2897 = vmatprep.subr.mxu0 0.0
      %2898 = vmatpush1.xpose.msra.mxu0 0.0
      %2899 = vmatprep.mubr.f32.mxu0 0.0
      %2900 = vmatmul.mubr.f32.gmra.mrb[0].mxu0 %v2831
      %v2901 = vpop.f32.mrb[0].mxu0
      %v2902 = vadd.f32 0.0, %v2901
      %v2903 = vpop.f32.mrb[0].mxu0
      %2904 = vdwg.mxu0
      %2905 = vrot.lane.b32.xlu0 %v2498, 116
      %v2906 = vpop.permute.xlu0 %2905
      %2907 = vrot.lane.b32.xlu0 %v2500, 116
      %v2908 = vpop.permute.xlu0 %2907
      %v2909 = vsel %vm893, %v2906, 0
      %v2911 = vsel %vm893, %v2908, 0
      %2913 = vmatprep.subr.mxu0 0.0
      %2914 = vmatpush1.xpose.msra.mxu0 %v2911
      %2915 = vmatprep.subr.mxu0 0.0
      %2916 = vmatpush1.xpose.msra.mxu0 0.0
      %2917 = vmatprep.subr.mxu0 0.0
      %2918 = vmatpush1.xpose.msra.mxu0 0.0
      %2919 = vmatprep.subr.mxu0 0.0
      %2920 = vmatpush1.xpose.msra.mxu0 0.0
      %2921 = vmatprep.subr.mxu0 0.0
      %2922 = vmatpush1.xpose.msra.mxu0 0.0
      %2923 = vmatprep.subr.mxu0 0.0
      %2924 = vmatpush1.xpose.msra.mxu0 0.0
      %2925 = vmatprep.subr.mxu0 0.0
      %2926 = vmatpush1.xpose.msra.mxu0 0.0
      %2927 = vmatprep.subr.mxu0 0.0
      %2928 = vmatpush1.xpose.msra.mxu0 0.0
      %2929 = vmatprep.subr.mxu0 0.0
      %2930 = vmatpush1.xpose.msra.mxu0 0.0
      %2931 = vmatprep.subr.mxu0 0.0
      %2932 = vmatpush1.xpose.msra.mxu0 0.0
      %2933 = vmatprep.subr.mxu0 0.0
      %2934 = vmatpush1.xpose.msra.mxu0 0.0
      %2935 = vmatprep.subr.mxu0 0.0
      %2936 = vmatpush1.xpose.msra.mxu0 0.0
      %2937 = vmatprep.subr.mxu0 0.0
      %2938 = vmatpush1.xpose.msra.mxu0 0.0
      %2939 = vmatprep.subr.mxu0 0.0
      %2940 = vmatpush1.xpose.msra.mxu0 0.0
      %2941 = vmatprep.subr.mxu0 0.0
      %2942 = vmatpush1.xpose.msra.mxu0 0.0
      %2943 = vmatprep.subr.mxu0 0.0
      %2944 = vmatpush1.xpose.msra.mxu0 0.0
      %2945 = vmatprep.subr.mxu0 0.0
      %2946 = vmatpush1.xpose.msra.mxu0 0.0
      %2947 = vmatprep.subr.mxu0 0.0
      %2948 = vmatpush1.xpose.msra.mxu0 0.0
      %2949 = vmatprep.subr.mxu0 0.0
      %2950 = vmatpush1.xpose.msra.mxu0 0.0
      %2951 = vmatprep.subr.mxu0 0.0
      %2952 = vmatpush1.xpose.msra.mxu0 0.0
      %2953 = vmatprep.subr.mxu0 0.0
      %2954 = vmatpush1.xpose.msra.mxu0 0.0
      %2955 = vmatprep.subr.mxu0 0.0
      %2956 = vmatpush1.xpose.msra.mxu0 0.0
      %2957 = vmatprep.subr.mxu0 0.0
      %2958 = vmatpush1.xpose.msra.mxu0 0.0
      %2959 = vmatprep.subr.mxu0 0.0
      %2960 = vmatpush1.xpose.msra.mxu0 0.0
      %2961 = vmatprep.subr.mxu0 0.0
      %2962 = vmatpush1.xpose.msra.mxu0 0.0
      %2963 = vmatprep.subr.mxu0 0.0
      %2964 = vmatpush1.xpose.msra.mxu0 0.0
      %2965 = vmatprep.subr.mxu0 0.0
      %2966 = vmatpush1.xpose.msra.mxu0 0.0
      %2967 = vmatprep.subr.mxu0 0.0
      %2968 = vmatpush1.xpose.msra.mxu0 0.0
      %2969 = vmatprep.subr.mxu0 0.0
      %2970 = vmatpush1.xpose.msra.mxu0 0.0
      %2971 = vmatprep.subr.mxu0 0.0
      %2972 = vmatpush1.xpose.msra.mxu0 0.0
      %2973 = vmatprep.subr.mxu0 0.0
      %2974 = vmatpush1.xpose.msra.mxu0 0.0
      %2975 = vmatprep.subr.mxu0 0.0
      %2976 = vmatpush1.xpose.msra.mxu0 0.0
      %2977 = vmatprep.mubr.f32.mxu0 0.0
      %2978 = vmatmul.mubr.f32.gmra.mrb[0].mxu0 %v2909
      %v2979 = vpop.f32.mrb[0].mxu0
      %v2980 = vadd.f32 0.0, %v2979
      %v2981 = vpop.f32.mrb[0].mxu0
      %2982 = vdwg.mxu0
      %v2983 = vmul.f32 %v2902, 0.28867513
      %v2984 = vmul.f32 %v2980, 0.28867513
      %v2985 = vsel %vm1044, %v2983, -inf
      %2986 = vmax.xlane.f32.xlu0 %v2985
      %v2987 = vpop.xlane.xlu0 %2986
      %v2988 = vsel %vm1044, %v2984, -inf
      %2989 = vmax.xlane.f32.xlu0 %v2988
      %v2990 = vpop.xlane.xlu0 %2989
      %v2991 = vsub.f32 %v2983, %v2987
      %v2992 = vsub.f32 %v2984, %v2990
      %v2993 = vmul.f32 %v2991, 1.442695
      %v2994 = vpow.pop %v2993
      %v2995 = vmul.f32 %v2992, 1.442695
      %v2996 = vpow.pop %v2995
      %v2997 = vsel %vm1044, %v2994, 0.0
      %2998 = vadd.xlane.f32.xlu0 %v2997
      %v2999 = vpop.xlane.xlu0 %2998
      %v3000 = vsel %vm1044, %v2996, 0.0
      %3001 = vadd.xlane.f32.xlu0 %v3000
      %v3002 = vpop.xlane.xlu0 %3001
      %v3003 = vrcp.pop %v2999
      %v3004 = vrcp.pop %v3002
      %v3005 = vmul.f32 %v2994, %v3003
      %v3006 = vmul.f32 %v2996, %v3004
      %3007 = vrot.lane.b32.xlu0 %v2494, 68
      %v3008 = vpop.permute.xlu0 %3007
      %v3010 = vsel %vm1069, %v3005, 0
      %v3012 = vsel %vm1073, %v3008, 0
      %3014 = vmatprep.subr.mxu0 0.0
      %3015 = vmatpush1.msra.mxu0 %v3012
      %3016 = vmatprep.subr.mxu0 0.0
      %3017 = vmatpush1.msra.mxu0 0.0
      %3018 = vmatprep.subr.mxu0 0.0
      %3019 = vmatpush1.msra.mxu0 0.0
      %3020 = vmatprep.subr.mxu0 0.0
      %3021 = vmatpush1.msra.mxu0 0.0
      %3022 = vmatprep.subr.mxu0 0.0
      %3023 = vmatpush1.msra.mxu0 0.0
      %3024 = vmatprep.subr.mxu0 0.0
      %3025 = vmatpush1.msra.mxu0 0.0
      %3026 = vmatprep.subr.mxu0 0.0
      %3027 = vmatpush1.msra.mxu0 0.0
      %3028 = vmatprep.subr.mxu0 0.0
      %3029 = vmatpush1.msra.mxu0 0.0
      %3030 = vmatprep.subr.mxu0 0.0
      %3031 = vmatpush1.msra.mxu0 0.0
      %3032 = vmatprep.subr.mxu0 0.0
      %3033 = vmatpush1.msra.mxu0 0.0
      %3034 = vmatprep.subr.mxu0 0.0
      %3035 = vmatpush1.msra.mxu0 0.0
      %3036 = vmatprep.subr.mxu0 0.0
      %3037 = vmatpush1.msra.mxu0 0.0
      %3038 = vmatprep.subr.mxu0 0.0
      %3039 = vmatpush1.msra.mxu0 0.0
      %3040 = vmatprep.subr.mxu0 0.0
      %3041 = vmatpush1.msra.mxu0 0.0
      %3042 = vmatprep.subr.mxu0 0.0
      %3043 = vmatpush1.msra.mxu0 0.0
      %3044 = vmatprep.subr.mxu0 0.0
      %3045 = vmatpush1.msra.mxu0 0.0
      %3046 = vmatprep.subr.mxu0 0.0
      %3047 = vmatpush1.msra.mxu0 0.0
      %3048 = vmatprep.subr.mxu0 0.0
      %3049 = vmatpush1.msra.mxu0 0.0
      %3050 = vmatprep.subr.mxu0 0.0
      %3051 = vmatpush1.msra.mxu0 0.0
      %3052 = vmatprep.subr.mxu0 0.0
      %3053 = vmatpush1.msra.mxu0 0.0
      %3054 = vmatprep.subr.mxu0 0.0
      %3055 = vmatpush1.msra.mxu0 0.0
      %3056 = vmatprep.subr.mxu0 0.0
      %3057 = vmatpush1.msra.mxu0 0.0
      %3058 = vmatprep.subr.mxu0 0.0
      %3059 = vmatpush1.msra.mxu0 0.0
      %3060 = vmatprep.subr.mxu0 0.0
      %3061 = vmatpush1.msra.mxu0 0.0
      %3062 = vmatprep.subr.mxu0 0.0
      %3063 = vmatpush1.msra.mxu0 0.0
      %3064 = vmatprep.subr.mxu0 0.0
      %3065 = vmatpush1.msra.mxu0 0.0
      %3066 = vmatprep.subr.mxu0 0.0
      %3067 = vmatpush1.msra.mxu0 0.0
      %3068 = vmatprep.subr.mxu0 0.0
      %3069 = vmatpush1.msra.mxu0 0.0
      %3070 = vmatprep.subr.mxu0 0.0
      %3071 = vmatpush1.msra.mxu0 0.0
      %3072 = vmatprep.subr.mxu0 0.0
      %3073 = vmatpush1.msra.mxu0 0.0
      %3074 = vmatprep.subr.mxu0 0.0
      %3075 = vmatpush1.msra.mxu0 0.0
      %3076 = vmatprep.subr.mxu0 0.0
      %3077 = vmatpush1.msra.mxu0 0.0
      %3078 = vmatprep.mubr.f32.mxu0 0.0
      %3079 = vmatmul.mubr.f32.gmra.mrb[0].mxu0 %v3010
      %v3080 = vpop.f32.mrb[0].mxu0
      %v3081 = vadd.f32 0.0, %v3080
      %v3082 = vpop.f32.mrb[0].mxu0
      %3083 = vdwg.mxu0
      %3084 = vrot.lane.b32.xlu0 %v2500, 68
      %v3085 = vpop.permute.xlu0 %3084
      %v3087 = vsel %vm1069, %v3006, 0
      %v3089 = vsel %vm1073, %v3085, 0
      %3091 = vmatprep.subr.mxu0 0.0
      %3092 = vmatpush1.msra.mxu0 %v3089
      %3093 = vmatprep.subr.mxu0 0.0
      %3094 = vmatpush1.msra.mxu0 0.0
      %3095 = vmatprep.subr.mxu0 0.0
      %3096 = vmatpush1.msra.mxu0 0.0
      %3097 = vmatprep.subr.mxu0 0.0
      %3098 = vmatpush1.msra.mxu0 0.0
      %3099 = vmatprep.subr.mxu0 0.0
      %3100 = vmatpush1.msra.mxu0 0.0
      %3101 = vmatprep.subr.mxu0 0.0
      %3102 = vmatpush1.msra.mxu0 0.0
      %3103 = vmatprep.subr.mxu0 0.0
      %3104 = vmatpush1.msra.mxu0 0.0
      %3105 = vmatprep.subr.mxu0 0.0
      %3106 = vmatpush1.msra.mxu0 0.0
      %3107 = vmatprep.subr.mxu0 0.0
      %3108 = vmatpush1.msra.mxu0 0.0
      %3109 = vmatprep.subr.mxu0 0.0
      %3110 = vmatpush1.msra.mxu0 0.0
      %3111 = vmatprep.subr.mxu0 0.0
      %3112 = vmatpush1.msra.mxu0 0.0
      %3113 = vmatprep.subr.mxu0 0.0
      %3114 = vmatpush1.msra.mxu0 0.0
      %3115 = vmatprep.subr.mxu0 0.0
      %3116 = vmatpush1.msra.mxu0 0.0
      %3117 = vmatprep.subr.mxu0 0.0
      %3118 = vmatpush1.msra.mxu0 0.0
      %3119 = vmatprep.subr.mxu0 0.0
      %3120 = vmatpush1.msra.mxu0 0.0
      %3121 = vmatprep.subr.mxu0 0.0
      %3122 = vmatpush1.msra.mxu0 0.0
      %3123 = vmatprep.subr.mxu0 0.0
      %3124 = vmatpush1.msra.mxu0 0.0
      %3125 = vmatprep.subr.mxu0 0.0
      %3126 = vmatpush1.msra.mxu0 0.0
      %3127 = vmatprep.subr.mxu0 0.0
      %3128 = vmatpush1.msra.mxu0 0.0
      %3129 = vmatprep.subr.mxu0 0.0
      %3130 = vmatpush1.msra.mxu0 0.0
      %3131 = vmatprep.subr.mxu0 0.0
      %3132 = vmatpush1.msra.mxu0 0.0
      %3133 = vmatprep.subr.mxu0 0.0
      %3134 = vmatpush1.msra.mxu0 0.0
      %3135 = vmatprep.subr.mxu0 0.0
      %3136 = vmatpush1.msra.mxu0 0.0
      %3137 = vmatprep.subr.mxu0 0.0
      %3138 = vmatpush1.msra.mxu0 0.0
      %3139 = vmatprep.subr.mxu0 0.0
      %3140 = vmatpush1.msra.mxu0 0.0
      %3141 = vmatprep.subr.mxu0 0.0
      %3142 = vmatpush1.msra.mxu0 0.0
      %3143 = vmatprep.subr.mxu0 0.0
      %3144 = vmatpush1.msra.mxu0 0.0
      %3145 = vmatprep.subr.mxu0 0.0
      %3146 = vmatpush1.msra.mxu0 0.0
      %3147 = vmatprep.subr.mxu0 0.0
      %3148 = vmatpush1.msra.mxu0 0.0
      %3149 = vmatprep.subr.mxu0 0.0
      %3150 = vmatpush1.msra.mxu0 0.0
      %3151 = vmatprep.subr.mxu0 0.0
      %3152 = vmatpush1.msra.mxu0 0.0
      %3153 = vmatprep.subr.mxu0 0.0
      %3154 = vmatpush1.msra.mxu0 0.0
      %3155 = vmatprep.mubr.f32.mxu0 0.0
      %3156 = vmatmul.mubr.f32.gmra.mrb[0].mxu0 %v3087
      %v3157 = vpop.f32.mrb[0].mxu0
      %v3158 = vadd.f32 0.0, %v3157
      %v3159 = vpop.f32.mrb[0].mxu0
      %3160 = vdwg.mxu0
      %3161 = vrot.lane.b32.xlu0 %v2418, 104
      %v3162 = vpop.permute.xlu0 %3161
      %3163 = vrot.lane.b32.xlu0 %v2494, 104
      %v3164 = vpop.permute.xlu0 %3163
      %v3165 = vsel %vm893, %v3162, 0
      %v3167 = vsel %vm893, %v3164, 0
      %3169 = vmatprep.subr.mxu0 0.0
      %3170 = vmatpush1.xpose.msra.mxu0 %v3167
      %3171 = vmatprep.subr.mxu0 0.0
      %3172 = vmatpush1.xpose.msra.mxu0 0.0
      %3173 = vmatprep.subr.mxu0 0.0
      %3174 = vmatpush1.xpose.msra.mxu0 0.0
      %3175 = vmatprep.subr.mxu0 0.0
      %3176 = vmatpush1.xpose.msra.mxu0 0.0
      %3177 = vmatprep.subr.mxu0 0.0
      %3178 = vmatpush1.xpose.msra.mxu0 0.0
      %3179 = vmatprep.subr.mxu0 0.0
      %3180 = vmatpush1.xpose.msra.mxu0 0.0
      %3181 = vmatprep.subr.mxu0 0.0
      %3182 = vmatpush1.xpose.msra.mxu0 0.0
      %3183 = vmatprep.subr.mxu0 0.0
      %3184 = vmatpush1.xpose.msra.mxu0 0.0
      %3185 = vmatprep.subr.mxu0 0.0
      %3186 = vmatpush1.xpose.msra.mxu0 0.0
      %3187 = vmatprep.subr.mxu0 0.0
      %3188 = vmatpush1.xpose.msra.mxu0 0.0
      %3189 = vmatprep.subr.mxu0 0.0
      %3190 = vmatpush1.xpose.msra.mxu0 0.0
      %3191 = vmatprep.subr.mxu0 0.0
      %3192 = vmatpush1.xpose.msra.mxu0 0.0
      %3193 = vmatprep.subr.mxu0 0.0
      %3194 = vmatpush1.xpose.msra.mxu0 0.0
      %3195 = vmatprep.subr.mxu0 0.0
      %3196 = vmatpush1.xpose.msra.mxu0 0.0
      %3197 = vmatprep.subr.mxu0 0.0
      %3198 = vmatpush1.xpose.msra.mxu0 0.0
      %3199 = vmatprep.subr.mxu0 0.0
      %3200 = vmatpush1.xpose.msra.mxu0 0.0
      %3201 = vmatprep.subr.mxu0 0.0
      %3202 = vmatpush1.xpose.msra.mxu0 0.0
      %3203 = vmatprep.subr.mxu0 0.0
      %3204 = vmatpush1.xpose.msra.mxu0 0.0
      %3205 = vmatprep.subr.mxu0 0.0
      %3206 = vmatpush1.xpose.msra.mxu0 0.0
      %3207 = vmatprep.subr.mxu0 0.0
      %3208 = vmatpush1.xpose.msra.mxu0 0.0
      %3209 = vmatprep.subr.mxu0 0.0
      %3210 = vmatpush1.xpose.msra.mxu0 0.0
      %3211 = vmatprep.subr.mxu0 0.0
      %3212 = vmatpush1.xpose.msra.mxu0 0.0
      %3213 = vmatprep.subr.mxu0 0.0
      %3214 = vmatpush1.xpose.msra.mxu0 0.0
      %3215 = vmatprep.subr.mxu0 0.0
      %3216 = vmatpush1.xpose.msra.mxu0 0.0
      %3217 = vmatprep.subr.mxu0 0.0
      %3218 = vmatpush1.xpose.msra.mxu0 0.0
      %3219 = vmatprep.subr.mxu0 0.0
      %3220 = vmatpush1.xpose.msra.mxu0 0.0
      %3221 = vmatprep.subr.mxu0 0.0
      %3222 = vmatpush1.xpose.msra.mxu0 0.0
      %3223 = vmatprep.subr.mxu0 0.0
      %3224 = vmatpush1.xpose.msra.mxu0 0.0
      %3225 = vmatprep.subr.mxu0 0.0
      %3226 = vmatpush1.xpose.msra.mxu0 0.0
      %3227 = vmatprep.subr.mxu0 0.0
      %3228 = vmatpush1.xpose.msra.mxu0 0.0
      %3229 = vmatprep.subr.mxu0 0.0
      %3230 = vmatpush1.xpose.msra.mxu0 0.0
      %3231 = vmatprep.subr.mxu0 0.0
      %3232 = vmatpush1.xpose.msra.mxu0 0.0
      %3233 = vmatprep.mubr.f32.mxu0 0.0
      %3234 = vmatmul.mubr.f32.gmra.mrb[0].mxu0 %v3165
      %v3235 = vpop.f32.mrb[0].mxu0
      %v3236 = vadd.f32 0.0, %v3235
      %v3237 = vpop.f32.mrb[0].mxu0
      %3238 = vdwg.mxu0
      %3239 = vrot.lane.b32.xlu0 %v2498, 104
      %v3240 = vpop.permute.xlu0 %3239
      %3241 = vrot.lane.b32.xlu0 %v2500, 104
      %v3242 = vpop.permute.xlu0 %3241
      %v3243 = vsel %vm893, %v3240, 0
      %v3245 = vsel %vm893, %v3242, 0
      %3247 = vmatprep.subr.mxu0 0.0
      %3248 = vmatpush1.xpose.msra.mxu0 %v3245
      %3249 = vmatprep.subr.mxu0 0.0
      %3250 = vmatpush1.xpose.msra.mxu0 0.0
      %3251 = vmatprep.subr.mxu0 0.0
      %3252 = vmatpush1.xpose.msra.mxu0 0.0
      %3253 = vmatprep.subr.mxu0 0.0
      %3254 = vmatpush1.xpose.msra.mxu0 0.0
      %3255 = vmatprep.subr.mxu0 0.0
      %3256 = vmatpush1.xpose.msra.mxu0 0.0
      %3257 = vmatprep.subr.mxu0 0.0
      %3258 = vmatpush1.xpose.msra.mxu0 0.0
      %3259 = vmatprep.subr.mxu0 0.0
      %3260 = vmatpush1.xpose.msra.mxu0 0.0
      %3261 = vmatprep.subr.mxu0 0.0
      %3262 = vmatpush1.xpose.msra.mxu0 0.0
      %3263 = vmatprep.subr.mxu0 0.0
      %3264 = vmatpush1.xpose.msra.mxu0 0.0
      %3265 = vmatprep.subr.mxu0 0.0
      %3266 = vmatpush1.xpose.msra.mxu0 0.0
      %3267 = vmatprep.subr.mxu0 0.0
      %3268 = vmatpush1.xpose.msra.mxu0 0.0
      %3269 = vmatprep.subr.mxu0 0.0
      %3270 = vmatpush1.xpose.msra.mxu0 0.0
      %3271 = vmatprep.subr.mxu0 0.0
      %3272 = vmatpush1.xpose.msra.mxu0 0.0
      %3273 = vmatprep.subr.mxu0 0.0
      %3274 = vmatpush1.xpose.msra.mxu0 0.0
      %3275 = vmatprep.subr.mxu0 0.0
      %3276 = vmatpush1.xpose.msra.mxu0 0.0
      %3277 = vmatprep.subr.mxu0 0.0
      %3278 = vmatpush1.xpose.msra.mxu0 0.0
      %3279 = vmatprep.subr.mxu0 0.0
      %3280 = vmatpush1.xpose.msra.mxu0 0.0
      %3281 = vmatprep.subr.mxu0 0.0
      %3282 = vmatpush1.xpose.msra.mxu0 0.0
      %3283 = vmatprep.subr.mxu0 0.0
      %3284 = vmatpush1.xpose.msra.mxu0 0.0
      %3285 = vmatprep.subr.mxu0 0.0
      %3286 = vmatpush1.xpose.msra.mxu0 0.0
      %3287 = vmatprep.subr.mxu0 0.0
      %3288 = vmatpush1.xpose.msra.mxu0 0.0
      %3289 = vmatprep.subr.mxu0 0.0
      %3290 = vmatpush1.xpose.msra.mxu0 0.0
      %3291 = vmatprep.subr.mxu0 0.0
      %3292 = vmatpush1.xpose.msra.mxu0 0.0
      %3293 = vmatprep.subr.mxu0 0.0
      %3294 = vmatpush1.xpose.msra.mxu0 0.0
      %3295 = vmatprep.subr.mxu0 0.0
      %3296 = vmatpush1.xpose.msra.mxu0 0.0
      %3297 = vmatprep.subr.mxu0 0.0
      %3298 = vmatpush1.xpose.msra.mxu0 0.0
      %3299 = vmatprep.subr.mxu0 0.0
      %3300 = vmatpush1.xpose.msra.mxu0 0.0
      %3301 = vmatprep.subr.mxu0 0.0
      %3302 = vmatpush1.xpose.msra.mxu0 0.0
      %3303 = vmatprep.subr.mxu0 0.0
      %3304 = vmatpush1.xpose.msra.mxu0 0.0
      %3305 = vmatprep.subr.mxu0 0.0
      %3306 = vmatpush1.xpose.msra.mxu0 0.0
      %3307 = vmatprep.subr.mxu0 0.0
      %3308 = vmatpush1.xpose.msra.mxu0 0.0
      %3309 = vmatprep.subr.mxu0 0.0
      %3310 = vmatpush1.xpose.msra.mxu0 0.0
      %3311 = vmatprep.mubr.f32.mxu0 0.0
      %3312 = vmatmul.mubr.f32.gmra.mrb[0].mxu0 %v3243
      %v3313 = vpop.f32.mrb[0].mxu0
      %v3314 = vadd.f32 0.0, %v3313
      %v3315 = vpop.f32.mrb[0].mxu0
      %3316 = vdwg.mxu0
      %v3317 = vmul.f32 %v3236, 0.28867513
      %v3318 = vmul.f32 %v3314, 0.28867513
      %v3319 = vsel %vm1044, %v3317, -inf
      %3320 = vmax.xlane.f32.xlu0 %v3319
      %v3321 = vpop.xlane.xlu0 %3320
      %v3322 = vsel %vm1044, %v3318, -inf
      %3323 = vmax.xlane.f32.xlu0 %v3322
      %v3324 = vpop.xlane.xlu0 %3323
      %v3325 = vsub.f32 %v3317, %v3321
      %v3326 = vsub.f32 %v3318, %v3324
      %v3327 = vmul.f32 %v3325, 1.442695
      %v3328 = vpow.pop %v3327
      %v3329 = vmul.f32 %v3326, 1.442695
      %v3330 = vpow.pop %v3329
      %v3331 = vsel %vm1044, %v3328, 0.0
      %3332 = vadd.xlane.f32.xlu0 %v3331
      %v3333 = vpop.xlane.xlu0 %3332
      %v3334 = vsel %vm1044, %v3330, 0.0
      %3335 = vadd.xlane.f32.xlu0 %v3334
      %v3336 = vpop.xlane.xlu0 %3335
      %v3337 = vrcp.pop %v3333
      %v3338 = vrcp.pop %v3336
      %v3339 = vmul.f32 %v3328, %v3337
      %v3340 = vmul.f32 %v3330, %v3338
      %3341 = vrot.lane.b32.xlu0 %v2494, 56
      %v3342 = vpop.permute.xlu0 %3341
      %v3344 = vsel %vm1069, %v3339, 0
      %v3346 = vsel %vm1073, %v3342, 0
      %3348 = vmatprep.subr.mxu0 0.0
      %3349 = vmatpush1.msra.mxu0 %v3346
      %3350 = vmatprep.subr.mxu0 0.0
      %3351 = vmatpush1.msra.mxu0 0.0
      %3352 = vmatprep.subr.mxu0 0.0
      %3353 = vmatpush1.msra.mxu0 0.0
      %3354 = vmatprep.subr.mxu0 0.0
      %3355 = vmatpush1.msra.mxu0 0.0
      %3356 = vmatprep.subr.mxu0 0.0
      %3357 = vmatpush1.msra.mxu0 0.0
      %3358 = vmatprep.subr.mxu0 0.0
      %3359 = vmatpush1.msra.mxu0 0.0
      %3360 = vmatprep.subr.mxu0 0.0
      %3361 = vmatpush1.msra.mxu0 0.0
      %3362 = vmatprep.subr.mxu0 0.0
      %3363 = vmatpush1.msra.mxu0 0.0
      %3364 = vmatprep.subr.mxu0 0.0
      %3365 = vmatpush1.msra.mxu0 0.0
      %3366 = vmatprep.subr.mxu0 0.0
      %3367 = vmatpush1.msra.mxu0 0.0
      %3368 = vmatprep.subr.mxu0 0.0
      %3369 = vmatpush1.msra.mxu0 0.0
      %3370 = vmatprep.subr.mxu0 0.0
      %3371 = vmatpush1.msra.mxu0 0.0
      %3372 = vmatprep.subr.mxu0 0.0
      %3373 = vmatpush1.msra.mxu0 0.0
      %3374 = vmatprep.subr.mxu0 0.0
      %3375 = vmatpush1.msra.mxu0 0.0
      %3376 = vmatprep.subr.mxu0 0.0
      %3377 = vmatpush1.msra.mxu0 0.0
      %3378 = vmatprep.subr.mxu0 0.0
      %3379 = vmatpush1.msra.mxu0 0.0
      %3380 = vmatprep.subr.mxu0 0.0
      %3381 = vmatpush1.msra.mxu0 0.0
      %3382 = vmatprep.subr.mxu0 0.0
      %3383 = vmatpush1.msra.mxu0 0.0
      %3384 = vmatprep.subr.mxu0 0.0
      %3385 = vmatpush1.msra.mxu0 0.0
      %3386 = vmatprep.subr.mxu0 0.0
      %3387 = vmatpush1.msra.mxu0 0.0
      %3388 = vmatprep.subr.mxu0 0.0
      %3389 = vmatpush1.msra.mxu0 0.0
      %3390 = vmatprep.subr.mxu0 0.0
      %3391 = vmatpush1.msra.mxu0 0.0
      %3392 = vmatprep.subr.mxu0 0.0
      %3393 = vmatpush1.msra.mxu0 0.0
      %3394 = vmatprep.subr.mxu0 0.0
      %3395 = vmatpush1.msra.mxu0 0.0
      %3396 = vmatprep.subr.mxu0 0.0
      %3397 = vmatpush1.msra.mxu0 0.0
      %3398 = vmatprep.subr.mxu0 0.0
      %3399 = vmatpush1.msra.mxu0 0.0
      %3400 = vmatprep.subr.mxu0 0.0
      %3401 = vmatpush1.msra.mxu0 0.0
      %3402 = vmatprep.subr.mxu0 0.0
      %3403 = vmatpush1.msra.mxu0 0.0
      %3404 = vmatprep.subr.mxu0 0.0
      %3405 = vmatpush1.msra.mxu0 0.0
      %3406 = vmatprep.subr.mxu0 0.0
      %3407 = vmatpush1.msra.mxu0 0.0
      %3408 = vmatprep.subr.mxu0 0.0
      %3409 = vmatpush1.msra.mxu0 0.0
      %3410 = vmatprep.subr.mxu0 0.0
      %3411 = vmatpush1.msra.mxu0 0.0
      %3412 = vmatprep.mubr.f32.mxu0 0.0
      %3413 = vmatmul.mubr.f32.gmra.mrb[0].mxu0 %v3344
      %v3414 = vpop.f32.mrb[0].mxu0
      %v3415 = vadd.f32 0.0, %v3414
      %v3416 = vpop.f32.mrb[0].mxu0
      %3417 = vdwg.mxu0
      %3418 = vrot.lane.b32.xlu0 %v2500, 56
      %v3419 = vpop.permute.xlu0 %3418
      %v3421 = vsel %vm1069, %v3340, 0
      %v3423 = vsel %vm1073, %v3419, 0
      %3425 = vmatprep.subr.mxu0 0.0
      %3426 = vmatpush1.msra.mxu0 %v3423
      %3427 = vmatprep.subr.mxu0 0.0
      %3428 = vmatpush1.msra.mxu0 0.0
      %3429 = vmatprep.subr.mxu0 0.0
      %3430 = vmatpush1.msra.mxu0 0.0
      %3431 = vmatprep.subr.mxu0 0.0
      %3432 = vmatpush1.msra.mxu0 0.0
      %3433 = vmatprep.subr.mxu0 0.0
      %3434 = vmatpush1.msra.mxu0 0.0
      %3435 = vmatprep.subr.mxu0 0.0
      %3436 = vmatpush1.msra.mxu0 0.0
      %3437 = vmatprep.subr.mxu0 0.0
      %3438 = vmatpush1.msra.mxu0 0.0
      %3439 = vmatprep.subr.mxu0 0.0
      %3440 = vmatpush1.msra.mxu0 0.0
      %3441 = vmatprep.subr.mxu0 0.0
      %3442 = vmatpush1.msra.mxu0 0.0
      %3443 = vmatprep.subr.mxu0 0.0
      %3444 = vmatpush1.msra.mxu0 0.0
      %3445 = vmatprep.subr.mxu0 0.0
      %3446 = vmatpush1.msra.mxu0 0.0
      %3447 = vmatprep.subr.mxu0 0.0
      %3448 = vmatpush1.msra.mxu0 0.0
      %3449 = vmatprep.subr.mxu0 0.0
      %3450 = vmatpush1.msra.mxu0 0.0
      %3451 = vmatprep.subr.mxu0 0.0
      %3452 = vmatpush1.msra.mxu0 0.0
      %3453 = vmatprep.subr.mxu0 0.0
      %3454 = vmatpush1.msra.mxu0 0.0
      %3455 = vmatprep.subr.mxu0 0.0
      %3456 = vmatpush1.msra.mxu0 0.0
      %3457 = vmatprep.subr.mxu0 0.0
      %3458 = vmatpush1.msra.mxu0 0.0
      %3459 = vmatprep.subr.mxu0 0.0
      %3460 = vmatpush1.msra.mxu0 0.0
      %3461 = vmatprep.subr.mxu0 0.0
      %3462 = vmatpush1.msra.mxu0 0.0
      %3463 = vmatprep.subr.mxu0 0.0
      %3464 = vmatpush1.msra.mxu0 0.0
      %3465 = vmatprep.subr.mxu0 0.0
      %3466 = vmatpush1.msra.mxu0 0.0
      %3467 = vmatprep.subr.mxu0 0.0
      %3468 = vmatpush1.msra.mxu0 0.0
      %3469 = vmatprep.subr.mxu0 0.0
      %3470 = vmatpush1.msra.mxu0 0.0
      %3471 = vmatprep.subr.mxu0 0.0
      %3472 = vmatpush1.msra.mxu0 0.0
      %3473 = vmatprep.subr.mxu0 0.0
      %3474 = vmatpush1.msra.mxu0 0.0
      %3475 = vmatprep.subr.mxu0 0.0
      %3476 = vmatpush1.msra.mxu0 0.0
      %3477 = vmatprep.subr.mxu0 0.0
      %3478 = vmatpush1.msra.mxu0 0.0
      %3479 = vmatprep.subr.mxu0 0.0
      %3480 = vmatpush1.msra.mxu0 0.0
      %3481 = vmatprep.subr.mxu0 0.0
      %3482 = vmatpush1.msra.mxu0 0.0
      %3483 = vmatprep.subr.mxu0 0.0
      %3484 = vmatpush1.msra.mxu0 0.0
      %3485 = vmatprep.subr.mxu0 0.0
      %3486 = vmatpush1.msra.mxu0 0.0
      %3487 = vmatprep.subr.mxu0 0.0
      %3488 = vmatpush1.msra.mxu0 0.0
      %3489 = vmatprep.mubr.f32.mxu0 0.0
      %3490 = vmatmul.mubr.f32.gmra.mrb[0].mxu0 %v3421
      %v3491 = vpop.f32.mrb[0].mxu0
      %v3492 = vadd.f32 0.0, %v3491
      %v3493 = vpop.f32.mrb[0].mxu0
      %3494 = vdwg.mxu0
      %3495 = vrot.lane.b32.xlu0 %v2418, 92
      %v3496 = vpop.permute.xlu0 %3495
      %3497 = vrot.lane.b32.xlu0 %v2494, 92
      %v3498 = vpop.permute.xlu0 %3497
      %v3499 = vsel %vm893, %v3496, 0
      %v3501 = vsel %vm893, %v3498, 0
      %3503 = vmatprep.subr.mxu0 0.0
      %3504 = vmatpush1.xpose.msra.mxu0 %v3501
      %3505 = vmatprep.subr.mxu0 0.0
      %3506 = vmatpush1.xpose.msra.mxu0 0.0
      %3507 = vmatprep.subr.mxu0 0.0
      %3508 = vmatpush1.xpose.msra.mxu0 0.0
      %3509 = vmatprep.subr.mxu0 0.0
      %3510 = vmatpush1.xpose.msra.mxu0 0.0
      %3511 = vmatprep.subr.mxu0 0.0
      %3512 = vmatpush1.xpose.msra.mxu0 0.0
      %3513 = vmatprep.subr.mxu0 0.0
      %3514 = vmatpush1.xpose.msra.mxu0 0.0
      %3515 = vmatprep.subr.mxu0 0.0
      %3516 = vmatpush1.xpose.msra.mxu0 0.0
      %3517 = vmatprep.subr.mxu0 0.0
      %3518 = vmatpush1.xpose.msra.mxu0 0.0
      %3519 = vmatprep.subr.mxu0 0.0
      %3520 = vmatpush1.xpose.msra.mxu0 0.0
      %3521 = vmatprep.subr.mxu0 0.0
      %3522 = vmatpush1.xpose.msra.mxu0 0.0
      %3523 = vmatprep.subr.mxu0 0.0
      %3524 = vmatpush1.xpose.msra.mxu0 0.0
      %3525 = vmatprep.subr.mxu0 0.0
      %3526 = vmatpush1.xpose.msra.mxu0 0.0
      %3527 = vmatprep.subr.mxu0 0.0
      %3528 = vmatpush1.xpose.msra.mxu0 0.0
      %3529 = vmatprep.subr.mxu0 0.0
      %3530 = vmatpush1.xpose.msra.mxu0 0.0
      %3531 = vmatprep.subr.mxu0 0.0
      %3532 = vmatpush1.xpose.msra.mxu0 0.0
      %3533 = vmatprep.subr.mxu0 0.0
      %3534 = vmatpush1.xpose.msra.mxu0 0.0
      %3535 = vmatprep.subr.mxu0 0.0
      %3536 = vmatpush1.xpose.msra.mxu0 0.0
      %3537 = vmatprep.subr.mxu0 0.0
      %3538 = vmatpush1.xpose.msra.mxu0 0.0
      %3539 = vmatprep.subr.mxu0 0.0
      %3540 = vmatpush1.xpose.msra.mxu0 0.0
      %3541 = vmatprep.subr.mxu0 0.0
      %3542 = vmatpush1.xpose.msra.mxu0 0.0
      %3543 = vmatprep.subr.mxu0 0.0
      %3544 = vmatpush1.xpose.msra.mxu0 0.0
      %3545 = vmatprep.subr.mxu0 0.0
      %3546 = vmatpush1.xpose.msra.mxu0 0.0
      %3547 = vmatprep.subr.mxu0 0.0
      %3548 = vmatpush1.xpose.msra.mxu0 0.0
      %3549 = vmatprep.subr.mxu0 0.0
      %3550 = vmatpush1.xpose.msra.mxu0 0.0
      %3551 = vmatprep.subr.mxu0 0.0
      %3552 = vmatpush1.xpose.msra.mxu0 0.0
      %3553 = vmatprep.subr.mxu0 0.0
      %3554 = vmatpush1.xpose.msra.mxu0 0.0
      %3555 = vmatprep.subr.mxu0 0.0
      %3556 = vmatpush1.xpose.msra.mxu0 0.0
      %3557 = vmatprep.subr.mxu0 0.0
      %3558 = vmatpush1.xpose.msra.mxu0 0.0
      %3559 = vmatprep.subr.mxu0 0.0
      %3560 = vmatpush1.xpose.msra.mxu0 0.0
      %3561 = vmatprep.subr.mxu0 0.0
      %3562 = vmatpush1.xpose.msra.mxu0 0.0
      %3563 = vmatprep.subr.mxu0 0.0
      %3564 = vmatpush1.xpose.msra.mxu0 0.0
      %3565 = vmatprep.subr.mxu0 0.0
      %3566 = vmatpush1.xpose.msra.mxu0 0.0
      %3567 = vmatprep.mubr.f32.mxu0 0.0
      %3568 = vmatmul.mubr.f32.gmra.mrb[0].mxu0 %v3499
      %v3569 = vpop.f32.mrb[0].mxu0
      %v3570 = vadd.f32 0.0, %v3569
      %v3571 = vpop.f32.mrb[0].mxu0
      %3572 = vdwg.mxu0
      %3573 = vrot.lane.b32.xlu0 %v2498, 92
      %v3574 = vpop.permute.xlu0 %3573
      %3575 = vrot.lane.b32.xlu0 %v2500, 92
      %v3576 = vpop.permute.xlu0 %3575
      %v3577 = vsel %vm893, %v3574, 0
      %v3579 = vsel %vm893, %v3576, 0
      %3581 = vmatprep.subr.mxu0 0.0
      %3582 = vmatpush1.xpose.msra.mxu0 %v3579
      %3583 = vmatprep.subr.mxu0 0.0
      %3584 = vmatpush1.xpose.msra.mxu0 0.0
      %3585 = vmatprep.subr.mxu0 0.0
      %3586 = vmatpush1.xpose.msra.mxu0 0.0
      %3587 = vmatprep.subr.mxu0 0.0
      %3588 = vmatpush1.xpose.msra.mxu0 0.0
      %3589 = vmatprep.subr.mxu0 0.0
      %3590 = vmatpush1.xpose.msra.mxu0 0.0
      %3591 = vmatprep.subr.mxu0 0.0
      %3592 = vmatpush1.xpose.msra.mxu0 0.0
      %3593 = vmatprep.subr.mxu0 0.0
      %3594 = vmatpush1.xpose.msra.mxu0 0.0
      %3595 = vmatprep.subr.mxu0 0.0
      %3596 = vmatpush1.xpose.msra.mxu0 0.0
      %3597 = vmatprep.subr.mxu0 0.0
      %3598 = vmatpush1.xpose.msra.mxu0 0.0
      %3599 = vmatprep.subr.mxu0 0.0
      %3600 = vmatpush1.xpose.msra.mxu0 0.0
      %3601 = vmatprep.subr.mxu0 0.0
      %3602 = vmatpush1.xpose.msra.mxu0 0.0
      %3603 = vmatprep.subr.mxu0 0.0
      %3604 = vmatpush1.xpose.msra.mxu0 0.0
      %3605 = vmatprep.subr.mxu0 0.0
      %3606 = vmatpush1.xpose.msra.mxu0 0.0
      %3607 = vmatprep.subr.mxu0 0.0
      %3608 = vmatpush1.xpose.msra.mxu0 0.0
      %3609 = vmatprep.subr.mxu0 0.0
      %3610 = vmatpush1.xpose.msra.mxu0 0.0
      %3611 = vmatprep.subr.mxu0 0.0
      %3612 = vmatpush1.xpose.msra.mxu0 0.0
      %3613 = vmatprep.subr.mxu0 0.0
      %3614 = vmatpush1.xpose.msra.mxu0 0.0
      %3615 = vmatprep.subr.mxu0 0.0
      %3616 = vmatpush1.xpose.msra.mxu0 0.0
      %3617 = vmatprep.subr.mxu0 0.0
      %3618 = vmatpush1.xpose.msra.mxu0 0.0
      %3619 = vmatprep.subr.mxu0 0.0
      %3620 = vmatpush1.xpose.msra.mxu0 0.0
      %3621 = vmatprep.subr.mxu0 0.0
      %3622 = vmatpush1.xpose.msra.mxu0 0.0
      %3623 = vmatprep.subr.mxu0 0.0
      %3624 = vmatpush1.xpose.msra.mxu0 0.0
      %3625 = vmatprep.subr.mxu0 0.0
      %3626 = vmatpush1.xpose.msra.mxu0 0.0
      %3627 = vmatprep.subr.mxu0 0.0
      %3628 = vmatpush1.xpose.msra.mxu0 0.0
      %3629 = vmatprep.subr.mxu0 0.0
      %3630 = vmatpush1.xpose.msra.mxu0 0.0
      %3631 = vmatprep.subr.mxu0 0.0
      %3632 = vmatpush1.xpose.msra.mxu0 0.0
      %3633 = vmatprep.subr.mxu0 0.0
      %3634 = vmatpush1.xpose.msra.mxu0 0.0
      %3635 = vmatprep.subr.mxu0 0.0
      %3636 = vmatpush1.xpose.msra.mxu0 0.0
      %3637 = vmatprep.subr.mxu0 0.0
      %3638 = vmatpush1.xpose.msra.mxu0 0.0
      %3639 = vmatprep.subr.mxu0 0.0
      %3640 = vmatpush1.xpose.msra.mxu0 0.0
      %3641 = vmatprep.subr.mxu0 0.0
      %3642 = vmatpush1.xpose.msra.mxu0 0.0
      %3643 = vmatprep.subr.mxu0 0.0
      %3644 = vmatpush1.xpose.msra.mxu0 0.0
      %3645 = vmatprep.mubr.f32.mxu0 0.0
      %3646 = vmatmul.mubr.f32.gmra.mrb[0].mxu0 %v3577
      %v3647 = vpop.f32.mrb[0].mxu0
      %v3648 = vadd.f32 0.0, %v3647
      %v3649 = vpop.f32.mrb[0].mxu0
      %3650 = vdwg.mxu0
      %v3651 = vmul.f32 %v3570, 0.28867513
      %v3652 = vmul.f32 %v3648, 0.28867513
      %v3653 = vsel %vm1044, %v3651, -inf
      %3654 = vmax.xlane.f32.xlu0 %v3653
      %v3655 = vpop.xlane.xlu0 %3654
      %v3656 = vsel %vm1044, %v3652, -inf
      %3657 = vmax.xlane.f32.xlu0 %v3656
      %v3658 = vpop.xlane.xlu0 %3657
      %v3659 = vsub.f32 %v3651, %v3655
      %v3660 = vsub.f32 %v3652, %v3658
      %v3661 = vmul.f32 %v3659, 1.442695
      %v3662 = vpow.pop %v3661
      %v3663 = vmul.f32 %v3660, 1.442695
      %v3664 = vpow.pop %v3663
      %v3665 = vsel %vm1044, %v3662, 0.0
      %3666 = vadd.xlane.f32.xlu0 %v3665
      %v3667 = vpop.xlane.xlu0 %3666
      %v3668 = vsel %vm1044, %v3664, 0.0
      %3669 = vadd.xlane.f32.xlu0 %v3668
      %v3670 = vpop.xlane.xlu0 %3669
      %v3671 = vrcp.pop %v3667
      %v3672 = vrcp.pop %v3670
      %v3673 = vmul.f32 %v3662, %v3671
      %v3674 = vmul.f32 %v3664, %v3672
      %3675 = vrot.lane.b32.xlu0 %v2494, 44
      %v3676 = vpop.permute.xlu0 %3675
      %v3678 = vsel %vm1069, %v3673, 0
      %v3680 = vsel %vm1073, %v3676, 0
      %3682 = vmatprep.subr.mxu0 0.0
      %3683 = vmatpush1.msra.mxu0 %v3680
      %3684 = vmatprep.subr.mxu0 0.0
      %3685 = vmatpush1.msra.mxu0 0.0
      %3686 = vmatprep.subr.mxu0 0.0
      %3687 = vmatpush1.msra.mxu0 0.0
      %3688 = vmatprep.subr.mxu0 0.0
      %3689 = vmatpush1.msra.mxu0 0.0
      %3690 = vmatprep.subr.mxu0 0.0
      %3691 = vmatpush1.msra.mxu0 0.0
      %3692 = vmatprep.subr.mxu0 0.0
      %3693 = vmatpush1.msra.mxu0 0.0
      %3694 = vmatprep.subr.mxu0 0.0
      %3695 = vmatpush1.msra.mxu0 0.0
      %3696 = vmatprep.subr.mxu0 0.0
      %3697 = vmatpush1.msra.mxu0 0.0
      %3698 = vmatprep.subr.mxu0 0.0
      %3699 = vmatpush1.msra.mxu0 0.0
      %3700 = vmatprep.subr.mxu0 0.0
      %3701 = vmatpush1.msra.mxu0 0.0
      %3702 = vmatprep.subr.mxu0 0.0
      %3703 = vmatpush1.msra.mxu0 0.0
      %3704 = vmatprep.subr.mxu0 0.0
      %3705 = vmatpush1.msra.mxu0 0.0
      %3706 = vmatprep.subr.mxu0 0.0
      %3707 = vmatpush1.msra.mxu0 0.0
      %3708 = vmatprep.subr.mxu0 0.0
      %3709 = vmatpush1.msra.mxu0 0.0
      %3710 = vmatprep.subr.mxu0 0.0
      %3711 = vmatpush1.msra.mxu0 0.0
      %3712 = vmatprep.subr.mxu0 0.0
      %3713 = vmatpush1.msra.mxu0 0.0
      %3714 = vmatprep.subr.mxu0 0.0
      %3715 = vmatpush1.msra.mxu0 0.0
      %3716 = vmatprep.subr.mxu0 0.0
      %3717 = vmatpush1.msra.mxu0 0.0
      %3718 = vmatprep.subr.mxu0 0.0
      %3719 = vmatpush1.msra.mxu0 0.0
      %3720 = vmatprep.subr.mxu0 0.0
      %3721 = vmatpush1.msra.mxu0 0.0
      %3722 = vmatprep.subr.mxu0 0.0
      %3723 = vmatpush1.msra.mxu0 0.0
      %3724 = vmatprep.subr.mxu0 0.0
      %3725 = vmatpush1.msra.mxu0 0.0
      %3726 = vmatprep.subr.mxu0 0.0
      %3727 = vmatpush1.msra.mxu0 0.0
      %3728 = vmatprep.subr.mxu0 0.0
      %3729 = vmatpush1.msra.mxu0 0.0
      %3730 = vmatprep.subr.mxu0 0.0
      %3731 = vmatpush1.msra.mxu0 0.0
      %3732 = vmatprep.subr.mxu0 0.0
      %3733 = vmatpush1.msra.mxu0 0.0
      %3734 = vmatprep.subr.mxu0 0.0
      %3735 = vmatpush1.msra.mxu0 0.0
      %3736 = vmatprep.subr.mxu0 0.0
      %3737 = vmatpush1.msra.mxu0 0.0
      %3738 = vmatprep.subr.mxu0 0.0
      %3739 = vmatpush1.msra.mxu0 0.0
      %3740 = vmatprep.subr.mxu0 0.0
      %3741 = vmatpush1.msra.mxu0 0.0
      %3742 = vmatprep.subr.mxu0 0.0
      %3743 = vmatpush1.msra.mxu0 0.0
      %3744 = vmatprep.subr.mxu0 0.0
      %3745 = vmatpush1.msra.mxu0 0.0
      %3746 = vmatprep.mubr.f32.mxu0 0.0
      %3747 = vmatmul.mubr.f32.gmra.mrb[0].mxu0 %v3678
      %v3748 = vpop.f32.mrb[0].mxu0
      %v3749 = vadd.f32 0.0, %v3748
      %v3750 = vpop.f32.mrb[0].mxu0
      %3751 = vdwg.mxu0
      %3752 = vrot.lane.b32.xlu0 %v2500, 44
      %v3753 = vpop.permute.xlu0 %3752
      %v3755 = vsel %vm1069, %v3674, 0
      %v3757 = vsel %vm1073, %v3753, 0
      %3759 = vmatprep.subr.mxu0 0.0
      %3760 = vmatpush1.msra.mxu0 %v3757
      %3761 = vmatprep.subr.mxu0 0.0
      %3762 = vmatpush1.msra.mxu0 0.0
      %3763 = vmatprep.subr.mxu0 0.0
      %3764 = vmatpush1.msra.mxu0 0.0
      %3765 = vmatprep.subr.mxu0 0.0
      %3766 = vmatpush1.msra.mxu0 0.0
      %3767 = vmatprep.subr.mxu0 0.0
      %3768 = vmatpush1.msra.mxu0 0.0
      %3769 = vmatprep.subr.mxu0 0.0
      %3770 = vmatpush1.msra.mxu0 0.0
      %3771 = vmatprep.subr.mxu0 0.0
      %3772 = vmatpush1.msra.mxu0 0.0
      %3773 = vmatprep.subr.mxu0 0.0
      %3774 = vmatpush1.msra.mxu0 0.0
      %3775 = vmatprep.subr.mxu0 0.0
      %3776 = vmatpush1.msra.mxu0 0.0
      %3777 = vmatprep.subr.mxu0 0.0
      %3778 = vmatpush1.msra.mxu0 0.0
      %3779 = vmatprep.subr.mxu0 0.0
      %3780 = vmatpush1.msra.mxu0 0.0
      %3781 = vmatprep.subr.mxu0 0.0
      %3782 = vmatpush1.msra.mxu0 0.0
      %3783 = vmatprep.subr.mxu0 0.0
      %3784 = vmatpush1.msra.mxu0 0.0
      %3785 = vmatprep.subr.mxu0 0.0
      %3786 = vmatpush1.msra.mxu0 0.0
      %3787 = vmatprep.subr.mxu0 0.0
      %3788 = vmatpush1.msra.mxu0 0.0
      %3789 = vmatprep.subr.mxu0 0.0
      %3790 = vmatpush1.msra.mxu0 0.0
      %3791 = vmatprep.subr.mxu0 0.0
      %3792 = vmatpush1.msra.mxu0 0.0
      %3793 = vmatprep.subr.mxu0 0.0
      %3794 = vmatpush1.msra.mxu0 0.0
      %3795 = vmatprep.subr.mxu0 0.0
      %3796 = vmatpush1.msra.mxu0 0.0
      %3797 = vmatprep.subr.mxu0 0.0
      %3798 = vmatpush1.msra.mxu0 0.0
      %3799 = vmatprep.subr.mxu0 0.0
      %3800 = vmatpush1.msra.mxu0 0.0
      %3801 = vmatprep.subr.mxu0 0.0
      %3802 = vmatpush1.msra.mxu0 0.0
      %3803 = vmatprep.subr.mxu0 0.0
      %3804 = vmatpush1.msra.mxu0 0.0
      %3805 = vmatprep.subr.mxu0 0.0
      %3806 = vmatpush1.msra.mxu0 0.0
      %3807 = vmatprep.subr.mxu0 0.0
      %3808 = vmatpush1.msra.mxu0 0.0
      %3809 = vmatprep.subr.mxu0 0.0
      %3810 = vmatpush1.msra.mxu0 0.0
      %3811 = vmatprep.subr.mxu0 0.0
      %3812 = vmatpush1.msra.mxu0 0.0
      %3813 = vmatprep.subr.mxu0 0.0
      %3814 = vmatpush1.msra.mxu0 0.0
      %3815 = vmatprep.subr.mxu0 0.0
      %3816 = vmatpush1.msra.mxu0 0.0
      %3817 = vmatprep.subr.mxu0 0.0
      %3818 = vmatpush1.msra.mxu0 0.0
      %3819 = vmatprep.subr.mxu0 0.0
      %3820 = vmatpush1.msra.mxu0 0.0
      %3821 = vmatprep.subr.mxu0 0.0
      %3822 = vmatpush1.msra.mxu0 0.0
      %3823 = vmatprep.mubr.f32.mxu0 0.0
      %3824 = vmatmul.mubr.f32.gmra.mrb[0].mxu0 %v3755
      %v3825 = vpop.f32.mrb[0].mxu0
      %v3826 = vadd.f32 0.0, %v3825
      %v3827 = vpop.f32.mrb[0].mxu0
      %3828 = vdwg.mxu0
      %3831 = vrot.lane.b32.xlu0 %v3081, 12
      %v3832 = vpop.permute.xlu0 %3831
      %3833 = vrot.lane.b32.xlu0 %v3158, 12
      %v3834 = vpop.permute.xlu0 %3833
      %3839 = vrot.lane.b32.xlu0 %v3415, 24
      %v3840 = vpop.permute.xlu0 %3839
      %3841 = vrot.lane.b32.xlu0 %v3492, 24
      %v3842 = vpop.permute.xlu0 %3841
      %3847 = vrot.lane.b32.xlu0 %v3749, 36
      %v3848 = vpop.permute.xlu0 %3847
      %3849 = vrot.lane.b32.xlu0 %v3826, 36
      %v3850 = vpop.permute.xlu0 %3849
      %v3853 = vsel %vm893, %v2747, %v3832
      %v3854 = vsel %vm893, %v2824, %v3834
      %v3855 = vsel %vm2251, %v3853, %v3840
      %v3856 = vsel %vm2251, %v3854, %v3842
      %v3857 = vsel %vm2254, %v3855, %v3848
      %v3858 = vsel %vm2254, %v3856, %v3850
      %v3859 = vld [vmem:[%s12] sm:$0xff]
      %v3860 = vld [vmem:[%s12 + $0x8] sm:$0xff]
      %v3861 = vld [vmem:[%s12 + $0x10] sm:$0xff]
      %v3862 = vld [vmem:[%s12 + $0x18] sm:$0xff]
      %v3863 = vld [vmem:[%s12 + $0x20] sm:$0xff]
      %v3864 = vld [vmem:[%s12 + $0x28] sm:$0xff]
      %v3865 = vld [vmem:[%s13] sm:$0x1]
      %v3867 = vlaneseq
      %v3868 = vshrl.u32 %v3867, 7
      %v3869 = vsub.s32 0, %v3868
      %v3870 = vrot.slane %v3865, %v3869
      %v3874 = vcombine.low %v3857, %v3858
      %v3875 = vsel %vm673, %v3874, 0
      %3877 = vmatprep.subr.mxu0 0.0
      %3878 = vmatpush1.msra.mxu0 %v3859
      %3879 = vmatprep.subr.mxu0 0.0
      %3880 = vmatpush1.msra.mxu0 %v3860
      %3881 = vmatprep.subr.mxu0 0.0
      %3882 = vmatpush1.msra.mxu0 %v3861
      %3883 = vmatprep.subr.mxu0 0.0
      %3884 = vmatpush1.msra.mxu0 %v3862
      %3885 = vmatprep.subr.mxu0 0.0
      %3886 = vmatpush1.msra.mxu0 %v3863
      %3887 = vmatprep.subr.mxu0 0.0
      %3888 = vmatpush1.msra.mxu0 %v3864
      %3889 = vmatprep.subr.mxu0 0.0
      %3890 = vmatpush1.msra.mxu0 0.0
      %3891 = vmatprep.subr.mxu0 0.0
      %3892 = vmatpush1.msra.mxu0 0.0
      %3893 = vmatprep.subr.mxu0 0.0
      %3894 = vmatpush1.msra.mxu0 0.0
      %3895 = vmatprep.subr.mxu0 0.0
      %3896 = vmatpush1.msra.mxu0 0.0
      %3897 = vmatprep.subr.mxu0 0.0
      %3898 = vmatpush1.msra.mxu0 0.0
      %3899 = vmatprep.subr.mxu0 0.0
      %3900 = vmatpush1.msra.mxu0 0.0
      %3901 = vmatprep.subr.mxu0 0.0
      %3902 = vmatpush1.msra.mxu0 0.0
      %3903 = vmatprep.subr.mxu0 0.0
      %3904 = vmatpush1.msra.mxu0 0.0
      %3905 = vmatprep.subr.mxu0 0.0
      %3906 = vmatpush1.msra.mxu0 0.0
      %3907 = vmatprep.subr.mxu0 0.0
      %3908 = vmatpush1.msra.mxu0 0.0
      %3909 = vmatprep.subr.mxu0 0.0
      %3910 = vmatpush1.msra.mxu0 0.0
      %3911 = vmatprep.subr.mxu0 0.0
      %3912 = vmatpush1.msra.mxu0 0.0
      %3913 = vmatprep.subr.mxu0 0.0
      %3914 = vmatpush1.msra.mxu0 0.0
      %3915 = vmatprep.subr.mxu0 0.0
      %3916 = vmatpush1.msra.mxu0 0.0
      %3917 = vmatprep.subr.mxu0 0.0
      %3918 = vmatpush1.msra.mxu0 0.0
      %3919 = vmatprep.subr.mxu0 0.0
      %3920 = vmatpush1.msra.mxu0 0.0
      %3921 = vmatprep.subr.mxu0 0.0
      %3922 = vmatpush1.msra.mxu0 0.0
      %3923 = vmatprep.subr.mxu0 0.0
      %3924 = vmatpush1.msra.mxu0 0.0
      %3925 = vmatprep.subr.mxu0 0.0
      %3926 = vmatpush1.msra.mxu0 0.0
      %3927 = vmatprep.subr.mxu0 0.0
      %3928 = vmatpush1.msra.mxu0 0.0
      %3929 = vmatprep.subr.mxu0 0.0
      %3930 = vmatpush1.msra.mxu0 0.0
      %3931 = vmatprep.subr.mxu0 0.0
      %3932 = vmatpush1.msra.mxu0 0.0
      %3933 = vmatprep.subr.mxu0 0.0
      %3934 = vmatpush1.msra.mxu0 0.0
      %3935 = vmatprep.subr.mxu0 0.0
      %3936 = vmatpush1.msra.mxu0 0.0
      %3937 = vmatprep.subr.mxu0 0.0
      %3938 = vmatpush1.msra.mxu0 0.0
      %3939 = vmatprep.subr.mxu0 0.0
      %3940 = vmatpush1.msra.mxu0 0.0
      %3941 = vmatprep.mubr.f32.mxu0 0.0
      %3942 = vmatmul.mubr.f32.gmra.mrb[0].mxu0 %v3875
      %v3943 = vpop.f32.mrb[0].mxu0
      %v3944 = vadd.f32 %v3870, %v3943
      %v3945 = vpop.f32.mrb[0].mxu0
      %3946 = vdwg.mxu0
      %v3947 = vld [vmem:[%s14] sm:$0xff]
      %v3948 = vld [vmem:[%s14 + $0x8] sm:$0xff]
      %v3949 = vld [vmem:[%s14 + $0x10] sm:$0xff]
      %v3950 = vld [vmem:[%s14 + $0x18] sm:$0xff]
      %v3951 = vld [vmem:[%s14 + $0x20] sm:$0xff]
      %v3952 = vld [vmem:[%s14 + $0x28] sm:$0xff]
      %v3953 = vld [vmem:[%s15] sm:$0xff]
      %v3954 = vld [vmem:[%s15 + $0x8] sm:$0xff]
      %v3955 = vld [vmem:[%s15 + $0x10] sm:$0xff]
      %v3956 = vld [vmem:[%s15 + $0x18] sm:$0xff]
      %v3957 = vld [vmem:[%s15 + $0x20] sm:$0xff]
      %v3958 = vld [vmem:[%s15 + $0x28] sm:$0xff]
      %v3960 = vsel %vm673, %v3944, 0
      %3962 = vmatprep.subr.mxu0 0.0
      %3963 = vmatpush1.msra.mxu0 %v3953
      %3964 = vmatprep.subr.mxu0 0.0
      %3965 = vmatpush1.msra.mxu0 %v3954
      %3966 = vmatprep.subr.mxu0 0.0
      %3967 = vmatpush1.msra.mxu0 %v3955
      %3968 = vmatprep.subr.mxu0 0.0
      %3969 = vmatpush1.msra.mxu0 %v3956
      %3970 = vmatprep.subr.mxu0 0.0
      %3971 = vmatpush1.msra.mxu0 %v3957
      %3972 = vmatprep.subr.mxu0 0.0
      %3973 = vmatpush1.msra.mxu0 %v3958
      %3974 = vmatprep.subr.mxu0 0.0
      %3975 = vmatpush1.msra.mxu0 0.0
      %3976 = vmatprep.subr.mxu0 0.0
      %3977 = vmatpush1.msra.mxu0 0.0
      %3978 = vmatprep.subr.mxu0 0.0
      %3979 = vmatpush1.msra.mxu0 0.0
      %3980 = vmatprep.subr.mxu0 0.0
      %3981 = vmatpush1.msra.mxu0 0.0
      %3982 = vmatprep.subr.mxu0 0.0
      %3983 = vmatpush1.msra.mxu0 0.0
      %3984 = vmatprep.subr.mxu0 0.0
      %3985 = vmatpush1.msra.mxu0 0.0
      %3986 = vmatprep.subr.mxu0 0.0
      %3987 = vmatpush1.msra.mxu0 0.0
      %3988 = vmatprep.subr.mxu0 0.0
      %3989 = vmatpush1.msra.mxu0 0.0
      %3990 = vmatprep.subr.mxu0 0.0
      %3991 = vmatpush1.msra.mxu0 0.0
      %3992 = vmatprep.subr.mxu0 0.0
      %3993 = vmatpush1.msra.mxu0 0.0
      %3994 = vmatprep.subr.mxu0 0.0
      %3995 = vmatpush1.msra.mxu0 0.0
      %3996 = vmatprep.subr.mxu0 0.0
      %3997 = vmatpush1.msra.mxu0 0.0
      %3998 = vmatprep.subr.mxu0 0.0
      %3999 = vmatpush1.msra.mxu0 0.0
      %4000 = vmatprep.subr.mxu0 0.0
      %4001 = vmatpush1.msra.mxu0 0.0
      %4002 = vmatprep.subr.mxu0 0.0
      %4003 = vmatpush1.msra.mxu0 0.0
      %4004 = vmatprep.subr.mxu0 0.0
      %4005 = vmatpush1.msra.mxu0 0.0
      %4006 = vmatprep.subr.mxu0 0.0
      %4007 = vmatpush1.msra.mxu0 0.0
      %4008 = vmatprep.subr.mxu0 0.0
      %4009 = vmatpush1.msra.mxu0 0.0
      %4010 = vmatprep.subr.mxu0 0.0
      %4011 = vmatpush1.msra.mxu0 0.0
      %4012 = vmatprep.subr.mxu0 0.0
      %4013 = vmatpush1.msra.mxu0 0.0
      %4014 = vmatprep.subr.mxu0 0.0
      %4015 = vmatpush1.msra.mxu0 0.0
      %4016 = vmatprep.subr.mxu0 0.0
      %4017 = vmatpush1.msra.mxu0 0.0
      %4018 = vmatprep.subr.mxu0 0.0
      %4019 = vmatpush1.msra.mxu0 0.0
      %4020 = vmatprep.subr.mxu0 0.0
      %4021 = vmatpush1.msra.mxu0 0.0
      %4022 = vmatprep.subr.mxu0 0.0
      %4023 = vmatpush1.msra.mxu0 0.0
      %4024 = vmatprep.subr.mxu0 0.0
      %4025 = vmatpush1.msra.mxu0 0.0
      %4026 = vmatprep.mubr.f32.mxu0 0.0
      %4027 = vmatmul.mubr.f32.gmra.mrb[0].mxu0 %v3960
      %v4028 = vpop.f32.mrb[0].mxu0
      %v4029 = vadd.f32 0.0, %v4028
      %v4030 = vpop.f32.mrb[0].mxu0
      %4031 = vdwg.mxu0
      %v4033 = vsel %vm673, %v2342, 0
      %4035 = vmatprep.subr.mxu0 0.0
      %4036 = vmatpush1.msra.mxu0 %v3947
      %4037 = vmatprep.subr.mxu0 0.0
      %4038 = vmatpush1.msra.mxu0 %v3948
      %4039 = vmatprep.subr.mxu0 0.0
      %4040 = vmatpush1.msra.mxu0 %v3949
      %4041 = vmatprep.subr.mxu0 0.0
      %4042 = vmatpush1.msra.mxu0 %v3950
      %4043 = vmatprep.subr.mxu0 0.0
      %4044 = vmatpush1.msra.mxu0 %v3951
      %4045 = vmatprep.subr.mxu0 0.0
      %4046 = vmatpush1.msra.mxu0 %v3952
      %4047 = vmatprep.subr.mxu0 0.0
      %4048 = vmatpush1.msra.mxu0 0.0
      %4049 = vmatprep.subr.mxu0 0.0
      %4050 = vmatpush1.msra.mxu0 0.0
      %4051 = vmatprep.subr.mxu0 0.0
      %4052 = vmatpush1.msra.mxu0 0.0
      %4053 = vmatprep.subr.mxu0 0.0
      %4054 = vmatpush1.msra.mxu0 0.0
      %4055 = vmatprep.subr.mxu0 0.0
      %4056 = vmatpush1.msra.mxu0 0.0
      %4057 = vmatprep.subr.mxu0 0.0
      %4058 = vmatpush1.msra.mxu0 0.0
      %4059 = vmatprep.subr.mxu0 0.0
      %4060 = vmatpush1.msra.mxu0 0.0
      %4061 = vmatprep.subr.mxu0 0.0
      %4062 = vmatpush1.msra.mxu0 0.0
      %4063 = vmatprep.subr.mxu0 0.0
      %4064 = vmatpush1.msra.mxu0 0.0
      %4065 = vmatprep.subr.mxu0 0.0
      %4066 = vmatpush1.msra.mxu0 0.0
      %4067 = vmatprep.subr.mxu0 0.0
      %4068 = vmatpush1.msra.mxu0 0.0
      %4069 = vmatprep.subr.mxu0 0.0
      %4070 = vmatpush1.msra.mxu0 0.0
      %4071 = vmatprep.subr.mxu0 0.0
      %4072 = vmatpush1.msra.mxu0 0.0
      %4073 = vmatprep.subr.mxu0 0.0
      %4074 = vmatpush1.msra.mxu0 0.0
      %4075 = vmatprep.subr.mxu0 0.0
      %4076 = vmatpush1.msra.mxu0 0.0
      %4077 = vmatprep.subr.mxu0 0.0
      %4078 = vmatpush1.msra.mxu0 0.0
      %4079 = vmatprep.subr.mxu0 0.0
      %4080 = vmatpush1.msra.mxu0 0.0
      %4081 = vmatprep.subr.mxu0 0.0
      %4082 = vmatpush1.msra.mxu0 0.0
      %4083 = vmatprep.subr.mxu0 0.0
      %4084 = vmatpush1.msra.mxu0 0.0
      %4085 = vmatprep.subr.mxu0 0.0
      %4086 = vmatpush1.msra.mxu0 0.0
      %4087 = vmatprep.subr.mxu0 0.0
      %4088 = vmatpush1.msra.mxu0 0.0
      %4089 = vmatprep.subr.mxu0 0.0
      %4090 = vmatpush1.msra.mxu0 0.0
      %4091 = vmatprep.subr.mxu0 0.0
      %4092 = vmatpush1.msra.mxu0 0.0
      %4093 = vmatprep.subr.mxu0 0.0
      %4094 = vmatpush1.msra.mxu0 0.0
      %4095 = vmatprep.subr.mxu0 0.0
      %4096 = vmatpush1.msra.mxu0 0.0
      %4097 = vmatprep.subr.mxu0 0.0
      %4098 = vmatpush1.msra.mxu0 0.0
      %4099 = vmatprep.mubr.f32.mxu0 0.0
      %4100 = vmatmul.mubr.f32.gmra.mrb[0].mxu0 %v4033
      %v4101 = vpop.f32.mrb[0].mxu0
      %v4102 = vadd.f32 %v4029, %v4101
      %v4103 = vpop.f32.mrb[0].mxu0
      %4104 = vdwg.mxu0
      %v4105 = vld [vmem:[%s16] sm:$0x1]
      %v4107 = vlaneseq
      %v4108 = vshrl.u32 %v4107, 7
      %v4109 = vsub.s32 0, %v4108
      %v4110 = vrot.slane %v4105, %v4109
      %v4112 = vadd.f32 %v4102, %v4110
      %v4113 = vsel %vm673, %v4112, 0.0
      %4114 = vadd.xlane.f32.xlu0 %v4113
      %v4115 = vpop.xlane.xlu0 %4114
      %v4116 = vmul.f32 %v4115, %v677
      %v4117 = vsub.f32 %v4112, %v4116
      %v4118 = vmul.f32 %v4117, %v4117
      %v4119 = vsel %vm673, %v4118, 0.0
      %4120 = vadd.xlane.f32.xlu0 %v4119
      %v4121 = vpop.xlane.xlu0 %4120
      %v4122 = vmul.f32 %v4121, %v677
      %v4123 = vadd.f32 %v4122, 1e-05
      %v4124 = vrsqrt.pop %v4123
      %v4125 = vmul.f32 %v4117, %v4124
      %v4126 = vmul.f32 %v4125, %v721
      %v4127 = vadd.f32 %v4126, %v728
      %v4128 = vld [vmem:[%s17] sm:$0xff]
      %v4129 = vld [vmem:[%s17 + $0x8] sm:$0xff]
      %v4130 = vld [vmem:[%s17 + $0x10] sm:$0xff]
      %v4131 = vld [vmem:[%s17 + $0x18] sm:$0xff]
      %v4132 = vld [vmem:[%s17 + $0x20] sm:$0xff]
      %v4133 = vld [vmem:[%s17 + $0x28] sm:$0xff]
      %v4134 = vld [vmem:[%s17 + $0x30] sm:$0xff]
      %v4135 = vld [vmem:[%s17 + $0x38] sm:$0xff]
      %v4136 = vld [vmem:[%s17 + $0x40] sm:$0xff]
      %v4137 = vld [vmem:[%s17 + $0x48] sm:$0xff]
      %v4138 = vld [vmem:[%s17 + $0x50] sm:$0xff]
      %v4139 = vld [vmem:[%s17 + $0x58] sm:$0xff]
      %v4140 = vld [vmem:[%s18] sm:$0x3]
      %v4142 = vlaneseq
      %v4143 = vshrl.u32 %v4142, 7
      %v4144 = vsub.s32 0, %v4143
      %v4145 = vrot.slane %v4140, %v4144
      %v4146 = vlaneseq
      %v4147 = vshrl.u32 %v4146, 7
      %v4148 = vsub.s32 1, %v4147
      %v4149 = vrot.slane %v4140, %v4148
      %v4153 = vsel %vm673, %v4127, 0
      %4155 = vmatprep.subr.mxu0 %v4129
      %4156 = vmatpush1.msra.mxu0 %v4128
      %4157 = vmatprep.subr.mxu0 %v4131
      %4158 = vmatpush1.msra.mxu0 %v4130
      %4159 = vmatprep.subr.mxu0 %v4133
      %4160 = vmatpush1.msra.mxu0 %v4132
      %4161 = vmatprep.subr.mxu0 %v4135
      %4162 = vmatpush1.msra.mxu0 %v4134
      %4163 = vmatprep.subr.mxu0 %v4137
      %4164 = vmatpush1.msra.mxu0 %v4136
      %4165 = vmatprep.subr.mxu0 %v4139
      %4166 = vmatpush1.msra.mxu0 %v4138
      %4167 = vmatprep.subr.mxu0 0.0
      %4168 = vmatpush1.msra.mxu0 0.0
      %4169 = vmatprep.subr.mxu0 0.0
      %4170 = vmatpush1.msra.mxu0 0.0
      %4171 = vmatprep.subr.mxu0 0.0
      %4172 = vmatpush1.msra.mxu0 0.0
      %4173 = vmatprep.subr.mxu0 0.0
      %4174 = vmatpush1.msra.mxu0 0.0
      %4175 = vmatprep.subr.mxu0 0.0
      %4176 = vmatpush1.msra.mxu0 0.0
      %4177 = vmatprep.subr.mxu0 0.0
      %4178 = vmatpush1.msra.mxu0 0.0
      %4179 = vmatprep.subr.mxu0 0.0
      %4180 = vmatpush1.msra.mxu0 0.0
      %4181 = vmatprep.subr.mxu0 0.0
      %4182 = vmatpush1.msra.mxu0 0.0
      %4183 = vmatprep.subr.mxu0 0.0
      %4184 = vmatpush1.msra.mxu0 0.0
      %4185 = vmatprep.subr.mxu0 0.0
      %4186 = vmatpush1.msra.mxu0 0.0
      %4187 = vmatprep.subr.mxu0 0.0
      %4188 = vmatpush1.msra.mxu0 0.0
      %4189 = vmatprep.subr.mxu0 0.0
      %4190 = vmatpush1.msra.mxu0 0.0
      %4191 = vmatprep.subr.mxu0 0.0
      %4192 = vmatpush1.msra.mxu0 0.0
      %4193 = vmatprep.subr.mxu0 0.0
      %4194 = vmatpush1.msra.mxu0 0.0
      %4195 = vmatprep.subr.mxu0 0.0
      %4196 = vmatpush1.msra.mxu0 0.0
      %4197 = vmatprep.subr.mxu0 0.0
      %4198 = vmatpush1.msra.mxu0 0.0
      %4199 = vmatprep.subr.mxu0 0.0
      %4200 = vmatpush1.msra.mxu0 0.0
      %4201 = vmatprep.subr.mxu0 0.0
      %4202 = vmatpush1.msra.mxu0 0.0
      %4203 = vmatprep.subr.mxu0 0.0
      %4204 = vmatpush1.msra.mxu0 0.0
      %4205 = vmatprep.subr.mxu0 0.0
      %4206 = vmatpush1.msra.mxu0 0.0
      %4207 = vmatprep.subr.mxu0 0.0
      %4208 = vmatpush1.msra.mxu0 0.0
      %4209 = vmatprep.subr.mxu0 0.0
      %4210 = vmatpush1.msra.mxu0 0.0
      %4211 = vmatprep.subr.mxu0 0.0
      %4212 = vmatpush1.msra.mxu0 0.0
      %4213 = vmatprep.subr.mxu0 0.0
      %4214 = vmatpush1.msra.mxu0 0.0
      %4215 = vmatprep.subr.mxu0 0.0
      %4216 = vmatpush1.msra.mxu0 0.0
      %4217 = vmatprep.subr.mxu0 0.0
      %4218 = vmatpush1.msra.mxu0 0.0
      %4219 = vmatprep.mubr.f32.mxu0 0.0
      %4220 = vmatmul.mubr.f32.gmra.mrb[0].mxu0 %v4153
      %v4221 = vpop.f32.mrb[0].mxu0
      %v4222 = vadd.f32 %v4145, %v4221
      %v4223 = vpop.f32.mrb[0].mxu0
      %v4224 = vadd.f32 %v4149, %v4223
      %4225 = vdwg.mxu0
      %v4226 = vmul.f32 %v4222, 0.5
      %v4227 = vmul.f32 %v4224, 0.5
      %v4228 = vmul.f32 %v4222, 0.70710677
      %v4229 = vmul.f32 %v4224, 0.70710677
      %v4230 = verf.f32.pop %v4228
      %v4231 = verf.f32.pop %v4229
      %v4232 = vadd.f32 %v4230, 1.0
      %v4233 = vadd.f32 %v4231, 1.0
      %v4234 = vmul.f32 %v4226, %v4232
      %v4235 = vmul.f32 %v4227, %v4233
      %v4236 = vld [vmem:[%s19] sm:$0xff]
      %v4237 = vld [vmem:[%s19 + $0x8] sm:$0xff]
      %v4238 = vld [vmem:[%s19 + $0x10] sm:$0xff]
      %v4239 = vld [vmem:[%s19 + $0x18] sm:$0xff]
      %v4240 = vld [vmem:[%s19 + $0x20] sm:$0xff]
      %v4241 = vld [vmem:[%s19 + $0x28] sm:$0xff]
      %v4242 = vld [vmem:[%s19 + $0x30] sm:$0xff]
      %v4243 = vld [vmem:[%s19 + $0x38] sm:$0xff]
      %v4244 = vld [vmem:[%s19 + $0x40] sm:$0xff]
      %v4245 = vld [vmem:[%s19 + $0x48] sm:$0xff]
      %v4246 = vld [vmem:[%s19 + $0x50] sm:$0xff]
      %v4247 = vld [vmem:[%s19 + $0x58] sm:$0xff]
      %v4248 = vld [vmem:[%s19 + $0x60] sm:$0xff]
      %v4249 = vld [vmem:[%s19 + $0x68] sm:$0xff]
      %v4250 = vld [vmem:[%s19 + $0x70] sm:$0xff]
      %v4251 = vld [vmem:[%s19 + $0x78] sm:$0xff]
      %v4252 = vld [vmem:[%s19 + $0x80] sm:$0xff]
      %v4253 = vld [vmem:[%s19 + $0x88] sm:$0xff]
      %v4254 = vld [vmem:[%s19 + $0x90] sm:$0xff]
      %v4255 = vld [vmem:[%s19 + $0x98] sm:$0xff]
      %v4256 = vld [vmem:[%s19 + $0xa0] sm:$0xff]
      %v4257 = vld [vmem:[%s19 + $0xa8] sm:$0xff]
      %v4258 = vld [vmem:[%s19 + $0xb0] sm:$0xff]
      %v4259 = vld [vmem:[%s19 + $0xb8] sm:$0xff]
      %v4260 = vld [vmem:[%s20] sm:$0x1]
      %v4262 = vlaneseq
      %v4263 = vshrl.u32 %v4262, 7
      %v4264 = vsub.s32 0, %v4263
      %v4265 = vrot.slane %v4260, %v4264
      %vm4267 = vcmask 523264
      %v4269 = vsel %vm4267, %v4235, 0
      %4271 = vmatprep.subr.mxu0 0.0
      %4272 = vmatpush1.msra.mxu0 %v4236
      %4273 = vmatprep.subr.mxu0 0.0
      %4274 = vmatpush1.msra.mxu0 %v4237
      %4275 = vmatprep.subr.mxu0 0.0
      %4276 = vmatpush1.msra.mxu0 %v4238
      %4277 = vmatprep.subr.mxu0 0.0
      %4278 = vmatpush1.msra.mxu0 %v4239
      %4279 = vmatprep.subr.mxu0 0.0
      %4280 = vmatpush1.msra.mxu0 %v4240
      %4281 = vmatprep.subr.mxu0 0.0
      %4282 = vmatpush1.msra.mxu0 %v4241
      %4283 = vmatprep.subr.mxu0 0.0
      %4284 = vmatpush1.msra.mxu0 %v4242
      %4285 = vmatprep.subr.mxu0 0.0
      %4286 = vmatpush1.msra.mxu0 %v4243
      %4287 = vmatprep.subr.mxu0 0.0
      %4288 = vmatpush1.msra.mxu0 %v4244
      %4289 = vmatprep.subr.mxu0 0.0
      %4290 = vmatpush1.msra.mxu0 %v4245
      %4291 = vmatprep.subr.mxu0 0.0
      %4292 = vmatpush1.msra.mxu0 %v4246
      %4293 = vmatprep.subr.mxu0 0.0
      %4294 = vmatpush1.msra.mxu0 %v4247
      %4295 = vmatprep.subr.mxu0 0.0
      %4296 = vmatpush1.msra.mxu0 %v4248
      %4297 = vmatprep.subr.mxu0 0.0
      %4298 = vmatpush1.msra.mxu0 %v4249
      %4299 = vmatprep.subr.mxu0 0.0
      %4300 = vmatpush1.msra.mxu0 %v4250
      %4301 = vmatprep.subr.mxu0 0.0
      %4302 = vmatpush1.msra.mxu0 %v4251
      %4303 = vmatprep.subr.mxu0 0.0
      %4304 = vmatpush1.msra.mxu0 %v4252
      %4305 = vmatprep.subr.mxu0 0.0
      %4306 = vmatpush1.msra.mxu0 %v4253
      %4307 = vmatprep.subr.mxu0 0.0
      %4308 = vmatpush1.msra.mxu0 %v4254
      %4309 = vmatprep.subr.mxu0 0.0
      %4310 = vmatpush1.msra.mxu0 %v4255
      %4311 = vmatprep.subr.mxu0 0.0
      %4312 = vmatpush1.msra.mxu0 %v4256
      %4313 = vmatprep.subr.mxu0 0.0
      %4314 = vmatpush1.msra.mxu0 %v4257
      %4315 = vmatprep.subr.mxu0 0.0
      %4316 = vmatpush1.msra.mxu0 %v4258
      %4317 = vmatprep.subr.mxu0 0.0
      %4318 = vmatpush1.msra.mxu0 %v4259
      %4319 = vmatprep.subr.mxu0 0.0
      %4320 = vmatpush1.msra.mxu0 0.0
      %4321 = vmatprep.subr.mxu0 0.0
      %4322 = vmatpush1.msra.mxu0 0.0
      %4323 = vmatprep.subr.mxu0 0.0
      %4324 = vmatpush1.msra.mxu0 0.0
      %4325 = vmatprep.subr.mxu0 0.0
      %4326 = vmatpush1.msra.mxu0 0.0
      %4327 = vmatprep.subr.mxu0 0.0
      %4328 = vmatpush1.msra.mxu0 0.0
      %4329 = vmatprep.subr.mxu0 0.0
      %4330 = vmatpush1.msra.mxu0 0.0
      %4331 = vmatprep.subr.mxu0 0.0
      %4332 = vmatpush1.msra.mxu0 0.0
      %4333 = vmatprep.subr.mxu0 0.0
      %4334 = vmatpush1.msra.mxu0 0.0
      %4335 = vmatprep.mubr.f32.mxu0 %v4269
      %4336 = vmatmul.mubr.f32.gmra.mrb[0].mxu0 %v4234
      %v4337 = vpop.f32.mrb[0].mxu0
      %v4338 = vadd.f32 %v4265, %v4337
      %v4339 = vpop.f32.mrb[0].mxu0
      %4340 = vdwg.mxu0
      %v4341 = vadd.f32 %v4112, %v4338
      %4342 = vst.msk [vmem:[%s668] sm:$0xff] %vm673, %v4341
      %p4343 = scmp.lt.s32.totalorder %s32, 1
      %s4344 = scalar_select %p4343, %s32, 1
      %s4345 = smul.addr %s4344, 8
      %s4346 = scalar_lea.vmem %s21, %s4345
      // Predicated region
      $region105: #{vision_transformer_forward.8} parent=103 // pred_check
        %p4347 = pneg %p501
      $region106: #{vision_transformer_forward.8} parent=103 // pred_check_branch
        %4349 = sbr.rel (%p4347) target = $region108
      $region107: #{vision_transformer_forward.8} parent=103 // pred_region
        _
      $region108: #{vision_transformer_forward.8} parent=103 // pred_fallthru
        _
    $region104: #{vision_transformer_forward.8} parent=5 // pred_fallthru
      _
    %p4350 = scmp.le.s32.totalorder 2, %s27
    // Predicated region
    $region109: #{vision_transformer_forward.8} parent=5 // pred_check
      %p4351 = pneg %p4350
    $region110: #{vision_transformer_forward.8} parent=5 // pred_check_branch
      %4353 = sbr.rel (%p4351) target = $region112
    $region111: #{vision_transformer_forward.8} parent=5 // pred_region
      %s4354 = ssub.s32 %s27, 2
      // Predicated region
      $region113: #{vision_transformer_forward.8} parent=111 // pred_check
        %p4355 = pneg %p507
      $region114: #{vision_transformer_forward.8} parent=111 // pred_check_branch
        %4357 = sbr.rel (%p4355) target = $region116
      $region115: #{vision_transformer_forward.8} parent=111 // pred_region
        %p4358 = scmp.lt.s32.totalorder %s33, 1
        %s4359 = scalar_select %p4358, %s33, 1
        %s4360 = smul.addr %s4359, 8
        %s4361 = scalar_lea.vmem %s21, %s4360
      $region116: #{vision_transformer_forward.8} parent=111 // pred_fallthru
        _
    $region112: #{vision_transformer_forward.8} parent=5 // pred_fallthru
      _
  $region6: #{vision_transformer_forward.8} parent=0 // loop_footer
    %s31 = sadd.s32 1, %s27
  $region7: #{vision_transformer_forward.8} parent=0 // loop_footer_branch
    %26 = sbr.rel target = $region3
  $region8: #{vision_transformer_forward.8} parent=0 // loop_exit
    _

// kernel: vision_transformer_forward.9
$region0: #{vision_transformer_forward.9}
  #allocation0 [shape = 'u32[]', space=smem, size = 0x4, offset = 0x4, fixed_abs, tag = 'smem constant byte address 0x4 - core index']
  #allocation1 [shape = 'u32[144,128]{1,0:T(1,128)}', space=vmem, size = 0x12000, scoped, tag = 'internal scratch']
  #allocation2 [shape = 'f32[8,48]{1,0:T(8,128)}', space=vmem, size = 0x1000, scoped, tag = 'scratch operand']
  %s0 = inlined_call_operand.vmem [shape: f32[16,48], index: 0, kind: input, shape index: {}]
  %s1 = inlined_call_operand.vmem [shape: f32[2,1,48], index: 1, kind: input, shape index: {}]
  %s2 = inlined_call_operand.vmem [shape: f32[2,1,48], index: 2, kind: input, shape index: {}]
  %s3 = inlined_call_operand.vmem [shape: f32[2,48,144], index: 3, kind: input, shape index: {}]
  %s4 = inlined_call_operand.vmem [shape: f32[2,48,48], index: 4, kind: input, shape index: {}]
  %s5 = inlined_call_operand.vmem [shape: f32[2,1,48], index: 5, kind: input, shape index: {}]
  %s6 = inlined_call_operand.vmem [shape: f32[2,1,48], index: 6, kind: input, shape index: {}]
  %s7 = inlined_call_operand.vmem [shape: f32[2,1,48], index: 7, kind: input, shape index: {}]
  %s8 = inlined_call_operand.vmem [shape: f32[2,48,192], index: 8, kind: input, shape index: {}]
  %s9 = inlined_call_operand.vmem [shape: f32[2,1,192], index: 9, kind: input, shape index: {}]
  %s10 = inlined_call_operand.vmem [shape: f32[2,192,48], index: 10, kind: input, shape index: {}]
  %s11 = inlined_call_operand.vmem [shape: f32[2,1,48], index: 11, kind: input, shape index: {}]
  %s12 = inlined_call_operand.vmem [shape: f32[16,48], index: 12, kind: output, shape index: {}]
  %s13 = sld [smem:[#allocation0]]
  $region89: #{vision_transformer_forward.9} parent=0
    _
  %s15 = ssub.s32 1, %s13
  %s16 = scalar_select 0, %s15, %s13
  loop: start=0, step=1, limit=6
  $region2: #{vision_transformer_forward.9} parent=0 // loop_pre_header
    _
  $region3: #{vision_transformer_forward.9} parent=0 // loop_header
    %s18 = sphi 0, %s22
    %p19 = scmp.ge.s32.totalorder %s18, 6
    %s25 = sphi 0, %s37
    %s26 = sphi 0, %s33
    %s27 = sphi 0, %s25
    %s28 = sphi 0, %s26
    %s29 = sphi 0, %s27
    %s30 = sphi 0, %s28
    %s40 = sphi 0, %s42
    %s43 = sphi 0, %s40
    %s44 = sphi 0, %s43
    %s60 = sphi 0, %s44
    %s66 = sphi 0, %s68
    %s69 = sphi 0, %s66
    %s70 = sphi 0, %s69
    %s86 = sphi 0, %s70
    %s92 = sphi 0, %s94
    %s95 = sphi 0, %s92
    %s96 = sphi 0, %s95
    %s112 = sphi 0, %s96
    %s118 = sphi 0, %s120
    %s121 = sphi 0, %s118
    %s122 = sphi 0, %s121
    %s138 = sphi 0, %s122
    %s144 = sphi 0, %s146
    %s147 = sphi 0, %s144
    %s148 = sphi 0, %s147
    %s164 = sphi 0, %s148
    %s170 = sphi 0, %s172
    %s173 = sphi 0, %s170
    %s174 = sphi 0, %s173
    %s190 = sphi 0, %s174
    %s196 = sphi 0, %s198
    %s199 = sphi 0, %s196
    %s200 = sphi 0, %s199
    %s216 = sphi 0, %s200
    %s222 = sphi 0, %s224
    %s225 = sphi 0, %s222
    %s226 = sphi 0, %s225
    %s242 = sphi 0, %s226
    %s248 = sphi 0, %s250
    %s251 = sphi 0, %s248
    %s252 = sphi 0, %s251
    %s268 = sphi 0, %s252
    %s274 = sphi 0, %s276
    %s277 = sphi 0, %s274
    %s278 = sphi 0, %s277
    %s294 = sphi 0, %s278
    %s300 = sphi 0, %s302
    %s303 = sphi 0, %s300
    %s304 = sphi 0, %s303
    %s320 = sphi 0, %s304
    %s326 = sphi 0, %s328
    %s329 = sphi 0, %s326
    %s330 = sphi 0, %s329
    %s346 = sphi 0, %s330
    %s352 = sphi 0, %s354
    %s355 = sphi 0, %s352
    %s356 = sphi 0, %s355
    %s372 = sphi 0, %s356
  $region4: #{vision_transformer_forward.9} parent=0 // loop_header_branch
    %21 = sbr.rel (%p19) target = $region8
  $region5: #{vision_transformer_forward.9} parent=0 // loop_body
    %s23 = ssub.s32 %s18, 1
    %s24 = ssub.s32 %s18, 2
    %s31 = sadd.s32 1, %s26
    %p32 = scmp.ge.s32.totalorder %s31, 2
    %s33 = scalar_select %p32, 0, %s31
    %s34 = sadd.s32 1, %s25
    %s35 = scalar_select %p32, %s34, %s25
    %p36 = scmp.ge.s32.totalorder %s35, 2
    %s37 = scalar_select %p36, 0, %s35
    %s38 = ssub.s32 %s25, %s37
    %p39 = scmp.eq.s32.totalorder %s38, 0
    %s41 = sadd.s32 %s40, 1
    %s42 = scalar_select %p39, %s40, %s41
    %p45 = pneg %p39
    %p46 = scmp.eq.s32.totalorder %s18, 3
    %p47 = por %p45, %p46
    %p48 = scmp.ne.s32.totalorder %s40, %s43
    %p49 = scmp.eq.s32.totalorder %s18, 0
    %p50 = por %p48, %p49
    %p51 = scmp.ne.s32.totalorder %s40, %s43
    %p52 = scmp.eq.s32.totalorder %s23, 3
    %p53 = por %p51, %p52
    %p54 = scmp.ne.s32.totalorder %s43, %s44
    %p55 = scmp.eq.s32.totalorder %s23, 0
    %p56 = por %p54, %p55
    %p57 = scmp.ne.s32.totalorder %s43, %s44
    %p58 = scmp.eq.s32.totalorder %s24, 3
    %p59 = por %p57, %p58
    %p61 = scmp.ne.s32.totalorder %s44, %s60
    %p62 = scmp.eq.s32.totalorder %s24, 0
    %p63 = por %p61, %p62
    %s64 = ssub.s32 %s26, %s33
    %p65 = scmp.eq.s32.totalorder %s64, 0
    %s67 = sadd.s32 %s66, 1
    %s68 = scalar_select %p65, %s66, %s67
    %p71 = pneg %p65
    %p72 = scmp.eq.s32.totalorder %s18, 3
    %p73 = por %p71, %p72
    %p74 = scmp.ne.s32.totalorder %s66, %s69
    %p75 = scmp.eq.s32.totalorder %s18, 0
    %p76 = por %p74, %p75
    %p77 = scmp.ne.s32.totalorder %s66, %s69
    %p78 = scmp.eq.s32.totalorder %s23, 3
    %p79 = por %p77, %p78
    %p80 = scmp.ne.s32.totalorder %s69, %s70
    %p81 = scmp.eq.s32.totalorder %s23, 0
    %p82 = por %p80, %p81
    %p83 = scmp.ne.s32.totalorder %s69, %s70
    %p84 = scmp.eq.s32.totalorder %s24, 3
    %p85 = por %p83, %p84
    %p87 = scmp.ne.s32.totalorder %s70, %s86
    %p88 = scmp.eq.s32.totalorder %s24, 0
    %p89 = por %p87, %p88
    %s90 = ssub.s32 %s26, %s33
    %p91 = scmp.eq.s32.totalorder %s90, 0
    %s93 = sadd.s32 %s92, 1
    %s94 = scalar_select %p91, %s92, %s93
    %p97 = pneg %p91
    %p98 = scmp.eq.s32.totalorder %s18, 3
    %p99 = por %p97, %p98
    %p100 = scmp.ne.s32.totalorder %s92, %s95
    %p101 = scmp.eq.s32.totalorder %s18, 0
    %p102 = por %p100, %p101
    %p103 = scmp.ne.s32.totalorder %s92, %s95
    %p104 = scmp.eq.s32.totalorder %s23, 3
    %p105 = por %p103, %p104
    %p106 = scmp.ne.s32.totalorder %s95, %s96
    %p107 = scmp.eq.s32.totalorder %s23, 0
    %p108 = por %p106, %p107
    %p109 = scmp.ne.s32.totalorder %s95, %s96
    %p110 = scmp.eq.s32.totalorder %s24, 3
    %p111 = por %p109, %p110
    %p113 = scmp.ne.s32.totalorder %s96, %s112
    %p114 = scmp.eq.s32.totalorder %s24, 0
    %p115 = por %p113, %p114
    %s116 = ssub.s32 %s26, %s33
    %p117 = scmp.eq.s32.totalorder %s116, 0
    %s119 = sadd.s32 %s118, 1
    %s120 = scalar_select %p117, %s118, %s119
    %p123 = pneg %p117
    %p124 = scmp.eq.s32.totalorder %s18, 3
    %p125 = por %p123, %p124
    %p126 = scmp.ne.s32.totalorder %s118, %s121
    %p127 = scmp.eq.s32.totalorder %s18, 0
    %p128 = por %p126, %p127
    %p129 = scmp.ne.s32.totalorder %s118, %s121
    %p130 = scmp.eq.s32.totalorder %s23, 3
    %p131 = por %p129, %p130
    %p132 = scmp.ne.s32.totalorder %s121, %s122
    %p133 = scmp.eq.s32.totalorder %s23, 0
    %p134 = por %p132, %p133
    %p135 = scmp.ne.s32.totalorder %s121, %s122
    %p136 = scmp.eq.s32.totalorder %s24, 3
    %p137 = por %p135, %p136
    %p139 = scmp.ne.s32.totalorder %s122, %s138
    %p140 = scmp.eq.s32.totalorder %s24, 0
    %p141 = por %p139, %p140
    %s142 = ssub.s32 %s26, %s33
    %p143 = scmp.eq.s32.totalorder %s142, 0
    %s145 = sadd.s32 %s144, 1
    %s146 = scalar_select %p143, %s144, %s145
    %p149 = pneg %p143
    %p150 = scmp.eq.s32.totalorder %s18, 3
    %p151 = por %p149, %p150
    %p152 = scmp.ne.s32.totalorder %s144, %s147
    %p153 = scmp.eq.s32.totalorder %s18, 0
    %p154 = por %p152, %p153
    %p155 = scmp.ne.s32.totalorder %s144, %s147
    %p156 = scmp.eq.s32.totalorder %s23, 3
    %p157 = por %p155, %p156
    %p158 = scmp.ne.s32.totalorder %s147, %s148
    %p159 = scmp.eq.s32.totalorder %s23, 0
    %p160 = por %p158, %p159
    %p161 = scmp.ne.s32.totalorder %s147, %s148
    %p162 = scmp.eq.s32.totalorder %s24, 3
    %p163 = por %p161, %p162
    %p165 = scmp.ne.s32.totalorder %s148, %s164
    %p166 = scmp.eq.s32.totalorder %s24, 0
    %p167 = por %p165, %p166
    %s168 = ssub.s32 %s26, %s33
    %p169 = scmp.eq.s32.totalorder %s168, 0
    %s171 = sadd.s32 %s170, 1
    %s172 = scalar_select %p169, %s170, %s171
    %p175 = pneg %p169
    %p176 = scmp.eq.s32.totalorder %s18, 3
    %p177 = por %p175, %p176
    %p178 = scmp.ne.s32.totalorder %s170, %s173
    %p179 = scmp.eq.s32.totalorder %s18, 0
    %p180 = por %p178, %p179
    %p181 = scmp.ne.s32.totalorder %s170, %s173
    %p182 = scmp.eq.s32.totalorder %s23, 3
    %p183 = por %p181, %p182
    %p184 = scmp.ne.s32.totalorder %s173, %s174
    %p185 = scmp.eq.s32.totalorder %s23, 0
    %p186 = por %p184, %p185
    %p187 = scmp.ne.s32.totalorder %s173, %s174
    %p188 = scmp.eq.s32.totalorder %s24, 3
    %p189 = por %p187, %p188
    %p191 = scmp.ne.s32.totalorder %s174, %s190
    %p192 = scmp.eq.s32.totalorder %s24, 0
    %p193 = por %p191, %p192
    %s194 = ssub.s32 %s26, %s33
    %p195 = scmp.eq.s32.totalorder %s194, 0
    %s197 = sadd.s32 %s196, 1
    %s198 = scalar_select %p195, %s196, %s197
    %p201 = pneg %p195
    %p202 = scmp.eq.s32.totalorder %s18, 3
    %p203 = por %p201, %p202
    %p204 = scmp.ne.s32.totalorder %s196, %s199
    %p205 = scmp.eq.s32.totalorder %s18, 0
    %p206 = por %p204, %p205
    %p207 = scmp.ne.s32.totalorder %s196, %s199
    %p208 = scmp.eq.s32.totalorder %s23, 3
    %p209 = por %p207, %p208
    %p210 = scmp.ne.s32.totalorder %s199, %s200
    %p211 = scmp.eq.s32.totalorder %s23, 0
    %p212 = por %p210, %p211
    %p213 = scmp.ne.s32.totalorder %s199, %s200
    %p214 = scmp.eq.s32.totalorder %s24, 3
    %p215 = por %p213, %p214
    %p217 = scmp.ne.s32.totalorder %s200, %s216
    %p218 = scmp.eq.s32.totalorder %s24, 0
    %p219 = por %p217, %p218
    %s220 = ssub.s32 %s26, %s33
    %p221 = scmp.eq.s32.totalorder %s220, 0
    %s223 = sadd.s32 %s222, 1
    %s224 = scalar_select %p221, %s222, %s223
    %p227 = pneg %p221
    %p228 = scmp.eq.s32.totalorder %s18, 3
    %p229 = por %p227, %p228
    %p230 = scmp.ne.s32.totalorder %s222, %s225
    %p231 = scmp.eq.s32.totalorder %s18, 0
    %p232 = por %p230, %p231
    %p233 = scmp.ne.s32.totalorder %s222, %s225
    %p234 = scmp.eq.s32.totalorder %s23, 3
    %p235 = por %p233, %p234
    %p236 = scmp.ne.s32.totalorder %s225, %s226
    %p237 = scmp.eq.s32.totalorder %s23, 0
    %p238 = por %p236, %p237
    %p239 = scmp.ne.s32.totalorder %s225, %s226
    %p240 = scmp.eq.s32.totalorder %s24, 3
    %p241 = por %p239, %p240
    %p243 = scmp.ne.s32.totalorder %s226, %s242
    %p244 = scmp.eq.s32.totalorder %s24, 0
    %p245 = por %p243, %p244
    %s246 = ssub.s32 %s26, %s33
    %p247 = scmp.eq.s32.totalorder %s246, 0
    %s249 = sadd.s32 %s248, 1
    %s250 = scalar_select %p247, %s248, %s249
    %p253 = pneg %p247
    %p254 = scmp.eq.s32.totalorder %s18, 3
    %p255 = por %p253, %p254
    %p256 = scmp.ne.s32.totalorder %s248, %s251
    %p257 = scmp.eq.s32.totalorder %s18, 0
    %p258 = por %p256, %p257
    %p259 = scmp.ne.s32.totalorder %s248, %s251
    %p260 = scmp.eq.s32.totalorder %s23, 3
    %p261 = por %p259, %p260
    %p262 = scmp.ne.s32.totalorder %s251, %s252
    %p263 = scmp.eq.s32.totalorder %s23, 0
    %p264 = por %p262, %p263
    %p265 = scmp.ne.s32.totalorder %s251, %s252
    %p266 = scmp.eq.s32.totalorder %s24, 3
    %p267 = por %p265, %p266
    %p269 = scmp.ne.s32.totalorder %s252, %s268
    %p270 = scmp.eq.s32.totalorder %s24, 0
    %p271 = por %p269, %p270
    %s272 = ssub.s32 %s26, %s33
    %p273 = scmp.eq.s32.totalorder %s272, 0
    %s275 = sadd.s32 %s274, 1
    %s276 = scalar_select %p273, %s274, %s275
    %p279 = pneg %p273
    %p280 = scmp.eq.s32.totalorder %s18, 3
    %p281 = por %p279, %p280
    %p282 = scmp.ne.s32.totalorder %s274, %s277
    %p283 = scmp.eq.s32.totalorder %s18, 0
    %p284 = por %p282, %p283
    %p285 = scmp.ne.s32.totalorder %s274, %s277
    %p286 = scmp.eq.s32.totalorder %s23, 3
    %p287 = por %p285, %p286
    %p288 = scmp.ne.s32.totalorder %s277, %s278
    %p289 = scmp.eq.s32.totalorder %s23, 0
    %p290 = por %p288, %p289
    %p291 = scmp.ne.s32.totalorder %s277, %s278
    %p292 = scmp.eq.s32.totalorder %s24, 3
    %p293 = por %p291, %p292
    %p295 = scmp.ne.s32.totalorder %s278, %s294
    %p296 = scmp.eq.s32.totalorder %s24, 0
    %p297 = por %p295, %p296
    %s298 = ssub.s32 %s26, %s33
    %p299 = scmp.eq.s32.totalorder %s298, 0
    %s301 = sadd.s32 %s300, 1
    %s302 = scalar_select %p299, %s300, %s301
    %p305 = pneg %p299
    %p306 = scmp.eq.s32.totalorder %s18, 3
    %p307 = por %p305, %p306
    %p308 = scmp.ne.s32.totalorder %s300, %s303
    %p309 = scmp.eq.s32.totalorder %s18, 0
    %p310 = por %p308, %p309
    %p311 = scmp.ne.s32.totalorder %s300, %s303
    %p312 = scmp.eq.s32.totalorder %s23, 3
    %p313 = por %p311, %p312
    %p314 = scmp.ne.s32.totalorder %s303, %s304
    %p315 = scmp.eq.s32.totalorder %s23, 0
    %p316 = por %p314, %p315
    %p317 = scmp.ne.s32.totalorder %s303, %s304
    %p318 = scmp.eq.s32.totalorder %s24, 3
    %p319 = por %p317, %p318
    %p321 = scmp.ne.s32.totalorder %s304, %s320
    %p322 = scmp.eq.s32.totalorder %s24, 0
    %p323 = por %p321, %p322
    %s324 = ssub.s32 %s26, %s33
    %p325 = scmp.eq.s32.totalorder %s324, 0
    %s327 = sadd.s32 %s326, 1
    %s328 = scalar_select %p325, %s326, %s327
    %p331 = pneg %p325
    %p332 = scmp.eq.s32.totalorder %s18, 3
    %p333 = por %p331, %p332
    %p334 = scmp.ne.s32.totalorder %s326, %s329
    %p335 = scmp.eq.s32.totalorder %s18, 0
    %p336 = por %p334, %p335
    %p337 = scmp.ne.s32.totalorder %s326, %s329
    %p338 = scmp.eq.s32.totalorder %s23, 3
    %p339 = por %p337, %p338
    %p340 = scmp.ne.s32.totalorder %s329, %s330
    %p341 = scmp.eq.s32.totalorder %s23, 0
    %p342 = por %p340, %p341
    %p343 = scmp.ne.s32.totalorder %s329, %s330
    %p344 = scmp.eq.s32.totalorder %s24, 3
    %p345 = por %p343, %p344
    %p347 = scmp.ne.s32.totalorder %s330, %s346
    %p348 = scmp.eq.s32.totalorder %s24, 0
    %p349 = por %p347, %p348
    %s350 = ssub.s32 %s25, %s37
    %p351 = scmp.eq.s32.totalorder %s350, 0
    %s353 = sadd.s32 %s352, 1
    %s354 = scalar_select %p351, %s352, %s353
    %p357 = pneg %p351
    %p358 = scmp.eq.s32.totalorder %s18, 3
    %p359 = por %p357, %p358
    %p360 = scmp.ne.s32.totalorder %s352, %s355
    %p361 = scmp.eq.s32.totalorder %s18, 0
    %p362 = por %p360, %p361
    %p363 = scmp.ne.s32.totalorder %s352, %s355
    %p364 = scmp.eq.s32.totalorder %s23, 3
    %p365 = por %p363, %p364
    %p366 = scmp.ne.s32.totalorder %s355, %s356
    %p367 = scmp.eq.s32.totalorder %s23, 0
    %p368 = por %p366, %p367
    %p369 = scmp.ne.s32.totalorder %s355, %s356
    %p370 = scmp.eq.s32.totalorder %s24, 3
    %p371 = por %p369, %p370
    %p373 = scmp.ne.s32.totalorder %s356, %s372
    %p374 = scmp.eq.s32.totalorder %s24, 0
    %p375 = por %p373, %p374
    %p376 = scmp.le.s32.totalorder 1, %s18
    %p377 = scmp.lt.s32.totalorder %s18, 5
    %p378 = pnand %p376, %p377
    %p379 = pneg %p378
    // Predicated region
    $region9: #{vision_transformer_forward.9} parent=5 // pred_check
      _
    $region10: #{vision_transformer_forward.9} parent=5 // pred_check_branch
      %381 = sbr.rel (%p378) target = $region12
    $region11: #{vision_transformer_forward.9} parent=5 // pred_region
      %s382 = ssub.s32 %s18, 1
    $region12: #{vision_transformer_forward.9} parent=5 // pred_fallthru
      _
    %p383 = scmp.lt.s32.totalorder %s18, 4
    // Predicated region
    $region13: #{vision_transformer_forward.9} parent=5 // pred_check
      %p384 = pneg %p383
    $region14: #{vision_transformer_forward.9} parent=5 // pred_check_branch
      %386 = sbr.rel (%p384) target = $region16
    $region15: #{vision_transformer_forward.9} parent=5 // pred_region
      // Predicated region
      $region17: #{vision_transformer_forward.9} parent=15 // pred_check
        %p387 = pneg %p50
      $region18: #{vision_transformer_forward.9} parent=15 // pred_check_branch
        %389 = sbr.rel (%p387) target = $region20
      $region19: #{vision_transformer_forward.9} parent=15 // pred_region
        %p390 = scmp.lt.s32.totalorder %s25, 1
        %s391 = scalar_select %p390, %s25, 1
        %s392 = smul.addr %s391, 8
        %s393 = scalar_lea.vmem %s0, %s392
      $region20: #{vision_transformer_forward.9} parent=15 // pred_fallthru
        _
      // Predicated region
      $region21: #{vision_transformer_forward.9} parent=15 // pred_check
        %p394 = pneg %p76
      $region22: #{vision_transformer_forward.9} parent=15 // pred_check_branch
        %396 = sbr.rel (%p394) target = $region24
      $region23: #{vision_transformer_forward.9} parent=15 // pred_region
        %p397 = scmp.lt.s32.totalorder %s26, 1
        %s398 = scalar_select %p397, %s26, 1
        %s399 = scalar_lea.vmem %s1, %s398
      $region24: #{vision_transformer_forward.9} parent=15 // pred_fallthru
        _
      // Predicated region
      $region25: #{vision_transformer_forward.9} parent=15 // pred_check
        %p400 = pneg %p102
      $region26: #{vision_transformer_forward.9} parent=15 // pred_check_branch
        %402 = sbr.rel (%p400) target = $region28
      $region27: #{vision_transformer_forward.9} parent=15 // pred_region
        %p403 = scmp.lt.s32.totalorder %s26, 1
        %s404 = scalar_select %p403, %s26, 1
        %s405 = scalar_lea.vmem %s2, %s404
      $region28: #{vision_transformer_forward.9} parent=15 // pred_fallthru
        _
      // Predicated region
      $region29: #{vision_transformer_forward.9} parent=15 // pred_check
        %p406 = pneg %p128
      $region30: #{vision_transformer_forward.9} parent=15 // pred_check_branch
        %408 = sbr.rel (%p406) target = $region32
      $region31: #{vision_transformer_forward.9} parent=15 // pred_region
        %p409 = scmp.lt.s32.totalorder %s26, 1
        %s410 = scalar_select %p409, %s26, 1
        %s411 = smul.addr %s410, 12
        %s412 = smul.addr %s411, 8
        %s413 = scalar_lea.vmem %s3, %s412
      $region32: #{vision_transformer_forward.9} parent=15 // pred_fallthru
        _
      // Predicated region
      $region33: #{vision_transformer_forward.9} parent=15 // pred_check
        %p414 = pneg %p154
      $region34: #{vision_transformer_forward.9} parent=15 // pred_check_branch
        %416 = sbr.rel (%p414) target = $region36
      $region35: #{vision_transformer_forward.9} parent=15 // pred_region
        %p417 = scmp.lt.s32.totalorder %s26, 1
        %s418 = scalar_select %p417, %s26, 1
        %s419 = smul.addr %s418, 6
        %s420 = smul.addr %s419, 8
        %s421 = scalar_lea.vmem %s4, %s420
      $region36: #{vision_transformer_forward.9} parent=15 // pred_fallthru
        _
      // Predicated region
      $region37: #{vision_transformer_forward.9} parent=15 // pred_check
        %p422 = pneg %p180
      $region38: #{vision_transformer_forward.9} parent=15 // pred_check_branch
        %424 = sbr.rel (%p422) target = $region40
      $region39: #{vision_transformer_forward.9} parent=15 // pred_region
        %p425 = scmp.lt.s32.totalorder %s26, 1
        %s426 = scalar_select %p425, %s26, 1
        %s427 = scalar_lea.vmem %s5, %s426
      $region40: #{vision_transformer_forward.9} parent=15 // pred_fallthru
        _
      // Predicated region
      $region41: #{vision_transformer_forward.9} parent=15 // pred_check
        %p428 = pneg %p206
      $region42: #{vision_transformer_forward.9} parent=15 // pred_check_branch
        %430 = sbr.rel (%p428) target = $region44
      $region43: #{vision_transformer_forward.9} parent=15 // pred_region
        %p431 = scmp.lt.s32.totalorder %s26, 1
        %s432 = scalar_select %p431, %s26, 1
        %s433 = scalar_lea.vmem %s6, %s432
      $region44: #{vision_transformer_forward.9} parent=15 // pred_fallthru
        _
      // Predicated region
      $region45: #{vision_transformer_forward.9} parent=15 // pred_check
        %p434 = pneg %p232
      $region46: #{vision_transformer_forward.9} parent=15 // pred_check_branch
        %436 = sbr.rel (%p434) target = $region48
      $region47: #{vision_transformer_forward.9} parent=15 // pred_region
        %p437 = scmp.lt.s32.totalorder %s26, 1
        %s438 = scalar_select %p437, %s26, 1
        %s439 = scalar_lea.vmem %s7, %s438
      $region48: #{vision_transformer_forward.9} parent=15 // pred_fallthru
        _
      // Predicated region
      $region49: #{vision_transformer_forward.9} parent=15 // pred_check
        %p440 = pneg %p258
      $region50: #{vision_transformer_forward.9} parent=15 // pred_check_branch
        %442 = sbr.rel (%p440) target = $region52
      $region51: #{vision_transformer_forward.9} parent=15 // pred_region
        %p443 = scmp.lt.s32.totalorder %s26, 1
        %s444 = scalar_select %p443, %s26, 1
        %s445 = smul.addr %s444, 12
        %s446 = smul.addr %s445, 8
        %s447 = scalar_lea.vmem %s8, %s446
      $region52: #{vision_transformer_forward.9} parent=15 // pred_fallthru
        _
      // Predicated region
      $region53: #{vision_transformer_forward.9} parent=15 // pred_check
        %p448 = pneg %p284
      $region54: #{vision_transformer_forward.9} parent=15 // pred_check_branch
        %450 = sbr.rel (%p448) target = $region56
      $region55: #{vision_transformer_forward.9} parent=15 // pred_region
        %p451 = scmp.lt.s32.totalorder %s26, 1
        %s452 = scalar_select %p451, %s26, 1
        %s453 = smul.addr %s452, 2
        %s454 = scalar_lea.vmem %s9, %s453
      $region56: #{vision_transformer_forward.9} parent=15 // pred_fallthru
        _
      // Predicated region
      $region57: #{vision_transformer_forward.9} parent=15 // pred_check
        %p455 = pneg %p310
      $region58: #{vision_transformer_forward.9} parent=15 // pred_check_branch
        %457 = sbr.rel (%p455) target = $region60
      $region59: #{vision_transformer_forward.9} parent=15 // pred_region
        %p458 = scmp.lt.s32.totalorder %s26, 1
        %s459 = scalar_select %p458, %s26, 1
        %s460 = smul.addr %s459, 24
        %s461 = smul.addr %s460, 8
        %s462 = scalar_lea.vmem %s10, %s461
      $region60: #{vision_transformer_forward.9} parent=15 // pred_fallthru
        _
      // Predicated region
      $region61: #{vision_transformer_forward.9} parent=15 // pred_check
        %p463 = pneg %p336
      $region62: #{vision_transformer_forward.9} parent=15 // pred_check_branch
        %465 = sbr.rel (%p463) target = $region64
      $region63: #{vision_transformer_forward.9} parent=15 // pred_region
        %p466 = scmp.lt.s32.totalorder %s26, 1
        %s467 = scalar_select %p466, %s26, 1
        %s468 = scalar_lea.vmem %s11, %s467
      $region64: #{vision_transformer_forward.9} parent=15 // pred_fallthru
        _
    $region16: #{vision_transformer_forward.9} parent=5 // pred_fallthru
      _
    %p469 = scmp.le.s32.totalorder 1, %s18
    %p470 = scmp.lt.s32.totalorder %s18, 5
    %p471 = pnand %p469, %p470
    %p472 = pneg %p471
    // Predicated region
    $region65: #{vision_transformer_forward.9} parent=5 // pred_check
      _
    $region66: #{vision_transformer_forward.9} parent=5 // pred_check_branch
      %474 = sbr.rel (%p471) target = $region68
    $region67: #{vision_transformer_forward.9} parent=5 // pred_region
      %s475 = ssub.s32 %s18, 1
      %p476 = scmp.lt.s32.totalorder %s27, 1
      %s477 = scalar_select %p476, %s27, 1
      %s478 = smul.addr %s477, 8
      %s479 = scalar_lea.vmem %s0, %s478
      %p480 = pneg %p56
      %p481 = pneg %p53
      %p482 = scmp.lt.s32.totalorder %s28, 1
      %s483 = scalar_select %p482, %s28, 1
      %s484 = scalar_lea.vmem %s1, %s483
      %p485 = pneg %p82
      %p486 = pneg %p79
      %p487 = scmp.lt.s32.totalorder %s28, 1
      %s488 = scalar_select %p487, %s28, 1
      %s489 = scalar_lea.vmem %s2, %s488
      %p490 = pneg %p108
      %p491 = pneg %p105
      %p492 = scmp.lt.s32.totalorder %s28, 1
      %s493 = scalar_select %p492, %s28, 1
      %s494 = smul.addr %s493, 12
      %s495 = smul.addr %s494, 8
      %s496 = scalar_lea.vmem %s3, %s495
      %p497 = pneg %p134
      %p498 = pneg %p131
      %p499 = scmp.lt.s32.totalorder %s28, 1
      %s500 = scalar_select %p499, %s28, 1
      %s501 = smul.addr %s500, 6
      %s502 = smul.addr %s501, 8
      %s503 = scalar_lea.vmem %s4, %s502
      %p504 = pneg %p160
      %p505 = pneg %p157
      %p506 = scmp.lt.s32.totalorder %s28, 1
      %s507 = scalar_select %p506, %s28, 1
      %s508 = scalar_lea.vmem %s5, %s507
      %p509 = pneg %p186
      %p510 = pneg %p183
      %p511 = scmp.lt.s32.totalorder %s28, 1
      %s512 = scalar_select %p511, %s28, 1
      %s513 = scalar_lea.vmem %s6, %s512
      %p514 = pneg %p212
      %p515 = pneg %p209
      %p516 = scmp.lt.s32.totalorder %s28, 1
      %s517 = scalar_select %p516, %s28, 1
      %s518 = scalar_lea.vmem %s7, %s517
      %p519 = pneg %p238
      %p520 = pneg %p235
      %p521 = scmp.lt.s32.totalorder %s28, 1
      %s522 = scalar_select %p521, %s28, 1
      %s523 = smul.addr %s522, 12
      %s524 = smul.addr %s523, 8
      %s525 = scalar_lea.vmem %s8, %s524
      %p526 = pneg %p264
      %p527 = pneg %p261
      %p528 = scmp.lt.s32.totalorder %s28, 1
      %s529 = scalar_select %p528, %s28, 1
      %s530 = smul.addr %s529, 2
      %s531 = scalar_lea.vmem %s9, %s530
      %p532 = pneg %p290
      %p533 = pneg %p287
      %p534 = scmp.lt.s32.totalorder %s28, 1
      %s535 = scalar_select %p534, %s28, 1
      %s536 = smul.addr %s535, 24
      %s537 = smul.addr %s536, 8
      %s538 = scalar_lea.vmem %s10, %s537
      %p539 = pneg %p316
      %p540 = pneg %p313
      %p541 = scmp.lt.s32.totalorder %s28, 1
      %s542 = scalar_select %p541, %s28, 1
      %s543 = scalar_lea.vmem %s11, %s542
      %p544 = pneg %p342
      %p545 = pneg %p339
      %p546 = pneg %p368
      %p547 = pneg %p365
      %p548 = scmp.lt.s32.totalorder %s27, 1
      %s549 = scalar_select %p548, %s27, 1
      %s550 = smul.addr %s549, 8
      %s551 = scalar_lea.vmem %s12, %s550
      %p552 = scmp.lt.s32.totalorder %s27, 1
      %s553 = scalar_select %p552, %s27, 1
      %s554 = smul.addr %s553, 8
      %s555 = scalar_lea.vmem %s0, %s554
      %p556 = scmp.lt.s32.totalorder %s28, 1
      %s557 = scalar_select %p556, %s28, 1
      %s558 = scalar_lea.vmem %s1, %s557
      %p559 = scmp.lt.s32.totalorder %s28, 1
      %s560 = scalar_select %p559, %s28, 1
      %s561 = scalar_lea.vmem %s2, %s560
      %p562 = scmp.lt.s32.totalorder %s28, 1
      %s563 = scalar_select %p562, %s28, 1
      %s564 = smul.addr %s563, 12
      %s565 = smul.addr %s564, 8
      %s566 = scalar_lea.vmem %s3, %s565
      %p567 = scmp.lt.s32.totalorder %s28, 1
      %s568 = scalar_select %p567, %s28, 1
      %s569 = smul.addr %s568, 6
      %s570 = smul.addr %s569, 8
      %s571 = scalar_lea.vmem %s4, %s570
      %p572 = scmp.lt.s32.totalorder %s28, 1
      %s573 = scalar_select %p572, %s28, 1
      %s574 = scalar_lea.vmem %s5, %s573
      %p575 = scmp.lt.s32.totalorder %s28, 1
      %s576 = scalar_select %p575, %s28, 1
      %s577 = scalar_lea.vmem %s6, %s576
      %p578 = scmp.lt.s32.totalorder %s28, 1
      %s579 = scalar_select %p578, %s28, 1
      %s580 = scalar_lea.vmem %s7, %s579
      %p581 = scmp.lt.s32.totalorder %s28, 1
      %s582 = scalar_select %p581, %s28, 1
      %s583 = smul.addr %s582, 12
      %s584 = smul.addr %s583, 8
      %s585 = scalar_lea.vmem %s8, %s584
      %p586 = scmp.lt.s32.totalorder %s28, 1
      %s587 = scalar_select %p586, %s28, 1
      %s588 = smul.addr %s587, 2
      %s589 = scalar_lea.vmem %s9, %s588
      %p590 = scmp.lt.s32.totalorder %s28, 1
      %s591 = scalar_select %p590, %s28, 1
      %s592 = smul.addr %s591, 24
      %s593 = smul.addr %s592, 8
      %s594 = scalar_lea.vmem %s10, %s593
      %p595 = scmp.lt.s32.totalorder %s28, 1
      %s596 = scalar_select %p595, %s28, 1
      %s597 = scalar_lea.vmem %s11, %s596
      %p598 = scmp.lt.s32.totalorder %s27, 1
      %s599 = scalar_select %p598, %s27, 1
      %s600 = smul.addr %s599, 8
      %s601 = scalar_lea.vmem %s12, %s600
      %p602 = scmp.eq.s32.totalorder %s28, 0
      // Predicated region
      $region69: #{vision_transformer_forward.9} parent=67 // pred_check
        %p603 = pneg %p602
      $region70: #{vision_transformer_forward.9} parent=67 // pred_check_branch
        %605 = sbr.rel (%p603) target = $region72
      $region71: #{vision_transformer_forward.9} parent=67 // pred_region
        %v606 = vld [vmem:[%s555] sm:$0xff]
        %vm607 = vcmask 392192
        %608 = vst.msk [vmem:[#allocation2] sm:$0xff] %vm607, %v606
      $region72: #{vision_transformer_forward.9} parent=67 // pred_fallthru
        _
      %v609 = vld [vmem:[#allocation2] sm:$0xff]
      %v610 = vld [vmem:[%s558] sm:$0x1]
      %v611 = vld [vmem:[%s561] sm:$0x1]
      %vm612 = vcmask 392192
      %v613 = vsel %vm612, %v609, 0.0
      %614 = vadd.xlane.f32.xlu0 %v613
      %v615 = vpop.xlane.xlu0 %614
      %v616 = vrcp.pop 48.0
      %v617 = vmul.f32 %v615, %v616
      %v618 = vsub.f32 %v609, %v617
      %v619 = vmul.f32 %v618, %v618
      %v620 = vsel %vm612, %v619, 0.0
      %621 = vadd.xlane.f32.xlu0 %v620
      %v622 = vpop.xlane.xlu0 %621
      %v623 = vmul.f32 %v622, %v616
      %v624 = vadd.f32 %v623, 1e-05
      %v625 = vrsqrt.pop %v624
      %v626 = vmul.f32 %v618, %v625
      %v628 = vlaneseq
      %v629 = vshrl.u32 %v628, 7
      %v630 = vsub.s32 0, %v629
      %v631 = vrot.slane %v610, %v630
      %v633 = vmul.f32 %v626, %v631
      %v635 = vlaneseq
      %v636 = vshrl.u32 %v635, 7
      %v637 = vsub.s32 0, %v636
      %v638 = vrot.slane %v611, %v637
      %v640 = vadd.f32 %v633, %v638
      %v641 = vld [vmem:[%s566] sm:$0xff]
      %v642 = vld [vmem:[%s566 + $0x8] sm:$0xff]
      %v643 = vld [vmem:[%s566 + $0x10] sm:$0xff]
      %v644 = vld [vmem:[%s566 + $0x18] sm:$0xff]
      %v645 = vld [vmem:[%s566 + $0x20] sm:$0xff]
      %v646 = vld [vmem:[%s566 + $0x28] sm:$0xff]
      %v647 = vld [vmem:[%s566 + $0x30] sm:$0xff]
      %v648 = vld [vmem:[%s566 + $0x38] sm:$0xff]
      %v649 = vld [vmem:[%s566 + $0x40] sm:$0xff]
      %v650 = vld [vmem:[%s566 + $0x48] sm:$0xff]
      %v651 = vld [vmem:[%s566 + $0x50] sm:$0xff]
      %v652 = vld [vmem:[%s566 + $0x58] sm:$0xff]
      %v654 = vsel %vm612, %v640, 0
      %656 = vmatprep.subr.mxu0 %v642
      %657 = vmatpush1.msra.mxu0 %v641
      %658 = vmatprep.subr.mxu0 %v644
      %659 = vmatpush1.msra.mxu0 %v643
      %660 = vmatprep.subr.mxu0 %v646
      %661 = vmatpush1.msra.mxu0 %v645
      %662 = vmatprep.subr.mxu0 %v648
      %663 = vmatpush1.msra.mxu0 %v647
      %664 = vmatprep.subr.mxu0 %v650
      %665 = vmatpush1.msra.mxu0 %v649
      %666 = vmatprep.subr.mxu0 %v652
      %667 = vmatpush1.msra.mxu0 %v651
      %668 = vmatprep.subr.mxu0 0.0
      %669 = vmatpush1.msra.mxu0 0.0
      %670 = vmatprep.subr.mxu0 0.0
      %671 = vmatpush1.msra.mxu0 0.0
      %672 = vmatprep.subr.mxu0 0.0
      %673 = vmatpush1.msra.mxu0 0.0
      %674 = vmatprep.subr.mxu0 0.0
      %675 = vmatpush1.msra.mxu0 0.0
      %676 = vmatprep.subr.mxu0 0.0
      %677 = vmatpush1.msra.mxu0 0.0
      %678 = vmatprep.subr.mxu0 0.0
      %679 = vmatpush1.msra.mxu0 0.0
      %680 = vmatprep.subr.mxu0 0.0
      %681 = vmatpush1.msra.mxu0 0.0
      %682 = vmatprep.subr.mxu0 0.0
      %683 = vmatpush1.msra.mxu0 0.0
      %684 = vmatprep.subr.mxu0 0.0
      %685 = vmatpush1.msra.mxu0 0.0
      %686 = vmatprep.subr.mxu0 0.0
      %687 = vmatpush1.msra.mxu0 0.0
      %688 = vmatprep.subr.mxu0 0.0
      %689 = vmatpush1.msra.mxu0 0.0
      %690 = vmatprep.subr.mxu0 0.0
      %691 = vmatpush1.msra.mxu0 0.0
      %692 = vmatprep.subr.mxu0 0.0
      %693 = vmatpush1.msra.mxu0 0.0
      %694 = vmatprep.subr.mxu0 0.0
      %695 = vmatpush1.msra.mxu0 0.0
      %696 = vmatprep.subr.mxu0 0.0
      %697 = vmatpush1.msra.mxu0 0.0
      %698 = vmatprep.subr.mxu0 0.0
      %699 = vmatpush1.msra.mxu0 0.0
      %700 = vmatprep.subr.mxu0 0.0
      %701 = vmatpush1.msra.mxu0 0.0
      %702 = vmatprep.subr.mxu0 0.0
      %703 = vmatpush1.msra.mxu0 0.0
      %704 = vmatprep.subr.mxu0 0.0
      %705 = vmatpush1.msra.mxu0 0.0
      %706 = vmatprep.subr.mxu0 0.0
      %707 = vmatpush1.msra.mxu0 0.0
      %708 = vmatprep.subr.mxu0 0.0
      %709 = vmatpush1.msra.mxu0 0.0
      %710 = vmatprep.subr.mxu0 0.0
      %711 = vmatpush1.msra.mxu0 0.0
      %712 = vmatprep.subr.mxu0 0.0
      %713 = vmatpush1.msra.mxu0 0.0
      %714 = vmatprep.subr.mxu0 0.0
      %715 = vmatpush1.msra.mxu0 0.0
      %716 = vmatprep.subr.mxu0 0.0
      %717 = vmatpush1.msra.mxu0 0.0
      %718 = vmatprep.subr.mxu0 0.0
      %719 = vmatpush1.msra.mxu0 0.0
      %720 = vmatprep.mubr.f32.mxu0 0.0
      %721 = vmatmul.mubr.f32.gmra.mrb[0].mxu0 %v654
      %v722 = vpop.f32.mrb[0].mxu0
      %v723 = vadd.f32 0.0, %v722
      %v724 = vpop.f32.mrb[0].mxu0
      %v725 = vadd.f32 0.0, %v724
      %726 = vdwg.mxu0
      %v728 = vcombine.high %v723, %v723
      %v730 = vcombine.low %v723, %v725
      %v731 = vcombine.high %v723, %v725
      %732 = vrot.lane.b32.xlu0 %v723, 80
      %v733 = vpop.permute.xlu0 %732
      %vm734 = vcmask 97280
      %v735 = vsel %vm734, %v723, 0
      %v737 = vsel %vm734, %v733, 0
      %739 = vmatprep.subr.mxu0 0.0
      %740 = vmatpush1.xpose.msra.mxu0 %v737
      %741 = vmatprep.subr.mxu0 0.0
      %742 = vmatpush1.xpose.msra.mxu0 0.0
      %743 = vmatprep.subr.mxu0 0.0
      %744 = vmatpush1.xpose.msra.mxu0 0.0
      %745 = vmatprep.subr.mxu0 0.0
      %746 = vmatpush1.xpose.msra.mxu0 0.0
      %747 = vmatprep.subr.mxu0 0.0
      %748 = vmatpush1.xpose.msra.mxu0 0.0
      %749 = vmatprep.subr.mxu0 0.0
      %750 = vmatpush1.xpose.msra.mxu0 0.0
      %751 = vmatprep.subr.mxu0 0.0
      %752 = vmatpush1.xpose.msra.mxu0 0.0
      %753 = vmatprep.subr.mxu0 0.0
      %754 = vmatpush1.xpose.msra.mxu0 0.0
      %755 = vmatprep.subr.mxu0 0.0
      %756 = vmatpush1.xpose.msra.mxu0 0.0
      %757 = vmatprep.subr.mxu0 0.0
      %758 = vmatpush1.xpose.msra.mxu0 0.0
      %759 = vmatprep.subr.mxu0 0.0
      %760 = vmatpush1.xpose.msra.mxu0 0.0
      %761 = vmatprep.subr.mxu0 0.0
      %762 = vmatpush1.xpose.msra.mxu0 0.0
      %763 = vmatprep.subr.mxu0 0.0
      %764 = vmatpush1.xpose.msra.mxu0 0.0
      %765 = vmatprep.subr.mxu0 0.0
      %766 = vmatpush1.xpose.msra.mxu0 0.0
      %767 = vmatprep.subr.mxu0 0.0
      %768 = vmatpush1.xpose.msra.mxu0 0.0
      %769 = vmatprep.subr.mxu0 0.0
      %770 = vmatpush1.xpose.msra.mxu0 0.0
      %771 = vmatprep.subr.mxu0 0.0
      %772 = vmatpush1.xpose.msra.mxu0 0.0
      %773 = vmatprep.subr.mxu0 0.0
      %774 = vmatpush1.xpose.msra.mxu0 0.0
      %775 = vmatprep.subr.mxu0 0.0
      %776 = vmatpush1.xpose.msra.mxu0 0.0
      %777 = vmatprep.subr.mxu0 0.0
      %778 = vmatpush1.xpose.msra.mxu0 0.0
      %779 = vmatprep.subr.mxu0 0.0
      %780 = vmatpush1.xpose.msra.mxu0 0.0
      %781 = vmatprep.subr.mxu0 0.0
      %782 = vmatpush1.xpose.msra.mxu0 0.0
      %783 = vmatprep.subr.mxu0 0.0
      %784 = vmatpush1.xpose.msra.mxu0 0.0
      %785 = vmatprep.subr.mxu0 0.0
      %786 = vmatpush1.xpose.msra.mxu0 0.0
      %787 = vmatprep.subr.mxu0 0.0
      %788 = vmatpush1.xpose.msra.mxu0 0.0
      %789 = vmatprep.subr.mxu0 0.0
      %790 = vmatpush1.xpose.msra.mxu0 0.0
      %791 = vmatprep.subr.mxu0 0.0
      %792 = vmatpush1.xpose.msra.mxu0 0.0
      %793 = vmatprep.subr.mxu0 0.0
      %794 = vmatpush1.xpose.msra.mxu0 0.0
      %795 = vmatprep.subr.mxu0 0.0
      %796 = vmatpush1.xpose.msra.mxu0 0.0
      %797 = vmatprep.subr.mxu0 0.0
      %798 = vmatpush1.xpose.msra.mxu0 0.0
      %799 = vmatprep.subr.mxu0 0.0
      %800 = vmatpush1.xpose.msra.mxu0 0.0
      %801 = vmatprep.subr.mxu0 0.0
      %802 = vmatpush1.xpose.msra.mxu0 0.0
      %803 = vmatprep.mubr.f32.mxu0 0.0
      %804 = vmatmul.mubr.f32.gmra.mrb[0].mxu0 %v735
      %v805 = vpop.f32.mrb[0].mxu0
      %v806 = vadd.f32 0.0, %v805
      %v807 = vpop.f32.mrb[0].mxu0
      %808 = vdwg.mxu0
      %809 = vrot.lane.b32.xlu0 %v728, 80
      %v810 = vpop.permute.xlu0 %809
      %v811 = vsel %vm734, %v728, 0
      %v813 = vsel %vm734, %v810, 0
      %815 = vmatprep.subr.mxu0 0.0
      %816 = vmatpush1.xpose.msra.mxu0 %v813
      %817 = vmatprep.subr.mxu0 0.0
      %818 = vmatpush1.xpose.msra.mxu0 0.0
      %819 = vmatprep.subr.mxu0 0.0
      %820 = vmatpush1.xpose.msra.mxu0 0.0
      %821 = vmatprep.subr.mxu0 0.0
      %822 = vmatpush1.xpose.msra.mxu0 0.0
      %823 = vmatprep.subr.mxu0 0.0
      %824 = vmatpush1.xpose.msra.mxu0 0.0
      %825 = vmatprep.subr.mxu0 0.0
      %826 = vmatpush1.xpose.msra.mxu0 0.0
      %827 = vmatprep.subr.mxu0 0.0
      %828 = vmatpush1.xpose.msra.mxu0 0.0
      %829 = vmatprep.subr.mxu0 0.0
      %830 = vmatpush1.xpose.msra.mxu0 0.0
      %831 = vmatprep.subr.mxu0 0.0
      %832 = vmatpush1.xpose.msra.mxu0 0.0
      %833 = vmatprep.subr.mxu0 0.0
      %834 = vmatpush1.xpose.msra.mxu0 0.0
      %835 = vmatprep.subr.mxu0 0.0
      %836 = vmatpush1.xpose.msra.mxu0 0.0
      %837 = vmatprep.subr.mxu0 0.0
      %838 = vmatpush1.xpose.msra.mxu0 0.0
      %839 = vmatprep.subr.mxu0 0.0
      %840 = vmatpush1.xpose.msra.mxu0 0.0
      %841 = vmatprep.subr.mxu0 0.0
      %842 = vmatpush1.xpose.msra.mxu0 0.0
      %843 = vmatprep.subr.mxu0 0.0
      %844 = vmatpush1.xpose.msra.mxu0 0.0
      %845 = vmatprep.subr.mxu0 0.0
      %846 = vmatpush1.xpose.msra.mxu0 0.0
      %847 = vmatprep.subr.mxu0 0.0
      %848 = vmatpush1.xpose.msra.mxu0 0.0
      %849 = vmatprep.subr.mxu0 0.0
      %850 = vmatpush1.xpose.msra.mxu0 0.0
      %851 = vmatprep.subr.mxu0 0.0
      %852 = vmatpush1.xpose.msra.mxu0 0.0
      %853 = vmatprep.subr.mxu0 0.0
      %854 = vmatpush1.xpose.msra.mxu0 0.0
      %855 = vmatprep.subr.mxu0 0.0
      %856 = vmatpush1.xpose.msra.mxu0 0.0
      %857 = vmatprep.subr.mxu0 0.0
      %858 = vmatpush1.xpose.msra.mxu0 0.0
      %859 = vmatprep.subr.mxu0 0.0
      %860 = vmatpush1.xpose.msra.mxu0 0.0
      %861 = vmatprep.subr.mxu0 0.0
      %862 = vmatpush1.xpose.msra.mxu0 0.0
      %863 = vmatprep.subr.mxu0 0.0
      %864 = vmatpush1.xpose.msra.mxu0 0.0
      %865 = vmatprep.subr.mxu0 0.0
      %866 = vmatpush1.xpose.msra.mxu0 0.0
      %867 = vmatprep.subr.mxu0 0.0
      %868 = vmatpush1.xpose.msra.mxu0 0.0
      %869 = vmatprep.subr.mxu0 0.0
      %870 = vmatpush1.xpose.msra.mxu0 0.0
      %871 = vmatprep.subr.mxu0 0.0
      %872 = vmatpush1.xpose.msra.mxu0 0.0
      %873 = vmatprep.subr.mxu0 0.0
      %874 = vmatpush1.xpose.msra.mxu0 0.0
      %875 = vmatprep.subr.mxu0 0.0
      %876 = vmatpush1.xpose.msra.mxu0 0.0
      %877 = vmatprep.subr.mxu0 0.0
      %878 = vmatpush1.xpose.msra.mxu0 0.0
      %879 = vmatprep.mubr.f32.mxu0 0.0
      %880 = vmatmul.mubr.f32.gmra.mrb[0].mxu0 %v811
      %v881 = vpop.f32.mrb[0].mxu0
      %v882 = vadd.f32 0.0, %v881
      %v883 = vpop.f32.mrb[0].mxu0
      %884 = vdwg.mxu0
      %v885 = vmul.f32 %v806, 0.28867513
      %v886 = vmul.f32 %v882, 0.28867513
      %vm887 = vcmask 27648
      %v888 = vsel %vm887, %v885, -inf
      %889 = vmax.xlane.f32.xlu0 %v888
      %v890 = vpop.xlane.xlu0 %889
      %v891 = vsel %vm887, %v886, -inf
      %892 = vmax.xlane.f32.xlu0 %v891
      %v893 = vpop.xlane.xlu0 %892
      %v894 = vsub.f32 %v885, %v890
      %v895 = vsub.f32 %v886, %v893
      %v896 = vmul.f32 %v894, 1.442695
      %v897 = vpow.pop %v896
      %v898 = vmul.f32 %v895, 1.442695
      %v899 = vpow.pop %v898
      %v900 = vsel %vm887, %v897, 0.0
      %901 = vadd.xlane.f32.xlu0 %v900
      %v902 = vpop.xlane.xlu0 %901
      %v903 = vsel %vm887, %v899, 0.0
      %904 = vadd.xlane.f32.xlu0 %v903
      %v905 = vpop.xlane.xlu0 %904
      %v906 = vrcp.pop %v902
      %v907 = vrcp.pop %v905
      %v908 = vmul.f32 %v897, %v906
      %v909 = vmul.f32 %v899, %v907
      %910 = vrot.lane.b32.xlu0 %v730, 32
      %v911 = vpop.permute.xlu0 %910
      %vm912 = vcmask 31744
      %v914 = vsel %vm912, %v908, 0
      %vm916 = vcmask 1043456
      %v917 = vsel %vm916, %v911, 0
      %919 = vmatprep.subr.mxu0 0.0
      %920 = vmatpush1.msra.mxu0 %v917
      %921 = vmatprep.subr.mxu0 0.0
      %922 = vmatpush1.msra.mxu0 0.0
      %923 = vmatprep.subr.mxu0 0.0
      %924 = vmatpush1.msra.mxu0 0.0
      %925 = vmatprep.subr.mxu0 0.0
      %926 = vmatpush1.msra.mxu0 0.0
      %927 = vmatprep.subr.mxu0 0.0
      %928 = vmatpush1.msra.mxu0 0.0
      %929 = vmatprep.subr.mxu0 0.0
      %930 = vmatpush1.msra.mxu0 0.0
      %931 = vmatprep.subr.mxu0 0.0
      %932 = vmatpush1.msra.mxu0 0.0
      %933 = vmatprep.subr.mxu0 0.0
      %934 = vmatpush1.msra.mxu0 0.0
      %935 = vmatprep.subr.mxu0 0.0
      %936 = vmatpush1.msra.mxu0 0.0
      %937 = vmatprep.subr.mxu0 0.0
      %938 = vmatpush1.msra.mxu0 0.0
      %939 = vmatprep.subr.mxu0 0.0
      %940 = vmatpush1.msra.mxu0 0.0
      %941 = vmatprep.subr.mxu0 0.0
      %942 = vmatpush1.msra.mxu0 0.0
      %943 = vmatprep.subr.mxu0 0.0
      %944 = vmatpush1.msra.mxu0 0.0
      %945 = vmatprep.subr.mxu0 0.0
      %946 = vmatpush1.msra.mxu0 0.0
      %947 = vmatprep.subr.mxu0 0.0
      %948 = vmatpush1.msra.mxu0 0.0
      %949 = vmatprep.subr.mxu0 0.0
      %950 = vmatpush1.msra.mxu0 0.0
      %951 = vmatprep.subr.mxu0 0.0
      %952 = vmatpush1.msra.mxu0 0.0
      %953 = vmatprep.subr.mxu0 0.0
      %954 = vmatpush1.msra.mxu0 0.0
      %955 = vmatprep.subr.mxu0 0.0
      %956 = vmatpush1.msra.mxu0 0.0
      %957 = vmatprep.subr.mxu0 0.0
      %958 = vmatpush1.msra.mxu0 0.0
      %959 = vmatprep.subr.mxu0 0.0
      %960 = vmatpush1.msra.mxu0 0.0
      %961 = vmatprep.subr.mxu0 0.0
      %962 = vmatpush1.msra.mxu0 0.0
      %963 = vmatprep.subr.mxu0 0.0
      %964 = vmatpush1.msra.mxu0 0.0
      %965 = vmatprep.subr.mxu0 0.0
      %966 = vmatpush1.msra.mxu0 0.0
      %967 = vmatprep.subr.mxu0 0.0
      %968 = vmatpush1.msra.mxu0 0.0
      %969 = vmatprep.subr.mxu0 0.0
      %970 = vmatpush1.msra.mxu0 0.0
      %971 = vmatprep.subr.mxu0 0.0
      %972 = vmatpush1.msra.mxu0 0.0
      %973 = vmatprep.subr.mxu0 0.0
      %974 = vmatpush1.msra.mxu0 0.0
      %975 = vmatprep.subr.mxu0 0.0
      %976 = vmatpush1.msra.mxu0 0.0
      %977 = vmatprep.subr.mxu0 0.0
      %978 = vmatpush1.msra.mxu0 0.0
      %979 = vmatprep.subr.mxu0 0.0
      %980 = vmatpush1.msra.mxu0 0.0
      %981 = vmatprep.subr.mxu0 0.0
      %982 = vmatpush1.msra.mxu0 0.0
      %983 = vmatprep.mubr.f32.mxu0 0.0
      %984 = vmatmul.mubr.f32.gmra.mrb[0].mxu0 %v914
      %v985 = vpop.f32.mrb[0].mxu0
      %v986 = vadd.f32 0.0, %v985
      %v987 = vpop.f32.mrb[0].mxu0
      %988 = vdwg.mxu0
      %989 = vrot.lane.b32.xlu0 %v731, 32
      %v990 = vpop.permute.xlu0 %989
      %v992 = vsel %vm912, %v909, 0
      %v994 = vsel %vm916, %v990, 0
      %996 = vmatprep.subr.mxu0 0.0
      %997 = vmatpush1.msra.mxu0 %v994
      %998 = vmatprep.subr.mxu0 0.0
      %999 = vmatpush1.msra.mxu0 0.0
      %1000 = vmatprep.subr.mxu0 0.0
      %1001 = vmatpush1.msra.mxu0 0.0
      %1002 = vmatprep.subr.mxu0 0.0
      %1003 = vmatpush1.msra.mxu0 0.0
      %1004 = vmatprep.subr.mxu0 0.0
      %1005 = vmatpush1.msra.mxu0 0.0
      %1006 = vmatprep.subr.mxu0 0.0
      %1007 = vmatpush1.msra.mxu0 0.0
      %1008 = vmatprep.subr.mxu0 0.0
      %1009 = vmatpush1.msra.mxu0 0.0
      %1010 = vmatprep.subr.mxu0 0.0
      %1011 = vmatpush1.msra.mxu0 0.0
      %1012 = vmatprep.subr.mxu0 0.0
      %1013 = vmatpush1.msra.mxu0 0.0
      %1014 = vmatprep.subr.mxu0 0.0
      %1015 = vmatpush1.msra.mxu0 0.0
      %1016 = vmatprep.subr.mxu0 0.0
      %1017 = vmatpush1.msra.mxu0 0.0
      %1018 = vmatprep.subr.mxu0 0.0
      %1019 = vmatpush1.msra.mxu0 0.0
      %1020 = vmatprep.subr.mxu0 0.0
      %1021 = vmatpush1.msra.mxu0 0.0
      %1022 = vmatprep.subr.mxu0 0.0
      %1023 = vmatpush1.msra.mxu0 0.0
      %1024 = vmatprep.subr.mxu0 0.0
      %1025 = vmatpush1.msra.mxu0 0.0
      %1026 = vmatprep.subr.mxu0 0.0
      %1027 = vmatpush1.msra.mxu0 0.0
      %1028 = vmatprep.subr.mxu0 0.0
      %1029 = vmatpush1.msra.mxu0 0.0
      %1030 = vmatprep.subr.mxu0 0.0
      %1031 = vmatpush1.msra.mxu0 0.0
      %1032 = vmatprep.subr.mxu0 0.0
      %1033 = vmatpush1.msra.mxu0 0.0
      %1034 = vmatprep.subr.mxu0 0.0
      %1035 = vmatpush1.msra.mxu0 0.0
      %1036 = vmatprep.subr.mxu0 0.0
      %1037 = vmatpush1.msra.mxu0 0.0
      %1038 = vmatprep.subr.mxu0 0.0
      %1039 = vmatpush1.msra.mxu0 0.0
      %1040 = vmatprep.subr.mxu0 0.0
      %1041 = vmatpush1.msra.mxu0 0.0
      %1042 = vmatprep.subr.mxu0 0.0
      %1043 = vmatpush1.msra.mxu0 0.0
      %1044 = vmatprep.subr.mxu0 0.0
      %1045 = vmatpush1.msra.mxu0 0.0
      %1046 = vmatprep.subr.mxu0 0.0
      %1047 = vmatpush1.msra.mxu0 0.0
      %1048 = vmatprep.subr.mxu0 0.0
      %1049 = vmatpush1.msra.mxu0 0.0
      %1050 = vmatprep.subr.mxu0 0.0
      %1051 = vmatpush1.msra.mxu0 0.0
      %1052 = vmatprep.subr.mxu0 0.0
      %1053 = vmatpush1.msra.mxu0 0.0
      %1054 = vmatprep.subr.mxu0 0.0
      %1055 = vmatpush1.msra.mxu0 0.0
      %1056 = vmatprep.subr.mxu0 0.0
      %1057 = vmatpush1.msra.mxu0 0.0
      %1058 = vmatprep.subr.mxu0 0.0
      %1059 = vmatpush1.msra.mxu0 0.0
      %1060 = vmatprep.mubr.f32.mxu0 0.0
      %1061 = vmatmul.mubr.f32.gmra.mrb[0].mxu0 %v992
      %v1062 = vpop.f32.mrb[0].mxu0
      %v1063 = vadd.f32 0.0, %v1062
      %v1064 = vpop.f32.mrb[0].mxu0
      %1065 = vdwg.mxu0
      %1066 = vrot.lane.b32.xlu0 %v723, 116
      %v1067 = vpop.permute.xlu0 %1066
      %1068 = vrot.lane.b32.xlu0 %v723, 68
      %v1069 = vpop.permute.xlu0 %1068
      %v1070 = vsel %vm734, %v1067, 0
      %v1072 = vsel %vm734, %v1069, 0
      %1074 = vmatprep.subr.mxu0 0.0
      %1075 = vmatpush1.xpose.msra.mxu0 %v1072
      %1076 = vmatprep.subr.mxu0 0.0
      %1077 = vmatpush1.xpose.msra.mxu0 0.0
      %1078 = vmatprep.subr.mxu0 0.0
      %1079 = vmatpush1.xpose.msra.mxu0 0.0
      %1080 = vmatprep.subr.mxu0 0.0
      %1081 = vmatpush1.xpose.msra.mxu0 0.0
      %1082 = vmatprep.subr.mxu0 0.0
      %1083 = vmatpush1.xpose.msra.mxu0 0.0
      %1084 = vmatprep.subr.mxu0 0.0
      %1085 = vmatpush1.xpose.msra.mxu0 0.0
      %1086 = vmatprep.subr.mxu0 0.0
      %1087 = vmatpush1.xpose.msra.mxu0 0.0
      %1088 = vmatprep.subr.mxu0 0.0
      %1089 = vmatpush1.xpose.msra.mxu0 0.0
      %1090 = vmatprep.subr.mxu0 0.0
      %1091 = vmatpush1.xpose.msra.mxu0 0.0
      %1092 = vmatprep.subr.mxu0 0.0
      %1093 = vmatpush1.xpose.msra.mxu0 0.0
      %1094 = vmatprep.subr.mxu0 0.0
      %1095 = vmatpush1.xpose.msra.mxu0 0.0
      %1096 = vmatprep.subr.mxu0 0.0
      %1097 = vmatpush1.xpose.msra.mxu0 0.0
      %1098 = vmatprep.subr.mxu0 0.0
      %1099 = vmatpush1.xpose.msra.mxu0 0.0
      %1100 = vmatprep.subr.mxu0 0.0
      %1101 = vmatpush1.xpose.msra.mxu0 0.0
      %1102 = vmatprep.subr.mxu0 0.0
      %1103 = vmatpush1.xpose.msra.mxu0 0.0
      %1104 = vmatprep.subr.mxu0 0.0
      %1105 = vmatpush1.xpose.msra.mxu0 0.0
      %1106 = vmatprep.subr.mxu0 0.0
      %1107 = vmatpush1.xpose.msra.mxu0 0.0
      %1108 = vmatprep.subr.mxu0 0.0
      %1109 = vmatpush1.xpose.msra.mxu0 0.0
      %1110 = vmatprep.subr.mxu0 0.0
      %1111 = vmatpush1.xpose.msra.mxu0 0.0
      %1112 = vmatprep.subr.mxu0 0.0
      %1113 = vmatpush1.xpose.msra.mxu0 0.0
      %1114 = vmatprep.subr.mxu0 0.0
      %1115 = vmatpush1.xpose.msra.mxu0 0.0
      %1116 = vmatprep.subr.mxu0 0.0
      %1117 = vmatpush1.xpose.msra.mxu0 0.0
      %1118 = vmatprep.subr.mxu0 0.0
      %1119 = vmatpush1.xpose.msra.mxu0 0.0
      %1120 = vmatprep.subr.mxu0 0.0
      %1121 = vmatpush1.xpose.msra.mxu0 0.0
      %1122 = vmatprep.subr.mxu0 0.0
      %1123 = vmatpush1.xpose.msra.mxu0 0.0
      %1124 = vmatprep.subr.mxu0 0.0
      %1125 = vmatpush1.xpose.msra.mxu0 0.0
      %1126 = vmatprep.subr.mxu0 0.0
      %1127 = vmatpush1.xpose.msra.mxu0 0.0
      %1128 = vmatprep.subr.mxu0 0.0
      %1129 = vmatpush1.xpose.msra.mxu0 0.0
      %1130 = vmatprep.subr.mxu0 0.0
      %1131 = vmatpush1.xpose.msra.mxu0 0.0
      %1132 = vmatprep.subr.mxu0 0.0
      %1133 = vmatpush1.xpose.msra.mxu0 0.0
      %1134 = vmatprep.subr.mxu0 0.0
      %1135 = vmatpush1.xpose.msra.mxu0 0.0
      %1136 = vmatprep.subr.mxu0 0.0
      %1137 = vmatpush1.xpose.msra.mxu0 0.0
      %1138 = vmatprep.mubr.f32.mxu0 0.0
      %1139 = vmatmul.mubr.f32.gmra.mrb[0].mxu0 %v1070
      %v1140 = vpop.f32.mrb[0].mxu0
      %v1141 = vadd.f32 0.0, %v1140
      %v1142 = vpop.f32.mrb[0].mxu0
      %1143 = vdwg.mxu0
      %1144 = vrot.lane.b32.xlu0 %v728, 116
      %v1145 = vpop.permute.xlu0 %1144
      %1146 = vrot.lane.b32.xlu0 %v728, 68
      %v1147 = vpop.permute.xlu0 %1146
      %v1148 = vsel %vm734, %v1145, 0
      %v1150 = vsel %vm734, %v1147, 0
      %1152 = vmatprep.subr.mxu0 0.0
      %1153 = vmatpush1.xpose.msra.mxu0 %v1150
      %1154 = vmatprep.subr.mxu0 0.0
      %1155 = vmatpush1.xpose.msra.mxu0 0.0
      %1156 = vmatprep.subr.mxu0 0.0
      %1157 = vmatpush1.xpose.msra.mxu0 0.0
      %1158 = vmatprep.subr.mxu0 0.0
      %1159 = vmatpush1.xpose.msra.mxu0 0.0
      %1160 = vmatprep.subr.mxu0 0.0
      %1161 = vmatpush1.xpose.msra.mxu0 0.0
      %1162 = vmatprep.subr.mxu0 0.0
      %1163 = vmatpush1.xpose.msra.mxu0 0.0
      %1164 = vmatprep.subr.mxu0 0.0
      %1165 = vmatpush1.xpose.msra.mxu0 0.0
      %1166 = vmatprep.subr.mxu0 0.0
      %1167 = vmatpush1.xpose.msra.mxu0 0.0
      %1168 = vmatprep.subr.mxu0 0.0
      %1169 = vmatpush1.xpose.msra.mxu0 0.0
      %1170 = vmatprep.subr.mxu0 0.0
      %1171 = vmatpush1.xpose.msra.mxu0 0.0
      %1172 = vmatprep.subr.mxu0 0.0
      %1173 = vmatpush1.xpose.msra.mxu0 0.0
      %1174 = vmatprep.subr.mxu0 0.0
      %1175 = vmatpush1.xpose.msra.mxu0 0.0
      %1176 = vmatprep.subr.mxu0 0.0
      %1177 = vmatpush1.xpose.msra.mxu0 0.0
      %1178 = vmatprep.subr.mxu0 0.0
      %1179 = vmatpush1.xpose.msra.mxu0 0.0
      %1180 = vmatprep.subr.mxu0 0.0
      %1181 = vmatpush1.xpose.msra.mxu0 0.0
      %1182 = vmatprep.subr.mxu0 0.0
      %1183 = vmatpush1.xpose.msra.mxu0 0.0
      %1184 = vmatprep.subr.mxu0 0.0
      %1185 = vmatpush1.xpose.msra.mxu0 0.0
      %1186 = vmatprep.subr.mxu0 0.0
      %1187 = vmatpush1.xpose.msra.mxu0 0.0
      %1188 = vmatprep.subr.mxu0 0.0
      %1189 = vmatpush1.xpose.msra.mxu0 0.0
      %1190 = vmatprep.subr.mxu0 0.0
      %1191 = vmatpush1.xpose.msra.mxu0 0.0
      %1192 = vmatprep.subr.mxu0 0.0
      %1193 = vmatpush1.xpose.msra.mxu0 0.0
      %1194 = vmatprep.subr.mxu0 0.0
      %1195 = vmatpush1.xpose.msra.mxu0 0.0
      %1196 = vmatprep.subr.mxu0 0.0
      %1197 = vmatpush1.xpose.msra.mxu0 0.0
      %1198 = vmatprep.subr.mxu0 0.0
      %1199 = vmatpush1.xpose.msra.mxu0 0.0
      %1200 = vmatprep.subr.mxu0 0.0
      %1201 = vmatpush1.xpose.msra.mxu0 0.0
      %1202 = vmatprep.subr.mxu0 0.0
      %1203 = vmatpush1.xpose.msra.mxu0 0.0
      %1204 = vmatprep.subr.mxu0 0.0
      %1205 = vmatpush1.xpose.msra.mxu0 0.0
      %1206 = vmatprep.subr.mxu0 0.0
      %1207 = vmatpush1.xpose.msra.mxu0 0.0
      %1208 = vmatprep.subr.mxu0 0.0
      %1209 = vmatpush1.xpose.msra.mxu0 0.0
      %1210 = vmatprep.subr.mxu0 0.0
      %1211 = vmatpush1.xpose.msra.mxu0 0.0
      %1212 = vmatprep.subr.mxu0 0.0
      %1213 = vmatpush1.xpose.msra.mxu0 0.0
      %1214 = vmatprep.subr.mxu0 0.0
      %1215 = vmatpush1.xpose.msra.mxu0 0.0
      %1216 = vmatprep.mubr.f32.mxu0 0.0
      %1217 = vmatmul.mubr.f32.gmra.mrb[0].mxu0 %v1148
      %v1218 = vpop.f32.mrb[0].mxu0
      %v1219 = vadd.f32 0.0, %v1218
      %v1220 = vpop.f32.mrb[0].mxu0
      %1221 = vdwg.mxu0
      %v1222 = vmul.f32 %v1141, 0.28867513
      %v1223 = vmul.f32 %v1219, 0.28867513
      %v1224 = vsel %vm887, %v1222, -inf
      %1225 = vmax.xlane.f32.xlu0 %v1224
      %v1226 = vpop.xlane.xlu0 %1225
      %v1227 = vsel %vm887, %v1223, -inf
      %1228 = vmax.xlane.f32.xlu0 %v1227
      %v1229 = vpop.xlane.xlu0 %1228
      %v1230 = vsub.f32 %v1222, %v1226
      %v1231 = vsub.f32 %v1223, %v1229
      %v1232 = vmul.f32 %v1230, 1.442695
      %v1233 = vpow.pop %v1232
      %v1234 = vmul.f32 %v1231, 1.442695
      %v1235 = vpow.pop %v1234
      %v1236 = vsel %vm887, %v1233, 0.0
      %1237 = vadd.xlane.f32.xlu0 %v1236
      %v1238 = vpop.xlane.xlu0 %1237
      %v1239 = vsel %vm887, %v1235, 0.0
      %1240 = vadd.xlane.f32.xlu0 %v1239
      %v1241 = vpop.xlane.xlu0 %1240
      %v1242 = vrcp.pop %v1238
      %v1243 = vrcp.pop %v1241
      %v1244 = vmul.f32 %v1233, %v1242
      %v1245 = vmul.f32 %v1235, %v1243
      %1246 = vrot.lane.b32.xlu0 %v730, 20
      %v1247 = vpop.permute.xlu0 %1246
      %v1249 = vsel %vm912, %v1244, 0
      %v1251 = vsel %vm916, %v1247, 0
      %1253 = vmatprep.subr.mxu0 0.0
      %1254 = vmatpush1.msra.mxu0 %v1251
      %1255 = vmatprep.subr.mxu0 0.0
      %1256 = vmatpush1.msra.mxu0 0.0
      %1257 = vmatprep.subr.mxu0 0.0
      %1258 = vmatpush1.msra.mxu0 0.0
      %1259 = vmatprep.subr.mxu0 0.0
      %1260 = vmatpush1.msra.mxu0 0.0
      %1261 = vmatprep.subr.mxu0 0.0
      %1262 = vmatpush1.msra.mxu0 0.0
      %1263 = vmatprep.subr.mxu0 0.0
      %1264 = vmatpush1.msra.mxu0 0.0
      %1265 = vmatprep.subr.mxu0 0.0
      %1266 = vmatpush1.msra.mxu0 0.0
      %1267 = vmatprep.subr.mxu0 0.0
      %1268 = vmatpush1.msra.mxu0 0.0
      %1269 = vmatprep.subr.mxu0 0.0
      %1270 = vmatpush1.msra.mxu0 0.0
      %1271 = vmatprep.subr.mxu0 0.0
      %1272 = vmatpush1.msra.mxu0 0.0
      %1273 = vmatprep.subr.mxu0 0.0
      %1274 = vmatpush1.msra.mxu0 0.0
      %1275 = vmatprep.subr.mxu0 0.0
      %1276 = vmatpush1.msra.mxu0 0.0
      %1277 = vmatprep.subr.mxu0 0.0
      %1278 = vmatpush1.msra.mxu0 0.0
      %1279 = vmatprep.subr.mxu0 0.0
      %1280 = vmatpush1.msra.mxu0 0.0
      %1281 = vmatprep.subr.mxu0 0.0
      %1282 = vmatpush1.msra.mxu0 0.0
      %1283 = vmatprep.subr.mxu0 0.0
      %1284 = vmatpush1.msra.mxu0 0.0
      %1285 = vmatprep.subr.mxu0 0.0
      %1286 = vmatpush1.msra.mxu0 0.0
      %1287 = vmatprep.subr.mxu0 0.0
      %1288 = vmatpush1.msra.mxu0 0.0
      %1289 = vmatprep.subr.mxu0 0.0
      %1290 = vmatpush1.msra.mxu0 0.0
      %1291 = vmatprep.subr.mxu0 0.0
      %1292 = vmatpush1.msra.mxu0 0.0
      %1293 = vmatprep.subr.mxu0 0.0
      %1294 = vmatpush1.msra.mxu0 0.0
      %1295 = vmatprep.subr.mxu0 0.0
      %1296 = vmatpush1.msra.mxu0 0.0
      %1297 = vmatprep.subr.mxu0 0.0
      %1298 = vmatpush1.msra.mxu0 0.0
      %1299 = vmatprep.subr.mxu0 0.0
      %1300 = vmatpush1.msra.mxu0 0.0
      %1301 = vmatprep.subr.mxu0 0.0
      %1302 = vmatpush1.msra.mxu0 0.0
      %1303 = vmatprep.subr.mxu0 0.0
      %1304 = vmatpush1.msra.mxu0 0.0
      %1305 = vmatprep.subr.mxu0 0.0
      %1306 = vmatpush1.msra.mxu0 0.0
      %1307 = vmatprep.subr.mxu0 0.0
      %1308 = vmatpush1.msra.mxu0 0.0
      %1309 = vmatprep.subr.mxu0 0.0
      %1310 = vmatpush1.msra.mxu0 0.0
      %1311 = vmatprep.subr.mxu0 0.0
      %1312 = vmatpush1.msra.mxu0 0.0
      %1313 = vmatprep.subr.mxu0 0.0
      %1314 = vmatpush1.msra.mxu0 0.0
      %1315 = vmatprep.subr.mxu0 0.0
      %1316 = vmatpush1.msra.mxu0 0.0
      %1317 = vmatprep.mubr.f32.mxu0 0.0
      %1318 = vmatmul.mubr.f32.gmra.mrb[0].mxu0 %v1249
      %v1319 = vpop.f32.mrb[0].mxu0
      %v1320 = vadd.f32 0.0, %v1319
      %v1321 = vpop.f32.mrb[0].mxu0
      %1322 = vdwg.mxu0
      %1323 = vrot.lane.b32.xlu0 %v731, 20
      %v1324 = vpop.permute.xlu0 %1323
      %v1326 = vsel %vm912, %v1245, 0
      %v1328 = vsel %vm916, %v1324, 0
      %1330 = vmatprep.subr.mxu0 0.0
      %1331 = vmatpush1.msra.mxu0 %v1328
      %1332 = vmatprep.subr.mxu0 0.0
      %1333 = vmatpush1.msra.mxu0 0.0
      %1334 = vmatprep.subr.mxu0 0.0
      %1335 = vmatpush1.msra.mxu0 0.0
      %1336 = vmatprep.subr.mxu0 0.0
      %1337 = vmatpush1.msra.mxu0 0.0
      %1338 = vmatprep.subr.mxu0 0.0
      %1339 = vmatpush1.msra.mxu0 0.0
      %1340 = vmatprep.subr.mxu0 0.0
      %1341 = vmatpush1.msra.mxu0 0.0
      %1342 = vmatprep.subr.mxu0 0.0
      %1343 = vmatpush1.msra.mxu0 0.0
      %1344 = vmatprep.subr.mxu0 0.0
      %1345 = vmatpush1.msra.mxu0 0.0
      %1346 = vmatprep.subr.mxu0 0.0
      %1347 = vmatpush1.msra.mxu0 0.0
      %1348 = vmatprep.subr.mxu0 0.0
      %1349 = vmatpush1.msra.mxu0 0.0
      %1350 = vmatprep.subr.mxu0 0.0
      %1351 = vmatpush1.msra.mxu0 0.0
      %1352 = vmatprep.subr.mxu0 0.0
      %1353 = vmatpush1.msra.mxu0 0.0
      %1354 = vmatprep.subr.mxu0 0.0
      %1355 = vmatpush1.msra.mxu0 0.0
      %1356 = vmatprep.subr.mxu0 0.0
      %1357 = vmatpush1.msra.mxu0 0.0
      %1358 = vmatprep.subr.mxu0 0.0
      %1359 = vmatpush1.msra.mxu0 0.0
      %1360 = vmatprep.subr.mxu0 0.0
      %1361 = vmatpush1.msra.mxu0 0.0
      %1362 = vmatprep.subr.mxu0 0.0
      %1363 = vmatpush1.msra.mxu0 0.0
      %1364 = vmatprep.subr.mxu0 0.0
      %1365 = vmatpush1.msra.mxu0 0.0
      %1366 = vmatprep.subr.mxu0 0.0
      %1367 = vmatpush1.msra.mxu0 0.0
      %1368 = vmatprep.subr.mxu0 0.0
      %1369 = vmatpush1.msra.mxu0 0.0
      %1370 = vmatprep.subr.mxu0 0.0
      %1371 = vmatpush1.msra.mxu0 0.0
      %1372 = vmatprep.subr.mxu0 0.0
      %1373 = vmatpush1.msra.mxu0 0.0
      %1374 = vmatprep.subr.mxu0 0.0
      %1375 = vmatpush1.msra.mxu0 0.0
      %1376 = vmatprep.subr.mxu0 0.0
      %1377 = vmatpush1.msra.mxu0 0.0
      %1378 = vmatprep.subr.mxu0 0.0
      %1379 = vmatpush1.msra.mxu0 0.0
      %1380 = vmatprep.subr.mxu0 0.0
      %1381 = vmatpush1.msra.mxu0 0.0
      %1382 = vmatprep.subr.mxu0 0.0
      %1383 = vmatpush1.msra.mxu0 0.0
      %1384 = vmatprep.subr.mxu0 0.0
      %1385 = vmatpush1.msra.mxu0 0.0
      %1386 = vmatprep.subr.mxu0 0.0
      %1387 = vmatpush1.msra.mxu0 0.0
      %1388 = vmatprep.subr.mxu0 0.0
      %1389 = vmatpush1.msra.mxu0 0.0
      %1390 = vmatprep.subr.mxu0 0.0
      %1391 = vmatpush1.msra.mxu0 0.0
      %1392 = vmatprep.subr.mxu0 0.0
      %1393 = vmatpush1.msra.mxu0 0.0
      %1394 = vmatprep.mubr.f32.mxu0 0.0
      %1395 = vmatmul.mubr.f32.gmra.mrb[0].mxu0 %v1326
      %v1396 = vpop.f32.mrb[0].mxu0
      %v1397 = vadd.f32 0.0, %v1396
      %v1398 = vpop.f32.mrb[0].mxu0
      %1399 = vdwg.mxu0
      %1400 = vrot.lane.b32.xlu0 %v723, 104
      %v1401 = vpop.permute.xlu0 %1400
      %1402 = vrot.lane.b32.xlu0 %v723, 56
      %v1403 = vpop.permute.xlu0 %1402
      %v1404 = vsel %vm734, %v1401, 0
      %v1406 = vsel %vm734, %v1403, 0
      %1408 = vmatprep.subr.mxu0 0.0
      %1409 = vmatpush1.xpose.msra.mxu0 %v1406
      %1410 = vmatprep.subr.mxu0 0.0
      %1411 = vmatpush1.xpose.msra.mxu0 0.0
      %1412 = vmatprep.subr.mxu0 0.0
      %1413 = vmatpush1.xpose.msra.mxu0 0.0
      %1414 = vmatprep.subr.mxu0 0.0
      %1415 = vmatpush1.xpose.msra.mxu0 0.0
      %1416 = vmatprep.subr.mxu0 0.0
      %1417 = vmatpush1.xpose.msra.mxu0 0.0
      %1418 = vmatprep.subr.mxu0 0.0
      %1419 = vmatpush1.xpose.msra.mxu0 0.0
      %1420 = vmatprep.subr.mxu0 0.0
      %1421 = vmatpush1.xpose.msra.mxu0 0.0
      %1422 = vmatprep.subr.mxu0 0.0
      %1423 = vmatpush1.xpose.msra.mxu0 0.0
      %1424 = vmatprep.subr.mxu0 0.0
      %1425 = vmatpush1.xpose.msra.mxu0 0.0
      %1426 = vmatprep.subr.mxu0 0.0
      %1427 = vmatpush1.xpose.msra.mxu0 0.0
      %1428 = vmatprep.subr.mxu0 0.0
      %1429 = vmatpush1.xpose.msra.mxu0 0.0
      %1430 = vmatprep.subr.mxu0 0.0
      %1431 = vmatpush1.xpose.msra.mxu0 0.0
      %1432 = vmatprep.subr.mxu0 0.0
      %1433 = vmatpush1.xpose.msra.mxu0 0.0
      %1434 = vmatprep.subr.mxu0 0.0
      %1435 = vmatpush1.xpose.msra.mxu0 0.0
      %1436 = vmatprep.subr.mxu0 0.0
      %1437 = vmatpush1.xpose.msra.mxu0 0.0
      %1438 = vmatprep.subr.mxu0 0.0
      %1439 = vmatpush1.xpose.msra.mxu0 0.0
      %1440 = vmatprep.subr.mxu0 0.0
      %1441 = vmatpush1.xpose.msra.mxu0 0.0
      %1442 = vmatprep.subr.mxu0 0.0
      %1443 = vmatpush1.xpose.msra.mxu0 0.0
      %1444 = vmatprep.subr.mxu0 0.0
      %1445 = vmatpush1.xpose.msra.mxu0 0.0
      %1446 = vmatprep.subr.mxu0 0.0
      %1447 = vmatpush1.xpose.msra.mxu0 0.0
      %1448 = vmatprep.subr.mxu0 0.0
      %1449 = vmatpush1.xpose.msra.mxu0 0.0
      %1450 = vmatprep.subr.mxu0 0.0
      %1451 = vmatpush1.xpose.msra.mxu0 0.0
      %1452 = vmatprep.subr.mxu0 0.0
      %1453 = vmatpush1.xpose.msra.mxu0 0.0
      %1454 = vmatprep.subr.mxu0 0.0
      %1455 = vmatpush1.xpose.msra.mxu0 0.0
      %1456 = vmatprep.subr.mxu0 0.0
      %1457 = vmatpush1.xpose.msra.mxu0 0.0
      %1458 = vmatprep.subr.mxu0 0.0
      %1459 = vmatpush1.xpose.msra.mxu0 0.0
      %1460 = vmatprep.subr.mxu0 0.0
      %1461 = vmatpush1.xpose.msra.mxu0 0.0
      %1462 = vmatprep.subr.mxu0 0.0
      %1463 = vmatpush1.xpose.msra.mxu0 0.0
      %1464 = vmatprep.subr.mxu0 0.0
      %1465 = vmatpush1.xpose.msra.mxu0 0.0
      %1466 = vmatprep.subr.mxu0 0.0
      %1467 = vmatpush1.xpose.msra.mxu0 0.0
      %1468 = vmatprep.subr.mxu0 0.0
      %1469 = vmatpush1.xpose.msra.mxu0 0.0
      %1470 = vmatprep.subr.mxu0 0.0
      %1471 = vmatpush1.xpose.msra.mxu0 0.0
      %1472 = vmatprep.mubr.f32.mxu0 0.0
      %1473 = vmatmul.mubr.f32.gmra.mrb[0].mxu0 %v1404
      %v1474 = vpop.f32.mrb[0].mxu0
      %v1475 = vadd.f32 0.0, %v1474
      %v1476 = vpop.f32.mrb[0].mxu0
      %1477 = vdwg.mxu0
      %1478 = vrot.lane.b32.xlu0 %v728, 104
      %v1479 = vpop.permute.xlu0 %1478
      %1480 = vrot.lane.b32.xlu0 %v728, 56
      %v1481 = vpop.permute.xlu0 %1480
      %v1482 = vsel %vm734, %v1479, 0
      %v1484 = vsel %vm734, %v1481, 0
      %1486 = vmatprep.subr.mxu0 0.0
      %1487 = vmatpush1.xpose.msra.mxu0 %v1484
      %1488 = vmatprep.subr.mxu0 0.0
      %1489 = vmatpush1.xpose.msra.mxu0 0.0
      %1490 = vmatprep.subr.mxu0 0.0
      %1491 = vmatpush1.xpose.msra.mxu0 0.0
      %1492 = vmatprep.subr.mxu0 0.0
      %1493 = vmatpush1.xpose.msra.mxu0 0.0
      %1494 = vmatprep.subr.mxu0 0.0
      %1495 = vmatpush1.xpose.msra.mxu0 0.0
      %1496 = vmatprep.subr.mxu0 0.0
      %1497 = vmatpush1.xpose.msra.mxu0 0.0
      %1498 = vmatprep.subr.mxu0 0.0
      %1499 = vmatpush1.xpose.msra.mxu0 0.0
      %1500 = vmatprep.subr.mxu0 0.0
      %1501 = vmatpush1.xpose.msra.mxu0 0.0
      %1502 = vmatprep.subr.mxu0 0.0
      %1503 = vmatpush1.xpose.msra.mxu0 0.0
      %1504 = vmatprep.subr.mxu0 0.0
      %1505 = vmatpush1.xpose.msra.mxu0 0.0
      %1506 = vmatprep.subr.mxu0 0.0
      %1507 = vmatpush1.xpose.msra.mxu0 0.0
      %1508 = vmatprep.subr.mxu0 0.0
      %1509 = vmatpush1.xpose.msra.mxu0 0.0
      %1510 = vmatprep.subr.mxu0 0.0
      %1511 = vmatpush1.xpose.msra.mxu0 0.0
      %1512 = vmatprep.subr.mxu0 0.0
      %1513 = vmatpush1.xpose.msra.mxu0 0.0
      %1514 = vmatprep.subr.mxu0 0.0
      %1515 = vmatpush1.xpose.msra.mxu0 0.0
      %1516 = vmatprep.subr.mxu0 0.0
      %1517 = vmatpush1.xpose.msra.mxu0 0.0
      %1518 = vmatprep.subr.mxu0 0.0
      %1519 = vmatpush1.xpose.msra.mxu0 0.0
      %1520 = vmatprep.subr.mxu0 0.0
      %1521 = vmatpush1.xpose.msra.mxu0 0.0
      %1522 = vmatprep.subr.mxu0 0.0
      %1523 = vmatpush1.xpose.msra.mxu0 0.0
      %1524 = vmatprep.subr.mxu0 0.0
      %1525 = vmatpush1.xpose.msra.mxu0 0.0
      %1526 = vmatprep.subr.mxu0 0.0
      %1527 = vmatpush1.xpose.msra.mxu0 0.0
      %1528 = vmatprep.subr.mxu0 0.0
      %1529 = vmatpush1.xpose.msra.mxu0 0.0
      %1530 = vmatprep.subr.mxu0 0.0
      %1531 = vmatpush1.xpose.msra.mxu0 0.0
      %1532 = vmatprep.subr.mxu0 0.0
      %1533 = vmatpush1.xpose.msra.mxu0 0.0
      %1534 = vmatprep.subr.mxu0 0.0
      %1535 = vmatpush1.xpose.msra.mxu0 0.0
      %1536 = vmatprep.subr.mxu0 0.0
      %1537 = vmatpush1.xpose.msra.mxu0 0.0
      %1538 = vmatprep.subr.mxu0 0.0
      %1539 = vmatpush1.xpose.msra.mxu0 0.0
      %1540 = vmatprep.subr.mxu0 0.0
      %1541 = vmatpush1.xpose.msra.mxu0 0.0
      %1542 = vmatprep.subr.mxu0 0.0
      %1543 = vmatpush1.xpose.msra.mxu0 0.0
      %1544 = vmatprep.subr.mxu0 0.0
      %1545 = vmatpush1.xpose.msra.mxu0 0.0
      %1546 = vmatprep.subr.mxu0 0.0
      %1547 = vmatpush1.xpose.msra.mxu0 0.0
      %1548 = vmatprep.subr.mxu0 0.0
      %1549 = vmatpush1.xpose.msra.mxu0 0.0
      %1550 = vmatprep.mubr.f32.mxu0 0.0
      %1551 = vmatmul.mubr.f32.gmra.mrb[0].mxu0 %v1482
      %v1552 = vpop.f32.mrb[0].mxu0
      %v1553 = vadd.f32 0.0, %v1552
      %v1554 = vpop.f32.mrb[0].mxu0
      %1555 = vdwg.mxu0
      %v1556 = vmul.f32 %v1475, 0.28867513
      %v1557 = vmul.f32 %v1553, 0.28867513
      %v1558 = vsel %vm887, %v1556, -inf
      %1559 = vmax.xlane.f32.xlu0 %v1558
      %v1560 = vpop.xlane.xlu0 %1559
      %v1561 = vsel %vm887, %v1557, -inf
      %1562 = vmax.xlane.f32.xlu0 %v1561
      %v1563 = vpop.xlane.xlu0 %1562
      %v1564 = vsub.f32 %v1556, %v1560
      %v1565 = vsub.f32 %v1557, %v1563
      %v1566 = vmul.f32 %v1564, 1.442695
      %v1567 = vpow.pop %v1566
      %v1568 = vmul.f32 %v1565, 1.442695
      %v1569 = vpow.pop %v1568
      %v1570 = vsel %vm887, %v1567, 0.0
      %1571 = vadd.xlane.f32.xlu0 %v1570
      %v1572 = vpop.xlane.xlu0 %1571
      %v1573 = vsel %vm887, %v1569, 0.0
      %1574 = vadd.xlane.f32.xlu0 %v1573
      %v1575 = vpop.xlane.xlu0 %1574
      %v1576 = vrcp.pop %v1572
      %v1577 = vrcp.pop %v1575
      %v1578 = vmul.f32 %v1567, %v1576
      %v1579 = vmul.f32 %v1569, %v1577
      %v1580 = vcombine.high %v730, %v730
      %1581 = vrot.lane.b32.xlu0 %v730, 8
      %v1582 = vpop.permute.xlu0 %1581
      %1583 = vrot.lane.b32.xlu0 %v1580, 8
      %v1584 = vpop.permute.xlu0 %1583
      %vm1585 = vcmask 64512
      %v1586 = vsel %vm1585, %v1582, %v1584
      %v1588 = vsel %vm912, %v1578, 0
      %v1590 = vsel %vm916, %v1586, 0
      %1592 = vmatprep.subr.mxu0 0.0
      %1593 = vmatpush1.msra.mxu0 %v1590
      %1594 = vmatprep.subr.mxu0 0.0
      %1595 = vmatpush1.msra.mxu0 0.0
      %1596 = vmatprep.subr.mxu0 0.0
      %1597 = vmatpush1.msra.mxu0 0.0
      %1598 = vmatprep.subr.mxu0 0.0
      %1599 = vmatpush1.msra.mxu0 0.0
      %1600 = vmatprep.subr.mxu0 0.0
      %1601 = vmatpush1.msra.mxu0 0.0
      %1602 = vmatprep.subr.mxu0 0.0
      %1603 = vmatpush1.msra.mxu0 0.0
      %1604 = vmatprep.subr.mxu0 0.0
      %1605 = vmatpush1.msra.mxu0 0.0
      %1606 = vmatprep.subr.mxu0 0.0
      %1607 = vmatpush1.msra.mxu0 0.0
      %1608 = vmatprep.subr.mxu0 0.0
      %1609 = vmatpush1.msra.mxu0 0.0
      %1610 = vmatprep.subr.mxu0 0.0
      %1611 = vmatpush1.msra.mxu0 0.0
      %1612 = vmatprep.subr.mxu0 0.0
      %1613 = vmatpush1.msra.mxu0 0.0
      %1614 = vmatprep.subr.mxu0 0.0
      %1615 = vmatpush1.msra.mxu0 0.0
      %1616 = vmatprep.subr.mxu0 0.0
      %1617 = vmatpush1.msra.mxu0 0.0
      %1618 = vmatprep.subr.mxu0 0.0
      %1619 = vmatpush1.msra.mxu0 0.0
      %1620 = vmatprep.subr.mxu0 0.0
      %1621 = vmatpush1.msra.mxu0 0.0
      %1622 = vmatprep.subr.mxu0 0.0
      %1623 = vmatpush1.msra.mxu0 0.0
      %1624 = vmatprep.subr.mxu0 0.0
      %1625 = vmatpush1.msra.mxu0 0.0
      %1626 = vmatprep.subr.mxu0 0.0
      %1627 = vmatpush1.msra.mxu0 0.0
      %1628 = vmatprep.subr.mxu0 0.0
      %1629 = vmatpush1.msra.mxu0 0.0
      %1630 = vmatprep.subr.mxu0 0.0
      %1631 = vmatpush1.msra.mxu0 0.0
      %1632 = vmatprep.subr.mxu0 0.0
      %1633 = vmatpush1.msra.mxu0 0.0
      %1634 = vmatprep.subr.mxu0 0.0
      %1635 = vmatpush1.msra.mxu0 0.0
      %1636 = vmatprep.subr.mxu0 0.0
      %1637 = vmatpush1.msra.mxu0 0.0
      %1638 = vmatprep.subr.mxu0 0.0
      %1639 = vmatpush1.msra.mxu0 0.0
      %1640 = vmatprep.subr.mxu0 0.0
      %1641 = vmatpush1.msra.mxu0 0.0
      %1642 = vmatprep.subr.mxu0 0.0
      %1643 = vmatpush1.msra.mxu0 0.0
      %1644 = vmatprep.subr.mxu0 0.0
      %1645 = vmatpush1.msra.mxu0 0.0
      %1646 = vmatprep.subr.mxu0 0.0
      %1647 = vmatpush1.msra.mxu0 0.0
      %1648 = vmatprep.subr.mxu0 0.0
      %1649 = vmatpush1.msra.mxu0 0.0
      %1650 = vmatprep.subr.mxu0 0.0
      %1651 = vmatpush1.msra.mxu0 0.0
      %1652 = vmatprep.subr.mxu0 0.0
      %1653 = vmatpush1.msra.mxu0 0.0
      %1654 = vmatprep.subr.mxu0 0.0
      %1655 = vmatpush1.msra.mxu0 0.0
      %1656 = vmatprep.mubr.f32.mxu0 0.0
      %1657 = vmatmul.mubr.f32.gmra.mrb[0].mxu0 %v1588
      %v1658 = vpop.f32.mrb[0].mxu0
      %v1659 = vadd.f32 0.0, %v1658
      %v1660 = vpop.f32.mrb[0].mxu0
      %1661 = vdwg.mxu0
      %v1662 = vcombine.high %v731, %v731
      %1663 = vrot.lane.b32.xlu0 %v731, 8
      %v1664 = vpop.permute.xlu0 %1663
      %1665 = vrot.lane.b32.xlu0 %v1662, 8
      %v1666 = vpop.permute.xlu0 %1665
      %v1667 = vsel %vm1585, %v1664, %v1666
      %v1669 = vsel %vm912, %v1579, 0
      %v1671 = vsel %vm916, %v1667, 0
      %1673 = vmatprep.subr.mxu0 0.0
      %1674 = vmatpush1.msra.mxu0 %v1671
      %1675 = vmatprep.subr.mxu0 0.0
      %1676 = vmatpush1.msra.mxu0 0.0
      %1677 = vmatprep.subr.mxu0 0.0
      %1678 = vmatpush1.msra.mxu0 0.0
      %1679 = vmatprep.subr.mxu0 0.0
      %1680 = vmatpush1.msra.mxu0 0.0
      %1681 = vmatprep.subr.mxu0 0.0
      %1682 = vmatpush1.msra.mxu0 0.0
      %1683 = vmatprep.subr.mxu0 0.0
      %1684 = vmatpush1.msra.mxu0 0.0
      %1685 = vmatprep.subr.mxu0 0.0
      %1686 = vmatpush1.msra.mxu0 0.0
      %1687 = vmatprep.subr.mxu0 0.0
      %1688 = vmatpush1.msra.mxu0 0.0
      %1689 = vmatprep.subr.mxu0 0.0
      %1690 = vmatpush1.msra.mxu0 0.0
      %1691 = vmatprep.subr.mxu0 0.0
      %1692 = vmatpush1.msra.mxu0 0.0
      %1693 = vmatprep.subr.mxu0 0.0
      %1694 = vmatpush1.msra.mxu0 0.0
      %1695 = vmatprep.subr.mxu0 0.0
      %1696 = vmatpush1.msra.mxu0 0.0
      %1697 = vmatprep.subr.mxu0 0.0
      %1698 = vmatpush1.msra.mxu0 0.0
      %1699 = vmatprep.subr.mxu0 0.0
      %1700 = vmatpush1.msra.mxu0 0.0
      %1701 = vmatprep.subr.mxu0 0.0
      %1702 = vmatpush1.msra.mxu0 0.0
      %1703 = vmatprep.subr.mxu0 0.0
      %1704 = vmatpush1.msra.mxu0 0.0
      %1705 = vmatprep.subr.mxu0 0.0
      %1706 = vmatpush1.msra.mxu0 0.0
      %1707 = vmatprep.subr.mxu0 0.0
      %1708 = vmatpush1.msra.mxu0 0.0
      %1709 = vmatprep.subr.mxu0 0.0
      %1710 = vmatpush1.msra.mxu0 0.0
      %1711 = vmatprep.subr.mxu0 0.0
      %1712 = vmatpush1.msra.mxu0 0.0
      %1713 = vmatprep.subr.mxu0 0.0
      %1714 = vmatpush1.msra.mxu0 0.0
      %1715 = vmatprep.subr.mxu0 0.0
      %1716 = vmatpush1.msra.mxu0 0.0
      %1717 = vmatprep.subr.mxu0 0.0
      %1718 = vmatpush1.msra.mxu0 0.0
      %1719 = vmatprep.subr.mxu0 0.0
      %1720 = vmatpush1.msra.mxu0 0.0
      %1721 = vmatprep.subr.mxu0 0.0
      %1722 = vmatpush1.msra.mxu0 0.0
      %1723 = vmatprep.subr.mxu0 0.0
      %1724 = vmatpush1.msra.mxu0 0.0
      %1725 = vmatprep.subr.mxu0 0.0
      %1726 = vmatpush1.msra.mxu0 0.0
      %1727 = vmatprep.subr.mxu0 0.0
      %1728 = vmatpush1.msra.mxu0 0.0
      %1729 = vmatprep.subr.mxu0 0.0
      %1730 = vmatpush1.msra.mxu0 0.0
      %1731 = vmatprep.subr.mxu0 0.0
      %1732 = vmatpush1.msra.mxu0 0.0
      %1733 = vmatprep.subr.mxu0 0.0
      %1734 = vmatpush1.msra.mxu0 0.0
      %1735 = vmatprep.subr.mxu0 0.0
      %1736 = vmatpush1.msra.mxu0 0.0
      %1737 = vmatprep.mubr.f32.mxu0 0.0
      %1738 = vmatmul.mubr.f32.gmra.mrb[0].mxu0 %v1669
      %v1739 = vpop.f32.mrb[0].mxu0
      %v1740 = vadd.f32 0.0, %v1739
      %v1741 = vpop.f32.mrb[0].mxu0
      %1742 = vdwg.mxu0
      %1743 = vrot.lane.b32.xlu0 %v723, 92
      %v1744 = vpop.permute.xlu0 %1743
      %1745 = vrot.lane.b32.xlu0 %v723, 44
      %v1746 = vpop.permute.xlu0 %1745
      %v1747 = vsel %vm734, %v1744, 0
      %v1749 = vsel %vm734, %v1746, 0
      %1751 = vmatprep.subr.mxu0 0.0
      %1752 = vmatpush1.xpose.msra.mxu0 %v1749
      %1753 = vmatprep.subr.mxu0 0.0
      %1754 = vmatpush1.xpose.msra.mxu0 0.0
      %1755 = vmatprep.subr.mxu0 0.0
      %1756 = vmatpush1.xpose.msra.mxu0 0.0
      %1757 = vmatprep.subr.mxu0 0.0
      %1758 = vmatpush1.xpose.msra.mxu0 0.0
      %1759 = vmatprep.subr.mxu0 0.0
      %1760 = vmatpush1.xpose.msra.mxu0 0.0
      %1761 = vmatprep.subr.mxu0 0.0
      %1762 = vmatpush1.xpose.msra.mxu0 0.0
      %1763 = vmatprep.subr.mxu0 0.0
      %1764 = vmatpush1.xpose.msra.mxu0 0.0
      %1765 = vmatprep.subr.mxu0 0.0
      %1766 = vmatpush1.xpose.msra.mxu0 0.0
      %1767 = vmatprep.subr.mxu0 0.0
      %1768 = vmatpush1.xpose.msra.mxu0 0.0
      %1769 = vmatprep.subr.mxu0 0.0
      %1770 = vmatpush1.xpose.msra.mxu0 0.0
      %1771 = vmatprep.subr.mxu0 0.0
      %1772 = vmatpush1.xpose.msra.mxu0 0.0
      %1773 = vmatprep.subr.mxu0 0.0
      %1774 = vmatpush1.xpose.msra.mxu0 0.0
      %1775 = vmatprep.subr.mxu0 0.0
      %1776 = vmatpush1.xpose.msra.mxu0 0.0
      %1777 = vmatprep.subr.mxu0 0.0
      %1778 = vmatpush1.xpose.msra.mxu0 0.0
      %1779 = vmatprep.subr.mxu0 0.0
      %1780 = vmatpush1.xpose.msra.mxu0 0.0
      %1781 = vmatprep.subr.mxu0 0.0
      %1782 = vmatpush1.xpose.msra.mxu0 0.0
      %1783 = vmatprep.subr.mxu0 0.0
      %1784 = vmatpush1.xpose.msra.mxu0 0.0
      %1785 = vmatprep.subr.mxu0 0.0
      %1786 = vmatpush1.xpose.msra.mxu0 0.0
      %1787 = vmatprep.subr.mxu0 0.0
      %1788 = vmatpush1.xpose.msra.mxu0 0.0
      %1789 = vmatprep.subr.mxu0 0.0
      %1790 = vmatpush1.xpose.msra.mxu0 0.0
      %1791 = vmatprep.subr.mxu0 0.0
      %1792 = vmatpush1.xpose.msra.mxu0 0.0
      %1793 = vmatprep.subr.mxu0 0.0
      %1794 = vmatpush1.xpose.msra.mxu0 0.0
      %1795 = vmatprep.subr.mxu0 0.0
      %1796 = vmatpush1.xpose.msra.mxu0 0.0
      %1797 = vmatprep.subr.mxu0 0.0
      %1798 = vmatpush1.xpose.msra.mxu0 0.0
      %1799 = vmatprep.subr.mxu0 0.0
      %1800 = vmatpush1.xpose.msra.mxu0 0.0
      %1801 = vmatprep.subr.mxu0 0.0
      %1802 = vmatpush1.xpose.msra.mxu0 0.0
      %1803 = vmatprep.subr.mxu0 0.0
      %1804 = vmatpush1.xpose.msra.mxu0 0.0
      %1805 = vmatprep.subr.mxu0 0.0
      %1806 = vmatpush1.xpose.msra.mxu0 0.0
      %1807 = vmatprep.subr.mxu0 0.0
      %1808 = vmatpush1.xpose.msra.mxu0 0.0
      %1809 = vmatprep.subr.mxu0 0.0
      %1810 = vmatpush1.xpose.msra.mxu0 0.0
      %1811 = vmatprep.subr.mxu0 0.0
      %1812 = vmatpush1.xpose.msra.mxu0 0.0
      %1813 = vmatprep.subr.mxu0 0.0
      %1814 = vmatpush1.xpose.msra.mxu0 0.0
      %1815 = vmatprep.mubr.f32.mxu0 0.0
      %1816 = vmatmul.mubr.f32.gmra.mrb[0].mxu0 %v1747
      %v1817 = vpop.f32.mrb[0].mxu0
      %v1818 = vadd.f32 0.0, %v1817
      %v1819 = vpop.f32.mrb[0].mxu0
      %1820 = vdwg.mxu0
      %1821 = vrot.lane.b32.xlu0 %v728, 92
      %v1822 = vpop.permute.xlu0 %1821
      %1823 = vrot.lane.b32.xlu0 %v728, 44
      %v1824 = vpop.permute.xlu0 %1823
      %v1825 = vsel %vm734, %v1822, 0
      %v1827 = vsel %vm734, %v1824, 0
      %1829 = vmatprep.subr.mxu0 0.0
      %1830 = vmatpush1.xpose.msra.mxu0 %v1827
      %1831 = vmatprep.subr.mxu0 0.0
      %1832 = vmatpush1.xpose.msra.mxu0 0.0
      %1833 = vmatprep.subr.mxu0 0.0
      %1834 = vmatpush1.xpose.msra.mxu0 0.0
      %1835 = vmatprep.subr.mxu0 0.0
      %1836 = vmatpush1.xpose.msra.mxu0 0.0
      %1837 = vmatprep.subr.mxu0 0.0
      %1838 = vmatpush1.xpose.msra.mxu0 0.0
      %1839 = vmatprep.subr.mxu0 0.0
      %1840 = vmatpush1.xpose.msra.mxu0 0.0
      %1841 = vmatprep.subr.mxu0 0.0
      %1842 = vmatpush1.xpose.msra.mxu0 0.0
      %1843 = vmatprep.subr.mxu0 0.0
      %1844 = vmatpush1.xpose.msra.mxu0 0.0
      %1845 = vmatprep.subr.mxu0 0.0
      %1846 = vmatpush1.xpose.msra.mxu0 0.0
      %1847 = vmatprep.subr.mxu0 0.0
      %1848 = vmatpush1.xpose.msra.mxu0 0.0
      %1849 = vmatprep.subr.mxu0 0.0
      %1850 = vmatpush1.xpose.msra.mxu0 0.0
      %1851 = vmatprep.subr.mxu0 0.0
      %1852 = vmatpush1.xpose.msra.mxu0 0.0
      %1853 = vmatprep.subr.mxu0 0.0
      %1854 = vmatpush1.xpose.msra.mxu0 0.0
      %1855 = vmatprep.subr.mxu0 0.0
      %1856 = vmatpush1.xpose.msra.mxu0 0.0
      %1857 = vmatprep.subr.mxu0 0.0
      %1858 = vmatpush1.xpose.msra.mxu0 0.0
      %1859 = vmatprep.subr.mxu0 0.0
      %1860 = vmatpush1.xpose.msra.mxu0 0.0
      %1861 = vmatprep.subr.mxu0 0.0
      %1862 = vmatpush1.xpose.msra.mxu0 0.0
      %1863 = vmatprep.subr.mxu0 0.0
      %1864 = vmatpush1.xpose.msra.mxu0 0.0
      %1865 = vmatprep.subr.mxu0 0.0
      %1866 = vmatpush1.xpose.msra.mxu0 0.0
      %1867 = vmatprep.subr.mxu0 0.0
      %1868 = vmatpush1.xpose.msra.mxu0 0.0
      %1869 = vmatprep.subr.mxu0 0.0
      %1870 = vmatpush1.xpose.msra.mxu0 0.0
      %1871 = vmatprep.subr.mxu0 0.0
      %1872 = vmatpush1.xpose.msra.mxu0 0.0
      %1873 = vmatprep.subr.mxu0 0.0
      %1874 = vmatpush1.xpose.msra.mxu0 0.0
      %1875 = vmatprep.subr.mxu0 0.0
      %1876 = vmatpush1.xpose.msra.mxu0 0.0
      %1877 = vmatprep.subr.mxu0 0.0
      %1878 = vmatpush1.xpose.msra.mxu0 0.0
      %1879 = vmatprep.subr.mxu0 0.0
      %1880 = vmatpush1.xpose.msra.mxu0 0.0
      %1881 = vmatprep.subr.mxu0 0.0
      %1882 = vmatpush1.xpose.msra.mxu0 0.0
      %1883 = vmatprep.subr.mxu0 0.0
      %1884 = vmatpush1.xpose.msra.mxu0 0.0
      %1885 = vmatprep.subr.mxu0 0.0
      %1886 = vmatpush1.xpose.msra.mxu0 0.0
      %1887 = vmatprep.subr.mxu0 0.0
      %1888 = vmatpush1.xpose.msra.mxu0 0.0
      %1889 = vmatprep.subr.mxu0 0.0
      %1890 = vmatpush1.xpose.msra.mxu0 0.0
      %1891 = vmatprep.subr.mxu0 0.0
      %1892 = vmatpush1.xpose.msra.mxu0 0.0
      %1893 = vmatprep.mubr.f32.mxu0 0.0
      %1894 = vmatmul.mubr.f32.gmra.mrb[0].mxu0 %v1825
      %v1895 = vpop.f32.mrb[0].mxu0
      %v1896 = vadd.f32 0.0, %v1895
      %v1897 = vpop.f32.mrb[0].mxu0
      %1898 = vdwg.mxu0
      %v1899 = vmul.f32 %v1818, 0.28867513
      %v1900 = vmul.f32 %v1896, 0.28867513
      %v1901 = vsel %vm887, %v1899, -inf
      %1902 = vmax.xlane.f32.xlu0 %v1901
      %v1903 = vpop.xlane.xlu0 %1902
      %v1904 = vsel %vm887, %v1900, -inf
      %1905 = vmax.xlane.f32.xlu0 %v1904
      %v1906 = vpop.xlane.xlu0 %1905
      %v1907 = vsub.f32 %v1899, %v1903
      %v1908 = vsub.f32 %v1900, %v1906
      %v1909 = vmul.f32 %v1907, 1.442695
      %v1910 = vpow.pop %v1909
      %v1911 = vmul.f32 %v1908, 1.442695
      %v1912 = vpow.pop %v1911
      %v1913 = vsel %vm887, %v1910, 0.0
      %1914 = vadd.xlane.f32.xlu0 %v1913
      %v1915 = vpop.xlane.xlu0 %1914
      %v1916 = vsel %vm887, %v1912, 0.0
      %1917 = vadd.xlane.f32.xlu0 %v1916
      %v1918 = vpop.xlane.xlu0 %1917
      %v1919 = vrcp.pop %v1915
      %v1920 = vrcp.pop %v1918
      %v1921 = vmul.f32 %v1910, %v1919
      %v1922 = vmul.f32 %v1912, %v1920
      %1923 = vrot.lane.b32.xlu0 %v730, 124
      %v1924 = vpop.permute.xlu0 %1923
      %v1925 = vrot.slane %v1924, 4
      %v1927 = vsel %vm912, %v1921, 0
      %v1929 = vsel %vm916, %v1925, 0
      %1931 = vmatprep.subr.mxu0 0.0
      %1932 = vmatpush1.msra.mxu0 %v1929
      %1933 = vmatprep.subr.mxu0 0.0
      %1934 = vmatpush1.msra.mxu0 0.0
      %1935 = vmatprep.subr.mxu0 0.0
      %1936 = vmatpush1.msra.mxu0 0.0
      %1937 = vmatprep.subr.mxu0 0.0
      %1938 = vmatpush1.msra.mxu0 0.0
      %1939 = vmatprep.subr.mxu0 0.0
      %1940 = vmatpush1.msra.mxu0 0.0
      %1941 = vmatprep.subr.mxu0 0.0
      %1942 = vmatpush1.msra.mxu0 0.0
      %1943 = vmatprep.subr.mxu0 0.0
      %1944 = vmatpush1.msra.mxu0 0.0
      %1945 = vmatprep.subr.mxu0 0.0
      %1946 = vmatpush1.msra.mxu0 0.0
      %1947 = vmatprep.subr.mxu0 0.0
      %1948 = vmatpush1.msra.mxu0 0.0
      %1949 = vmatprep.subr.mxu0 0.0
      %1950 = vmatpush1.msra.mxu0 0.0
      %1951 = vmatprep.subr.mxu0 0.0
      %1952 = vmatpush1.msra.mxu0 0.0
      %1953 = vmatprep.subr.mxu0 0.0
      %1954 = vmatpush1.msra.mxu0 0.0
      %1955 = vmatprep.subr.mxu0 0.0
      %1956 = vmatpush1.msra.mxu0 0.0
      %1957 = vmatprep.subr.mxu0 0.0
      %1958 = vmatpush1.msra.mxu0 0.0
      %1959 = vmatprep.subr.mxu0 0.0
      %1960 = vmatpush1.msra.mxu0 0.0
      %1961 = vmatprep.subr.mxu0 0.0
      %1962 = vmatpush1.msra.mxu0 0.0
      %1963 = vmatprep.subr.mxu0 0.0
      %1964 = vmatpush1.msra.mxu0 0.0
      %1965 = vmatprep.subr.mxu0 0.0
      %1966 = vmatpush1.msra.mxu0 0.0
      %1967 = vmatprep.subr.mxu0 0.0
      %1968 = vmatpush1.msra.mxu0 0.0
      %1969 = vmatprep.subr.mxu0 0.0
      %1970 = vmatpush1.msra.mxu0 0.0
      %1971 = vmatprep.subr.mxu0 0.0
      %1972 = vmatpush1.msra.mxu0 0.0
      %1973 = vmatprep.subr.mxu0 0.0
      %1974 = vmatpush1.msra.mxu0 0.0
      %1975 = vmatprep.subr.mxu0 0.0
      %1976 = vmatpush1.msra.mxu0 0.0
      %1977 = vmatprep.subr.mxu0 0.0
      %1978 = vmatpush1.msra.mxu0 0.0
      %1979 = vmatprep.subr.mxu0 0.0
      %1980 = vmatpush1.msra.mxu0 0.0
      %1981 = vmatprep.subr.mxu0 0.0
      %1982 = vmatpush1.msra.mxu0 0.0
      %1983 = vmatprep.subr.mxu0 0.0
      %1984 = vmatpush1.msra.mxu0 0.0
      %1985 = vmatprep.subr.mxu0 0.0
      %1986 = vmatpush1.msra.mxu0 0.0
      %1987 = vmatprep.subr.mxu0 0.0
      %1988 = vmatpush1.msra.mxu0 0.0
      %1989 = vmatprep.subr.mxu0 0.0
      %1990 = vmatpush1.msra.mxu0 0.0
      %1991 = vmatprep.subr.mxu0 0.0
      %1992 = vmatpush1.msra.mxu0 0.0
      %1993 = vmatprep.subr.mxu0 0.0
      %1994 = vmatpush1.msra.mxu0 0.0
      %1995 = vmatprep.mubr.f32.mxu0 0.0
      %1996 = vmatmul.mubr.f32.gmra.mrb[0].mxu0 %v1927
      %v1997 = vpop.f32.mrb[0].mxu0
      %v1998 = vadd.f32 0.0, %v1997
      %v1999 = vpop.f32.mrb[0].mxu0
      %2000 = vdwg.mxu0
      %2001 = vrot.lane.b32.xlu0 %v731, 124
      %v2002 = vpop.permute.xlu0 %2001
      %v2003 = vrot.slane %v2002, 4
      %v2005 = vsel %vm912, %v1922, 0
      %v2007 = vsel %vm916, %v2003, 0
      %2009 = vmatprep.subr.mxu0 0.0
      %2010 = vmatpush1.msra.mxu0 %v2007
      %2011 = vmatprep.subr.mxu0 0.0
      %2012 = vmatpush1.msra.mxu0 0.0
      %2013 = vmatprep.subr.mxu0 0.0
      %2014 = vmatpush1.msra.mxu0 0.0
      %2015 = vmatprep.subr.mxu0 0.0
      %2016 = vmatpush1.msra.mxu0 0.0
      %2017 = vmatprep.subr.mxu0 0.0
      %2018 = vmatpush1.msra.mxu0 0.0
      %2019 = vmatprep.subr.mxu0 0.0
      %2020 = vmatpush1.msra.mxu0 0.0
      %2021 = vmatprep.subr.mxu0 0.0
      %2022 = vmatpush1.msra.mxu0 0.0
      %2023 = vmatprep.subr.mxu0 0.0
      %2024 = vmatpush1.msra.mxu0 0.0
      %2025 = vmatprep.subr.mxu0 0.0
      %2026 = vmatpush1.msra.mxu0 0.0
      %2027 = vmatprep.subr.mxu0 0.0
      %2028 = vmatpush1.msra.mxu0 0.0
      %2029 = vmatprep.subr.mxu0 0.0
      %2030 = vmatpush1.msra.mxu0 0.0
      %2031 = vmatprep.subr.mxu0 0.0
      %2032 = vmatpush1.msra.mxu0 0.0
      %2033 = vmatprep.subr.mxu0 0.0
      %2034 = vmatpush1.msra.mxu0 0.0
      %2035 = vmatprep.subr.mxu0 0.0
      %2036 = vmatpush1.msra.mxu0 0.0
      %2037 = vmatprep.subr.mxu0 0.0
      %2038 = vmatpush1.msra.mxu0 0.0
      %2039 = vmatprep.subr.mxu0 0.0
      %2040 = vmatpush1.msra.mxu0 0.0
      %2041 = vmatprep.subr.mxu0 0.0
      %2042 = vmatpush1.msra.mxu0 0.0
      %2043 = vmatprep.subr.mxu0 0.0
      %2044 = vmatpush1.msra.mxu0 0.0
      %2045 = vmatprep.subr.mxu0 0.0
      %2046 = vmatpush1.msra.mxu0 0.0
      %2047 = vmatprep.subr.mxu0 0.0
      %2048 = vmatpush1.msra.mxu0 0.0
      %2049 = vmatprep.subr.mxu0 0.0
      %2050 = vmatpush1.msra.mxu0 0.0
      %2051 = vmatprep.subr.mxu0 0.0
      %2052 = vmatpush1.msra.mxu0 0.0
      %2053 = vmatprep.subr.mxu0 0.0
      %2054 = vmatpush1.msra.mxu0 0.0
      %2055 = vmatprep.subr.mxu0 0.0
      %2056 = vmatpush1.msra.mxu0 0.0
      %2057 = vmatprep.subr.mxu0 0.0
      %2058 = vmatpush1.msra.mxu0 0.0
      %2059 = vmatprep.subr.mxu0 0.0
      %2060 = vmatpush1.msra.mxu0 0.0
      %2061 = vmatprep.subr.mxu0 0.0
      %2062 = vmatpush1.msra.mxu0 0.0
      %2063 = vmatprep.subr.mxu0 0.0
      %2064 = vmatpush1.msra.mxu0 0.0
      %2065 = vmatprep.subr.mxu0 0.0
      %2066 = vmatpush1.msra.mxu0 0.0
      %2067 = vmatprep.subr.mxu0 0.0
      %2068 = vmatpush1.msra.mxu0 0.0
      %2069 = vmatprep.subr.mxu0 0.0
      %2070 = vmatpush1.msra.mxu0 0.0
      %2071 = vmatprep.subr.mxu0 0.0
      %2072 = vmatpush1.msra.mxu0 0.0
      %2073 = vmatprep.mubr.f32.mxu0 0.0
      %2074 = vmatmul.mubr.f32.gmra.mrb[0].mxu0 %v2005
      %v2075 = vpop.f32.mrb[0].mxu0
      %v2076 = vadd.f32 0.0, %v2075
      %v2077 = vpop.f32.mrb[0].mxu0
      %2078 = vdwg.mxu0
      %2081 = vrot.lane.b32.xlu0 %v1320, 12
      %v2082 = vpop.permute.xlu0 %2081
      %2083 = vrot.lane.b32.xlu0 %v1397, 12
      %v2084 = vpop.permute.xlu0 %2083
      %2089 = vrot.lane.b32.xlu0 %v1659, 24
      %v2090 = vpop.permute.xlu0 %2089
      %2091 = vrot.lane.b32.xlu0 %v1740, 24
      %v2092 = vpop.permute.xlu0 %2091
      %2097 = vrot.lane.b32.xlu0 %v1998, 36
      %v2098 = vpop.permute.xlu0 %2097
      %2099 = vrot.lane.b32.xlu0 %v2076, 36
      %v2100 = vpop.permute.xlu0 %2099
      %v2103 = vsel %vm734, %v986, %v2082
      %v2104 = vsel %vm734, %v1063, %v2084
      %vm2105 = vcmask 195584
      %v2106 = vsel %vm2105, %v2103, %v2090
      %v2107 = vsel %vm2105, %v2104, %v2092
      %vm2108 = vcmask 293888
      %v2109 = vsel %vm2108, %v2106, %v2098
      %v2110 = vsel %vm2108, %v2107, %v2100
      %v2111 = vld [vmem:[%s571] sm:$0xff]
      %v2112 = vld [vmem:[%s571 + $0x8] sm:$0xff]
      %v2113 = vld [vmem:[%s571 + $0x10] sm:$0xff]
      %v2114 = vld [vmem:[%s571 + $0x18] sm:$0xff]
      %v2115 = vld [vmem:[%s571 + $0x20] sm:$0xff]
      %v2116 = vld [vmem:[%s571 + $0x28] sm:$0xff]
      %v2117 = vld [vmem:[%s574] sm:$0x1]
      %v2119 = vlaneseq
      %v2120 = vshrl.u32 %v2119, 7
      %v2121 = vsub.s32 0, %v2120
      %v2122 = vrot.slane %v2117, %v2121
      %v2126 = vcombine.low %v2109, %v2110
      %v2127 = vsel %vm612, %v2126, 0
      %2129 = vmatprep.subr.mxu0 0.0
      %2130 = vmatpush1.msra.mxu0 %v2111
      %2131 = vmatprep.subr.mxu0 0.0
      %2132 = vmatpush1.msra.mxu0 %v2112
      %2133 = vmatprep.subr.mxu0 0.0
      %2134 = vmatpush1.msra.mxu0 %v2113
      %2135 = vmatprep.subr.mxu0 0.0
      %2136 = vmatpush1.msra.mxu0 %v2114
      %2137 = vmatprep.subr.mxu0 0.0
      %2138 = vmatpush1.msra.mxu0 %v2115
      %2139 = vmatprep.subr.mxu0 0.0
      %2140 = vmatpush1.msra.mxu0 %v2116
      %2141 = vmatprep.subr.mxu0 0.0
      %2142 = vmatpush1.msra.mxu0 0.0
      %2143 = vmatprep.subr.mxu0 0.0
      %2144 = vmatpush1.msra.mxu0 0.0
      %2145 = vmatprep.subr.mxu0 0.0
      %2146 = vmatpush1.msra.mxu0 0.0
      %2147 = vmatprep.subr.mxu0 0.0
      %2148 = vmatpush1.msra.mxu0 0.0
      %2149 = vmatprep.subr.mxu0 0.0
      %2150 = vmatpush1.msra.mxu0 0.0
      %2151 = vmatprep.subr.mxu0 0.0
      %2152 = vmatpush1.msra.mxu0 0.0
      %2153 = vmatprep.subr.mxu0 0.0
      %2154 = vmatpush1.msra.mxu0 0.0
      %2155 = vmatprep.subr.mxu0 0.0
      %2156 = vmatpush1.msra.mxu0 0.0
      %2157 = vmatprep.subr.mxu0 0.0
      %2158 = vmatpush1.msra.mxu0 0.0
      %2159 = vmatprep.subr.mxu0 0.0
      %2160 = vmatpush1.msra.mxu0 0.0
      %2161 = vmatprep.subr.mxu0 0.0
      %2162 = vmatpush1.msra.mxu0 0.0
      %2163 = vmatprep.subr.mxu0 0.0
      %2164 = vmatpush1.msra.mxu0 0.0
      %2165 = vmatprep.subr.mxu0 0.0
      %2166 = vmatpush1.msra.mxu0 0.0
      %2167 = vmatprep.subr.mxu0 0.0
      %2168 = vmatpush1.msra.mxu0 0.0
      %2169 = vmatprep.subr.mxu0 0.0
      %2170 = vmatpush1.msra.mxu0 0.0
      %2171 = vmatprep.subr.mxu0 0.0
      %2172 = vmatpush1.msra.mxu0 0.0
      %2173 = vmatprep.subr.mxu0 0.0
      %2174 = vmatpush1.msra.mxu0 0.0
      %2175 = vmatprep.subr.mxu0 0.0
      %2176 = vmatpush1.msra.mxu0 0.0
      %2177 = vmatprep.subr.mxu0 0.0
      %2178 = vmatpush1.msra.mxu0 0.0
      %2179 = vmatprep.subr.mxu0 0.0
      %2180 = vmatpush1.msra.mxu0 0.0
      %2181 = vmatprep.subr.mxu0 0.0
      %2182 = vmatpush1.msra.mxu0 0.0
      %2183 = vmatprep.subr.mxu0 0.0
      %2184 = vmatpush1.msra.mxu0 0.0
      %2185 = vmatprep.subr.mxu0 0.0
      %2186 = vmatpush1.msra.mxu0 0.0
      %2187 = vmatprep.subr.mxu0 0.0
      %2188 = vmatpush1.msra.mxu0 0.0
      %2189 = vmatprep.subr.mxu0 0.0
      %2190 = vmatpush1.msra.mxu0 0.0
      %2191 = vmatprep.subr.mxu0 0.0
      %2192 = vmatpush1.msra.mxu0 0.0
      %2193 = vmatprep.mubr.f32.mxu0 0.0
      %2194 = vmatmul.mubr.f32.gmra.mrb[0].mxu0 %v2127
      %v2195 = vpop.f32.mrb[0].mxu0
      %v2196 = vadd.f32 %v2122, %v2195
      %v2197 = vpop.f32.mrb[0].mxu0
      %2198 = vdwg.mxu0
      %v2199 = vadd.f32 %v609, %v2196
      %v2200 = vld [vmem:[%s577] sm:$0x1]
      %v2201 = vld [vmem:[%s580] sm:$0x1]
      %v2202 = vsel %vm612, %v2199, 0.0
      %2203 = vadd.xlane.f32.xlu0 %v2202
      %v2204 = vpop.xlane.xlu0 %2203
      %v2205 = vmul.f32 %v2204, %v616
      %v2206 = vsub.f32 %v2199, %v2205
      %v2207 = vmul.f32 %v2206, %v2206
      %v2208 = vsel %vm612, %v2207, 0.0
      %2209 = vadd.xlane.f32.xlu0 %v2208
      %v2210 = vpop.xlane.xlu0 %2209
      %v2211 = vmul.f32 %v2210, %v616
      %v2212 = vadd.f32 %v2211, 1e-05
      %v2213 = vrsqrt.pop %v2212
      %v2214 = vmul.f32 %v2206, %v2213
      %v2216 = vlaneseq
      %v2217 = vshrl.u32 %v2216, 7
      %v2218 = vsub.s32 0, %v2217
      %v2219 = vrot.slane %v2200, %v2218
      %v2221 = vmul.f32 %v2214, %v2219
      %v2223 = vlaneseq
      %v2224 = vshrl.u32 %v2223, 7
      %v2225 = vsub.s32 0, %v2224
      %v2226 = vrot.slane %v2201, %v2225
      %v2228 = vadd.f32 %v2221, %v2226
      %v2229 = vld [vmem:[%s585] sm:$0xff]
      %v2230 = vld [vmem:[%s585 + $0x8] sm:$0xff]
      %v2231 = vld [vmem:[%s585 + $0x10] sm:$0xff]
      %v2232 = vld [vmem:[%s585 + $0x18] sm:$0xff]
      %v2233 = vld [vmem:[%s585 + $0x20] sm:$0xff]
      %v2234 = vld [vmem:[%s585 + $0x28] sm:$0xff]
      %v2235 = vld [vmem:[%s585 + $0x30] sm:$0xff]
      %v2236 = vld [vmem:[%s585 + $0x38] sm:$0xff]
      %v2237 = vld [vmem:[%s585 + $0x40] sm:$0xff]
      %v2238 = vld [vmem:[%s585 + $0x48] sm:$0xff]
      %v2239 = vld [vmem:[%s585 + $0x50] sm:$0xff]
      %v2240 = vld [vmem:[%s585 + $0x58] sm:$0xff]
      %v2241 = vld [vmem:[%s589] sm:$0x3]
      %v2243 = vlaneseq
      %v2244 = vshrl.u32 %v2243, 7
      %v2245 = vsub.s32 0, %v2244
      %v2246 = vrot.slane %v2241, %v2245
      %v2247 = vlaneseq
      %v2248 = vshrl.u32 %v2247, 7
      %v2249 = vsub.s32 1, %v2248
      %v2250 = vrot.slane %v2241, %v2249
      %v2254 = vsel %vm612, %v2228, 0
      %2256 = vmatprep.subr.mxu0 %v2230
      %2257 = vmatpush1.msra.mxu0 %v2229
      %2258 = vmatprep.subr.mxu0 %v2232
      %2259 = vmatpush1.msra.mxu0 %v2231
      %2260 = vmatprep.subr.mxu0 %v2234
      %2261 = vmatpush1.msra.mxu0 %v2233
      %2262 = vmatprep.subr.mxu0 %v2236
      %2263 = vmatpush1.msra.mxu0 %v2235
      %2264 = vmatprep.subr.mxu0 %v2238
      %2265 = vmatpush1.msra.mxu0 %v2237
      %2266 = vmatprep.subr.mxu0 %v2240
      %2267 = vmatpush1.msra.mxu0 %v2239
      %2268 = vmatprep.subr.mxu0 0.0
      %2269 = vmatpush1.msra.mxu0 0.0
      %2270 = vmatprep.subr.mxu0 0.0
      %2271 = vmatpush1.msra.mxu0 0.0
      %2272 = vmatprep.subr.mxu0 0.0
      %2273 = vmatpush1.msra.mxu0 0.0
      %2274 = vmatprep.subr.mxu0 0.0
      %2275 = vmatpush1.msra.mxu0 0.0
      %2276 = vmatprep.subr.mxu0 0.0
      %2277 = vmatpush1.msra.mxu0 0.0
      %2278 = vmatprep.subr.mxu0 0.0
      %2279 = vmatpush1.msra.mxu0 0.0
      %2280 = vmatprep.subr.mxu0 0.0
      %2281 = vmatpush1.msra.mxu0 0.0
      %2282 = vmatprep.subr.mxu0 0.0
      %2283 = vmatpush1.msra.mxu0 0.0
      %2284 = vmatprep.subr.mxu0 0.0
      %2285 = vmatpush1.msra.mxu0 0.0
      %2286 = vmatprep.subr.mxu0 0.0
      %2287 = vmatpush1.msra.mxu0 0.0
      %2288 = vmatprep.subr.mxu0 0.0
      %2289 = vmatpush1.msra.mxu0 0.0
      %2290 = vmatprep.subr.mxu0 0.0
      %2291 = vmatpush1.msra.mxu0 0.0
      %2292 = vmatprep.subr.mxu0 0.0
      %2293 = vmatpush1.msra.mxu0 0.0
      %2294 = vmatprep.subr.mxu0 0.0
      %2295 = vmatpush1.msra.mxu0 0.0
      %2296 = vmatprep.subr.mxu0 0.0
      %2297 = vmatpush1.msra.mxu0 0.0
      %2298 = vmatprep.subr.mxu0 0.0
      %2299 = vmatpush1.msra.mxu0 0.0
      %2300 = vmatprep.subr.mxu0 0.0
      %2301 = vmatpush1.msra.mxu0 0.0
      %2302 = vmatprep.subr.mxu0 0.0
      %2303 = vmatpush1.msra.mxu0 0.0
      %2304 = vmatprep.subr.mxu0 0.0
      %2305 = vmatpush1.msra.mxu0 0.0
      %2306 = vmatprep.subr.mxu0 0.0
      %2307 = vmatpush1.msra.mxu0 0.0
      %2308 = vmatprep.subr.mxu0 0.0
      %2309 = vmatpush1.msra.mxu0 0.0
      %2310 = vmatprep.subr.mxu0 0.0
      %2311 = vmatpush1.msra.mxu0 0.0
      %2312 = vmatprep.subr.mxu0 0.0
      %2313 = vmatpush1.msra.mxu0 0.0
      %2314 = vmatprep.subr.mxu0 0.0
      %2315 = vmatpush1.msra.mxu0 0.0
      %2316 = vmatprep.subr.mxu0 0.0
      %2317 = vmatpush1.msra.mxu0 0.0
      %2318 = vmatprep.subr.mxu0 0.0
      %2319 = vmatpush1.msra.mxu0 0.0
      %2320 = vmatprep.mubr.f32.mxu0 0.0
      %2321 = vmatmul.mubr.f32.gmra.mrb[0].mxu0 %v2254
      %v2322 = vpop.f32.mrb[0].mxu0
      %v2323 = vadd.f32 %v2246, %v2322
      %v2324 = vpop.f32.mrb[0].mxu0
      %v2325 = vadd.f32 %v2250, %v2324
      %2326 = vdwg.mxu0
      %v2327 = vmul.f32 %v2323, 0.5
      %v2328 = vmul.f32 %v2325, 0.5
      %v2329 = vmul.f32 %v2323, 0.70710677
      %v2330 = vmul.f32 %v2325, 0.70710677
      %v2331 = verf.f32.pop %v2329
      %v2332 = verf.f32.pop %v2330
      %v2333 = vadd.f32 %v2331, 1.0
      %v2334 = vadd.f32 %v2332, 1.0
      %v2335 = vmul.f32 %v2327, %v2333
      %v2336 = vmul.f32 %v2328, %v2334
      %v2337 = vld [vmem:[%s594] sm:$0xff]
      %v2338 = vld [vmem:[%s594 + $0x8] sm:$0xff]
      %v2339 = vld [vmem:[%s594 + $0x10] sm:$0xff]
      %v2340 = vld [vmem:[%s594 + $0x18] sm:$0xff]
      %v2341 = vld [vmem:[%s594 + $0x20] sm:$0xff]
      %v2342 = vld [vmem:[%s594 + $0x28] sm:$0xff]
      %v2343 = vld [vmem:[%s594 + $0x30] sm:$0xff]
      %v2344 = vld [vmem:[%s594 + $0x38] sm:$0xff]
      %v2345 = vld [vmem:[%s594 + $0x40] sm:$0xff]
      %v2346 = vld [vmem:[%s594 + $0x48] sm:$0xff]
      %v2347 = vld [vmem:[%s594 + $0x50] sm:$0xff]
      %v2348 = vld [vmem:[%s594 + $0x58] sm:$0xff]
      %v2349 = vld [vmem:[%s594 + $0x60] sm:$0xff]
      %v2350 = vld [vmem:[%s594 + $0x68] sm:$0xff]
      %v2351 = vld [vmem:[%s594 + $0x70] sm:$0xff]
      %v2352 = vld [vmem:[%s594 + $0x78] sm:$0xff]
      %v2353 = vld [vmem:[%s594 + $0x80] sm:$0xff]
      %v2354 = vld [vmem:[%s594 + $0x88] sm:$0xff]
      %v2355 = vld [vmem:[%s594 + $0x90] sm:$0xff]
      %v2356 = vld [vmem:[%s594 + $0x98] sm:$0xff]
      %v2357 = vld [vmem:[%s594 + $0xa0] sm:$0xff]
      %v2358 = vld [vmem:[%s594 + $0xa8] sm:$0xff]
      %v2359 = vld [vmem:[%s594 + $0xb0] sm:$0xff]
      %v2360 = vld [vmem:[%s594 + $0xb8] sm:$0xff]
      %v2361 = vld [vmem:[%s597] sm:$0x1]
      %v2363 = vlaneseq
      %v2364 = vshrl.u32 %v2363, 7
      %v2365 = vsub.s32 0, %v2364
      %v2366 = vrot.slane %v2361, %v2365
      %vm2368 = vcmask 523264
      %v2370 = vsel %vm2368, %v2336, 0
      %2372 = vmatprep.subr.mxu0 0.0
      %2373 = vmatpush1.msra.mxu0 %v2337
      %2374 = vmatprep.subr.mxu0 0.0
      %2375 = vmatpush1.msra.mxu0 %v2338
      %2376 = vmatprep.subr.mxu0 0.0
      %2377 = vmatpush1.msra.mxu0 %v2339
      %2378 = vmatprep.subr.mxu0 0.0
      %2379 = vmatpush1.msra.mxu0 %v2340
      %2380 = vmatprep.subr.mxu0 0.0
      %2381 = vmatpush1.msra.mxu0 %v2341
      %2382 = vmatprep.subr.mxu0 0.0
      %2383 = vmatpush1.msra.mxu0 %v2342
      %2384 = vmatprep.subr.mxu0 0.0
      %2385 = vmatpush1.msra.mxu0 %v2343
      %2386 = vmatprep.subr.mxu0 0.0
      %2387 = vmatpush1.msra.mxu0 %v2344
      %2388 = vmatprep.subr.mxu0 0.0
      %2389 = vmatpush1.msra.mxu0 %v2345
      %2390 = vmatprep.subr.mxu0 0.0
      %2391 = vmatpush1.msra.mxu0 %v2346
      %2392 = vmatprep.subr.mxu0 0.0
      %2393 = vmatpush1.msra.mxu0 %v2347
      %2394 = vmatprep.subr.mxu0 0.0
      %2395 = vmatpush1.msra.mxu0 %v2348
      %2396 = vmatprep.subr.mxu0 0.0
      %2397 = vmatpush1.msra.mxu0 %v2349
      %2398 = vmatprep.subr.mxu0 0.0
      %2399 = vmatpush1.msra.mxu0 %v2350
      %2400 = vmatprep.subr.mxu0 0.0
      %2401 = vmatpush1.msra.mxu0 %v2351
      %2402 = vmatprep.subr.mxu0 0.0
      %2403 = vmatpush1.msra.mxu0 %v2352
      %2404 = vmatprep.subr.mxu0 0.0
      %2405 = vmatpush1.msra.mxu0 %v2353
      %2406 = vmatprep.subr.mxu0 0.0
      %2407 = vmatpush1.msra.mxu0 %v2354
      %2408 = vmatprep.subr.mxu0 0.0
      %2409 = vmatpush1.msra.mxu0 %v2355
      %2410 = vmatprep.subr.mxu0 0.0
      %2411 = vmatpush1.msra.mxu0 %v2356
      %2412 = vmatprep.subr.mxu0 0.0
      %2413 = vmatpush1.msra.mxu0 %v2357
      %2414 = vmatprep.subr.mxu0 0.0
      %2415 = vmatpush1.msra.mxu0 %v2358
      %2416 = vmatprep.subr.mxu0 0.0
      %2417 = vmatpush1.msra.mxu0 %v2359
      %2418 = vmatprep.subr.mxu0 0.0
      %2419 = vmatpush1.msra.mxu0 %v2360
      %2420 = vmatprep.subr.mxu0 0.0
      %2421 = vmatpush1.msra.mxu0 0.0
      %2422 = vmatprep.subr.mxu0 0.0
      %2423 = vmatpush1.msra.mxu0 0.0
      %2424 = vmatprep.subr.mxu0 0.0
      %2425 = vmatpush1.msra.mxu0 0.0
      %2426 = vmatprep.subr.mxu0 0.0
      %2427 = vmatpush1.msra.mxu0 0.0
      %2428 = vmatprep.subr.mxu0 0.0
      %2429 = vmatpush1.msra.mxu0 0.0
      %2430 = vmatprep.subr.mxu0 0.0
      %2431 = vmatpush1.msra.mxu0 0.0
      %2432 = vmatprep.subr.mxu0 0.0
      %2433 = vmatpush1.msra.mxu0 0.0
      %2434 = vmatprep.subr.mxu0 0.0
      %2435 = vmatpush1.msra.mxu0 0.0
      %2436 = vmatprep.mubr.f32.mxu0 %v2370
      %2437 = vmatmul.mubr.f32.gmra.mrb[0].mxu0 %v2335
      %v2438 = vpop.f32.mrb[0].mxu0
      %v2439 = vadd.f32 %v2366, %v2438
      %v2440 = vpop.f32.mrb[0].mxu0
      %2441 = vdwg.mxu0
      %v2442 = vadd.f32 %v2199, %v2439
      %2443 = vst.msk [vmem:[#allocation2] sm:$0xff] %vm612, %v2442
      %p2444 = scmp.eq.s32.totalorder %s28, 1
      // Predicated region
      $region73: #{vision_transformer_forward.9} parent=67 // pred_check
        %p2445 = pneg %p2444
      $region74: #{vision_transformer_forward.9} parent=67 // pred_check_branch
        %2447 = sbr.rel (%p2445) target = $region76
      $region75: #{vision_transformer_forward.9} parent=67 // pred_region
        %2448 = vst.msk [vmem:[%s601] sm:$0xff] %vm612, %v2442
      $region76: #{vision_transformer_forward.9} parent=67 // pred_fallthru
        _
      %p2449 = scmp.lt.s32.totalorder %s27, 1
      %s2450 = scalar_select %p2449, %s27, 1
      %s2451 = smul.addr %s2450, 8
      %s2452 = scalar_lea.vmem %s12, %s2451
      // Predicated region
      $region77: #{vision_transformer_forward.9} parent=67 // pred_check
        %p2453 = pneg %p365
      $region78: #{vision_transformer_forward.9} parent=67 // pred_check_branch
        %2455 = sbr.rel (%p2453) target = $region80
      $region79: #{vision_transformer_forward.9} parent=67 // pred_region
        _
      $region80: #{vision_transformer_forward.9} parent=67 // pred_fallthru
        _
    $region68: #{vision_transformer_forward.9} parent=5 // pred_fallthru
      _
    %p2456 = scmp.le.s32.totalorder 2, %s18
    // Predicated region
    $region81: #{vision_transformer_forward.9} parent=5 // pred_check
      %p2457 = pneg %p2456
    $region82: #{vision_transformer_forward.9} parent=5 // pred_check_branch
      %2459 = sbr.rel (%p2457) target = $region84
    $region83: #{vision_transformer_forward.9} parent=5 // pred_region
      %s2460 = ssub.s32 %s18, 2
      // Predicated region
      $region85: #{vision_transformer_forward.9} parent=83 // pred_check
        %p2461 = pneg %p371
      $region86: #{vision_transformer_forward.9} parent=83 // pred_check_branch
        %2463 = sbr.rel (%p2461) target = $region88
      $region87: #{vision_transformer_forward.9} parent=83 // pred_region
        %p2464 = scmp.lt.s32.totalorder %s29, 1
        %s2465 = scalar_select %p2464, %s29, 1
        %s2466 = smul.addr %s2465, 8
        %s2467 = scalar_lea.vmem %s12, %s2466
      $region88: #{vision_transformer_forward.9} parent=83 // pred_fallthru
        _
    $region84: #{vision_transformer_forward.9} parent=5 // pred_fallthru
      _
  $region6: #{vision_transformer_forward.9} parent=0 // loop_footer
    %s22 = sadd.s32 1, %s18
  $region7: #{vision_transformer_forward.9} parent=0 // loop_footer_branch
    %17 = sbr.rel target = $region3
  $region8: #{vision_transformer_forward.9} parent=0 // loop_exit
    _

</llo_original>
